<compile_context>
chip_gen: v7x
topology: tpu7x:2x2x1
jax: 0.10.0
libtpu: 0.0.40
codegen_flags: <defaults>
</compile_context>

<pallas_src>
import functools

import jax
import jax.numpy as jnp
from jax.experimental import pallas as pl
from jax.experimental.pallas import tpu as pltpu

NEG_SLOPE = 0.1
C = 32  # SOL hidden width


def _lrelu(x):
    return jnp.where(x > 0, x, NEG_SLOPE * x)


# ---------------------------------------------------------------------------
# Fused kernel: conv1 + blocks 2,3,3,4(+residual),5 for one image.
# ---------------------------------------------------------------------------
def sol_fused_kernel(x_ref, w1_ref, b1_ref, w2_ref, w3_ref, w4_ref, w5_ref,
                     o_ref, act_ref, res_ref):
    # x_ref  : (1, H, W, C)        input, channels zero-padded 3 -> C
    # w1_ref : (9*C, C)    bf16    conv1 in im2col layout (zero rows for pad channels)
    # b1_ref : (1, C)      f32     conv1 bias
    # w*_ref : (9*C, Cout) bf16    depthwise(3x3) folded into pointwise(1x1)
    # o_ref  : (1, H, W, Cout5)
    # act_ref: VMEM (H+2, W+2, C) f32   zero-halo padded activation, reused per layer
    # res_ref: VMEM (H*W, C)      f32   conv1 output kept for the residual add
    _, H, W, _ = x_ref.shape
    Ck = act_ref.shape[-1]
    HW = H * W

    # Zero the halo once; every layer overwrites only the interior.
    act_ref[...] = jnp.zeros_like(act_ref)
    act_ref[1:H + 1, 1:W + 1, :] = x_ref[0].astype(act_ref.dtype)

    def patches():
        # im2col patch matrix (H*W, 9*C), tap-major / channel-minor, bf16 for the MXU.
        cols = []
        for t in range(9):
            dy, dx = t // 3, t % 3
            cols.append(act_ref[dy:dy + H, dx:dx + W, :].reshape(HW, Ck))
        return jnp.concatenate(cols, axis=1).astype(jnp.bfloat16)

    # conv1 (full 3x3, 3->32) as one K=9*C matmul + bias + LeakyReLU
    y = jnp.dot(patches(), w1_ref[...], preferred_element_type=jnp.float32)
    y = _lrelu(y + b1_ref[...])
    res_ref[...] = y
    act_ref[1:H + 1, 1:W + 1, :] = y.reshape(H, W, Ck)

    # blocks 2, 3, 3 (block 3 is applied twice, as in the PyTorch forward), 4(+res)
    for w_ref, add_res in ((w2_ref, False), (w3_ref, False),
                           (w3_ref, False), (w4_ref, True)):
        z = jnp.dot(patches(), w_ref[...], preferred_element_type=jnp.float32)
        z = _lrelu(z)
        if add_res:
            z = z + res_ref[...]       # residual added AFTER the LeakyReLU (PyTorch order)
        act_ref[1:H + 1, 1:W + 1, :] = z.reshape(H, W, Ck)

    # block 5: 32 -> n_colors*scale^2; the only HBM store of the network.
    z = jnp.dot(patches(), w5_ref[...], preferred_element_type=jnp.float32)
    z = _lrelu(z)
    o_ref[...] = z.reshape(1, H, W, o_ref.shape[-1]).astype(o_ref.dtype)


def sol_pallas_call(x_nhwc, w1, b1, wc2, wc3, wc4, wc5):
    N, H, W, Cp = x_nhwc.shape
    cout5 = wc5.shape[-1]
    return pl.pallas_call(
        sol_fused_kernel,
        out_shape=jax.ShapeDtypeStruct((N, H, W, cout5), jnp.float32),
        grid=(N,),
        in_specs=[
            pl.BlockSpec((1, H, W, Cp), lambda n: (n, 0, 0, 0)),
            pl.BlockSpec((9 * C, C), lambda n: (0, 0)),
            pl.BlockSpec((1, C), lambda n: (0, 0)),
            pl.BlockSpec((9 * C, C), lambda n: (0, 0)),
            pl.BlockSpec((9 * C, C), lambda n: (0, 0)),
            pl.BlockSpec((9 * C, C), lambda n: (0, 0)),
            pl.BlockSpec((9 * C, cout5), lambda n: (0, 0)),
        ],
        out_specs=pl.BlockSpec((1, H, W, cout5), lambda n: (n, 0, 0, 0)),
        scratch_shapes=[
            pltpu.VMEM((H + 2, W + 2, C), jnp.float32),   # padded activation
            pltpu.VMEM((H * W, C), jnp.float32),          # residual (conv1 output)
        ],
        compiler_params=pltpu.CompilerParams(
            dimension_semantics=("parallel",)),
    )(x_nhwc, w1, b1, wc2, wc3, wc4, wc5)


# ---------------------------------------------------------------------------
# Weight preparation
# ---------------------------------------------------------------------------
def _combine_dw_pw(dw, pw):
    # Exact fold of depthwise(3x3, no bias) followed by pointwise(1x1, no bias):
    # W[t*C + c, co] = dw[t, c] * pw[c, co]
    return (dw[:, :, None] * pw[None, :, :]).reshape(dw.shape[0] * dw.shape[1],
                                                     pw.shape[-1])


# ---------------------------------------------------------------------------
# Parameter construction (deterministic synthetic init, kaiming-like std)
# ---------------------------------------------------------------------------
def init_params(key, n_colors=3, scale=2):
    ks = jax.random.split(key, 12)
    c_out5 = n_colors * scale * scale

    def normal(k, shape, std):
        return std * jax.random.normal(k, shape, jnp.float32)

    return {
        # conv1: tap-major (9, Cin, Cout) with t = dy*3 + dx; bias (1, Cout)
        "w1": normal(ks[0], (9, 3, C), 1.0 / jnp.sqrt(27.0)),
        "b1": normal(ks[1], (1, C), 0.1),
        # depthwise weights (9, C): kaiming fan_in = 9
        "dw2": normal(ks[2], (9, C), jnp.sqrt(2.0 / 9.0)),
        "dw3": normal(ks[3], (9, C), jnp.sqrt(2.0 / 9.0)),
        "dw4": normal(ks[4], (9, C), jnp.sqrt(2.0 / 9.0)),
        "dw5": normal(ks[5], (9, C), jnp.sqrt(2.0 / 9.0)),
        # pointwise weights (Cin, Cout): kaiming fan_in = 32
        "pw2": normal(ks[6], (C, C), jnp.sqrt(2.0 / C)),
        "pw3": normal(ks[7], (C, C), jnp.sqrt(2.0 / C)),
        "pw4": normal(ks[8], (C, C), jnp.sqrt(2.0 / C)),
        "pw5": normal(ks[9], (C, c_out5), jnp.sqrt(2.0 / C)),
    }


# ---------------------------------------------------------------------------
# Full forward pass (matches PyTorch SOL.forward, incl. repeated block 3 and
# the post-ReLU residual add).  NCHW in, NCHW out.
# ---------------------------------------------------------------------------
@functools.partial(jax.jit, static_argnames=("n_colors", "scale"))
def sol_forward(x_nchw, params, n_colors=3, scale=2):
    N, Cin, H, W = x_nchw.shape
    r = scale

    # NCHW -> NHWC, zero-pad channels 3 -> 32 so conv1 shares the im2col path.
    x = jnp.transpose(x_nchw, (0, 2, 3, 1))
    x = jnp.pad(x, ((0, 0), (0, 0), (0, 0), (0, C - Cin)))

    # conv1 weight (9, Cin, C) embedded into the (9*C, C) im2col layout.
    w1 = jnp.zeros((9, C, C), jnp.float32).at[:, :Cin, :].set(params["w1"])
    w1 = w1.reshape(9 * C, C).astype(jnp.bfloat16)
    b1 = params["b1"].astype(jnp.float32)

    wc2 = _combine_dw_pw(params["dw2"], params["pw2"]).astype(jnp.bfloat16)
    wc3 = _combine_dw_pw(params["dw3"], params["pw3"]).astype(jnp.bfloat16)
    wc4 = _combine_dw_pw(params["dw4"], params["pw4"]).astype(jnp.bfloat16)
    wc5 = _combine_dw_pw(params["dw5"], params["pw5"]).astype(jnp.bfloat16)

    y = sol_pallas_call(x, w1, b1, wc2, wc3, wc4, wc5)   # (N, H, W, n_colors*r*r)

    # Pixel shuffle + NHWC -> NCHW:
    # out[n, c, h*r+i, w*r+j] = y[n, h, w, c*r*r + i*r + j]
    y = y.reshape(N, H, W, n_colors, r, r)
    y = jnp.transpose(y, (0, 3, 1, 4, 2, 5)).reshape(N, n_colors, H * r, W * r)
    return y


if __name__ == "__main__":
    key = jax.random.PRNGKey(0)
    k_params, k_x = jax.random.split(key)

    n_colors, scale = 3, 2
    params = init_params(k_params, n_colors=n_colors, scale=scale)

    # Input matches nn.Conv2d(3, 32, ...): NCHW with 3 channels.
    x = jax.random.normal(k_x, (2, 3, 16, 16), jnp.float32)

    out = sol_forward(x, params, n_colors=n_colors, scale=scale)
    out = jax.block_until_ready(out)

    expected_shape = (2, n_colors, 16 * scale, 16 * scale)
    assert out.shape == expected_shape, (out.shape, expected_shape)
    assert out.dtype == jnp.float32
    print("KERNEL_OK")
</pallas_src>

<mosaic_0001>
module attributes {stable_mosaic.version = 11 : i64} {
  func.func @sol_fused_kernel(%arg0: i32, %arg1: memref<1x16x16x32xf32, #tpu.memory_space<vmem>>, %arg2: memref<288x32xbf16, #tpu.memory_space<vmem>>, %arg3: memref<1x32xf32, #tpu.memory_space<vmem>>, %arg4: memref<288x32xbf16, #tpu.memory_space<vmem>>, %arg5: memref<288x32xbf16, #tpu.memory_space<vmem>>, %arg6: memref<288x32xbf16, #tpu.memory_space<vmem>>, %arg7: memref<288x12xbf16, #tpu.memory_space<vmem>>, %arg8: memref<1x16x16x12xf32, #tpu.memory_space<vmem>>, %arg9: memref<18x18x32xf32, #tpu.memory_space<vmem>>, %arg10: memref<256x32xf32, #tpu.memory_space<vmem>>) attributes {dimension_semantics = [#tpu.dimension_semantics<parallel>], iteration_bounds = array<i64: 2>, scalar_prefetch = 0 : i64, scratch_operands = 2 : i64, tpu.core_type = #tpu.core_type<tc>, window_params = [{transform_indices = @transform_0, window_bounds = array<i64: 1, 16, 16, 32>}, {pipeline_mode = #tpu.pipeline_mode<synchronous>, transform_indices = @transform_1, window_bounds = array<i64: 288, 32>}, {pipeline_mode = #tpu.pipeline_mode<synchronous>, transform_indices = @transform_2, window_bounds = array<i64: 1, 32>}, {pipeline_mode = #tpu.pipeline_mode<synchronous>, transform_indices = @transform_3, window_bounds = array<i64: 288, 32>}, {pipeline_mode = #tpu.pipeline_mode<synchronous>, transform_indices = @transform_4, window_bounds = array<i64: 288, 32>}, {pipeline_mode = #tpu.pipeline_mode<synchronous>, transform_indices = @transform_5, window_bounds = array<i64: 288, 32>}, {pipeline_mode = #tpu.pipeline_mode<synchronous>, transform_indices = @transform_6, window_bounds = array<i64: 288, 12>}, {transform_indices = @transform_7, window_bounds = array<i64: 1, 16, 16, 12>}]} {
    %cst = arith.constant 0.000000e+00 : f32
    %0 = vector.broadcast %cst : f32 to vector<18x18x32xf32>
    %c0 = arith.constant 0 : index
    %c0_0 = arith.constant 0 : index
    %c0_1 = arith.constant 0 : index
    %1 = vector.load %arg9[%c0, %c0_0, %c0_1] : memref<18x18x32xf32, #tpu.memory_space<vmem>>, vector<18x18x32xf32>
    tpu.vector_store %arg9[%c0, %c0_0, %c0_1], %0 {strides = array<i32>} : memref<18x18x32xf32, #tpu.memory_space<vmem>>, vector<18x18x32xf32>,
    %c0_2 = arith.constant 0 : index
    %c0_3 = arith.constant 0 : index
    %c0_4 = arith.constant 0 : index
    %c0_5 = arith.constant 0 : index
    %2 = vector.load %arg1[%c0_2, %c0_3, %c0_4, %c0_5] : memref<1x16x16x32xf32, #tpu.memory_space<vmem>>, vector<1x16x16x32xf32>
    %3 = vector.shape_cast %2 : vector<1x16x16x32xf32> to vector<16x16x32xf32>
    %c1 = arith.constant 1 : index
    %c1_6 = arith.constant 1 : index
    %c0_7 = arith.constant 0 : index
    %4 = vector.load %arg9[%c1, %c1_6, %c0_7] : memref<18x18x32xf32, #tpu.memory_space<vmem>>, vector<16x16x32xf32>
    tpu.vector_store %arg9[%c1, %c1_6, %c0_7], %3 {strides = array<i32>} : memref<18x18x32xf32, #tpu.memory_space<vmem>>, vector<16x16x32xf32>,
    %c0_8 = arith.constant 0 : index
    %c0_9 = arith.constant 0 : index
    %c0_10 = arith.constant 0 : index
    %5 = vector.load %arg9[%c0_8, %c0_9, %c0_10] : memref<18x18x32xf32, #tpu.memory_space<vmem>>, vector<16x16x32xf32>
    %6 = vector.shape_cast %5 : vector<16x16x32xf32> to vector<256x32xf32>
    %c0_11 = arith.constant 0 : index
    %c1_12 = arith.constant 1 : index
    %c0_13 = arith.constant 0 : index
    %7 = vector.load %arg9[%c0_11, %c1_12, %c0_13] : memref<18x18x32xf32, #tpu.memory_space<vmem>>, vector<16x16x32xf32>
    %8 = vector.shape_cast %7 : vector<16x16x32xf32> to vector<256x32xf32>
    %c0_14 = arith.constant 0 : index
    %c2 = arith.constant 2 : index
    %c0_15 = arith.constant 0 : index
    %9 = vector.load %arg9[%c0_14, %c2, %c0_15] : memref<18x18x32xf32, #tpu.memory_space<vmem>>, vector<16x16x32xf32>
    %10 = vector.shape_cast %9 : vector<16x16x32xf32> to vector<256x32xf32>
    %c1_16 = arith.constant 1 : index
    %c0_17 = arith.constant 0 : index
    %c0_18 = arith.constant 0 : index
    %11 = vector.load %arg9[%c1_16, %c0_17, %c0_18] : memref<18x18x32xf32, #tpu.memory_space<vmem>>, vector<16x16x32xf32>
    %12 = vector.shape_cast %11 : vector<16x16x32xf32> to vector<256x32xf32>
    %c1_19 = arith.constant 1 : index
    %c1_20 = arith.constant 1 : index
    %c0_21 = arith.constant 0 : index
    %13 = vector.load %arg9[%c1_19, %c1_20, %c0_21] : memref<18x18x32xf32, #tpu.memory_space<vmem>>, vector<16x16x32xf32>
    %14 = vector.shape_cast %13 : vector<16x16x32xf32> to vector<256x32xf32>
    %c1_22 = arith.constant 1 : index
    %c2_23 = arith.constant 2 : index
    %c0_24 = arith.constant 0 : index
    %15 = vector.load %arg9[%c1_22, %c2_23, %c0_24] : memref<18x18x32xf32, #tpu.memory_space<vmem>>, vector<16x16x32xf32>
    %16 = vector.shape_cast %15 : vector<16x16x32xf32> to vector<256x32xf32>
    %c2_25 = arith.constant 2 : index
    %c0_26 = arith.constant 0 : index
    %c0_27 = arith.constant 0 : index
    %17 = vector.load %arg9[%c2_25, %c0_26, %c0_27] : memref<18x18x32xf32, #tpu.memory_space<vmem>>, vector<16x16x32xf32>
    %18 = vector.shape_cast %17 : vector<16x16x32xf32> to vector<256x32xf32>
    %c2_28 = arith.constant 2 : index
    %c1_29 = arith.constant 1 : index
    %c0_30 = arith.constant 0 : index
    %19 = vector.load %arg9[%c2_28, %c1_29, %c0_30] : memref<18x18x32xf32, #tpu.memory_space<vmem>>, vector<16x16x32xf32>
    %20 = vector.shape_cast %19 : vector<16x16x32xf32> to vector<256x32xf32>
    %c2_31 = arith.constant 2 : index
    %c2_32 = arith.constant 2 : index
    %c0_33 = arith.constant 0 : index
    %21 = vector.load %arg9[%c2_31, %c2_32, %c0_33] : memref<18x18x32xf32, #tpu.memory_space<vmem>>, vector<16x16x32xf32>
    %22 = vector.shape_cast %21 : vector<16x16x32xf32> to vector<256x32xf32>
    %23 = tpu.concatenate %6, %8, %10, %12, %14, %16, %18, %20, %22 in 1 : vector<256x32xf32>, vector<256x32xf32>, vector<256x32xf32>, vector<256x32xf32>, vector<256x32xf32>, vector<256x32xf32>, vector<256x32xf32>, vector<256x32xf32>, vector<256x32xf32> -> vector<256x288xf32>
    %24 = arith.truncf %23 : vector<256x288xf32> to vector<256x288xbf16>
    %c0_34 = arith.constant 0 : index
    %c0_35 = arith.constant 0 : index
    %25 = vector.load %arg2[%c0_34, %c0_35] : memref<288x32xbf16, #tpu.memory_space<vmem>>, vector<288x32xbf16>
    %cst_36 = arith.constant dense<0.000000e+00> : vector<256x32xf32>
    %26 = tpu.matmul %24, %25, %cst_36 {dimension_numbers = #tpu.dot_dimension_numbers<[1], [0], [0], [1], [0, 0, 1, 1], [], []>} : vector<256x288xbf16>, vector<288x32xbf16>, vector<256x32xf32> -> vector<256x32xf32>
    %c0_37 = arith.constant 0 : index
    %c0_38 = arith.constant 0 : index
    %27 = vector.load %arg3[%c0_37, %c0_38] : memref<1x32xf32, #tpu.memory_space<vmem>>, vector<1x32xf32>
    %28 = vector.broadcast %27 : vector<1x32xf32> to vector<256x32xf32>
    %29 = arith.addf %26, %28 : vector<256x32xf32>
    %cst_39 = arith.constant 0.000000e+00 : f32
    %30 = vector.broadcast %cst_39 : f32 to vector<256x32xf32>
    %31 = arith.cmpf ogt, %29, %30 : vector<256x32xf32>
    %cst_40 = arith.constant 1.000000e-01 : f32
    %32 = vector.broadcast %cst_40 : f32 to vector<256x32xf32>
    %33 = arith.mulf %32, %29 : vector<256x32xf32>
    %34 = arith.select %31, %29, %33 : vector<256x32xi1>, vector<256x32xf32>
    %c0_41 = arith.constant 0 : index
    %c0_42 = arith.constant 0 : index
    %35 = vector.load %arg10[%c0_41, %c0_42] : memref<256x32xf32, #tpu.memory_space<vmem>>, vector<256x32xf32>
    tpu.vector_store %arg10[%c0_41, %c0_42], %34 {strides = array<i32>} : memref<256x32xf32, #tpu.memory_space<vmem>>, vector<256x32xf32>,
    %36 = vector.shape_cast %34 : vector<256x32xf32> to vector<16x16x32xf32>
    %c1_43 = arith.constant 1 : index
    %c1_44 = arith.constant 1 : index
    %c0_45 = arith.constant 0 : index
    %37 = vector.load %arg9[%c1_43, %c1_44, %c0_45] : memref<18x18x32xf32, #tpu.memory_space<vmem>>, vector<16x16x32xf32>
    tpu.vector_store %arg9[%c1_43, %c1_44, %c0_45], %36 {strides = array<i32>} : memref<18x18x32xf32, #tpu.memory_space<vmem>>, vector<16x16x32xf32>,
    %c0_46 = arith.constant 0 : index
    %c0_47 = arith.constant 0 : index
    %c0_48 = arith.constant 0 : index
    %38 = vector.load %arg9[%c0_46, %c0_47, %c0_48] : memref<18x18x32xf32, #tpu.memory_space<vmem>>, vector<16x16x32xf32>
    %39 = vector.shape_cast %38 : vector<16x16x32xf32> to vector<256x32xf32>
    %c0_49 = arith.constant 0 : index
    %c1_50 = arith.constant 1 : index
    %c0_51 = arith.constant 0 : index
    %40 = vector.load %arg9[%c0_49, %c1_50, %c0_51] : memref<18x18x32xf32, #tpu.memory_space<vmem>>, vector<16x16x32xf32>
    %41 = vector.shape_cast %40 : vector<16x16x32xf32> to vector<256x32xf32>
    %c0_52 = arith.constant 0 : index
    %c2_53 = arith.constant 2 : index
    %c0_54 = arith.constant 0 : index
    %42 = vector.load %arg9[%c0_52, %c2_53, %c0_54] : memref<18x18x32xf32, #tpu.memory_space<vmem>>, vector<16x16x32xf32>
    %43 = vector.shape_cast %42 : vector<16x16x32xf32> to vector<256x32xf32>
    %c1_55 = arith.constant 1 : index
    %c0_56 = arith.constant 0 : index
    %c0_57 = arith.constant 0 : index
    %44 = vector.load %arg9[%c1_55, %c0_56, %c0_57] : memref<18x18x32xf32, #tpu.memory_space<vmem>>, vector<16x16x32xf32>
    %45 = vector.shape_cast %44 : vector<16x16x32xf32> to vector<256x32xf32>
    %c1_58 = arith.constant 1 : index
    %c1_59 = arith.constant 1 : index
    %c0_60 = arith.constant 0 : index
    %46 = vector.load %arg9[%c1_58, %c1_59, %c0_60] : memref<18x18x32xf32, #tpu.memory_space<vmem>>, vector<16x16x32xf32>
    %47 = vector.shape_cast %46 : vector<16x16x32xf32> to vector<256x32xf32>
    %c1_61 = arith.constant 1 : index
    %c2_62 = arith.constant 2 : index
    %c0_63 = arith.constant 0 : index
    %48 = vector.load %arg9[%c1_61, %c2_62, %c0_63] : memref<18x18x32xf32, #tpu.memory_space<vmem>>, vector<16x16x32xf32>
    %49 = vector.shape_cast %48 : vector<16x16x32xf32> to vector<256x32xf32>
    %c2_64 = arith.constant 2 : index
    %c0_65 = arith.constant 0 : index
    %c0_66 = arith.constant 0 : index
    %50 = vector.load %arg9[%c2_64, %c0_65, %c0_66] : memref<18x18x32xf32, #tpu.memory_space<vmem>>, vector<16x16x32xf32>
    %51 = vector.shape_cast %50 : vector<16x16x32xf32> to vector<256x32xf32>
    %c2_67 = arith.constant 2 : index
    %c1_68 = arith.constant 1 : index
    %c0_69 = arith.constant 0 : index
    %52 = vector.load %arg9[%c2_67, %c1_68, %c0_69] : memref<18x18x32xf32, #tpu.memory_space<vmem>>, vector<16x16x32xf32>
    %53 = vector.shape_cast %52 : vector<16x16x32xf32> to vector<256x32xf32>
    %c2_70 = arith.constant 2 : index
    %c2_71 = arith.constant 2 : index
    %c0_72 = arith.constant 0 : index
    %54 = vector.load %arg9[%c2_70, %c2_71, %c0_72] : memref<18x18x32xf32, #tpu.memory_space<vmem>>, vector<16x16x32xf32>
    %55 = vector.shape_cast %54 : vector<16x16x32xf32> to vector<256x32xf32>
    %56 = tpu.concatenate %39, %41, %43, %45, %47, %49, %51, %53, %55 in 1 : vector<256x32xf32>, vector<256x32xf32>, vector<256x32xf32>, vector<256x32xf32>, vector<256x32xf32>, vector<256x32xf32>, vector<256x32xf32>, vector<256x32xf32>, vector<256x32xf32> -> vector<256x288xf32>
    %57 = arith.truncf %56 : vector<256x288xf32> to vector<256x288xbf16>
    %c0_73 = arith.constant 0 : index
    %c0_74 = arith.constant 0 : index
    %58 = vector.load %arg4[%c0_73, %c0_74] : memref<288x32xbf16, #tpu.memory_space<vmem>>, vector<288x32xbf16>
    %cst_75 = arith.constant dense<0.000000e+00> : vector<256x32xf32>
    %59 = tpu.matmul %57, %58, %cst_75 {dimension_numbers = #tpu.dot_dimension_numbers<[1], [0], [0], [1], [0, 0, 1, 1], [], []>} : vector<256x288xbf16>, vector<288x32xbf16>, vector<256x32xf32> -> vector<256x32xf32>
    %cst_76 = arith.constant 0.000000e+00 : f32
    %60 = vector.broadcast %cst_76 : f32 to vector<256x32xf32>
    %61 = arith.cmpf ogt, %59, %60 : vector<256x32xf32>
    %cst_77 = arith.constant 1.000000e-01 : f32
    %62 = vector.broadcast %cst_77 : f32 to vector<256x32xf32>
    %63 = arith.mulf %62, %59 : vector<256x32xf32>
    %64 = arith.select %61, %59, %63 : vector<256x32xi1>, vector<256x32xf32>
    %65 = vector.shape_cast %64 : vector<256x32xf32> to vector<16x16x32xf32>
    %c1_78 = arith.constant 1 : index
    %c1_79 = arith.constant 1 : index
    %c0_80 = arith.constant 0 : index
    %66 = vector.load %arg9[%c1_78, %c1_79, %c0_80] : memref<18x18x32xf32, #tpu.memory_space<vmem>>, vector<16x16x32xf32>
    tpu.vector_store %arg9[%c1_78, %c1_79, %c0_80], %65 {strides = array<i32>} : memref<18x18x32xf32, #tpu.memory_space<vmem>>, vector<16x16x32xf32>,
    %c0_81 = arith.constant 0 : index
    %c0_82 = arith.constant 0 : index
    %c0_83 = arith.constant 0 : index
    %67 = vector.load %arg9[%c0_81, %c0_82, %c0_83] : memref<18x18x32xf32, #tpu.memory_space<vmem>>, vector<16x16x32xf32>
    %68 = vector.shape_cast %67 : vector<16x16x32xf32> to vector<256x32xf32>
    %c0_84 = arith.constant 0 : index
    %c1_85 = arith.constant 1 : index
    %c0_86 = arith.constant 0 : index
    %69 = vector.load %arg9[%c0_84, %c1_85, %c0_86] : memref<18x18x32xf32, #tpu.memory_space<vmem>>, vector<16x16x32xf32>
    %70 = vector.shape_cast %69 : vector<16x16x32xf32> to vector<256x32xf32>
    %c0_87 = arith.constant 0 : index
    %c2_88 = arith.constant 2 : index
    %c0_89 = arith.constant 0 : index
    %71 = vector.load %arg9[%c0_87, %c2_88, %c0_89] : memref<18x18x32xf32, #tpu.memory_space<vmem>>, vector<16x16x32xf32>
    %72 = vector.shape_cast %71 : vector<16x16x32xf32> to vector<256x32xf32>
    %c1_90 = arith.constant 1 : index
    %c0_91 = arith.constant 0 : index
    %c0_92 = arith.constant 0 : index
    %73 = vector.load %arg9[%c1_90, %c0_91, %c0_92] : memref<18x18x32xf32, #tpu.memory_space<vmem>>, vector<16x16x32xf32>
    %74 = vector.shape_cast %73 : vector<16x16x32xf32> to vector<256x32xf32>
    %c1_93 = arith.constant 1 : index
    %c1_94 = arith.constant 1 : index
    %c0_95 = arith.constant 0 : index
    %75 = vector.load %arg9[%c1_93, %c1_94, %c0_95] : memref<18x18x32xf32, #tpu.memory_space<vmem>>, vector<16x16x32xf32>
    %76 = vector.shape_cast %75 : vector<16x16x32xf32> to vector<256x32xf32>
    %c1_96 = arith.constant 1 : index
    %c2_97 = arith.constant 2 : index
    %c0_98 = arith.constant 0 : index
    %77 = vector.load %arg9[%c1_96, %c2_97, %c0_98] : memref<18x18x32xf32, #tpu.memory_space<vmem>>, vector<16x16x32xf32>
    %78 = vector.shape_cast %77 : vector<16x16x32xf32> to vector<256x32xf32>
    %c2_99 = arith.constant 2 : index
    %c0_100 = arith.constant 0 : index
    %c0_101 = arith.constant 0 : index
    %79 = vector.load %arg9[%c2_99, %c0_100, %c0_101] : memref<18x18x32xf32, #tpu.memory_space<vmem>>, vector<16x16x32xf32>
    %80 = vector.shape_cast %79 : vector<16x16x32xf32> to vector<256x32xf32>
    %c2_102 = arith.constant 2 : index
    %c1_103 = arith.constant 1 : index
    %c0_104 = arith.constant 0 : index
    %81 = vector.load %arg9[%c2_102, %c1_103, %c0_104] : memref<18x18x32xf32, #tpu.memory_space<vmem>>, vector<16x16x32xf32>
    %82 = vector.shape_cast %81 : vector<16x16x32xf32> to vector<256x32xf32>
    %c2_105 = arith.constant 2 : index
    %c2_106 = arith.constant 2 : index
    %c0_107 = arith.constant 0 : index
    %83 = vector.load %arg9[%c2_105, %c2_106, %c0_107] : memref<18x18x32xf32, #tpu.memory_space<vmem>>, vector<16x16x32xf32>
    %84 = vector.shape_cast %83 : vector<16x16x32xf32> to vector<256x32xf32>
    %85 = tpu.concatenate %68, %70, %72, %74, %76, %78, %80, %82, %84 in 1 : vector<256x32xf32>, vector<256x32xf32>, vector<256x32xf32>, vector<256x32xf32>, vector<256x32xf32>, vector<256x32xf32>, vector<256x32xf32>, vector<256x32xf32>, vector<256x32xf32> -> vector<256x288xf32>
    %86 = arith.truncf %85 : vector<256x288xf32> to vector<256x288xbf16>
    %c0_108 = arith.constant 0 : index
    %c0_109 = arith.constant 0 : index
    %87 = vector.load %arg5[%c0_108, %c0_109] : memref<288x32xbf16, #tpu.memory_space<vmem>>, vector<288x32xbf16>
    %cst_110 = arith.constant dense<0.000000e+00> : vector<256x32xf32>
    %88 = tpu.matmul %86, %87, %cst_110 {dimension_numbers = #tpu.dot_dimension_numbers<[1], [0], [0], [1], [0, 0, 1, 1], [], []>} : vector<256x288xbf16>, vector<288x32xbf16>, vector<256x32xf32> -> vector<256x32xf32>
    %cst_111 = arith.constant 0.000000e+00 : f32
    %89 = vector.broadcast %cst_111 : f32 to vector<256x32xf32>
    %90 = arith.cmpf ogt, %88, %89 : vector<256x32xf32>
    %cst_112 = arith.constant 1.000000e-01 : f32
    %91 = vector.broadcast %cst_112 : f32 to vector<256x32xf32>
    %92 = arith.mulf %91, %88 : vector<256x32xf32>
    %93 = arith.select %90, %88, %92 : vector<256x32xi1>, vector<256x32xf32>
    %94 = vector.shape_cast %93 : vector<256x32xf32> to vector<16x16x32xf32>
    %c1_113 = arith.constant 1 : index
    %c1_114 = arith.constant 1 : index
    %c0_115 = arith.constant 0 : index
    %95 = vector.load %arg9[%c1_113, %c1_114, %c0_115] : memref<18x18x32xf32, #tpu.memory_space<vmem>>, vector<16x16x32xf32>
    tpu.vector_store %arg9[%c1_113, %c1_114, %c0_115], %94 {strides = array<i32>} : memref<18x18x32xf32, #tpu.memory_space<vmem>>, vector<16x16x32xf32>,
    %c0_116 = arith.constant 0 : index
    %c0_117 = arith.constant 0 : index
    %c0_118 = arith.constant 0 : index
    %96 = vector.load %arg9[%c0_116, %c0_117, %c0_118] : memref<18x18x32xf32, #tpu.memory_space<vmem>>, vector<16x16x32xf32>
    %97 = vector.shape_cast %96 : vector<16x16x32xf32> to vector<256x32xf32>
    %c0_119 = arith.constant 0 : index
    %c1_120 = arith.constant 1 : index
    %c0_121 = arith.constant 0 : index
    %98 = vector.load %arg9[%c0_119, %c1_120, %c0_121] : memref<18x18x32xf32, #tpu.memory_space<vmem>>, vector<16x16x32xf32>
    %99 = vector.shape_cast %98 : vector<16x16x32xf32> to vector<256x32xf32>
    %c0_122 = arith.constant 0 : index
    %c2_123 = arith.constant 2 : index
    %c0_124 = arith.constant 0 : index
    %100 = vector.load %arg9[%c0_122, %c2_123, %c0_124] : memref<18x18x32xf32, #tpu.memory_space<vmem>>, vector<16x16x32xf32>
    %101 = vector.shape_cast %100 : vector<16x16x32xf32> to vector<256x32xf32>
    %c1_125 = arith.constant 1 : index
    %c0_126 = arith.constant 0 : index
    %c0_127 = arith.constant 0 : index
    %102 = vector.load %arg9[%c1_125, %c0_126, %c0_127] : memref<18x18x32xf32, #tpu.memory_space<vmem>>, vector<16x16x32xf32>
    %103 = vector.shape_cast %102 : vector<16x16x32xf32> to vector<256x32xf32>
    %c1_128 = arith.constant 1 : index
    %c1_129 = arith.constant 1 : index
    %c0_130 = arith.constant 0 : index
    %104 = vector.load %arg9[%c1_128, %c1_129, %c0_130] : memref<18x18x32xf32, #tpu.memory_space<vmem>>, vector<16x16x32xf32>
    %105 = vector.shape_cast %104 : vector<16x16x32xf32> to vector<256x32xf32>
    %c1_131 = arith.constant 1 : index
    %c2_132 = arith.constant 2 : index
    %c0_133 = arith.constant 0 : index
    %106 = vector.load %arg9[%c1_131, %c2_132, %c0_133] : memref<18x18x32xf32, #tpu.memory_space<vmem>>, vector<16x16x32xf32>
    %107 = vector.shape_cast %106 : vector<16x16x32xf32> to vector<256x32xf32>
    %c2_134 = arith.constant 2 : index
    %c0_135 = arith.constant 0 : index
    %c0_136 = arith.constant 0 : index
    %108 = vector.load %arg9[%c2_134, %c0_135, %c0_136] : memref<18x18x32xf32, #tpu.memory_space<vmem>>, vector<16x16x32xf32>
    %109 = vector.shape_cast %108 : vector<16x16x32xf32> to vector<256x32xf32>
    %c2_137 = arith.constant 2 : index
    %c1_138 = arith.constant 1 : index
    %c0_139 = arith.constant 0 : index
    %110 = vector.load %arg9[%c2_137, %c1_138, %c0_139] : memref<18x18x32xf32, #tpu.memory_space<vmem>>, vector<16x16x32xf32>
    %111 = vector.shape_cast %110 : vector<16x16x32xf32> to vector<256x32xf32>
    %c2_140 = arith.constant 2 : index
    %c2_141 = arith.constant 2 : index
    %c0_142 = arith.constant 0 : index
    %112 = vector.load %arg9[%c2_140, %c2_141, %c0_142] : memref<18x18x32xf32, #tpu.memory_space<vmem>>, vector<16x16x32xf32>
    %113 = vector.shape_cast %112 : vector<16x16x32xf32> to vector<256x32xf32>
    %114 = tpu.concatenate %97, %99, %101, %103, %105, %107, %109, %111, %113 in 1 : vector<256x32xf32>, vector<256x32xf32>, vector<256x32xf32>, vector<256x32xf32>, vector<256x32xf32>, vector<256x32xf32>, vector<256x32xf32>, vector<256x32xf32>, vector<256x32xf32> -> vector<256x288xf32>
    %115 = arith.truncf %114 : vector<256x288xf32> to vector<256x288xbf16>
    %c0_143 = arith.constant 0 : index
    %c0_144 = arith.constant 0 : index
    %116 = vector.load %arg5[%c0_143, %c0_144] : memref<288x32xbf16, #tpu.memory_space<vmem>>, vector<288x32xbf16>
    %cst_145 = arith.constant dense<0.000000e+00> : vector<256x32xf32>
    %117 = tpu.matmul %115, %116, %cst_145 {dimension_numbers = #tpu.dot_dimension_numbers<[1], [0], [0], [1], [0, 0, 1, 1], [], []>} : vector<256x288xbf16>, vector<288x32xbf16>, vector<256x32xf32> -> vector<256x32xf32>
    %cst_146 = arith.constant 0.000000e+00 : f32
    %118 = vector.broadcast %cst_146 : f32 to vector<256x32xf32>
    %119 = arith.cmpf ogt, %117, %118 : vector<256x32xf32>
    %cst_147 = arith.constant 1.000000e-01 : f32
    %120 = vector.broadcast %cst_147 : f32 to vector<256x32xf32>
    %121 = arith.mulf %120, %117 : vector<256x32xf32>
    %122 = arith.select %119, %117, %121 : vector<256x32xi1>, vector<256x32xf32>
    %123 = vector.shape_cast %122 : vector<256x32xf32> to vector<16x16x32xf32>
    %c1_148 = arith.constant 1 : index
    %c1_149 = arith.constant 1 : index
    %c0_150 = arith.constant 0 : index
    %124 = vector.load %arg9[%c1_148, %c1_149, %c0_150] : memref<18x18x32xf32, #tpu.memory_space<vmem>>, vector<16x16x32xf32>
    tpu.vector_store %arg9[%c1_148, %c1_149, %c0_150], %123 {strides = array<i32>} : memref<18x18x32xf32, #tpu.memory_space<vmem>>, vector<16x16x32xf32>,
    %c0_151 = arith.constant 0 : index
    %c0_152 = arith.constant 0 : index
    %c0_153 = arith.constant 0 : index
    %125 = vector.load %arg9[%c0_151, %c0_152, %c0_153] : memref<18x18x32xf32, #tpu.memory_space<vmem>>, vector<16x16x32xf32>
    %126 = vector.shape_cast %125 : vector<16x16x32xf32> to vector<256x32xf32>
    %c0_154 = arith.constant 0 : index
    %c1_155 = arith.constant 1 : index
    %c0_156 = arith.constant 0 : index
    %127 = vector.load %arg9[%c0_154, %c1_155, %c0_156] : memref<18x18x32xf32, #tpu.memory_space<vmem>>, vector<16x16x32xf32>
    %128 = vector.shape_cast %127 : vector<16x16x32xf32> to vector<256x32xf32>
    %c0_157 = arith.constant 0 : index
    %c2_158 = arith.constant 2 : index
    %c0_159 = arith.constant 0 : index
    %129 = vector.load %arg9[%c0_157, %c2_158, %c0_159] : memref<18x18x32xf32, #tpu.memory_space<vmem>>, vector<16x16x32xf32>
    %130 = vector.shape_cast %129 : vector<16x16x32xf32> to vector<256x32xf32>
    %c1_160 = arith.constant 1 : index
    %c0_161 = arith.constant 0 : index
    %c0_162 = arith.constant 0 : index
    %131 = vector.load %arg9[%c1_160, %c0_161, %c0_162] : memref<18x18x32xf32, #tpu.memory_space<vmem>>, vector<16x16x32xf32>
    %132 = vector.shape_cast %131 : vector<16x16x32xf32> to vector<256x32xf32>
    %c1_163 = arith.constant 1 : index
    %c1_164 = arith.constant 1 : index
    %c0_165 = arith.constant 0 : index
    %133 = vector.load %arg9[%c1_163, %c1_164, %c0_165] : memref<18x18x32xf32, #tpu.memory_space<vmem>>, vector<16x16x32xf32>
    %134 = vector.shape_cast %133 : vector<16x16x32xf32> to vector<256x32xf32>
    %c1_166 = arith.constant 1 : index
    %c2_167 = arith.constant 2 : index
    %c0_168 = arith.constant 0 : index
    %135 = vector.load %arg9[%c1_166, %c2_167, %c0_168] : memref<18x18x32xf32, #tpu.memory_space<vmem>>, vector<16x16x32xf32>
    %136 = vector.shape_cast %135 : vector<16x16x32xf32> to vector<256x32xf32>
    %c2_169 = arith.constant 2 : index
    %c0_170 = arith.constant 0 : index
    %c0_171 = arith.constant 0 : index
    %137 = vector.load %arg9[%c2_169, %c0_170, %c0_171] : memref<18x18x32xf32, #tpu.memory_space<vmem>>, vector<16x16x32xf32>
    %138 = vector.shape_cast %137 : vector<16x16x32xf32> to vector<256x32xf32>
    %c2_172 = arith.constant 2 : index
    %c1_173 = arith.constant 1 : index
    %c0_174 = arith.constant 0 : index
    %139 = vector.load %arg9[%c2_172, %c1_173, %c0_174] : memref<18x18x32xf32, #tpu.memory_space<vmem>>, vector<16x16x32xf32>
    %140 = vector.shape_cast %139 : vector<16x16x32xf32> to vector<256x32xf32>
    %c2_175 = arith.constant 2 : index
    %c2_176 = arith.constant 2 : index
    %c0_177 = arith.constant 0 : index
    %141 = vector.load %arg9[%c2_175, %c2_176, %c0_177] : memref<18x18x32xf32, #tpu.memory_space<vmem>>, vector<16x16x32xf32>
    %142 = vector.shape_cast %141 : vector<16x16x32xf32> to vector<256x32xf32>
    %143 = tpu.concatenate %126, %128, %130, %132, %134, %136, %138, %140, %142 in 1 : vector<256x32xf32>, vector<256x32xf32>, vector<256x32xf32>, vector<256x32xf32>, vector<256x32xf32>, vector<256x32xf32>, vector<256x32xf32>, vector<256x32xf32>, vector<256x32xf32> -> vector<256x288xf32>
    %144 = arith.truncf %143 : vector<256x288xf32> to vector<256x288xbf16>
    %c0_178 = arith.constant 0 : index
    %c0_179 = arith.constant 0 : index
    %145 = vector.load %arg6[%c0_178, %c0_179] : memref<288x32xbf16, #tpu.memory_space<vmem>>, vector<288x32xbf16>
    %cst_180 = arith.constant dense<0.000000e+00> : vector<256x32xf32>
    %146 = tpu.matmul %144, %145, %cst_180 {dimension_numbers = #tpu.dot_dimension_numbers<[1], [0], [0], [1], [0, 0, 1, 1], [], []>} : vector<256x288xbf16>, vector<288x32xbf16>, vector<256x32xf32> -> vector<256x32xf32>
    %cst_181 = arith.constant 0.000000e+00 : f32
    %147 = vector.broadcast %cst_181 : f32 to vector<256x32xf32>
    %148 = arith.cmpf ogt, %146, %147 : vector<256x32xf32>
    %cst_182 = arith.constant 1.000000e-01 : f32
    %149 = vector.broadcast %cst_182 : f32 to vector<256x32xf32>
    %150 = arith.mulf %149, %146 : vector<256x32xf32>
    %151 = arith.select %148, %146, %150 : vector<256x32xi1>, vector<256x32xf32>
    %c0_183 = arith.constant 0 : index
    %c0_184 = arith.constant 0 : index
    %152 = vector.load %arg10[%c0_183, %c0_184] : memref<256x32xf32, #tpu.memory_space<vmem>>, vector<256x32xf32>
    %153 = arith.addf %151, %152 : vector<256x32xf32>
    %154 = vector.shape_cast %153 : vector<256x32xf32> to vector<16x16x32xf32>
    %c1_185 = arith.constant 1 : index
    %c1_186 = arith.constant 1 : index
    %c0_187 = arith.constant 0 : index
    %155 = vector.load %arg9[%c1_185, %c1_186, %c0_187] : memref<18x18x32xf32, #tpu.memory_space<vmem>>, vector<16x16x32xf32>
    tpu.vector_store %arg9[%c1_185, %c1_186, %c0_187], %154 {strides = array<i32>} : memref<18x18x32xf32, #tpu.memory_space<vmem>>, vector<16x16x32xf32>,
    %c0_188 = arith.constant 0 : index
    %c0_189 = arith.constant 0 : index
    %c0_190 = arith.constant 0 : index
    %156 = vector.load %arg9[%c0_188, %c0_189, %c0_190] : memref<18x18x32xf32, #tpu.memory_space<vmem>>, vector<16x16x32xf32>
    %157 = vector.shape_cast %156 : vector<16x16x32xf32> to vector<256x32xf32>
    %c0_191 = arith.constant 0 : index
    %c1_192 = arith.constant 1 : index
    %c0_193 = arith.constant 0 : index
    %158 = vector.load %arg9[%c0_191, %c1_192, %c0_193] : memref<18x18x32xf32, #tpu.memory_space<vmem>>, vector<16x16x32xf32>
    %159 = vector.shape_cast %158 : vector<16x16x32xf32> to vector<256x32xf32>
    %c0_194 = arith.constant 0 : index
    %c2_195 = arith.constant 2 : index
    %c0_196 = arith.constant 0 : index
    %160 = vector.load %arg9[%c0_194, %c2_195, %c0_196] : memref<18x18x32xf32, #tpu.memory_space<vmem>>, vector<16x16x32xf32>
    %161 = vector.shape_cast %160 : vector<16x16x32xf32> to vector<256x32xf32>
    %c1_197 = arith.constant 1 : index
    %c0_198 = arith.constant 0 : index
    %c0_199 = arith.constant 0 : index
    %162 = vector.load %arg9[%c1_197, %c0_198, %c0_199] : memref<18x18x32xf32, #tpu.memory_space<vmem>>, vector<16x16x32xf32>
    %163 = vector.shape_cast %162 : vector<16x16x32xf32> to vector<256x32xf32>
    %c1_200 = arith.constant 1 : index
    %c1_201 = arith.constant 1 : index
    %c0_202 = arith.constant 0 : index
    %164 = vector.load %arg9[%c1_200, %c1_201, %c0_202] : memref<18x18x32xf32, #tpu.memory_space<vmem>>, vector<16x16x32xf32>
    %165 = vector.shape_cast %164 : vector<16x16x32xf32> to vector<256x32xf32>
    %c1_203 = arith.constant 1 : index
    %c2_204 = arith.constant 2 : index
    %c0_205 = arith.constant 0 : index
    %166 = vector.load %arg9[%c1_203, %c2_204, %c0_205] : memref<18x18x32xf32, #tpu.memory_space<vmem>>, vector<16x16x32xf32>
    %167 = vector.shape_cast %166 : vector<16x16x32xf32> to vector<256x32xf32>
    %c2_206 = arith.constant 2 : index
    %c0_207 = arith.constant 0 : index
    %c0_208 = arith.constant 0 : index
    %168 = vector.load %arg9[%c2_206, %c0_207, %c0_208] : memref<18x18x32xf32, #tpu.memory_space<vmem>>, vector<16x16x32xf32>
    %169 = vector.shape_cast %168 : vector<16x16x32xf32> to vector<256x32xf32>
    %c2_209 = arith.constant 2 : index
    %c1_210 = arith.constant 1 : index
    %c0_211 = arith.constant 0 : index
    %170 = vector.load %arg9[%c2_209, %c1_210, %c0_211] : memref<18x18x32xf32, #tpu.memory_space<vmem>>, vector<16x16x32xf32>
    %171 = vector.shape_cast %170 : vector<16x16x32xf32> to vector<256x32xf32>
    %c2_212 = arith.constant 2 : index
    %c2_213 = arith.constant 2 : index
    %c0_214 = arith.constant 0 : index
    %172 = vector.load %arg9[%c2_212, %c2_213, %c0_214] : memref<18x18x32xf32, #tpu.memory_space<vmem>>, vector<16x16x32xf32>
    %173 = vector.shape_cast %172 : vector<16x16x32xf32> to vector<256x32xf32>
    %174 = tpu.concatenate %157, %159, %161, %163, %165, %167, %169, %171, %173 in 1 : vector<256x32xf32>, vector<256x32xf32>, vector<256x32xf32>, vector<256x32xf32>, vector<256x32xf32>, vector<256x32xf32>, vector<256x32xf32>, vector<256x32xf32>, vector<256x32xf32> -> vector<256x288xf32>
    %175 = arith.truncf %174 : vector<256x288xf32> to vector<256x288xbf16>
    %c0_215 = arith.constant 0 : index
    %c0_216 = arith.constant 0 : index
    %176 = vector.load %arg7[%c0_215, %c0_216] : memref<288x12xbf16, #tpu.memory_space<vmem>>, vector<288x12xbf16>
    %cst_217 = arith.constant dense<0.000000e+00> : vector<256x12xf32>
    %177 = tpu.matmul %175, %176, %cst_217 {dimension_numbers = #tpu.dot_dimension_numbers<[1], [0], [0], [1], [0, 0, 1, 1], [], []>} : vector<256x288xbf16>, vector<288x12xbf16>, vector<256x12xf32> -> vector<256x12xf32>
    %cst_218 = arith.constant 0.000000e+00 : f32
    %178 = vector.broadcast %cst_218 : f32 to vector<256x12xf32>
    %179 = arith.cmpf ogt, %177, %178 : vector<256x12xf32>
    %cst_219 = arith.constant 1.000000e-01 : f32
    %180 = vector.broadcast %cst_219 : f32 to vector<256x12xf32>
    %181 = arith.mulf %180, %177 : vector<256x12xf32>
    %182 = arith.select %179, %177, %181 : vector<256x12xi1>, vector<256x12xf32>
    %183 = vector.shape_cast %182 : vector<256x12xf32> to vector<1x16x16x12xf32>
    %c0_220 = arith.constant 0 : index
    %c0_221 = arith.constant 0 : index
    %c0_222 = arith.constant 0 : index
    %c0_223 = arith.constant 0 : index
    %184 = vector.load %arg8[%c0_220, %c0_221, %c0_222, %c0_223] : memref<1x16x16x12xf32, #tpu.memory_space<vmem>>, vector<1x16x16x12xf32>
    tpu.vector_store %arg8[%c0_220, %c0_221, %c0_222, %c0_223], %183 {strides = array<i32>} : memref<1x16x16x12xf32, #tpu.memory_space<vmem>>, vector<1x16x16x12xf32>,
    return
  }
  func.func @transform_0(%arg0: i32) -> (i32, i32, i32, i32) {
    %c0_i32 = arith.constant 0 : i32
    %c0_i32_0 = arith.constant 0 : i32
    %c0_i32_1 = arith.constant 0 : i32
    %c0_i32_2 = arith.constant 0 : i32
    return %arg0, %c0_i32, %c0_i32_0, %c0_i32_1 : i32, i32, i32, i32
  }
  func.func @transform_1(%arg0: i32) -> (i32, i32) {
    %c0_i32 = arith.constant 0 : i32
    %c0_i32_0 = arith.constant 0 : i32
    %c0_i32_1 = arith.constant 0 : i32
    return %c0_i32, %c0_i32_0 : i32, i32
  }
  func.func @transform_2(%arg0: i32) -> (i32, i32) {
    %c0_i32 = arith.constant 0 : i32
    %c0_i32_0 = arith.constant 0 : i32
    %c0_i32_1 = arith.constant 0 : i32
    return %c0_i32, %c0_i32_0 : i32, i32
  }
  func.func @transform_3(%arg0: i32) -> (i32, i32) {
    %c0_i32 = arith.constant 0 : i32
    %c0_i32_0 = arith.constant 0 : i32
    %c0_i32_1 = arith.constant 0 : i32
    return %c0_i32, %c0_i32_0 : i32, i32
  }
  func.func @transform_4(%arg0: i32) -> (i32, i32) {
    %c0_i32 = arith.constant 0 : i32
    %c0_i32_0 = arith.constant 0 : i32
    %c0_i32_1 = arith.constant 0 : i32
    return %c0_i32, %c0_i32_0 : i32, i32
  }
  func.func @transform_5(%arg0: i32) -> (i32, i32) {
    %c0_i32 = arith.constant 0 : i32
    %c0_i32_0 = arith.constant 0 : i32
    %c0_i32_1 = arith.constant 0 : i32
    return %c0_i32, %c0_i32_0 : i32, i32
  }
  func.func @transform_6(%arg0: i32) -> (i32, i32) {
    %c0_i32 = arith.constant 0 : i32
    %c0_i32_0 = arith.constant 0 : i32
    %c0_i32_1 = arith.constant 0 : i32
    return %c0_i32, %c0_i32_0 : i32, i32
  }
  func.func @transform_7(%arg0: i32) -> (i32, i32, i32, i32) {
    %c0_i32 = arith.constant 0 : i32
    %c0_i32_0 = arith.constant 0 : i32
    %c0_i32_1 = arith.constant 0 : i32
    %c0_i32_2 = arith.constant 0 : i32
    return %arg0, %c0_i32, %c0_i32_0, %c0_i32_1 : i32, i32, i32, i32
  }
}

</mosaic_0001>

<llo_original>
// kernel: sol_forward.1
$region0: #{sol_forward.1}
  #allocation0 [shape = 'u32[]', space=smem, size = 0x4, offset = 0x4, fixed_abs, tag = 'smem constant byte address 0x4 - core index']
  #allocation1 [shape = 'u32[144,128]{1,0:T(1,128)}', space=vmem, size = 0x12000, scoped, tag = 'internal scratch']
  #allocation2 [shape = 'f32[18,18,32]{2,1,0:T(8,128)}', space=vmem, size = 0x36000, scoped, tag = 'scratch operand']
  #allocation3 [shape = 'f32[256,32]{1,0:T(8,128)}', space=vmem, size = 0x20000, scoped, tag = 'scratch operand']
  %s0 = inlined_call_operand.vmem [shape: f32[2,16,16,32], index: 0, kind: input, shape index: {}]
  %s1 = inlined_call_operand.vmem [shape: bf16[288,32], index: 1, kind: input, shape index: {}]
  %s2 = inlined_call_operand.vmem [shape: f32[1,32], index: 2, kind: input, shape index: {}]
  %s3 = inlined_call_operand.vmem [shape: bf16[288,32], index: 3, kind: input, shape index: {}]
  %s4 = inlined_call_operand.vmem [shape: bf16[288,32], index: 4, kind: input, shape index: {}]
  %s5 = inlined_call_operand.vmem [shape: bf16[288,32], index: 5, kind: input, shape index: {}]
  %s6 = inlined_call_operand.vmem [shape: bf16[288,12], index: 6, kind: input, shape index: {}]
  %s7 = inlined_call_operand.vmem [shape: f32[2,16,16,12], index: 7, kind: output, shape index: {}]
  %s8 = sld [smem:[#allocation0]]
  $region61: #{sol_forward.1} parent=0
    _
  %s10 = ssub.s32 1, %s8
  %s11 = scalar_select 0, %s10, %s8
  loop: start=0, step=1, limit=4
  $region2: #{sol_forward.1} parent=0 // loop_pre_header
    _
  $region3: #{sol_forward.1} parent=0 // loop_header
    %s13 = sphi 0, %s17
    %p14 = scmp.ge.s32.totalorder %s13, 4
    %s23 = sphi 0, %s25
    %s26 = sphi 0, %s23
    %s27 = sphi 0, %s26
    %s43 = sphi 0, %s27
    %s47 = sphi 0, %s47
    %s49 = sphi 0, %s47
    %s50 = sphi 0, %s49
    %s64 = sphi 0, %s50
    %s68 = sphi 0, %s68
    %s70 = sphi 0, %s68
    %s71 = sphi 0, %s70
    %s85 = sphi 0, %s71
    %s89 = sphi 0, %s89
    %s91 = sphi 0, %s89
    %s92 = sphi 0, %s91
    %s106 = sphi 0, %s92
    %s110 = sphi 0, %s110
    %s112 = sphi 0, %s110
    %s113 = sphi 0, %s112
    %s127 = sphi 0, %s113
    %s131 = sphi 0, %s131
    %s133 = sphi 0, %s131
    %s134 = sphi 0, %s133
    %s148 = sphi 0, %s134
    %s152 = sphi 0, %s152
    %s154 = sphi 0, %s152
    %s155 = sphi 0, %s154
    %s169 = sphi 0, %s155
    %s175 = sphi 0, %s177
    %s178 = sphi 0, %s175
    %s179 = sphi 0, %s178
    %s195 = sphi 0, %s179
  $region4: #{sol_forward.1} parent=0 // loop_header_branch
    %16 = sbr.rel (%p14) target = $region8
  $region5: #{sol_forward.1} parent=0 // loop_body
    %s18 = ssub.s32 %s13, 1
    %s19 = ssub.s32 %s13, 2
    %s20 = sadd.s32 %s13, 1
    %s21 = ssub.s32 %s13, %s20
    %p22 = scmp.eq.s32.totalorder %s21, 0
    %s24 = sadd.s32 %s23, 1
    %s25 = scalar_select %p22, %s23, %s24
    %p28 = pneg %p22
    %p29 = scmp.eq.s32.totalorder %s13, 1
    %p30 = por %p28, %p29
    %p31 = scmp.ne.s32.totalorder %s23, %s26
    %p32 = scmp.eq.s32.totalorder %s13, 0
    %p33 = por %p31, %p32
    %p34 = scmp.ne.s32.totalorder %s23, %s26
    %p35 = scmp.eq.s32.totalorder %s18, 1
    %p36 = por %p34, %p35
    %p37 = scmp.ne.s32.totalorder %s26, %s27
    %p38 = scmp.eq.s32.totalorder %s18, 0
    %p39 = por %p37, %p38
    %p40 = scmp.ne.s32.totalorder %s26, %s27
    %p41 = scmp.eq.s32.totalorder %s19, 1
    %p42 = por %p40, %p41
    %p44 = scmp.ne.s32.totalorder %s27, %s43
    %p45 = scmp.eq.s32.totalorder %s19, 0
    %p46 = por %p44, %p45
    %s48 = sadd.s32 %s47, 1
    %p51 = scmp.eq.s32.totalorder %s13, 1
    %p52 = scmp.ne.s32.totalorder %s47, %s49
    %p53 = scmp.eq.s32.totalorder %s13, 0
    %p54 = por %p52, %p53
    %p55 = scmp.ne.s32.totalorder %s47, %s49
    %p56 = scmp.eq.s32.totalorder %s18, 1
    %p57 = por %p55, %p56
    %p58 = scmp.ne.s32.totalorder %s49, %s50
    %p59 = scmp.eq.s32.totalorder %s18, 0
    %p60 = por %p58, %p59
    %p61 = scmp.ne.s32.totalorder %s49, %s50
    %p62 = scmp.eq.s32.totalorder %s19, 1
    %p63 = por %p61, %p62
    %p65 = scmp.ne.s32.totalorder %s50, %s64
    %p66 = scmp.eq.s32.totalorder %s19, 0
    %p67 = por %p65, %p66
    %s69 = sadd.s32 %s68, 1
    %p72 = scmp.eq.s32.totalorder %s13, 1
    %p73 = scmp.ne.s32.totalorder %s68, %s70
    %p74 = scmp.eq.s32.totalorder %s13, 0
    %p75 = por %p73, %p74
    %p76 = scmp.ne.s32.totalorder %s68, %s70
    %p77 = scmp.eq.s32.totalorder %s18, 1
    %p78 = por %p76, %p77
    %p79 = scmp.ne.s32.totalorder %s70, %s71
    %p80 = scmp.eq.s32.totalorder %s18, 0
    %p81 = por %p79, %p80
    %p82 = scmp.ne.s32.totalorder %s70, %s71
    %p83 = scmp.eq.s32.totalorder %s19, 1
    %p84 = por %p82, %p83
    %p86 = scmp.ne.s32.totalorder %s71, %s85
    %p87 = scmp.eq.s32.totalorder %s19, 0
    %p88 = por %p86, %p87
    %s90 = sadd.s32 %s89, 1
    %p93 = scmp.eq.s32.totalorder %s13, 1
    %p94 = scmp.ne.s32.totalorder %s89, %s91
    %p95 = scmp.eq.s32.totalorder %s13, 0
    %p96 = por %p94, %p95
    %p97 = scmp.ne.s32.totalorder %s89, %s91
    %p98 = scmp.eq.s32.totalorder %s18, 1
    %p99 = por %p97, %p98
    %p100 = scmp.ne.s32.totalorder %s91, %s92
    %p101 = scmp.eq.s32.totalorder %s18, 0
    %p102 = por %p100, %p101
    %p103 = scmp.ne.s32.totalorder %s91, %s92
    %p104 = scmp.eq.s32.totalorder %s19, 1
    %p105 = por %p103, %p104
    %p107 = scmp.ne.s32.totalorder %s92, %s106
    %p108 = scmp.eq.s32.totalorder %s19, 0
    %p109 = por %p107, %p108
    %s111 = sadd.s32 %s110, 1
    %p114 = scmp.eq.s32.totalorder %s13, 1
    %p115 = scmp.ne.s32.totalorder %s110, %s112
    %p116 = scmp.eq.s32.totalorder %s13, 0
    %p117 = por %p115, %p116
    %p118 = scmp.ne.s32.totalorder %s110, %s112
    %p119 = scmp.eq.s32.totalorder %s18, 1
    %p120 = por %p118, %p119
    %p121 = scmp.ne.s32.totalorder %s112, %s113
    %p122 = scmp.eq.s32.totalorder %s18, 0
    %p123 = por %p121, %p122
    %p124 = scmp.ne.s32.totalorder %s112, %s113
    %p125 = scmp.eq.s32.totalorder %s19, 1
    %p126 = por %p124, %p125
    %p128 = scmp.ne.s32.totalorder %s113, %s127
    %p129 = scmp.eq.s32.totalorder %s19, 0
    %p130 = por %p128, %p129
    %s132 = sadd.s32 %s131, 1
    %p135 = scmp.eq.s32.totalorder %s13, 1
    %p136 = scmp.ne.s32.totalorder %s131, %s133
    %p137 = scmp.eq.s32.totalorder %s13, 0
    %p138 = por %p136, %p137
    %p139 = scmp.ne.s32.totalorder %s131, %s133
    %p140 = scmp.eq.s32.totalorder %s18, 1
    %p141 = por %p139, %p140
    %p142 = scmp.ne.s32.totalorder %s133, %s134
    %p143 = scmp.eq.s32.totalorder %s18, 0
    %p144 = por %p142, %p143
    %p145 = scmp.ne.s32.totalorder %s133, %s134
    %p146 = scmp.eq.s32.totalorder %s19, 1
    %p147 = por %p145, %p146
    %p149 = scmp.ne.s32.totalorder %s134, %s148
    %p150 = scmp.eq.s32.totalorder %s19, 0
    %p151 = por %p149, %p150
    %s153 = sadd.s32 %s152, 1
    %p156 = scmp.eq.s32.totalorder %s13, 1
    %p157 = scmp.ne.s32.totalorder %s152, %s154
    %p158 = scmp.eq.s32.totalorder %s13, 0
    %p159 = por %p157, %p158
    %p160 = scmp.ne.s32.totalorder %s152, %s154
    %p161 = scmp.eq.s32.totalorder %s18, 1
    %p162 = por %p160, %p161
    %p163 = scmp.ne.s32.totalorder %s154, %s155
    %p164 = scmp.eq.s32.totalorder %s18, 0
    %p165 = por %p163, %p164
    %p166 = scmp.ne.s32.totalorder %s154, %s155
    %p167 = scmp.eq.s32.totalorder %s19, 1
    %p168 = por %p166, %p167
    %p170 = scmp.ne.s32.totalorder %s155, %s169
    %p171 = scmp.eq.s32.totalorder %s19, 0
    %p172 = por %p170, %p171
    %s173 = ssub.s32 %s13, %s20
    %p174 = scmp.eq.s32.totalorder %s173, 0
    %s176 = sadd.s32 %s175, 1
    %s177 = scalar_select %p174, %s175, %s176
    %p180 = pneg %p174
    %p181 = scmp.eq.s32.totalorder %s13, 1
    %p182 = por %p180, %p181
    %p183 = scmp.ne.s32.totalorder %s175, %s178
    %p184 = scmp.eq.s32.totalorder %s13, 0
    %p185 = por %p183, %p184
    %p186 = scmp.ne.s32.totalorder %s175, %s178
    %p187 = scmp.eq.s32.totalorder %s18, 1
    %p188 = por %p186, %p187
    %p189 = scmp.ne.s32.totalorder %s178, %s179
    %p190 = scmp.eq.s32.totalorder %s18, 0
    %p191 = por %p189, %p190
    %p192 = scmp.ne.s32.totalorder %s178, %s179
    %p193 = scmp.eq.s32.totalorder %s19, 1
    %p194 = por %p192, %p193
    %p196 = scmp.ne.s32.totalorder %s179, %s195
    %p197 = scmp.eq.s32.totalorder %s19, 0
    %p198 = por %p196, %p197
    %p199 = scmp.le.s32.totalorder 1, %s13
    %p200 = scmp.lt.s32.totalorder %s13, 3
    %p201 = pnand %p199, %p200
    %p202 = pneg %p201
    // Predicated region
    $region9: #{sol_forward.1} parent=5 // pred_check
      _
    $region10: #{sol_forward.1} parent=5 // pred_check_branch
      %204 = sbr.rel (%p201) target = $region12
    $region11: #{sol_forward.1} parent=5 // pred_region
      %s205 = ssub.s32 %s13, 1
      // Predicated region
      $region13: #{sol_forward.1} parent=11 // pred_check
        %p206 = pneg %p60
      $region14: #{sol_forward.1} parent=11 // pred_check_branch
        %208 = sbr.rel (%p206) target = $region16
      $region15: #{sol_forward.1} parent=11 // pred_region
        _
      $region16: #{sol_forward.1} parent=11 // pred_fallthru
        _
      // Predicated region
      $region17: #{sol_forward.1} parent=11 // pred_check
        %p209 = pneg %p81
      $region18: #{sol_forward.1} parent=11 // pred_check_branch
        %211 = sbr.rel (%p209) target = $region20
      $region19: #{sol_forward.1} parent=11 // pred_region
        _
      $region20: #{sol_forward.1} parent=11 // pred_fallthru
        _
      // Predicated region
      $region21: #{sol_forward.1} parent=11 // pred_check
        %p212 = pneg %p102
      $region22: #{sol_forward.1} parent=11 // pred_check_branch
        %214 = sbr.rel (%p212) target = $region24
      $region23: #{sol_forward.1} parent=11 // pred_region
        _
      $region24: #{sol_forward.1} parent=11 // pred_fallthru
        _
      // Predicated region
      $region25: #{sol_forward.1} parent=11 // pred_check
        %p215 = pneg %p123
      $region26: #{sol_forward.1} parent=11 // pred_check_branch
        %217 = sbr.rel (%p215) target = $region28
      $region27: #{sol_forward.1} parent=11 // pred_region
        _
      $region28: #{sol_forward.1} parent=11 // pred_fallthru
        _
      // Predicated region
      $region29: #{sol_forward.1} parent=11 // pred_check
        %p218 = pneg %p144
      $region30: #{sol_forward.1} parent=11 // pred_check_branch
        %220 = sbr.rel (%p218) target = $region32
      $region31: #{sol_forward.1} parent=11 // pred_region
        _
      $region32: #{sol_forward.1} parent=11 // pred_fallthru
        _
      // Predicated region
      $region33: #{sol_forward.1} parent=11 // pred_check
        %p221 = pneg %p165
      $region34: #{sol_forward.1} parent=11 // pred_check_branch
        %223 = sbr.rel (%p221) target = $region36
      $region35: #{sol_forward.1} parent=11 // pred_region
        _
      $region36: #{sol_forward.1} parent=11 // pred_fallthru
        _
    $region12: #{sol_forward.1} parent=5 // pred_fallthru
      _
    %p224 = scmp.lt.s32.totalorder %s13, 2
    // Predicated region
    $region37: #{sol_forward.1} parent=5 // pred_check
      %p225 = pneg %p224
    $region38: #{sol_forward.1} parent=5 // pred_check_branch
      %227 = sbr.rel (%p225) target = $region40
    $region39: #{sol_forward.1} parent=5 // pred_region
      // Predicated region
      $region41: #{sol_forward.1} parent=39 // pred_check
        %p228 = pneg %p33
      $region42: #{sol_forward.1} parent=39 // pred_check_branch
        %230 = sbr.rel (%p228) target = $region44
      $region43: #{sol_forward.1} parent=39 // pred_region
        %p231 = scmp.lt.s32.totalorder %s13, 1
        %s232 = scalar_select %p231, %s13, 1
        %s233 = smul.addr %s232, 32
        %s234 = smul.addr %s233, 8
        %s235 = scalar_lea.vmem %s0, %s234
      $region44: #{sol_forward.1} parent=39 // pred_fallthru
        _
    $region40: #{sol_forward.1} parent=5 // pred_fallthru
      _
    %p236 = scmp.le.s32.totalorder 1, %s13
    %p237 = scmp.lt.s32.totalorder %s13, 3
    %p238 = pnand %p236, %p237
    %p239 = pneg %p238
    // Predicated region
    $region45: #{sol_forward.1} parent=5 // pred_check
      _
    $region46: #{sol_forward.1} parent=5 // pred_check_branch
      %241 = sbr.rel (%p238) target = $region48
    $region47: #{sol_forward.1} parent=5 // pred_region
      %s242 = ssub.s32 %s13, 1
      %p243 = scmp.lt.s32.totalorder %s18, 1
      %s244 = scalar_select %p243, %s18, 1
      %s245 = smul.addr %s244, 32
      %s246 = smul.addr %s245, 8
      %s247 = scalar_lea.vmem %s0, %s246
      %p248 = pneg %p39
      %p249 = pneg %p36
      %p250 = pneg %p60
      %p251 = pneg %p57
      %p252 = pneg %p81
      %p253 = pneg %p78
      %p254 = pneg %p102
      %p255 = pneg %p99
      %p256 = pneg %p123
      %p257 = pneg %p120
      %p258 = pneg %p144
      %p259 = pneg %p141
      %p260 = pneg %p165
      %p261 = pneg %p162
      %p262 = pneg %p191
      %p263 = pneg %p188
      %p264 = scmp.lt.s32.totalorder %s18, 1
      %s265 = scalar_select %p264, %s18, 1
      %s266 = smul.addr %s265, 32
      %s267 = smul.addr %s266, 8
      %s268 = scalar_lea.vmem %s7, %s267
      %p269 = scmp.lt.s32.totalorder %s18, 1
      %s270 = scalar_select %p269, %s18, 1
      %s271 = smul.addr %s270, 32
      %s272 = smul.addr %s271, 8
      %s273 = scalar_lea.vmem %s0, %s272
      %p274 = scmp.lt.s32.totalorder %s18, 1
      %s275 = scalar_select %p274, %s18, 1
      %s276 = smul.addr %s275, 32
      %s277 = smul.addr %s276, 8
      %s278 = scalar_lea.vmem %s7, %s277
      %vm280 = vcmask 261120
      %281 = vst.msk [vmem:[#allocation2] sm:$0xff] %vm280, 0.0
      %282 = vst.msk [vmem:[#allocation2 + $0x8] sm:$0xff] %vm280, 0.0
      %vm283 = vcmask 254976
      %284 = vst.msk [vmem:[#allocation2 + $0x10] sm:$0x3] %vm283, 0.0
      %285 = vst.msk [vmem:[#allocation2 + $0x18] sm:$0xff] %vm280, 0.0
      %286 = vst.msk [vmem:[#allocation2 + $0x20] sm:$0xff] %vm280, 0.0
      %287 = vst.msk [vmem:[#allocation2 + $0x28] sm:$0x3] %vm283, 0.0
      %288 = vst.msk [vmem:[#allocation2 + $0x30] sm:$0xff] %vm280, 0.0
      %289 = vst.msk [vmem:[#allocation2 + $0x38] sm:$0xff] %vm280, 0.0
      %290 = vst.msk [vmem:[#allocation2 + $0x40] sm:$0x3] %vm283, 0.0
      %291 = vst.msk [vmem:[#allocation2 + $0x48] sm:$0xff] %vm280, 0.0
      %292 = vst.msk [vmem:[#allocation2 + $0x50] sm:$0xff] %vm280, 0.0
      %293 = vst.msk [vmem:[#allocation2 + $0x58] sm:$0x3] %vm283, 0.0
      %294 = vst.msk [vmem:[#allocation2 + $0x60] sm:$0xff] %vm280, 0.0
      %295 = vst.msk [vmem:[#allocation2 + $0x68] sm:$0xff] %vm280, 0.0
      %296 = vst.msk [vmem:[#allocation2 + $0x70] sm:$0x3] %vm283, 0.0
      %297 = vst.msk [vmem:[#allocation2 + $0x78] sm:$0xff] %vm280, 0.0
      %298 = vst.msk [vmem:[#allocation2 + $0x80] sm:$0xff] %vm280, 0.0
      %299 = vst.msk [vmem:[#allocation2 + $0x88] sm:$0x3] %vm283, 0.0
      %300 = vst.msk [vmem:[#allocation2 + $0x90] sm:$0xff] %vm280, 0.0
      %301 = vst.msk [vmem:[#allocation2 + $0x98] sm:$0xff] %vm280, 0.0
      %302 = vst.msk [vmem:[#allocation2 + $0xa0] sm:$0x3] %vm283, 0.0
      %303 = vst.msk [vmem:[#allocation2 + $0xa8] sm:$0xff] %vm280, 0.0
      %304 = vst.msk [vmem:[#allocation2 + $0xb0] sm:$0xff] %vm280, 0.0
      %305 = vst.msk [vmem:[#allocation2 + $0xb8] sm:$0x3] %vm283, 0.0
      %306 = vst.msk [vmem:[#allocation2 + $0xc0] sm:$0xff] %vm280, 0.0
      %307 = vst.msk [vmem:[#allocation2 + $0xc8] sm:$0xff] %vm280, 0.0
      %308 = vst.msk [vmem:[#allocation2 + $0xd0] sm:$0x3] %vm283, 0.0
      %309 = vst.msk [vmem:[#allocation2 + $0xd8] sm:$0xff] %vm280, 0.0
      %310 = vst.msk [vmem:[#allocation2 + $0xe0] sm:$0xff] %vm280, 0.0
      %311 = vst.msk [vmem:[#allocation2 + $0xe8] sm:$0x3] %vm283, 0.0
      %312 = vst.msk [vmem:[#allocation2 + $0xf0] sm:$0xff] %vm280, 0.0
      %313 = vst.msk [vmem:[#allocation2 + $0xf8] sm:$0xff] %vm280, 0.0
      %314 = vst.msk [vmem:[#allocation2 + $0x100] sm:$0x3] %vm283, 0.0
      %315 = vst.msk [vmem:[#allocation2 + $0x108] sm:$0xff] %vm280, 0.0
      %316 = vst.msk [vmem:[#allocation2 + $0x110] sm:$0xff] %vm280, 0.0
      %317 = vst.msk [vmem:[#allocation2 + $0x118] sm:$0x3] %vm283, 0.0
      %318 = vst.msk [vmem:[#allocation2 + $0x120] sm:$0xff] %vm280, 0.0
      %319 = vst.msk [vmem:[#allocation2 + $0x128] sm:$0xff] %vm280, 0.0
      %320 = vst.msk [vmem:[#allocation2 + $0x130] sm:$0x3] %vm283, 0.0
      %321 = vst.msk [vmem:[#allocation2 + $0x138] sm:$0xff] %vm280, 0.0
      %322 = vst.msk [vmem:[#allocation2 + $0x140] sm:$0xff] %vm280, 0.0
      %323 = vst.msk [vmem:[#allocation2 + $0x148] sm:$0x3] %vm283, 0.0
      %324 = vst.msk [vmem:[#allocation2 + $0x150] sm:$0xff] %vm280, 0.0
      %325 = vst.msk [vmem:[#allocation2 + $0x158] sm:$0xff] %vm280, 0.0
      %326 = vst.msk [vmem:[#allocation2 + $0x160] sm:$0x3] %vm283, 0.0
      %327 = vst.msk [vmem:[#allocation2 + $0x168] sm:$0xff] %vm280, 0.0
      %328 = vst.msk [vmem:[#allocation2 + $0x170] sm:$0xff] %vm280, 0.0
      %329 = vst.msk [vmem:[#allocation2 + $0x178] sm:$0x3] %vm283, 0.0
      %330 = vst.msk [vmem:[#allocation2 + $0x180] sm:$0xff] %vm280, 0.0
      %331 = vst.msk [vmem:[#allocation2 + $0x188] sm:$0xff] %vm280, 0.0
      %332 = vst.msk [vmem:[#allocation2 + $0x190] sm:$0x3] %vm283, 0.0
      %333 = vst.msk [vmem:[#allocation2 + $0x198] sm:$0xff] %vm280, 0.0
      %334 = vst.msk [vmem:[#allocation2 + $0x1a0] sm:$0xff] %vm280, 0.0
      %335 = vst.msk [vmem:[#allocation2 + $0x1a8] sm:$0x3] %vm283, 0.0
      %v336 = vld [vmem:[%s273] sm:$0xff]
      %v337 = vld [vmem:[%s273 + $0x8] sm:$0xff]
      %v338 = vld [vmem:[%s273 + $0x10] sm:$0xff]
      %v339 = vld [vmem:[%s273 + $0x18] sm:$0xff]
      %v340 = vld [vmem:[%s273 + $0x20] sm:$0xff]
      %v341 = vld [vmem:[%s273 + $0x28] sm:$0xff]
      %v342 = vld [vmem:[%s273 + $0x30] sm:$0xff]
      %v343 = vld [vmem:[%s273 + $0x38] sm:$0xff]
      %v344 = vld [vmem:[%s273 + $0x40] sm:$0xff]
      %v345 = vld [vmem:[%s273 + $0x48] sm:$0xff]
      %v346 = vld [vmem:[%s273 + $0x50] sm:$0xff]
      %v347 = vld [vmem:[%s273 + $0x58] sm:$0xff]
      %v348 = vld [vmem:[%s273 + $0x60] sm:$0xff]
      %v349 = vld [vmem:[%s273 + $0x68] sm:$0xff]
      %v350 = vld [vmem:[%s273 + $0x70] sm:$0xff]
      %v351 = vld [vmem:[%s273 + $0x78] sm:$0xff]
      %v352 = vld [vmem:[%s273 + $0x80] sm:$0xff]
      %v353 = vld [vmem:[%s273 + $0x88] sm:$0xff]
      %v354 = vld [vmem:[%s273 + $0x90] sm:$0xff]
      %v355 = vld [vmem:[%s273 + $0x98] sm:$0xff]
      %v356 = vld [vmem:[%s273 + $0xa0] sm:$0xff]
      %v357 = vld [vmem:[%s273 + $0xa8] sm:$0xff]
      %v358 = vld [vmem:[%s273 + $0xb0] sm:$0xff]
      %v359 = vld [vmem:[%s273 + $0xb8] sm:$0xff]
      %v360 = vld [vmem:[%s273 + $0xc0] sm:$0xff]
      %v361 = vld [vmem:[%s273 + $0xc8] sm:$0xff]
      %v362 = vld [vmem:[%s273 + $0xd0] sm:$0xff]
      %v363 = vld [vmem:[%s273 + $0xd8] sm:$0xff]
      %v364 = vld [vmem:[%s273 + $0xe0] sm:$0xff]
      %v365 = vld [vmem:[%s273 + $0xe8] sm:$0xff]
      %v366 = vld [vmem:[%s273 + $0xf0] sm:$0xff]
      %v367 = vld [vmem:[%s273 + $0xf8] sm:$0xff]
      %s368 = scalar_lea.vmem [#allocation2], 24
      %369 = vst.msk [vmem:[%s368 + $0x1] sm:$0xff] %vm280, %v336
      %370 = vst.msk [vmem:[%s368 + $0x9] sm:$0xff] %vm280, %v337
      %371 = vst.msk [vmem:[%s368 + $0x19] sm:$0xff] %vm280, %v338
      %372 = vst.msk [vmem:[%s368 + $0x21] sm:$0xff] %vm280, %v339
      %373 = vst.msk [vmem:[%s368 + $0x31] sm:$0xff] %vm280, %v340
      %374 = vst.msk [vmem:[%s368 + $0x39] sm:$0xff] %vm280, %v341
      %375 = vst.msk [vmem:[%s368 + $0x49] sm:$0xff] %vm280, %v342
      %376 = vst.msk [vmem:[%s368 + $0x51] sm:$0xff] %vm280, %v343
      %377 = vst.msk [vmem:[%s368 + $0x61] sm:$0xff] %vm280, %v344
      %378 = vst.msk [vmem:[%s368 + $0x69] sm:$0xff] %vm280, %v345
      %379 = vst.msk [vmem:[%s368 + $0x79] sm:$0xff] %vm280, %v346
      %380 = vst.msk [vmem:[%s368 + $0x81] sm:$0xff] %vm280, %v347
      %381 = vst.msk [vmem:[%s368 + $0x91] sm:$0xff] %vm280, %v348
      %382 = vst.msk [vmem:[%s368 + $0x99] sm:$0xff] %vm280, %v349
      %383 = vst.msk [vmem:[%s368 + $0xa9] sm:$0xff] %vm280, %v350
      %384 = vst.msk [vmem:[%s368 + $0xb1] sm:$0xff] %vm280, %v351
      %385 = vst.msk [vmem:[%s368 + $0xc1] sm:$0xff] %vm280, %v352
      %386 = vst.msk [vmem:[%s368 + $0xc9] sm:$0xff] %vm280, %v353
      %387 = vst.msk [vmem:[%s368 + $0xd9] sm:$0xff] %vm280, %v354
      %388 = vst.msk [vmem:[%s368 + $0xe1] sm:$0xff] %vm280, %v355
      %389 = vst.msk [vmem:[%s368 + $0xf1] sm:$0xff] %vm280, %v356
      %390 = vst.msk [vmem:[%s368 + $0xf9] sm:$0xff] %vm280, %v357
      %391 = vst.msk [vmem:[%s368 + $0x109] sm:$0xff] %vm280, %v358
      %392 = vst.msk [vmem:[%s368 + $0x111] sm:$0xff] %vm280, %v359
      %393 = vst.msk [vmem:[%s368 + $0x121] sm:$0xff] %vm280, %v360
      %394 = vst.msk [vmem:[%s368 + $0x129] sm:$0xff] %vm280, %v361
      %395 = vst.msk [vmem:[%s368 + $0x139] sm:$0xff] %vm280, %v362
      %396 = vst.msk [vmem:[%s368 + $0x141] sm:$0xff] %vm280, %v363
      %397 = vst.msk [vmem:[%s368 + $0x151] sm:$0xff] %vm280, %v364
      %398 = vst.msk [vmem:[%s368 + $0x159] sm:$0xff] %vm280, %v365
      %399 = vst.msk [vmem:[%s368 + $0x169] sm:$0xff] %vm280, %v366
      %400 = vst.msk [vmem:[%s368 + $0x171] sm:$0xff] %vm280, %v367
      %v401 = vld [vmem:[#allocation2] sm:$0xff]
      %v402 = vld [vmem:[#allocation2 + $0x8] sm:$0xff]
      %v403 = vld [vmem:[#allocation2 + $0x18] sm:$0xff]
      %v404 = vld [vmem:[#allocation2 + $0x20] sm:$0xff]
      %v405 = vld [vmem:[#allocation2 + $0x30] sm:$0xff]
      %v406 = vld [vmem:[#allocation2 + $0x38] sm:$0xff]
      %v407 = vld [vmem:[#allocation2 + $0x48] sm:$0xff]
      %v408 = vld [vmem:[#allocation2 + $0x50] sm:$0xff]
      %v409 = vld [vmem:[#allocation2 + $0x60] sm:$0xff]
      %v410 = vld [vmem:[#allocation2 + $0x68] sm:$0xff]
      %v411 = vld [vmem:[#allocation2 + $0x78] sm:$0xff]
      %v412 = vld [vmem:[#allocation2 + $0x80] sm:$0xff]
      %v413 = vld [vmem:[#allocation2 + $0x90] sm:$0xff]
      %v414 = vld [vmem:[#allocation2 + $0x98] sm:$0xff]
      %v415 = vld [vmem:[#allocation2 + $0xa8] sm:$0xff]
      %v416 = vld [vmem:[#allocation2 + $0xb0] sm:$0xff]
      %v417 = vld [vmem:[#allocation2 + $0xc0] sm:$0xff]
      %v418 = vld [vmem:[#allocation2 + $0xc8] sm:$0xff]
      %v419 = vld [vmem:[#allocation2 + $0xd8] sm:$0xff]
      %v420 = vld [vmem:[#allocation2 + $0xe0] sm:$0xff]
      %v421 = vld [vmem:[#allocation2 + $0xf0] sm:$0xff]
      %v422 = vld [vmem:[#allocation2 + $0xf8] sm:$0xff]
      %v423 = vld [vmem:[#allocation2 + $0x108] sm:$0xff]
      %v424 = vld [vmem:[#allocation2 + $0x110] sm:$0xff]
      %v425 = vld [vmem:[#allocation2 + $0x120] sm:$0xff]
      %v426 = vld [vmem:[#allocation2 + $0x128] sm:$0xff]
      %v427 = vld [vmem:[#allocation2 + $0x138] sm:$0xff]
      %v428 = vld [vmem:[#allocation2 + $0x140] sm:$0xff]
      %v429 = vld [vmem:[#allocation2 + $0x150] sm:$0xff]
      %v430 = vld [vmem:[#allocation2 + $0x158] sm:$0xff]
      %v431 = vld [vmem:[#allocation2 + $0x168] sm:$0xff]
      %v432 = vld [vmem:[#allocation2 + $0x170] sm:$0xff]
      %v433 = vld [vmem:[#allocation2 + $0x1] sm:$0xff]
      %v434 = vld [vmem:[#allocation2 + $0x9] sm:$0xff]
      %v435 = vld [vmem:[#allocation2 + $0x19] sm:$0xff]
      %v436 = vld [vmem:[#allocation2 + $0x21] sm:$0xff]
      %v437 = vld [vmem:[#allocation2 + $0x31] sm:$0xff]
      %v438 = vld [vmem:[#allocation2 + $0x39] sm:$0xff]
      %v439 = vld [vmem:[#allocation2 + $0x49] sm:$0xff]
      %v440 = vld [vmem:[#allocation2 + $0x51] sm:$0xff]
      %v441 = vld [vmem:[#allocation2 + $0x61] sm:$0xff]
      %v442 = vld [vmem:[#allocation2 + $0x69] sm:$0xff]
      %v443 = vld [vmem:[#allocation2 + $0x79] sm:$0xff]
      %v444 = vld [vmem:[#allocation2 + $0x81] sm:$0xff]
      %v445 = vld [vmem:[#allocation2 + $0x91] sm:$0xff]
      %v446 = vld [vmem:[#allocation2 + $0x99] sm:$0xff]
      %v447 = vld [vmem:[#allocation2 + $0xa9] sm:$0xff]
      %v448 = vld [vmem:[#allocation2 + $0xb1] sm:$0xff]
      %v449 = vld [vmem:[#allocation2 + $0xc1] sm:$0xff]
      %v450 = vld [vmem:[#allocation2 + $0xc9] sm:$0xff]
      %v451 = vld [vmem:[#allocation2 + $0xd9] sm:$0xff]
      %v452 = vld [vmem:[#allocation2 + $0xe1] sm:$0xff]
      %v453 = vld [vmem:[#allocation2 + $0xf1] sm:$0xff]
      %v454 = vld [vmem:[#allocation2 + $0xf9] sm:$0xff]
      %v455 = vld [vmem:[#allocation2 + $0x109] sm:$0xff]
      %v456 = vld [vmem:[#allocation2 + $0x111] sm:$0xff]
      %v457 = vld [vmem:[#allocation2 + $0x121] sm:$0xff]
      %v458 = vld [vmem:[#allocation2 + $0x129] sm:$0xff]
      %v459 = vld [vmem:[#allocation2 + $0x139] sm:$0xff]
      %v460 = vld [vmem:[#allocation2 + $0x141] sm:$0xff]
      %v461 = vld [vmem:[#allocation2 + $0x151] sm:$0xff]
      %v462 = vld [vmem:[#allocation2 + $0x159] sm:$0xff]
      %v463 = vld [vmem:[#allocation2 + $0x169] sm:$0xff]
      %v464 = vld [vmem:[#allocation2 + $0x171] sm:$0xff]
      %v465 = vld [vmem:[#allocation2 + $0x2] sm:$0xff]
      %v466 = vld [vmem:[#allocation2 + $0xa] sm:$0xff]
      %v467 = vld [vmem:[#allocation2 + $0x1a] sm:$0xff]
      %v468 = vld [vmem:[#allocation2 + $0x22] sm:$0xff]
      %v469 = vld [vmem:[#allocation2 + $0x32] sm:$0xff]
      %v470 = vld [vmem:[#allocation2 + $0x3a] sm:$0xff]
      %v471 = vld [vmem:[#allocation2 + $0x4a] sm:$0xff]
      %v472 = vld [vmem:[#allocation2 + $0x52] sm:$0xff]
      %v473 = vld [vmem:[#allocation2 + $0x62] sm:$0xff]
      %v474 = vld [vmem:[#allocation2 + $0x6a] sm:$0xff]
      %v475 = vld [vmem:[#allocation2 + $0x7a] sm:$0xff]
      %v476 = vld [vmem:[#allocation2 + $0x82] sm:$0xff]
      %v477 = vld [vmem:[#allocation2 + $0x92] sm:$0xff]
      %v478 = vld [vmem:[#allocation2 + $0x9a] sm:$0xff]
      %v479 = vld [vmem:[#allocation2 + $0xaa] sm:$0xff]
      %v480 = vld [vmem:[#allocation2 + $0xb2] sm:$0xff]
      %v481 = vld [vmem:[#allocation2 + $0xc2] sm:$0xff]
      %v482 = vld [vmem:[#allocation2 + $0xca] sm:$0xff]
      %v483 = vld [vmem:[#allocation2 + $0xda] sm:$0xff]
      %v484 = vld [vmem:[#allocation2 + $0xe2] sm:$0xff]
      %v485 = vld [vmem:[#allocation2 + $0xf2] sm:$0xff]
      %v486 = vld [vmem:[#allocation2 + $0xfa] sm:$0xff]
      %v487 = vld [vmem:[#allocation2 + $0x10a] sm:$0xff]
      %v488 = vld [vmem:[#allocation2 + $0x112] sm:$0xff]
      %v489 = vld [vmem:[#allocation2 + $0x122] sm:$0xff]
      %v490 = vld [vmem:[#allocation2 + $0x12a] sm:$0xff]
      %v491 = vld [vmem:[#allocation2 + $0x13a] sm:$0xff]
      %v492 = vld [vmem:[#allocation2 + $0x142] sm:$0xff]
      %v493 = vld [vmem:[#allocation2 + $0x152] sm:$0xff]
      %v494 = vld [vmem:[#allocation2 + $0x15a] sm:$0xff]
      %v495 = vld [vmem:[#allocation2 + $0x16a] sm:$0xff]
      %v496 = vld [vmem:[#allocation2 + $0x172] sm:$0xff]
      %v497 = vld [vmem:[%s368] sm:$0xff]
      %v498 = vld [vmem:[%s368 + $0x8] sm:$0xff]
      %v499 = vld [vmem:[%s368 + $0x18] sm:$0xff]
      %v500 = vld [vmem:[%s368 + $0x20] sm:$0xff]
      %v501 = vld [vmem:[%s368 + $0x30] sm:$0xff]
      %v502 = vld [vmem:[%s368 + $0x38] sm:$0xff]
      %v503 = vld [vmem:[%s368 + $0x48] sm:$0xff]
      %v504 = vld [vmem:[%s368 + $0x50] sm:$0xff]
      %v505 = vld [vmem:[%s368 + $0x60] sm:$0xff]
      %v506 = vld [vmem:[%s368 + $0x68] sm:$0xff]
      %v507 = vld [vmem:[%s368 + $0x78] sm:$0xff]
      %v508 = vld [vmem:[%s368 + $0x80] sm:$0xff]
      %v509 = vld [vmem:[%s368 + $0x90] sm:$0xff]
      %v510 = vld [vmem:[%s368 + $0x98] sm:$0xff]
      %v511 = vld [vmem:[%s368 + $0xa8] sm:$0xff]
      %v512 = vld [vmem:[%s368 + $0xb0] sm:$0xff]
      %v513 = vld [vmem:[%s368 + $0xc0] sm:$0xff]
      %v514 = vld [vmem:[%s368 + $0xc8] sm:$0xff]
      %v515 = vld [vmem:[%s368 + $0xd8] sm:$0xff]
      %v516 = vld [vmem:[%s368 + $0xe0] sm:$0xff]
      %v517 = vld [vmem:[%s368 + $0xf0] sm:$0xff]
      %v518 = vld [vmem:[%s368 + $0xf8] sm:$0xff]
      %v519 = vld [vmem:[%s368 + $0x108] sm:$0xff]
      %v520 = vld [vmem:[%s368 + $0x110] sm:$0xff]
      %v521 = vld [vmem:[%s368 + $0x120] sm:$0xff]
      %v522 = vld [vmem:[%s368 + $0x128] sm:$0xff]
      %v523 = vld [vmem:[%s368 + $0x138] sm:$0xff]
      %v524 = vld [vmem:[%s368 + $0x140] sm:$0xff]
      %v525 = vld [vmem:[%s368 + $0x150] sm:$0xff]
      %v526 = vld [vmem:[%s368 + $0x158] sm:$0xff]
      %v527 = vld [vmem:[%s368 + $0x168] sm:$0xff]
      %v528 = vld [vmem:[%s368 + $0x170] sm:$0xff]
      %v529 = vld [vmem:[%s368 + $0x1] sm:$0xff]
      %v530 = vld [vmem:[%s368 + $0x9] sm:$0xff]
      %v531 = vld [vmem:[%s368 + $0x19] sm:$0xff]
      %v532 = vld [vmem:[%s368 + $0x21] sm:$0xff]
      %v533 = vld [vmem:[%s368 + $0x31] sm:$0xff]
      %v534 = vld [vmem:[%s368 + $0x39] sm:$0xff]
      %v535 = vld [vmem:[%s368 + $0x49] sm:$0xff]
      %v536 = vld [vmem:[%s368 + $0x51] sm:$0xff]
      %v537 = vld [vmem:[%s368 + $0x61] sm:$0xff]
      %v538 = vld [vmem:[%s368 + $0x69] sm:$0xff]
      %v539 = vld [vmem:[%s368 + $0x79] sm:$0xff]
      %v540 = vld [vmem:[%s368 + $0x81] sm:$0xff]
      %v541 = vld [vmem:[%s368 + $0x91] sm:$0xff]
      %v542 = vld [vmem:[%s368 + $0x99] sm:$0xff]
      %v543 = vld [vmem:[%s368 + $0xa9] sm:$0xff]
      %v544 = vld [vmem:[%s368 + $0xb1] sm:$0xff]
      %v545 = vld [vmem:[%s368 + $0xc1] sm:$0xff]
      %v546 = vld [vmem:[%s368 + $0xc9] sm:$0xff]
      %v547 = vld [vmem:[%s368 + $0xd9] sm:$0xff]
      %v548 = vld [vmem:[%s368 + $0xe1] sm:$0xff]
      %v549 = vld [vmem:[%s368 + $0xf1] sm:$0xff]
      %v550 = vld [vmem:[%s368 + $0xf9] sm:$0xff]
      %v551 = vld [vmem:[%s368 + $0x109] sm:$0xff]
      %v552 = vld [vmem:[%s368 + $0x111] sm:$0xff]
      %v553 = vld [vmem:[%s368 + $0x121] sm:$0xff]
      %v554 = vld [vmem:[%s368 + $0x129] sm:$0xff]
      %v555 = vld [vmem:[%s368 + $0x139] sm:$0xff]
      %v556 = vld [vmem:[%s368 + $0x141] sm:$0xff]
      %v557 = vld [vmem:[%s368 + $0x151] sm:$0xff]
      %v558 = vld [vmem:[%s368 + $0x159] sm:$0xff]
      %v559 = vld [vmem:[%s368 + $0x169] sm:$0xff]
      %v560 = vld [vmem:[%s368 + $0x171] sm:$0xff]
      %v561 = vld [vmem:[%s368 + $0x2] sm:$0xff]
      %v562 = vld [vmem:[%s368 + $0xa] sm:$0xff]
      %v563 = vld [vmem:[%s368 + $0x1a] sm:$0xff]
      %v564 = vld [vmem:[%s368 + $0x22] sm:$0xff]
      %v565 = vld [vmem:[%s368 + $0x32] sm:$0xff]
      %v566 = vld [vmem:[%s368 + $0x3a] sm:$0xff]
      %v567 = vld [vmem:[%s368 + $0x4a] sm:$0xff]
      %v568 = vld [vmem:[%s368 + $0x52] sm:$0xff]
      %v569 = vld [vmem:[%s368 + $0x62] sm:$0xff]
      %v570 = vld [vmem:[%s368 + $0x6a] sm:$0xff]
      %v571 = vld [vmem:[%s368 + $0x7a] sm:$0xff]
      %v572 = vld [vmem:[%s368 + $0x82] sm:$0xff]
      %v573 = vld [vmem:[%s368 + $0x92] sm:$0xff]
      %v574 = vld [vmem:[%s368 + $0x9a] sm:$0xff]
      %v575 = vld [vmem:[%s368 + $0xaa] sm:$0xff]
      %v576 = vld [vmem:[%s368 + $0xb2] sm:$0xff]
      %v577 = vld [vmem:[%s368 + $0xc2] sm:$0xff]
      %v578 = vld [vmem:[%s368 + $0xca] sm:$0xff]
      %v579 = vld [vmem:[%s368 + $0xda] sm:$0xff]
      %v580 = vld [vmem:[%s368 + $0xe2] sm:$0xff]
      %v581 = vld [vmem:[%s368 + $0xf2] sm:$0xff]
      %v582 = vld [vmem:[%s368 + $0xfa] sm:$0xff]
      %v583 = vld [vmem:[%s368 + $0x10a] sm:$0xff]
      %v584 = vld [vmem:[%s368 + $0x112] sm:$0xff]
      %v585 = vld [vmem:[%s368 + $0x122] sm:$0xff]
      %v586 = vld [vmem:[%s368 + $0x12a] sm:$0xff]
      %v587 = vld [vmem:[%s368 + $0x13a] sm:$0xff]
      %v588 = vld [vmem:[%s368 + $0x142] sm:$0xff]
      %v589 = vld [vmem:[%s368 + $0x152] sm:$0xff]
      %v590 = vld [vmem:[%s368 + $0x15a] sm:$0xff]
      %v591 = vld [vmem:[%s368 + $0x16a] sm:$0xff]
      %v592 = vld [vmem:[%s368 + $0x172] sm:$0xff]
      %s593 = scalar_lea.vmem [#allocation2], 48
      %v594 = vld [vmem:[%s593] sm:$0xff]
      %v595 = vld [vmem:[%s593 + $0x8] sm:$0xff]
      %v596 = vld [vmem:[%s593 + $0x18] sm:$0xff]
      %v597 = vld [vmem:[%s593 + $0x20] sm:$0xff]
      %v598 = vld [vmem:[%s593 + $0x30] sm:$0xff]
      %v599 = vld [vmem:[%s593 + $0x38] sm:$0xff]
      %v600 = vld [vmem:[%s593 + $0x48] sm:$0xff]
      %v601 = vld [vmem:[%s593 + $0x50] sm:$0xff]
      %v602 = vld [vmem:[%s593 + $0x60] sm:$0xff]
      %v603 = vld [vmem:[%s593 + $0x68] sm:$0xff]
      %v604 = vld [vmem:[%s593 + $0x78] sm:$0xff]
      %v605 = vld [vmem:[%s593 + $0x80] sm:$0xff]
      %v606 = vld [vmem:[%s593 + $0x90] sm:$0xff]
      %v607 = vld [vmem:[%s593 + $0x98] sm:$0xff]
      %v608 = vld [vmem:[%s593 + $0xa8] sm:$0xff]
      %v609 = vld [vmem:[%s593 + $0xb0] sm:$0xff]
      %v610 = vld [vmem:[%s593 + $0xc0] sm:$0xff]
      %v611 = vld [vmem:[%s593 + $0xc8] sm:$0xff]
      %v612 = vld [vmem:[%s593 + $0xd8] sm:$0xff]
      %v613 = vld [vmem:[%s593 + $0xe0] sm:$0xff]
      %v614 = vld [vmem:[%s593 + $0xf0] sm:$0xff]
      %v615 = vld [vmem:[%s593 + $0xf8] sm:$0xff]
      %v616 = vld [vmem:[%s593 + $0x108] sm:$0xff]
      %v617 = vld [vmem:[%s593 + $0x110] sm:$0xff]
      %v618 = vld [vmem:[%s593 + $0x120] sm:$0xff]
      %v619 = vld [vmem:[%s593 + $0x128] sm:$0xff]
      %v620 = vld [vmem:[%s593 + $0x138] sm:$0xff]
      %v621 = vld [vmem:[%s593 + $0x140] sm:$0xff]
      %v622 = vld [vmem:[%s593 + $0x150] sm:$0xff]
      %v623 = vld [vmem:[%s593 + $0x158] sm:$0xff]
      %v624 = vld [vmem:[%s593 + $0x168] sm:$0xff]
      %v625 = vld [vmem:[%s593 + $0x170] sm:$0xff]
      %v626 = vld [vmem:[%s593 + $0x1] sm:$0xff]
      %v627 = vld [vmem:[%s593 + $0x9] sm:$0xff]
      %v628 = vld [vmem:[%s593 + $0x19] sm:$0xff]
      %v629 = vld [vmem:[%s593 + $0x21] sm:$0xff]
      %v630 = vld [vmem:[%s593 + $0x31] sm:$0xff]
      %v631 = vld [vmem:[%s593 + $0x39] sm:$0xff]
      %v632 = vld [vmem:[%s593 + $0x49] sm:$0xff]
      %v633 = vld [vmem:[%s593 + $0x51] sm:$0xff]
      %v634 = vld [vmem:[%s593 + $0x61] sm:$0xff]
      %v635 = vld [vmem:[%s593 + $0x69] sm:$0xff]
      %v636 = vld [vmem:[%s593 + $0x79] sm:$0xff]
      %v637 = vld [vmem:[%s593 + $0x81] sm:$0xff]
      %v638 = vld [vmem:[%s593 + $0x91] sm:$0xff]
      %v639 = vld [vmem:[%s593 + $0x99] sm:$0xff]
      %v640 = vld [vmem:[%s593 + $0xa9] sm:$0xff]
      %v641 = vld [vmem:[%s593 + $0xb1] sm:$0xff]
      %v642 = vld [vmem:[%s593 + $0xc1] sm:$0xff]
      %v643 = vld [vmem:[%s593 + $0xc9] sm:$0xff]
      %v644 = vld [vmem:[%s593 + $0xd9] sm:$0xff]
      %v645 = vld [vmem:[%s593 + $0xe1] sm:$0xff]
      %v646 = vld [vmem:[%s593 + $0xf1] sm:$0xff]
      %v647 = vld [vmem:[%s593 + $0xf9] sm:$0xff]
      %v648 = vld [vmem:[%s593 + $0x109] sm:$0xff]
      %v649 = vld [vmem:[%s593 + $0x111] sm:$0xff]
      %v650 = vld [vmem:[%s593 + $0x121] sm:$0xff]
      %v651 = vld [vmem:[%s593 + $0x129] sm:$0xff]
      %v652 = vld [vmem:[%s593 + $0x139] sm:$0xff]
      %v653 = vld [vmem:[%s593 + $0x141] sm:$0xff]
      %v654 = vld [vmem:[%s593 + $0x151] sm:$0xff]
      %v655 = vld [vmem:[%s593 + $0x159] sm:$0xff]
      %v656 = vld [vmem:[%s593 + $0x169] sm:$0xff]
      %v657 = vld [vmem:[%s593 + $0x171] sm:$0xff]
      %v658 = vld [vmem:[%s593 + $0x2] sm:$0xff]
      %v659 = vld [vmem:[%s593 + $0xa] sm:$0xff]
      %v660 = vld [vmem:[%s593 + $0x1a] sm:$0xff]
      %v661 = vld [vmem:[%s593 + $0x22] sm:$0xff]
      %v662 = vld [vmem:[%s593 + $0x32] sm:$0xff]
      %v663 = vld [vmem:[%s593 + $0x3a] sm:$0xff]
      %v664 = vld [vmem:[%s593 + $0x4a] sm:$0xff]
      %v665 = vld [vmem:[%s593 + $0x52] sm:$0xff]
      %v666 = vld [vmem:[%s593 + $0x62] sm:$0xff]
      %v667 = vld [vmem:[%s593 + $0x6a] sm:$0xff]
      %v668 = vld [vmem:[%s593 + $0x7a] sm:$0xff]
      %v669 = vld [vmem:[%s593 + $0x82] sm:$0xff]
      %v670 = vld [vmem:[%s593 + $0x92] sm:$0xff]
      %v671 = vld [vmem:[%s593 + $0x9a] sm:$0xff]
      %v672 = vld [vmem:[%s593 + $0xaa] sm:$0xff]
      %v673 = vld [vmem:[%s593 + $0xb2] sm:$0xff]
      %v674 = vld [vmem:[%s593 + $0xc2] sm:$0xff]
      %v675 = vld [vmem:[%s593 + $0xca] sm:$0xff]
      %v676 = vld [vmem:[%s593 + $0xda] sm:$0xff]
      %v677 = vld [vmem:[%s593 + $0xe2] sm:$0xff]
      %v678 = vld [vmem:[%s593 + $0xf2] sm:$0xff]
      %v679 = vld [vmem:[%s593 + $0xfa] sm:$0xff]
      %v680 = vld [vmem:[%s593 + $0x10a] sm:$0xff]
      %v681 = vld [vmem:[%s593 + $0x112] sm:$0xff]
      %v682 = vld [vmem:[%s593 + $0x122] sm:$0xff]
      %v683 = vld [vmem:[%s593 + $0x12a] sm:$0xff]
      %v684 = vld [vmem:[%s593 + $0x13a] sm:$0xff]
      %v685 = vld [vmem:[%s593 + $0x142] sm:$0xff]
      %v686 = vld [vmem:[%s593 + $0x152] sm:$0xff]
      %v687 = vld [vmem:[%s593 + $0x15a] sm:$0xff]
      %v688 = vld [vmem:[%s593 + $0x16a] sm:$0xff]
      %v689 = vld [vmem:[%s593 + $0x172] sm:$0xff]
      %722 = vrot.lane.b32.xlu0 %v433, 32
      %v723 = vpop.permute.xlu0 %722
      %724 = vrot.lane.b32.xlu0 %v434, 32
      %v725 = vpop.permute.xlu0 %724
      %726 = vrot.lane.b32.xlu0 %v435, 32
      %v727 = vpop.permute.xlu0 %726
      %728 = vrot.lane.b32.xlu0 %v436, 32
      %v729 = vpop.permute.xlu0 %728
      %730 = vrot.lane.b32.xlu0 %v437, 32
      %v731 = vpop.permute.xlu0 %730
      %732 = vrot.lane.b32.xlu0 %v438, 32
      %v733 = vpop.permute.xlu0 %732
      %734 = vrot.lane.b32.xlu0 %v439, 32
      %v735 = vpop.permute.xlu0 %734
      %736 = vrot.lane.b32.xlu0 %v440, 32
      %v737 = vpop.permute.xlu0 %736
      %738 = vrot.lane.b32.xlu0 %v441, 32
      %v739 = vpop.permute.xlu0 %738
      %740 = vrot.lane.b32.xlu0 %v442, 32
      %v741 = vpop.permute.xlu0 %740
      %742 = vrot.lane.b32.xlu0 %v443, 32
      %v743 = vpop.permute.xlu0 %742
      %744 = vrot.lane.b32.xlu0 %v444, 32
      %v745 = vpop.permute.xlu0 %744
      %746 = vrot.lane.b32.xlu0 %v445, 32
      %v747 = vpop.permute.xlu0 %746
      %748 = vrot.lane.b32.xlu0 %v446, 32
      %v749 = vpop.permute.xlu0 %748
      %750 = vrot.lane.b32.xlu0 %v447, 32
      %v751 = vpop.permute.xlu0 %750
      %752 = vrot.lane.b32.xlu0 %v448, 32
      %v753 = vpop.permute.xlu0 %752
      %754 = vrot.lane.b32.xlu0 %v449, 32
      %v755 = vpop.permute.xlu0 %754
      %756 = vrot.lane.b32.xlu0 %v450, 32
      %v757 = vpop.permute.xlu0 %756
      %758 = vrot.lane.b32.xlu0 %v451, 32
      %v759 = vpop.permute.xlu0 %758
      %760 = vrot.lane.b32.xlu0 %v452, 32
      %v761 = vpop.permute.xlu0 %760
      %762 = vrot.lane.b32.xlu0 %v453, 32
      %v763 = vpop.permute.xlu0 %762
      %764 = vrot.lane.b32.xlu0 %v454, 32
      %v765 = vpop.permute.xlu0 %764
      %766 = vrot.lane.b32.xlu0 %v455, 32
      %v767 = vpop.permute.xlu0 %766
      %768 = vrot.lane.b32.xlu0 %v456, 32
      %v769 = vpop.permute.xlu0 %768
      %770 = vrot.lane.b32.xlu0 %v457, 32
      %v771 = vpop.permute.xlu0 %770
      %772 = vrot.lane.b32.xlu0 %v458, 32
      %v773 = vpop.permute.xlu0 %772
      %774 = vrot.lane.b32.xlu0 %v459, 32
      %v775 = vpop.permute.xlu0 %774
      %776 = vrot.lane.b32.xlu0 %v460, 32
      %v777 = vpop.permute.xlu0 %776
      %778 = vrot.lane.b32.xlu0 %v461, 32
      %v779 = vpop.permute.xlu0 %778
      %780 = vrot.lane.b32.xlu0 %v462, 32
      %v781 = vpop.permute.xlu0 %780
      %782 = vrot.lane.b32.xlu0 %v463, 32
      %v783 = vpop.permute.xlu0 %782
      %784 = vrot.lane.b32.xlu0 %v464, 32
      %v785 = vpop.permute.xlu0 %784
      %850 = vrot.lane.b32.xlu0 %v465, 64
      %v851 = vpop.permute.xlu0 %850
      %852 = vrot.lane.b32.xlu0 %v466, 64
      %v853 = vpop.permute.xlu0 %852
      %854 = vrot.lane.b32.xlu0 %v467, 64
      %v855 = vpop.permute.xlu0 %854
      %856 = vrot.lane.b32.xlu0 %v468, 64
      %v857 = vpop.permute.xlu0 %856
      %858 = vrot.lane.b32.xlu0 %v469, 64
      %v859 = vpop.permute.xlu0 %858
      %860 = vrot.lane.b32.xlu0 %v470, 64
      %v861 = vpop.permute.xlu0 %860
      %862 = vrot.lane.b32.xlu0 %v471, 64
      %v863 = vpop.permute.xlu0 %862
      %864 = vrot.lane.b32.xlu0 %v472, 64
      %v865 = vpop.permute.xlu0 %864
      %866 = vrot.lane.b32.xlu0 %v473, 64
      %v867 = vpop.permute.xlu0 %866
      %868 = vrot.lane.b32.xlu0 %v474, 64
      %v869 = vpop.permute.xlu0 %868
      %870 = vrot.lane.b32.xlu0 %v475, 64
      %v871 = vpop.permute.xlu0 %870
      %872 = vrot.lane.b32.xlu0 %v476, 64
      %v873 = vpop.permute.xlu0 %872
      %874 = vrot.lane.b32.xlu0 %v477, 64
      %v875 = vpop.permute.xlu0 %874
      %876 = vrot.lane.b32.xlu0 %v478, 64
      %v877 = vpop.permute.xlu0 %876
      %878 = vrot.lane.b32.xlu0 %v479, 64
      %v879 = vpop.permute.xlu0 %878
      %880 = vrot.lane.b32.xlu0 %v480, 64
      %v881 = vpop.permute.xlu0 %880
      %882 = vrot.lane.b32.xlu0 %v481, 64
      %v883 = vpop.permute.xlu0 %882
      %884 = vrot.lane.b32.xlu0 %v482, 64
      %v885 = vpop.permute.xlu0 %884
      %886 = vrot.lane.b32.xlu0 %v483, 64
      %v887 = vpop.permute.xlu0 %886
      %888 = vrot.lane.b32.xlu0 %v484, 64
      %v889 = vpop.permute.xlu0 %888
      %890 = vrot.lane.b32.xlu0 %v485, 64
      %v891 = vpop.permute.xlu0 %890
      %892 = vrot.lane.b32.xlu0 %v486, 64
      %v893 = vpop.permute.xlu0 %892
      %894 = vrot.lane.b32.xlu0 %v487, 64
      %v895 = vpop.permute.xlu0 %894
      %896 = vrot.lane.b32.xlu0 %v488, 64
      %v897 = vpop.permute.xlu0 %896
      %898 = vrot.lane.b32.xlu0 %v489, 64
      %v899 = vpop.permute.xlu0 %898
      %900 = vrot.lane.b32.xlu0 %v490, 64
      %v901 = vpop.permute.xlu0 %900
      %902 = vrot.lane.b32.xlu0 %v491, 64
      %v903 = vpop.permute.xlu0 %902
      %904 = vrot.lane.b32.xlu0 %v492, 64
      %v905 = vpop.permute.xlu0 %904
      %906 = vrot.lane.b32.xlu0 %v493, 64
      %v907 = vpop.permute.xlu0 %906
      %908 = vrot.lane.b32.xlu0 %v494, 64
      %v909 = vpop.permute.xlu0 %908
      %910 = vrot.lane.b32.xlu0 %v495, 64
      %v911 = vpop.permute.xlu0 %910
      %912 = vrot.lane.b32.xlu0 %v496, 64
      %v913 = vpop.permute.xlu0 %912
      %978 = vrot.lane.b32.xlu0 %v497, 96
      %v979 = vpop.permute.xlu0 %978
      %980 = vrot.lane.b32.xlu0 %v498, 96
      %v981 = vpop.permute.xlu0 %980
      %982 = vrot.lane.b32.xlu0 %v499, 96
      %v983 = vpop.permute.xlu0 %982
      %984 = vrot.lane.b32.xlu0 %v500, 96
      %v985 = vpop.permute.xlu0 %984
      %986 = vrot.lane.b32.xlu0 %v501, 96
      %v987 = vpop.permute.xlu0 %986
      %988 = vrot.lane.b32.xlu0 %v502, 96
      %v989 = vpop.permute.xlu0 %988
      %990 = vrot.lane.b32.xlu0 %v503, 96
      %v991 = vpop.permute.xlu0 %990
      %992 = vrot.lane.b32.xlu0 %v504, 96
      %v993 = vpop.permute.xlu0 %992
      %994 = vrot.lane.b32.xlu0 %v505, 96
      %v995 = vpop.permute.xlu0 %994
      %996 = vrot.lane.b32.xlu0 %v506, 96
      %v997 = vpop.permute.xlu0 %996
      %998 = vrot.lane.b32.xlu0 %v507, 96
      %v999 = vpop.permute.xlu0 %998
      %1000 = vrot.lane.b32.xlu0 %v508, 96
      %v1001 = vpop.permute.xlu0 %1000
      %1002 = vrot.lane.b32.xlu0 %v509, 96
      %v1003 = vpop.permute.xlu0 %1002
      %1004 = vrot.lane.b32.xlu0 %v510, 96
      %v1005 = vpop.permute.xlu0 %1004
      %1006 = vrot.lane.b32.xlu0 %v511, 96
      %v1007 = vpop.permute.xlu0 %1006
      %1008 = vrot.lane.b32.xlu0 %v512, 96
      %v1009 = vpop.permute.xlu0 %1008
      %1010 = vrot.lane.b32.xlu0 %v513, 96
      %v1011 = vpop.permute.xlu0 %1010
      %1012 = vrot.lane.b32.xlu0 %v514, 96
      %v1013 = vpop.permute.xlu0 %1012
      %1014 = vrot.lane.b32.xlu0 %v515, 96
      %v1015 = vpop.permute.xlu0 %1014
      %1016 = vrot.lane.b32.xlu0 %v516, 96
      %v1017 = vpop.permute.xlu0 %1016
      %1018 = vrot.lane.b32.xlu0 %v517, 96
      %v1019 = vpop.permute.xlu0 %1018
      %1020 = vrot.lane.b32.xlu0 %v518, 96
      %v1021 = vpop.permute.xlu0 %1020
      %1022 = vrot.lane.b32.xlu0 %v519, 96
      %v1023 = vpop.permute.xlu0 %1022
      %1024 = vrot.lane.b32.xlu0 %v520, 96
      %v1025 = vpop.permute.xlu0 %1024
      %1026 = vrot.lane.b32.xlu0 %v521, 96
      %v1027 = vpop.permute.xlu0 %1026
      %1028 = vrot.lane.b32.xlu0 %v522, 96
      %v1029 = vpop.permute.xlu0 %1028
      %1030 = vrot.lane.b32.xlu0 %v523, 96
      %v1031 = vpop.permute.xlu0 %1030
      %1032 = vrot.lane.b32.xlu0 %v524, 96
      %v1033 = vpop.permute.xlu0 %1032
      %1034 = vrot.lane.b32.xlu0 %v525, 96
      %v1035 = vpop.permute.xlu0 %1034
      %1036 = vrot.lane.b32.xlu0 %v526, 96
      %v1037 = vpop.permute.xlu0 %1036
      %1038 = vrot.lane.b32.xlu0 %v527, 96
      %v1039 = vpop.permute.xlu0 %1038
      %1040 = vrot.lane.b32.xlu0 %v528, 96
      %v1041 = vpop.permute.xlu0 %1040
      %1106 = vrot.lane.b32.xlu0 %v561, 32
      %v1107 = vpop.permute.xlu0 %1106
      %1108 = vrot.lane.b32.xlu0 %v562, 32
      %v1109 = vpop.permute.xlu0 %1108
      %1110 = vrot.lane.b32.xlu0 %v563, 32
      %v1111 = vpop.permute.xlu0 %1110
      %1112 = vrot.lane.b32.xlu0 %v564, 32
      %v1113 = vpop.permute.xlu0 %1112
      %1114 = vrot.lane.b32.xlu0 %v565, 32
      %v1115 = vpop.permute.xlu0 %1114
      %1116 = vrot.lane.b32.xlu0 %v566, 32
      %v1117 = vpop.permute.xlu0 %1116
      %1118 = vrot.lane.b32.xlu0 %v567, 32
      %v1119 = vpop.permute.xlu0 %1118
      %1120 = vrot.lane.b32.xlu0 %v568, 32
      %v1121 = vpop.permute.xlu0 %1120
      %1122 = vrot.lane.b32.xlu0 %v569, 32
      %v1123 = vpop.permute.xlu0 %1122
      %1124 = vrot.lane.b32.xlu0 %v570, 32
      %v1125 = vpop.permute.xlu0 %1124
      %1126 = vrot.lane.b32.xlu0 %v571, 32
      %v1127 = vpop.permute.xlu0 %1126
      %1128 = vrot.lane.b32.xlu0 %v572, 32
      %v1129 = vpop.permute.xlu0 %1128
      %1130 = vrot.lane.b32.xlu0 %v573, 32
      %v1131 = vpop.permute.xlu0 %1130
      %1132 = vrot.lane.b32.xlu0 %v574, 32
      %v1133 = vpop.permute.xlu0 %1132
      %1134 = vrot.lane.b32.xlu0 %v575, 32
      %v1135 = vpop.permute.xlu0 %1134
      %1136 = vrot.lane.b32.xlu0 %v576, 32
      %v1137 = vpop.permute.xlu0 %1136
      %1138 = vrot.lane.b32.xlu0 %v577, 32
      %v1139 = vpop.permute.xlu0 %1138
      %1140 = vrot.lane.b32.xlu0 %v578, 32
      %v1141 = vpop.permute.xlu0 %1140
      %1142 = vrot.lane.b32.xlu0 %v579, 32
      %v1143 = vpop.permute.xlu0 %1142
      %1144 = vrot.lane.b32.xlu0 %v580, 32
      %v1145 = vpop.permute.xlu0 %1144
      %1146 = vrot.lane.b32.xlu0 %v581, 32
      %v1147 = vpop.permute.xlu0 %1146
      %1148 = vrot.lane.b32.xlu0 %v582, 32
      %v1149 = vpop.permute.xlu0 %1148
      %1150 = vrot.lane.b32.xlu0 %v583, 32
      %v1151 = vpop.permute.xlu0 %1150
      %1152 = vrot.lane.b32.xlu0 %v584, 32
      %v1153 = vpop.permute.xlu0 %1152
      %1154 = vrot.lane.b32.xlu0 %v585, 32
      %v1155 = vpop.permute.xlu0 %1154
      %1156 = vrot.lane.b32.xlu0 %v586, 32
      %v1157 = vpop.permute.xlu0 %1156
      %1158 = vrot.lane.b32.xlu0 %v587, 32
      %v1159 = vpop.permute.xlu0 %1158
      %1160 = vrot.lane.b32.xlu0 %v588, 32
      %v1161 = vpop.permute.xlu0 %1160
      %1162 = vrot.lane.b32.xlu0 %v589, 32
      %v1163 = vpop.permute.xlu0 %1162
      %1164 = vrot.lane.b32.xlu0 %v590, 32
      %v1165 = vpop.permute.xlu0 %1164
      %1166 = vrot.lane.b32.xlu0 %v591, 32
      %v1167 = vpop.permute.xlu0 %1166
      %1168 = vrot.lane.b32.xlu0 %v592, 32
      %v1169 = vpop.permute.xlu0 %1168
      %1234 = vrot.lane.b32.xlu0 %v594, 64
      %v1235 = vpop.permute.xlu0 %1234
      %1236 = vrot.lane.b32.xlu0 %v595, 64
      %v1237 = vpop.permute.xlu0 %1236
      %1238 = vrot.lane.b32.xlu0 %v596, 64
      %v1239 = vpop.permute.xlu0 %1238
      %1240 = vrot.lane.b32.xlu0 %v597, 64
      %v1241 = vpop.permute.xlu0 %1240
      %1242 = vrot.lane.b32.xlu0 %v598, 64
      %v1243 = vpop.permute.xlu0 %1242
      %1244 = vrot.lane.b32.xlu0 %v599, 64
      %v1245 = vpop.permute.xlu0 %1244
      %1246 = vrot.lane.b32.xlu0 %v600, 64
      %v1247 = vpop.permute.xlu0 %1246
      %1248 = vrot.lane.b32.xlu0 %v601, 64
      %v1249 = vpop.permute.xlu0 %1248
      %1250 = vrot.lane.b32.xlu0 %v602, 64
      %v1251 = vpop.permute.xlu0 %1250
      %1252 = vrot.lane.b32.xlu0 %v603, 64
      %v1253 = vpop.permute.xlu0 %1252
      %1254 = vrot.lane.b32.xlu0 %v604, 64
      %v1255 = vpop.permute.xlu0 %1254
      %1256 = vrot.lane.b32.xlu0 %v605, 64
      %v1257 = vpop.permute.xlu0 %1256
      %1258 = vrot.lane.b32.xlu0 %v606, 64
      %v1259 = vpop.permute.xlu0 %1258
      %1260 = vrot.lane.b32.xlu0 %v607, 64
      %v1261 = vpop.permute.xlu0 %1260
      %1262 = vrot.lane.b32.xlu0 %v608, 64
      %v1263 = vpop.permute.xlu0 %1262
      %1264 = vrot.lane.b32.xlu0 %v609, 64
      %v1265 = vpop.permute.xlu0 %1264
      %1266 = vrot.lane.b32.xlu0 %v610, 64
      %v1267 = vpop.permute.xlu0 %1266
      %1268 = vrot.lane.b32.xlu0 %v611, 64
      %v1269 = vpop.permute.xlu0 %1268
      %1270 = vrot.lane.b32.xlu0 %v612, 64
      %v1271 = vpop.permute.xlu0 %1270
      %1272 = vrot.lane.b32.xlu0 %v613, 64
      %v1273 = vpop.permute.xlu0 %1272
      %1274 = vrot.lane.b32.xlu0 %v614, 64
      %v1275 = vpop.permute.xlu0 %1274
      %1276 = vrot.lane.b32.xlu0 %v615, 64
      %v1277 = vpop.permute.xlu0 %1276
      %1278 = vrot.lane.b32.xlu0 %v616, 64
      %v1279 = vpop.permute.xlu0 %1278
      %1280 = vrot.lane.b32.xlu0 %v617, 64
      %v1281 = vpop.permute.xlu0 %1280
      %1282 = vrot.lane.b32.xlu0 %v618, 64
      %v1283 = vpop.permute.xlu0 %1282
      %1284 = vrot.lane.b32.xlu0 %v619, 64
      %v1285 = vpop.permute.xlu0 %1284
      %1286 = vrot.lane.b32.xlu0 %v620, 64
      %v1287 = vpop.permute.xlu0 %1286
      %1288 = vrot.lane.b32.xlu0 %v621, 64
      %v1289 = vpop.permute.xlu0 %1288
      %1290 = vrot.lane.b32.xlu0 %v622, 64
      %v1291 = vpop.permute.xlu0 %1290
      %1292 = vrot.lane.b32.xlu0 %v623, 64
      %v1293 = vpop.permute.xlu0 %1292
      %1294 = vrot.lane.b32.xlu0 %v624, 64
      %v1295 = vpop.permute.xlu0 %1294
      %1296 = vrot.lane.b32.xlu0 %v625, 64
      %v1297 = vpop.permute.xlu0 %1296
      %1362 = vrot.lane.b32.xlu0 %v626, 96
      %v1363 = vpop.permute.xlu0 %1362
      %1364 = vrot.lane.b32.xlu0 %v627, 96
      %v1365 = vpop.permute.xlu0 %1364
      %1366 = vrot.lane.b32.xlu0 %v628, 96
      %v1367 = vpop.permute.xlu0 %1366
      %1368 = vrot.lane.b32.xlu0 %v629, 96
      %v1369 = vpop.permute.xlu0 %1368
      %1370 = vrot.lane.b32.xlu0 %v630, 96
      %v1371 = vpop.permute.xlu0 %1370
      %1372 = vrot.lane.b32.xlu0 %v631, 96
      %v1373 = vpop.permute.xlu0 %1372
      %1374 = vrot.lane.b32.xlu0 %v632, 96
      %v1375 = vpop.permute.xlu0 %1374
      %1376 = vrot.lane.b32.xlu0 %v633, 96
      %v1377 = vpop.permute.xlu0 %1376
      %1378 = vrot.lane.b32.xlu0 %v634, 96
      %v1379 = vpop.permute.xlu0 %1378
      %1380 = vrot.lane.b32.xlu0 %v635, 96
      %v1381 = vpop.permute.xlu0 %1380
      %1382 = vrot.lane.b32.xlu0 %v636, 96
      %v1383 = vpop.permute.xlu0 %1382
      %1384 = vrot.lane.b32.xlu0 %v637, 96
      %v1385 = vpop.permute.xlu0 %1384
      %1386 = vrot.lane.b32.xlu0 %v638, 96
      %v1387 = vpop.permute.xlu0 %1386
      %1388 = vrot.lane.b32.xlu0 %v639, 96
      %v1389 = vpop.permute.xlu0 %1388
      %1390 = vrot.lane.b32.xlu0 %v640, 96
      %v1391 = vpop.permute.xlu0 %1390
      %1392 = vrot.lane.b32.xlu0 %v641, 96
      %v1393 = vpop.permute.xlu0 %1392
      %1394 = vrot.lane.b32.xlu0 %v642, 96
      %v1395 = vpop.permute.xlu0 %1394
      %1396 = vrot.lane.b32.xlu0 %v643, 96
      %v1397 = vpop.permute.xlu0 %1396
      %1398 = vrot.lane.b32.xlu0 %v644, 96
      %v1399 = vpop.permute.xlu0 %1398
      %1400 = vrot.lane.b32.xlu0 %v645, 96
      %v1401 = vpop.permute.xlu0 %1400
      %1402 = vrot.lane.b32.xlu0 %v646, 96
      %v1403 = vpop.permute.xlu0 %1402
      %1404 = vrot.lane.b32.xlu0 %v647, 96
      %v1405 = vpop.permute.xlu0 %1404
      %1406 = vrot.lane.b32.xlu0 %v648, 96
      %v1407 = vpop.permute.xlu0 %1406
      %1408 = vrot.lane.b32.xlu0 %v649, 96
      %v1409 = vpop.permute.xlu0 %1408
      %1410 = vrot.lane.b32.xlu0 %v650, 96
      %v1411 = vpop.permute.xlu0 %1410
      %1412 = vrot.lane.b32.xlu0 %v651, 96
      %v1413 = vpop.permute.xlu0 %1412
      %1414 = vrot.lane.b32.xlu0 %v652, 96
      %v1415 = vpop.permute.xlu0 %1414
      %1416 = vrot.lane.b32.xlu0 %v653, 96
      %v1417 = vpop.permute.xlu0 %1416
      %1418 = vrot.lane.b32.xlu0 %v654, 96
      %v1419 = vpop.permute.xlu0 %1418
      %1420 = vrot.lane.b32.xlu0 %v655, 96
      %v1421 = vpop.permute.xlu0 %1420
      %1422 = vrot.lane.b32.xlu0 %v656, 96
      %v1423 = vpop.permute.xlu0 %1422
      %1424 = vrot.lane.b32.xlu0 %v657, 96
      %v1425 = vpop.permute.xlu0 %1424
      %v1458 = vsel %vm280, %v401, %v723
      %v1459 = vsel %vm280, %v402, %v725
      %v1460 = vsel %vm280, %v403, %v727
      %v1461 = vsel %vm280, %v404, %v729
      %v1462 = vsel %vm280, %v405, %v731
      %v1463 = vsel %vm280, %v406, %v733
      %v1464 = vsel %vm280, %v407, %v735
      %v1465 = vsel %vm280, %v408, %v737
      %v1466 = vsel %vm280, %v409, %v739
      %v1467 = vsel %vm280, %v410, %v741
      %v1468 = vsel %vm280, %v411, %v743
      %v1469 = vsel %vm280, %v412, %v745
      %v1470 = vsel %vm280, %v413, %v747
      %v1471 = vsel %vm280, %v414, %v749
      %v1472 = vsel %vm280, %v415, %v751
      %v1473 = vsel %vm280, %v416, %v753
      %v1474 = vsel %vm280, %v417, %v755
      %v1475 = vsel %vm280, %v418, %v757
      %v1476 = vsel %vm280, %v419, %v759
      %v1477 = vsel %vm280, %v420, %v761
      %v1478 = vsel %vm280, %v421, %v763
      %v1479 = vsel %vm280, %v422, %v765
      %v1480 = vsel %vm280, %v423, %v767
      %v1481 = vsel %vm280, %v424, %v769
      %v1482 = vsel %vm280, %v425, %v771
      %v1483 = vsel %vm280, %v426, %v773
      %v1484 = vsel %vm280, %v427, %v775
      %v1485 = vsel %vm280, %v428, %v777
      %v1486 = vsel %vm280, %v429, %v779
      %v1487 = vsel %vm280, %v430, %v781
      %v1488 = vsel %vm280, %v431, %v783
      %v1489 = vsel %vm280, %v432, %v785
      %vm1490 = vcmask 523264
      %v1491 = vsel %vm1490, %v1458, %v851
      %v1492 = vsel %vm1490, %v1459, %v853
      %v1493 = vsel %vm1490, %v1460, %v855
      %v1494 = vsel %vm1490, %v1461, %v857
      %v1495 = vsel %vm1490, %v1462, %v859
      %v1496 = vsel %vm1490, %v1463, %v861
      %v1497 = vsel %vm1490, %v1464, %v863
      %v1498 = vsel %vm1490, %v1465, %v865
      %v1499 = vsel %vm1490, %v1466, %v867
      %v1500 = vsel %vm1490, %v1467, %v869
      %v1501 = vsel %vm1490, %v1468, %v871
      %v1502 = vsel %vm1490, %v1469, %v873
      %v1503 = vsel %vm1490, %v1470, %v875
      %v1504 = vsel %vm1490, %v1471, %v877
      %v1505 = vsel %vm1490, %v1472, %v879
      %v1506 = vsel %vm1490, %v1473, %v881
      %v1507 = vsel %vm1490, %v1474, %v883
      %v1508 = vsel %vm1490, %v1475, %v885
      %v1509 = vsel %vm1490, %v1476, %v887
      %v1510 = vsel %vm1490, %v1477, %v889
      %v1511 = vsel %vm1490, %v1478, %v891
      %v1512 = vsel %vm1490, %v1479, %v893
      %v1513 = vsel %vm1490, %v1480, %v895
      %v1514 = vsel %vm1490, %v1481, %v897
      %v1515 = vsel %vm1490, %v1482, %v899
      %v1516 = vsel %vm1490, %v1483, %v901
      %v1517 = vsel %vm1490, %v1484, %v903
      %v1518 = vsel %vm1490, %v1485, %v905
      %v1519 = vsel %vm1490, %v1486, %v907
      %v1520 = vsel %vm1490, %v1487, %v909
      %v1521 = vsel %vm1490, %v1488, %v911
      %v1522 = vsel %vm1490, %v1489, %v913
      %vm1523 = vcmask 785408
      %v1524 = vsel %vm1523, %v1491, %v979
      %v1525 = vsel %vm1523, %v1492, %v981
      %v1526 = vsel %vm1523, %v1493, %v983
      %v1527 = vsel %vm1523, %v1494, %v985
      %v1528 = vsel %vm1523, %v1495, %v987
      %v1529 = vsel %vm1523, %v1496, %v989
      %v1530 = vsel %vm1523, %v1497, %v991
      %v1531 = vsel %vm1523, %v1498, %v993
      %v1532 = vsel %vm1523, %v1499, %v995
      %v1533 = vsel %vm1523, %v1500, %v997
      %v1534 = vsel %vm1523, %v1501, %v999
      %v1535 = vsel %vm1523, %v1502, %v1001
      %v1536 = vsel %vm1523, %v1503, %v1003
      %v1537 = vsel %vm1523, %v1504, %v1005
      %v1538 = vsel %vm1523, %v1505, %v1007
      %v1539 = vsel %vm1523, %v1506, %v1009
      %v1540 = vsel %vm1523, %v1507, %v1011
      %v1541 = vsel %vm1523, %v1508, %v1013
      %v1542 = vsel %vm1523, %v1509, %v1015
      %v1543 = vsel %vm1523, %v1510, %v1017
      %v1544 = vsel %vm1523, %v1511, %v1019
      %v1545 = vsel %vm1523, %v1512, %v1021
      %v1546 = vsel %vm1523, %v1513, %v1023
      %v1547 = vsel %vm1523, %v1514, %v1025
      %v1548 = vsel %vm1523, %v1515, %v1027
      %v1549 = vsel %vm1523, %v1516, %v1029
      %v1550 = vsel %vm1523, %v1517, %v1031
      %v1551 = vsel %vm1523, %v1518, %v1033
      %v1552 = vsel %vm1523, %v1519, %v1035
      %v1553 = vsel %vm1523, %v1520, %v1037
      %v1554 = vsel %vm1523, %v1521, %v1039
      %v1555 = vsel %vm1523, %v1522, %v1041
      %v1556 = vsel %vm280, %v529, %v1107
      %v1557 = vsel %vm280, %v530, %v1109
      %v1558 = vsel %vm280, %v531, %v1111
      %v1559 = vsel %vm280, %v532, %v1113
      %v1560 = vsel %vm280, %v533, %v1115
      %v1561 = vsel %vm280, %v534, %v1117
      %v1562 = vsel %vm280, %v535, %v1119
      %v1563 = vsel %vm280, %v536, %v1121
      %v1564 = vsel %vm280, %v537, %v1123
      %v1565 = vsel %vm280, %v538, %v1125
      %v1566 = vsel %vm280, %v539, %v1127
      %v1567 = vsel %vm280, %v540, %v1129
      %v1568 = vsel %vm280, %v541, %v1131
      %v1569 = vsel %vm280, %v542, %v1133
      %v1570 = vsel %vm280, %v543, %v1135
      %v1571 = vsel %vm280, %v544, %v1137
      %v1572 = vsel %vm280, %v545, %v1139
      %v1573 = vsel %vm280, %v546, %v1141
      %v1574 = vsel %vm280, %v547, %v1143
      %v1575 = vsel %vm280, %v548, %v1145
      %v1576 = vsel %vm280, %v549, %v1147
      %v1577 = vsel %vm280, %v550, %v1149
      %v1578 = vsel %vm280, %v551, %v1151
      %v1579 = vsel %vm280, %v552, %v1153
      %v1580 = vsel %vm280, %v553, %v1155
      %v1581 = vsel %vm280, %v554, %v1157
      %v1582 = vsel %vm280, %v555, %v1159
      %v1583 = vsel %vm280, %v556, %v1161
      %v1584 = vsel %vm280, %v557, %v1163
      %v1585 = vsel %vm280, %v558, %v1165
      %v1586 = vsel %vm280, %v559, %v1167
      %v1587 = vsel %vm280, %v560, %v1169
      %v1588 = vsel %vm1490, %v1556, %v1235
      %v1589 = vsel %vm1490, %v1557, %v1237
      %v1590 = vsel %vm1490, %v1558, %v1239
      %v1591 = vsel %vm1490, %v1559, %v1241
      %v1592 = vsel %vm1490, %v1560, %v1243
      %v1593 = vsel %vm1490, %v1561, %v1245
      %v1594 = vsel %vm1490, %v1562, %v1247
      %v1595 = vsel %vm1490, %v1563, %v1249
      %v1596 = vsel %vm1490, %v1564, %v1251
      %v1597 = vsel %vm1490, %v1565, %v1253
      %v1598 = vsel %vm1490, %v1566, %v1255
      %v1599 = vsel %vm1490, %v1567, %v1257
      %v1600 = vsel %vm1490, %v1568, %v1259
      %v1601 = vsel %vm1490, %v1569, %v1261
      %v1602 = vsel %vm1490, %v1570, %v1263
      %v1603 = vsel %vm1490, %v1571, %v1265
      %v1604 = vsel %vm1490, %v1572, %v1267
      %v1605 = vsel %vm1490, %v1573, %v1269
      %v1606 = vsel %vm1490, %v1574, %v1271
      %v1607 = vsel %vm1490, %v1575, %v1273
      %v1608 = vsel %vm1490, %v1576, %v1275
      %v1609 = vsel %vm1490, %v1577, %v1277
      %v1610 = vsel %vm1490, %v1578, %v1279
      %v1611 = vsel %vm1490, %v1579, %v1281
      %v1612 = vsel %vm1490, %v1580, %v1283
      %v1613 = vsel %vm1490, %v1581, %v1285
      %v1614 = vsel %vm1490, %v1582, %v1287
      %v1615 = vsel %vm1490, %v1583, %v1289
      %v1616 = vsel %vm1490, %v1584, %v1291
      %v1617 = vsel %vm1490, %v1585, %v1293
      %v1618 = vsel %vm1490, %v1586, %v1295
      %v1619 = vsel %vm1490, %v1587, %v1297
      %v1620 = vsel %vm1523, %v1588, %v1363
      %v1621 = vsel %vm1523, %v1589, %v1365
      %v1622 = vsel %vm1523, %v1590, %v1367
      %v1623 = vsel %vm1523, %v1591, %v1369
      %v1624 = vsel %vm1523, %v1592, %v1371
      %v1625 = vsel %vm1523, %v1593, %v1373
      %v1626 = vsel %vm1523, %v1594, %v1375
      %v1627 = vsel %vm1523, %v1595, %v1377
      %v1628 = vsel %vm1523, %v1596, %v1379
      %v1629 = vsel %vm1523, %v1597, %v1381
      %v1630 = vsel %vm1523, %v1598, %v1383
      %v1631 = vsel %vm1523, %v1599, %v1385
      %v1632 = vsel %vm1523, %v1600, %v1387
      %v1633 = vsel %vm1523, %v1601, %v1389
      %v1634 = vsel %vm1523, %v1602, %v1391
      %v1635 = vsel %vm1523, %v1603, %v1393
      %v1636 = vsel %vm1523, %v1604, %v1395
      %v1637 = vsel %vm1523, %v1605, %v1397
      %v1638 = vsel %vm1523, %v1606, %v1399
      %v1639 = vsel %vm1523, %v1607, %v1401
      %v1640 = vsel %vm1523, %v1608, %v1403
      %v1641 = vsel %vm1523, %v1609, %v1405
      %v1642 = vsel %vm1523, %v1610, %v1407
      %v1643 = vsel %vm1523, %v1611, %v1409
      %v1644 = vsel %vm1523, %v1612, %v1411
      %v1645 = vsel %vm1523, %v1613, %v1413
      %v1646 = vsel %vm1523, %v1614, %v1415
      %v1647 = vsel %vm1523, %v1615, %v1417
      %v1648 = vsel %vm1523, %v1616, %v1419
      %v1649 = vsel %vm1523, %v1617, %v1421
      %v1650 = vsel %vm1523, %v1618, %v1423
      %v1651 = vsel %vm1523, %v1619, %v1425
      %v1652 = vpack.c.bf16 %v1525, %v1524
      %v1653 = vpack.c.bf16 %v1621, %v1620
      %v1654 = vpack.c.bf16 %v659, %v658
      %v1655 = vpack.c.bf16 %v1527, %v1526
      %v1656 = vpack.c.bf16 %v1623, %v1622
      %v1657 = vpack.c.bf16 %v661, %v660
      %v1658 = vpack.c.bf16 %v1529, %v1528
      %v1659 = vpack.c.bf16 %v1625, %v1624
      %v1660 = vpack.c.bf16 %v663, %v662
      %v1661 = vpack.c.bf16 %v1531, %v1530
      %v1662 = vpack.c.bf16 %v1627, %v1626
      %v1663 = vpack.c.bf16 %v665, %v664
      %v1664 = vpack.c.bf16 %v1533, %v1532
      %v1665 = vpack.c.bf16 %v1629, %v1628
      %v1666 = vpack.c.bf16 %v667, %v666
      %v1667 = vpack.c.bf16 %v1535, %v1534
      %v1668 = vpack.c.bf16 %v1631, %v1630
      %v1669 = vpack.c.bf16 %v669, %v668
      %v1670 = vpack.c.bf16 %v1537, %v1536
      %v1671 = vpack.c.bf16 %v1633, %v1632
      %v1672 = vpack.c.bf16 %v671, %v670
      %v1673 = vpack.c.bf16 %v1539, %v1538
      %v1674 = vpack.c.bf16 %v1635, %v1634
      %v1675 = vpack.c.bf16 %v673, %v672
      %v1676 = vpack.c.bf16 %v1541, %v1540
      %v1677 = vpack.c.bf16 %v1637, %v1636
      %v1678 = vpack.c.bf16 %v675, %v674
      %v1679 = vpack.c.bf16 %v1543, %v1542
      %v1680 = vpack.c.bf16 %v1639, %v1638
      %v1681 = vpack.c.bf16 %v677, %v676
      %v1682 = vpack.c.bf16 %v1545, %v1544
      %v1683 = vpack.c.bf16 %v1641, %v1640
      %v1684 = vpack.c.bf16 %v679, %v678
      %v1685 = vpack.c.bf16 %v1547, %v1546
      %v1686 = vpack.c.bf16 %v1643, %v1642
      %v1687 = vpack.c.bf16 %v681, %v680
      %v1688 = vpack.c.bf16 %v1549, %v1548
      %v1689 = vpack.c.bf16 %v1645, %v1644
      %v1690 = vpack.c.bf16 %v683, %v682
      %v1691 = vpack.c.bf16 %v1551, %v1550
      %v1692 = vpack.c.bf16 %v1647, %v1646
      %v1693 = vpack.c.bf16 %v685, %v684
      %v1694 = vpack.c.bf16 %v1553, %v1552
      %v1695 = vpack.c.bf16 %v1649, %v1648
      %v1696 = vpack.c.bf16 %v687, %v686
      %v1697 = vpack.c.bf16 %v1555, %v1554
      %v1698 = vpack.c.bf16 %v1651, %v1650
      %v1699 = vpack.c.bf16 %v689, %v688
      %v1700 = vld [vmem:[%s1] sm:$0xf]
      %v1701 = vld [vmem:[%s1 + $0x4] sm:$0xf]
      %v1702 = vld [vmem:[%s1 + $0x8] sm:$0xf]
      %v1703 = vld [vmem:[%s1 + $0xc] sm:$0xf]
      %v1704 = vld [vmem:[%s1 + $0x10] sm:$0xf]
      %v1705 = vld [vmem:[%s1 + $0x14] sm:$0xf]
      %v1706 = vld [vmem:[%s1 + $0x18] sm:$0xf]
      %v1707 = vld [vmem:[%s1 + $0x1c] sm:$0xf]
      %v1708 = vld [vmem:[%s1 + $0x20] sm:$0xf]
      %v1709 = vld [vmem:[%s1 + $0x24] sm:$0xf]
      %v1710 = vld [vmem:[%s1 + $0x28] sm:$0xf]
      %v1711 = vld [vmem:[%s1 + $0x2c] sm:$0xf]
      %v1712 = vld [vmem:[%s1 + $0x30] sm:$0xf]
      %v1713 = vld [vmem:[%s1 + $0x34] sm:$0xf]
      %v1714 = vld [vmem:[%s1 + $0x38] sm:$0xf]
      %v1715 = vld [vmem:[%s1 + $0x3c] sm:$0xf]
      %v1716 = vld [vmem:[%s1 + $0x40] sm:$0xf]
      %v1717 = vld [vmem:[%s1 + $0x44] sm:$0xf]
      %v1718 = vld [vmem:[%s1 + $0x48] sm:$0xf]
      %v1719 = vld [vmem:[%s1 + $0x4c] sm:$0xf]
      %v1720 = vld [vmem:[%s1 + $0x50] sm:$0xf]
      %v1721 = vld [vmem:[%s1 + $0x54] sm:$0xf]
      %v1722 = vld [vmem:[%s1 + $0x58] sm:$0xf]
      %v1723 = vld [vmem:[%s1 + $0x5c] sm:$0xf]
      %v1724 = vld [vmem:[%s1 + $0x60] sm:$0xf]
      %v1725 = vld [vmem:[%s1 + $0x64] sm:$0xf]
      %v1726 = vld [vmem:[%s1 + $0x68] sm:$0xf]
      %v1727 = vld [vmem:[%s1 + $0x6c] sm:$0xf]
      %v1728 = vld [vmem:[%s1 + $0x70] sm:$0xf]
      %v1729 = vld [vmem:[%s1 + $0x74] sm:$0xf]
      %v1730 = vld [vmem:[%s1 + $0x78] sm:$0xf]
      %v1731 = vld [vmem:[%s1 + $0x7c] sm:$0xf]
      %v1732 = vld [vmem:[%s1 + $0x80] sm:$0xf]
      %v1733 = vld [vmem:[%s1 + $0x84] sm:$0xf]
      %v1734 = vld [vmem:[%s1 + $0x88] sm:$0xf]
      %v1735 = vld [vmem:[%s1 + $0x8c] sm:$0xf]
      %v1736 = vld [vmem:[%s2] sm:$0x1]
      %v1738 = vlaneseq
      %v1739 = vshrl.u32 %v1738, 7
      %v1740 = vsub.s32 0, %v1739
      %v1741 = vrot.slane %v1736, %v1740
      %v1779 = vunpack.c.l.b16 %v1700
      %v1780 = vunpack.c.l.b16 %v1701
      %v1781 = vunpack.c.l.b16 %v1702
      %v1782 = vunpack.c.l.b16 %v1703
      %v1783 = vunpack.c.l.b16 %v1704
      %v1784 = vunpack.c.l.b16 %v1705
      %v1785 = vunpack.c.l.b16 %v1706
      %v1786 = vunpack.c.l.b16 %v1707
      %v1787 = vunpack.c.l.b16 %v1708
      %v1788 = vunpack.c.l.b16 %v1709
      %v1789 = vunpack.c.l.b16 %v1710
      %v1790 = vunpack.c.l.b16 %v1711
      %v1791 = vunpack.c.l.b16 %v1712
      %v1792 = vunpack.c.l.b16 %v1713
      %v1793 = vunpack.c.l.b16 %v1714
      %v1794 = vunpack.c.l.b16 %v1715
      %v1795 = vunpack.c.l.b16 %v1716
      %v1796 = vunpack.c.l.b16 %v1717
      %v1797 = vunpack.c.l.b16 %v1718
      %v1798 = vunpack.c.l.b16 %v1719
      %v1799 = vunpack.c.l.b16 %v1720
      %v1800 = vunpack.c.l.b16 %v1721
      %v1801 = vunpack.c.l.b16 %v1722
      %v1802 = vunpack.c.l.b16 %v1723
      %v1803 = vunpack.c.l.b16 %v1724
      %v1804 = vunpack.c.l.b16 %v1725
      %v1805 = vunpack.c.l.b16 %v1726
      %v1806 = vunpack.c.l.b16 %v1727
      %v1807 = vunpack.c.l.b16 %v1728
      %v1808 = vunpack.c.l.b16 %v1729
      %v1809 = vunpack.c.l.b16 %v1730
      %v1810 = vunpack.c.l.b16 %v1731
      %v1811 = vunpack.c.l.b16 %v1732
      %v1812 = vunpack.c.l.b16 %v1733
      %v1813 = vunpack.c.l.b16 %v1734
      %v1814 = vunpack.c.l.b16 %v1735
      %v1815 = vpack.c.b16 %v1780, %v1779
      %v1816 = vpack.c.b16 %v1782, %v1781
      %v1817 = vpack.c.b16 %v1784, %v1783
      %v1818 = vpack.c.b16 %v1786, %v1785
      %v1819 = vpack.c.b16 %v1788, %v1787
      %v1820 = vpack.c.b16 %v1790, %v1789
      %v1821 = vpack.c.b16 %v1792, %v1791
      %v1822 = vpack.c.b16 %v1794, %v1793
      %v1823 = vpack.c.b16 %v1796, %v1795
      %v1824 = vpack.c.b16 %v1798, %v1797
      %v1825 = vpack.c.b16 %v1800, %v1799
      %v1826 = vpack.c.b16 %v1802, %v1801
      %v1827 = vpack.c.b16 %v1804, %v1803
      %v1828 = vpack.c.b16 %v1806, %v1805
      %v1829 = vpack.c.b16 %v1808, %v1807
      %v1830 = vpack.c.b16 %v1810, %v1809
      %v1831 = vpack.c.b16 %v1812, %v1811
      %v1832 = vpack.c.b16 %v1814, %v1813
      %v1852 = vsel %vm280, %v1654, 0
      %v1855 = vsel %vm280, %v1657, 0
      %v1858 = vsel %vm280, %v1660, 0
      %v1861 = vsel %vm280, %v1663, 0
      %v1864 = vsel %vm280, %v1666, 0
      %v1867 = vsel %vm280, %v1669, 0
      %v1870 = vsel %vm280, %v1672, 0
      %v1873 = vsel %vm280, %v1675, 0
      %v1876 = vsel %vm280, %v1678, 0
      %v1879 = vsel %vm280, %v1681, 0
      %v1882 = vsel %vm280, %v1684, 0
      %v1885 = vsel %vm280, %v1687, 0
      %v1888 = vsel %vm280, %v1690, 0
      %v1891 = vsel %vm280, %v1693, 0
      %v1894 = vsel %vm280, %v1696, 0
      %v1897 = vsel %vm280, %v1699, 0
      %1899 = vmatprep.subr.bf16.mxu0 0
      %1900 = vmatpush1.bf16.msra.mxu0 %v1815
      %1901 = vmatprep.subr.bf16.mxu0 0
      %1902 = vmatpush1.bf16.msra.mxu0 %v1816
      %1903 = vmatprep.subr.bf16.mxu0 0
      %1904 = vmatpush1.bf16.msra.mxu0 %v1817
      %1905 = vmatprep.subr.bf16.mxu0 0
      %1906 = vmatpush1.bf16.msra.mxu0 %v1818
      %1907 = vmatprep.subr.bf16.mxu0 0
      %1908 = vmatpush1.bf16.msra.mxu0 %v1819
      %1909 = vmatprep.subr.bf16.mxu0 0
      %1910 = vmatpush1.bf16.msra.mxu0 %v1820
      %1911 = vmatprep.subr.bf16.mxu0 0
      %1912 = vmatpush1.bf16.msra.mxu0 %v1821
      %1913 = vmatprep.subr.bf16.mxu0 0
      %1914 = vmatpush1.bf16.msra.mxu0 %v1822
      %1915 = vmatprep.subr.bf16.mxu0 0
      %1916 = vmatpush1.bf16.msra.mxu0 %v1823
      %1917 = vmatprep.subr.bf16.mxu0 0
      %1918 = vmatpush1.bf16.msra.mxu0 %v1824
      %1919 = vmatprep.subr.bf16.mxu0 0
      %1920 = vmatpush1.bf16.msra.mxu0 %v1825
      %1921 = vmatprep.subr.bf16.mxu0 0
      %1922 = vmatpush1.bf16.msra.mxu0 %v1826
      %1923 = vmatprep.subr.bf16.mxu0 0
      %1924 = vmatpush1.bf16.msra.mxu0 %v1827
      %1925 = vmatprep.subr.bf16.mxu0 0
      %1926 = vmatpush1.bf16.msra.mxu0 %v1828
      %1927 = vmatprep.subr.bf16.mxu0 0
      %1928 = vmatpush1.bf16.msra.mxu0 %v1829
      %1929 = vmatprep.subr.bf16.mxu0 0
      %1930 = vmatpush1.bf16.msra.mxu0 %v1830
      %1931 = vmatprep.mubr.bf16.mxu0 %v1653
      %1932 = vmatmul.mubr.bf16.gmra.mrb[0].mxu0 %v1652
      %v1933 = vpop.f32.mrb[0].mxu0
      %v1934 = vadd.f32 %v1741, %v1933
      %v1935 = vpop.f32.mrb[0].mxu0
      %v1936 = vpop.f32.mrb[0].mxu0
      %v1937 = vadd.f32 %v1741, %v1936
      %v1938 = vpop.f32.mrb[0].mxu0
      %1939 = vmatprep.mubr.bf16.mxu0 %v1656
      %1940 = vmatmul.mubr.bf16.gmra.mrb[0].mxu0 %v1655
      %v1941 = vpop.f32.mrb[0].mxu0
      %v1942 = vadd.f32 %v1741, %v1941
      %v1943 = vpop.f32.mrb[0].mxu0
      %v1944 = vpop.f32.mrb[0].mxu0
      %v1945 = vadd.f32 %v1741, %v1944
      %v1946 = vpop.f32.mrb[0].mxu0
      %1947 = vmatprep.mubr.bf16.mxu0 %v1659
      %1948 = vmatmul.mubr.bf16.gmra.mrb[0].mxu0 %v1658
      %v1949 = vpop.f32.mrb[0].mxu0
      %v1950 = vadd.f32 %v1741, %v1949
      %v1951 = vpop.f32.mrb[0].mxu0
      %v1952 = vpop.f32.mrb[0].mxu0
      %v1953 = vadd.f32 %v1741, %v1952
      %v1954 = vpop.f32.mrb[0].mxu0
      %1955 = vmatprep.mubr.bf16.mxu0 %v1662
      %1956 = vmatmul.mubr.bf16.gmra.mrb[0].mxu0 %v1661
      %v1957 = vpop.f32.mrb[0].mxu0
      %v1958 = vadd.f32 %v1741, %v1957
      %v1959 = vpop.f32.mrb[0].mxu0
      %v1960 = vpop.f32.mrb[0].mxu0
      %v1961 = vadd.f32 %v1741, %v1960
      %v1962 = vpop.f32.mrb[0].mxu0
      %1963 = vmatprep.mubr.bf16.mxu0 %v1665
      %1964 = vmatmul.mubr.bf16.gmra.mrb[0].mxu0 %v1664
      %v1965 = vpop.f32.mrb[0].mxu0
      %v1966 = vadd.f32 %v1741, %v1965
      %v1967 = vpop.f32.mrb[0].mxu0
      %v1968 = vpop.f32.mrb[0].mxu0
      %v1969 = vadd.f32 %v1741, %v1968
      %v1970 = vpop.f32.mrb[0].mxu0
      %1971 = vmatprep.mubr.bf16.mxu0 %v1668
      %1972 = vmatmul.mubr.bf16.gmra.mrb[0].mxu0 %v1667
      %v1973 = vpop.f32.mrb[0].mxu0
      %v1974 = vadd.f32 %v1741, %v1973
      %v1975 = vpop.f32.mrb[0].mxu0
      %v1976 = vpop.f32.mrb[0].mxu0
      %v1977 = vadd.f32 %v1741, %v1976
      %v1978 = vpop.f32.mrb[0].mxu0
      %1979 = vmatprep.mubr.bf16.mxu0 %v1671
      %1980 = vmatmul.mubr.bf16.gmra.mrb[0].mxu0 %v1670
      %v1981 = vpop.f32.mrb[0].mxu0
      %v1982 = vadd.f32 %v1741, %v1981
      %v1983 = vpop.f32.mrb[0].mxu0
      %v1984 = vpop.f32.mrb[0].mxu0
      %v1985 = vadd.f32 %v1741, %v1984
      %v1986 = vpop.f32.mrb[0].mxu0
      %1987 = vmatprep.mubr.bf16.mxu0 %v1674
      %1988 = vmatmul.mubr.bf16.gmra.mrb[0].mxu0 %v1673
      %v1989 = vpop.f32.mrb[0].mxu0
      %v1990 = vadd.f32 %v1741, %v1989
      %v1991 = vpop.f32.mrb[0].mxu0
      %v1992 = vpop.f32.mrb[0].mxu0
      %v1993 = vadd.f32 %v1741, %v1992
      %v1994 = vpop.f32.mrb[0].mxu0
      %1995 = vmatprep.mubr.bf16.mxu0 %v1677
      %1996 = vmatmul.mubr.bf16.gmra.mrb[0].mxu0 %v1676
      %v1997 = vpop.f32.mrb[0].mxu0
      %v1998 = vadd.f32 %v1741, %v1997
      %v1999 = vpop.f32.mrb[0].mxu0
      %v2000 = vpop.f32.mrb[0].mxu0
      %v2001 = vadd.f32 %v1741, %v2000
      %v2002 = vpop.f32.mrb[0].mxu0
      %2003 = vmatprep.mubr.bf16.mxu0 %v1680
      %2004 = vmatmul.mubr.bf16.gmra.mrb[0].mxu0 %v1679
      %v2005 = vpop.f32.mrb[0].mxu0
      %v2006 = vadd.f32 %v1741, %v2005
      %v2007 = vpop.f32.mrb[0].mxu0
      %v2008 = vpop.f32.mrb[0].mxu0
      %v2009 = vadd.f32 %v1741, %v2008
      %v2010 = vpop.f32.mrb[0].mxu0
      %2011 = vmatprep.mubr.bf16.mxu0 %v1683
      %2012 = vmatmul.mubr.bf16.gmra.mrb[0].mxu0 %v1682
      %v2013 = vpop.f32.mrb[0].mxu0
      %v2014 = vadd.f32 %v1741, %v2013
      %v2015 = vpop.f32.mrb[0].mxu0
      %v2016 = vpop.f32.mrb[0].mxu0
      %v2017 = vadd.f32 %v1741, %v2016
      %v2018 = vpop.f32.mrb[0].mxu0
      %2019 = vmatprep.mubr.bf16.mxu0 %v1686
      %2020 = vmatmul.mubr.bf16.gmra.mrb[0].mxu0 %v1685
      %v2021 = vpop.f32.mrb[0].mxu0
      %v2022 = vadd.f32 %v1741, %v2021
      %v2023 = vpop.f32.mrb[0].mxu0
      %v2024 = vpop.f32.mrb[0].mxu0
      %v2025 = vadd.f32 %v1741, %v2024
      %v2026 = vpop.f32.mrb[0].mxu0
      %2027 = vmatprep.mubr.bf16.mxu0 %v1689
      %2028 = vmatmul.mubr.bf16.gmra.mrb[0].mxu0 %v1688
      %v2029 = vpop.f32.mrb[0].mxu0
      %v2030 = vadd.f32 %v1741, %v2029
      %v2031 = vpop.f32.mrb[0].mxu0
      %v2032 = vpop.f32.mrb[0].mxu0
      %v2033 = vadd.f32 %v1741, %v2032
      %v2034 = vpop.f32.mrb[0].mxu0
      %2035 = vmatprep.mubr.bf16.mxu0 %v1692
      %2036 = vmatmul.mubr.bf16.gmra.mrb[0].mxu0 %v1691
      %v2037 = vpop.f32.mrb[0].mxu0
      %v2038 = vadd.f32 %v1741, %v2037
      %v2039 = vpop.f32.mrb[0].mxu0
      %v2040 = vpop.f32.mrb[0].mxu0
      %v2041 = vadd.f32 %v1741, %v2040
      %v2042 = vpop.f32.mrb[0].mxu0
      %2043 = vmatprep.mubr.bf16.mxu0 %v1695
      %2044 = vmatmul.mubr.bf16.gmra.mrb[0].mxu0 %v1694
      %v2045 = vpop.f32.mrb[0].mxu0
      %v2046 = vadd.f32 %v1741, %v2045
      %v2047 = vpop.f32.mrb[0].mxu0
      %v2048 = vpop.f32.mrb[0].mxu0
      %v2049 = vadd.f32 %v1741, %v2048
      %v2050 = vpop.f32.mrb[0].mxu0
      %2051 = vmatprep.mubr.bf16.mxu0 %v1698
      %2052 = vmatmul.mubr.bf16.gmra.mrb[0].mxu0 %v1697
      %v2053 = vpop.f32.mrb[0].mxu0
      %v2054 = vadd.f32 %v1741, %v2053
      %v2055 = vpop.f32.mrb[0].mxu0
      %v2056 = vpop.f32.mrb[0].mxu0
      %v2057 = vadd.f32 %v1741, %v2056
      %v2058 = vpop.f32.mrb[0].mxu0
      %2059 = vdwg.mxu0
      %2060 = vmatprep.subr.bf16.mxu0 0
      %2061 = vmatpush1.bf16.msra.mxu0 %v1831
      %2062 = vmatprep.subr.bf16.mxu0 0
      %2063 = vmatpush1.bf16.msra.mxu0 %v1832
      %2064 = vmatprep.subr.bf16.mxu0 0
      %2065 = vmatpush1.bf16.msra.mxu0 0
      %2066 = vmatprep.subr.bf16.mxu0 0
      %2067 = vmatpush1.bf16.msra.mxu0 0
      %2068 = vmatprep.subr.bf16.mxu0 0
      %2069 = vmatpush1.bf16.msra.mxu0 0
      %2070 = vmatprep.subr.bf16.mxu0 0
      %2071 = vmatpush1.bf16.msra.mxu0 0
      %2072 = vmatprep.subr.bf16.mxu0 0
      %2073 = vmatpush1.bf16.msra.mxu0 0
      %2074 = vmatprep.subr.bf16.mxu0 0
      %2075 = vmatpush1.bf16.msra.mxu0 0
      %2076 = vmatprep.subr.bf16.mxu0 0
      %2077 = vmatpush1.bf16.msra.mxu0 0
      %2078 = vmatprep.subr.bf16.mxu0 0
      %2079 = vmatpush1.bf16.msra.mxu0 0
      %2080 = vmatprep.subr.bf16.mxu0 0
      %2081 = vmatpush1.bf16.msra.mxu0 0
      %2082 = vmatprep.subr.bf16.mxu0 0
      %2083 = vmatpush1.bf16.msra.mxu0 0
      %2084 = vmatprep.subr.bf16.mxu0 0
      %2085 = vmatpush1.bf16.msra.mxu0 0
      %2086 = vmatprep.subr.bf16.mxu0 0
      %2087 = vmatpush1.bf16.msra.mxu0 0
      %2088 = vmatprep.subr.bf16.mxu0 0
      %2089 = vmatpush1.bf16.msra.mxu0 0
      %2090 = vmatprep.subr.bf16.mxu0 0
      %2091 = vmatpush1.bf16.msra.mxu0 0
      %2092 = vmatprep.mubr.bf16.mxu0 0
      %2093 = vmatmul.mubr.bf16.gmra.mrb[0].mxu0 %v1852
      %v2094 = vpop.f32.mrb[0].mxu0
      %v2095 = vadd.f32 %v1934, %v2094
      %v2096 = vpop.f32.mrb[0].mxu0
      %v2097 = vpop.f32.mrb[0].mxu0
      %v2098 = vadd.f32 %v1937, %v2097
      %v2099 = vpop.f32.mrb[0].mxu0
      %2100 = vmatprep.mubr.bf16.mxu0 0
      %2101 = vmatmul.mubr.bf16.gmra.mrb[0].mxu0 %v1855
      %v2102 = vpop.f32.mrb[0].mxu0
      %v2103 = vadd.f32 %v1942, %v2102
      %v2104 = vpop.f32.mrb[0].mxu0
      %v2105 = vpop.f32.mrb[0].mxu0
      %v2106 = vadd.f32 %v1945, %v2105
      %v2107 = vpop.f32.mrb[0].mxu0
      %2108 = vmatprep.mubr.bf16.mxu0 0
      %2109 = vmatmul.mubr.bf16.gmra.mrb[0].mxu0 %v1858
      %v2110 = vpop.f32.mrb[0].mxu0
      %v2111 = vadd.f32 %v1950, %v2110
      %v2112 = vpop.f32.mrb[0].mxu0
      %v2113 = vpop.f32.mrb[0].mxu0
      %v2114 = vadd.f32 %v1953, %v2113
      %v2115 = vpop.f32.mrb[0].mxu0
      %2116 = vmatprep.mubr.bf16.mxu0 0
      %2117 = vmatmul.mubr.bf16.gmra.mrb[0].mxu0 %v1861
      %v2118 = vpop.f32.mrb[0].mxu0
      %v2119 = vadd.f32 %v1958, %v2118
      %v2120 = vpop.f32.mrb[0].mxu0
      %v2121 = vpop.f32.mrb[0].mxu0
      %v2122 = vadd.f32 %v1961, %v2121
      %v2123 = vpop.f32.mrb[0].mxu0
      %2124 = vmatprep.mubr.bf16.mxu0 0
      %2125 = vmatmul.mubr.bf16.gmra.mrb[0].mxu0 %v1864
      %v2126 = vpop.f32.mrb[0].mxu0
      %v2127 = vadd.f32 %v1966, %v2126
      %v2128 = vpop.f32.mrb[0].mxu0
      %v2129 = vpop.f32.mrb[0].mxu0
      %v2130 = vadd.f32 %v1969, %v2129
      %v2131 = vpop.f32.mrb[0].mxu0
      %2132 = vmatprep.mubr.bf16.mxu0 0
      %2133 = vmatmul.mubr.bf16.gmra.mrb[0].mxu0 %v1867
      %v2134 = vpop.f32.mrb[0].mxu0
      %v2135 = vadd.f32 %v1974, %v2134
      %v2136 = vpop.f32.mrb[0].mxu0
      %v2137 = vpop.f32.mrb[0].mxu0
      %v2138 = vadd.f32 %v1977, %v2137
      %v2139 = vpop.f32.mrb[0].mxu0
      %2140 = vmatprep.mubr.bf16.mxu0 0
      %2141 = vmatmul.mubr.bf16.gmra.mrb[0].mxu0 %v1870
      %v2142 = vpop.f32.mrb[0].mxu0
      %v2143 = vadd.f32 %v1982, %v2142
      %v2144 = vpop.f32.mrb[0].mxu0
      %v2145 = vpop.f32.mrb[0].mxu0
      %v2146 = vadd.f32 %v1985, %v2145
      %v2147 = vpop.f32.mrb[0].mxu0
      %2148 = vmatprep.mubr.bf16.mxu0 0
      %2149 = vmatmul.mubr.bf16.gmra.mrb[0].mxu0 %v1873
      %v2150 = vpop.f32.mrb[0].mxu0
      %v2151 = vadd.f32 %v1990, %v2150
      %v2152 = vpop.f32.mrb[0].mxu0
      %v2153 = vpop.f32.mrb[0].mxu0
      %v2154 = vadd.f32 %v1993, %v2153
      %v2155 = vpop.f32.mrb[0].mxu0
      %2156 = vmatprep.mubr.bf16.mxu0 0
      %2157 = vmatmul.mubr.bf16.gmra.mrb[0].mxu0 %v1876
      %v2158 = vpop.f32.mrb[0].mxu0
      %v2159 = vadd.f32 %v1998, %v2158
      %v2160 = vpop.f32.mrb[0].mxu0
      %v2161 = vpop.f32.mrb[0].mxu0
      %v2162 = vadd.f32 %v2001, %v2161
      %v2163 = vpop.f32.mrb[0].mxu0
      %2164 = vmatprep.mubr.bf16.mxu0 0
      %2165 = vmatmul.mubr.bf16.gmra.mrb[0].mxu0 %v1879
      %v2166 = vpop.f32.mrb[0].mxu0
      %v2167 = vadd.f32 %v2006, %v2166
      %v2168 = vpop.f32.mrb[0].mxu0
      %v2169 = vpop.f32.mrb[0].mxu0
      %v2170 = vadd.f32 %v2009, %v2169
      %v2171 = vpop.f32.mrb[0].mxu0
      %2172 = vmatprep.mubr.bf16.mxu0 0
      %2173 = vmatmul.mubr.bf16.gmra.mrb[0].mxu0 %v1882
      %v2174 = vpop.f32.mrb[0].mxu0
      %v2175 = vadd.f32 %v2014, %v2174
      %v2176 = vpop.f32.mrb[0].mxu0
      %v2177 = vpop.f32.mrb[0].mxu0
      %v2178 = vadd.f32 %v2017, %v2177
      %v2179 = vpop.f32.mrb[0].mxu0
      %2180 = vmatprep.mubr.bf16.mxu0 0
      %2181 = vmatmul.mubr.bf16.gmra.mrb[0].mxu0 %v1885
      %v2182 = vpop.f32.mrb[0].mxu0
      %v2183 = vadd.f32 %v2022, %v2182
      %v2184 = vpop.f32.mrb[0].mxu0
      %v2185 = vpop.f32.mrb[0].mxu0
      %v2186 = vadd.f32 %v2025, %v2185
      %v2187 = vpop.f32.mrb[0].mxu0
      %2188 = vmatprep.mubr.bf16.mxu0 0
      %2189 = vmatmul.mubr.bf16.gmra.mrb[0].mxu0 %v1888
      %v2190 = vpop.f32.mrb[0].mxu0
      %v2191 = vadd.f32 %v2030, %v2190
      %v2192 = vpop.f32.mrb[0].mxu0
      %v2193 = vpop.f32.mrb[0].mxu0
      %v2194 = vadd.f32 %v2033, %v2193
      %v2195 = vpop.f32.mrb[0].mxu0
      %2196 = vmatprep.mubr.bf16.mxu0 0
      %2197 = vmatmul.mubr.bf16.gmra.mrb[0].mxu0 %v1891
      %v2198 = vpop.f32.mrb[0].mxu0
      %v2199 = vadd.f32 %v2038, %v2198
      %v2200 = vpop.f32.mrb[0].mxu0
      %v2201 = vpop.f32.mrb[0].mxu0
      %v2202 = vadd.f32 %v2041, %v2201
      %v2203 = vpop.f32.mrb[0].mxu0
      %2204 = vmatprep.mubr.bf16.mxu0 0
      %2205 = vmatmul.mubr.bf16.gmra.mrb[0].mxu0 %v1894
      %v2206 = vpop.f32.mrb[0].mxu0
      %v2207 = vadd.f32 %v2046, %v2206
      %v2208 = vpop.f32.mrb[0].mxu0
      %v2209 = vpop.f32.mrb[0].mxu0
      %v2210 = vadd.f32 %v2049, %v2209
      %v2211 = vpop.f32.mrb[0].mxu0
      %2212 = vmatprep.mubr.bf16.mxu0 0
      %2213 = vmatmul.mubr.bf16.gmra.mrb[0].mxu0 %v1897
      %v2214 = vpop.f32.mrb[0].mxu0
      %v2215 = vadd.f32 %v2054, %v2214
      %v2216 = vpop.f32.mrb[0].mxu0
      %v2217 = vpop.f32.mrb[0].mxu0
      %v2218 = vadd.f32 %v2057, %v2217
      %v2219 = vpop.f32.mrb[0].mxu0
      %2220 = vdwg.mxu0
      %vm2221 = vcmp.gt.f32.partialorder %v2095, 0.0
      %vm2222 = vcmp.gt.f32.partialorder %v2098, 0.0
      %vm2223 = vcmp.gt.f32.partialorder %v2103, 0.0
      %vm2224 = vcmp.gt.f32.partialorder %v2106, 0.0
      %vm2225 = vcmp.gt.f32.partialorder %v2111, 0.0
      %vm2226 = vcmp.gt.f32.partialorder %v2114, 0.0
      %vm2227 = vcmp.gt.f32.partialorder %v2119, 0.0
      %vm2228 = vcmp.gt.f32.partialorder %v2122, 0.0
      %vm2229 = vcmp.gt.f32.partialorder %v2127, 0.0
      %vm2230 = vcmp.gt.f32.partialorder %v2130, 0.0
      %vm2231 = vcmp.gt.f32.partialorder %v2135, 0.0
      %vm2232 = vcmp.gt.f32.partialorder %v2138, 0.0
      %vm2233 = vcmp.gt.f32.partialorder %v2143, 0.0
      %vm2234 = vcmp.gt.f32.partialorder %v2146, 0.0
      %vm2235 = vcmp.gt.f32.partialorder %v2151, 0.0
      %vm2236 = vcmp.gt.f32.partialorder %v2154, 0.0
      %vm2237 = vcmp.gt.f32.partialorder %v2159, 0.0
      %vm2238 = vcmp.gt.f32.partialorder %v2162, 0.0
      %vm2239 = vcmp.gt.f32.partialorder %v2167, 0.0
      %vm2240 = vcmp.gt.f32.partialorder %v2170, 0.0
      %vm2241 = vcmp.gt.f32.partialorder %v2175, 0.0
      %vm2242 = vcmp.gt.f32.partialorder %v2178, 0.0
      %vm2243 = vcmp.gt.f32.partialorder %v2183, 0.0
      %vm2244 = vcmp.gt.f32.partialorder %v2186, 0.0
      %vm2245 = vcmp.gt.f32.partialorder %v2191, 0.0
      %vm2246 = vcmp.gt.f32.partialorder %v2194, 0.0
      %vm2247 = vcmp.gt.f32.partialorder %v2199, 0.0
      %vm2248 = vcmp.gt.f32.partialorder %v2202, 0.0
      %vm2249 = vcmp.gt.f32.partialorder %v2207, 0.0
      %vm2250 = vcmp.gt.f32.partialorder %v2210, 0.0
      %vm2251 = vcmp.gt.f32.partialorder %v2215, 0.0
      %vm2252 = vcmp.gt.f32.partialorder %v2218, 0.0
      %v2253 = vmul.f32 %v2095, 0.1
      %v2254 = vmul.f32 %v2098, 0.1
      %v2255 = vmul.f32 %v2103, 0.1
      %v2256 = vmul.f32 %v2106, 0.1
      %v2257 = vmul.f32 %v2111, 0.1
      %v2258 = vmul.f32 %v2114, 0.1
      %v2259 = vmul.f32 %v2119, 0.1
      %v2260 = vmul.f32 %v2122, 0.1
      %v2261 = vmul.f32 %v2127, 0.1
      %v2262 = vmul.f32 %v2130, 0.1
      %v2263 = vmul.f32 %v2135, 0.1
      %v2264 = vmul.f32 %v2138, 0.1
      %v2265 = vmul.f32 %v2143, 0.1
      %v2266 = vmul.f32 %v2146, 0.1
      %v2267 = vmul.f32 %v2151, 0.1
      %v2268 = vmul.f32 %v2154, 0.1
      %v2269 = vmul.f32 %v2159, 0.1
      %v2270 = vmul.f32 %v2162, 0.1
      %v2271 = vmul.f32 %v2167, 0.1
      %v2272 = vmul.f32 %v2170, 0.1
      %v2273 = vmul.f32 %v2175, 0.1
      %v2274 = vmul.f32 %v2178, 0.1
      %v2275 = vmul.f32 %v2183, 0.1
      %v2276 = vmul.f32 %v2186, 0.1
      %v2277 = vmul.f32 %v2191, 0.1
      %v2278 = vmul.f32 %v2194, 0.1
      %v2279 = vmul.f32 %v2199, 0.1
      %v2280 = vmul.f32 %v2202, 0.1
      %v2281 = vmul.f32 %v2207, 0.1
      %v2282 = vmul.f32 %v2210, 0.1
      %v2283 = vmul.f32 %v2215, 0.1
      %v2284 = vmul.f32 %v2218, 0.1
      %v2285 = vsel %vm2221, %v2095, %v2253
      %v2286 = vsel %vm2222, %v2098, %v2254
      %v2287 = vsel %vm2223, %v2103, %v2255
      %v2288 = vsel %vm2224, %v2106, %v2256
      %v2289 = vsel %vm2225, %v2111, %v2257
      %v2290 = vsel %vm2226, %v2114, %v2258
      %v2291 = vsel %vm2227, %v2119, %v2259
      %v2292 = vsel %vm2228, %v2122, %v2260
      %v2293 = vsel %vm2229, %v2127, %v2261
      %v2294 = vsel %vm2230, %v2130, %v2262
      %v2295 = vsel %vm2231, %v2135, %v2263
      %v2296 = vsel %vm2232, %v2138, %v2264
      %v2297 = vsel %vm2233, %v2143, %v2265
      %v2298 = vsel %vm2234, %v2146, %v2266
      %v2299 = vsel %vm2235, %v2151, %v2267
      %v2300 = vsel %vm2236, %v2154, %v2268
      %v2301 = vsel %vm2237, %v2159, %v2269
      %v2302 = vsel %vm2238, %v2162, %v2270
      %v2303 = vsel %vm2239, %v2167, %v2271
      %v2304 = vsel %vm2240, %v2170, %v2272
      %v2305 = vsel %vm2241, %v2175, %v2273
      %v2306 = vsel %vm2242, %v2178, %v2274
      %v2307 = vsel %vm2243, %v2183, %v2275
      %v2308 = vsel %vm2244, %v2186, %v2276
      %v2309 = vsel %vm2245, %v2191, %v2277
      %v2310 = vsel %vm2246, %v2194, %v2278
      %v2311 = vsel %vm2247, %v2199, %v2279
      %v2312 = vsel %vm2248, %v2202, %v2280
      %v2313 = vsel %vm2249, %v2207, %v2281
      %v2314 = vsel %vm2250, %v2210, %v2282
      %v2315 = vsel %vm2251, %v2215, %v2283
      %v2316 = vsel %vm2252, %v2218, %v2284
      %2317 = vst.msk [vmem:[#allocation3] sm:$0xff] %vm280, %v2285
      %2318 = vst.msk [vmem:[#allocation3 + $0x8] sm:$0xff] %vm280, %v2286
      %2319 = vst.msk [vmem:[#allocation3 + $0x10] sm:$0xff] %vm280, %v2287
      %2320 = vst.msk [vmem:[#allocation3 + $0x18] sm:$0xff] %vm280, %v2288
      %2321 = vst.msk [vmem:[#allocation3 + $0x20] sm:$0xff] %vm280, %v2289
      %2322 = vst.msk [vmem:[#allocation3 + $0x28] sm:$0xff] %vm280, %v2290
      %2323 = vst.msk [vmem:[#allocation3 + $0x30] sm:$0xff] %vm280, %v2291
      %2324 = vst.msk [vmem:[#allocation3 + $0x38] sm:$0xff] %vm280, %v2292
      %2325 = vst.msk [vmem:[#allocation3 + $0x40] sm:$0xff] %vm280, %v2293
      %2326 = vst.msk [vmem:[#allocation3 + $0x48] sm:$0xff] %vm280, %v2294
      %2327 = vst.msk [vmem:[#allocation3 + $0x50] sm:$0xff] %vm280, %v2295
      %2328 = vst.msk [vmem:[#allocation3 + $0x58] sm:$0xff] %vm280, %v2296
      %2329 = vst.msk [vmem:[#allocation3 + $0x60] sm:$0xff] %vm280, %v2297
      %2330 = vst.msk [vmem:[#allocation3 + $0x68] sm:$0xff] %vm280, %v2298
      %2331 = vst.msk [vmem:[#allocation3 + $0x70] sm:$0xff] %vm280, %v2299
      %2332 = vst.msk [vmem:[#allocation3 + $0x78] sm:$0xff] %vm280, %v2300
      %2333 = vst.msk [vmem:[#allocation3 + $0x80] sm:$0xff] %vm280, %v2301
      %2334 = vst.msk [vmem:[#allocation3 + $0x88] sm:$0xff] %vm280, %v2302
      %2335 = vst.msk [vmem:[#allocation3 + $0x90] sm:$0xff] %vm280, %v2303
      %2336 = vst.msk [vmem:[#allocation3 + $0x98] sm:$0xff] %vm280, %v2304
      %2337 = vst.msk [vmem:[#allocation3 + $0xa0] sm:$0xff] %vm280, %v2305
      %2338 = vst.msk [vmem:[#allocation3 + $0xa8] sm:$0xff] %vm280, %v2306
      %2339 = vst.msk [vmem:[#allocation3 + $0xb0] sm:$0xff] %vm280, %v2307
      %2340 = vst.msk [vmem:[#allocation3 + $0xb8] sm:$0xff] %vm280, %v2308
      %2341 = vst.msk [vmem:[#allocation3 + $0xc0] sm:$0xff] %vm280, %v2309
      %2342 = vst.msk [vmem:[#allocation3 + $0xc8] sm:$0xff] %vm280, %v2310
      %2343 = vst.msk [vmem:[#allocation3 + $0xd0] sm:$0xff] %vm280, %v2311
      %2344 = vst.msk [vmem:[#allocation3 + $0xd8] sm:$0xff] %vm280, %v2312
      %2345 = vst.msk [vmem:[#allocation3 + $0xe0] sm:$0xff] %vm280, %v2313
      %2346 = vst.msk [vmem:[#allocation3 + $0xe8] sm:$0xff] %vm280, %v2314
      %2347 = vst.msk [vmem:[#allocation3 + $0xf0] sm:$0xff] %vm280, %v2315
      %2348 = vst.msk [vmem:[#allocation3 + $0xf8] sm:$0xff] %vm280, %v2316
      %2349 = vst.msk [vmem:[%s368 + $0x1] sm:$0xff] %vm280, %v2285
      %2350 = vst.msk [vmem:[%s368 + $0x9] sm:$0xff] %vm280, %v2286
      %2351 = vst.msk [vmem:[%s368 + $0x19] sm:$0xff] %vm280, %v2287
      %2352 = vst.msk [vmem:[%s368 + $0x21] sm:$0xff] %vm280, %v2288
      %2353 = vst.msk [vmem:[%s368 + $0x31] sm:$0xff] %vm280, %v2289
      %2354 = vst.msk [vmem:[%s368 + $0x39] sm:$0xff] %vm280, %v2290
      %2355 = vst.msk [vmem:[%s368 + $0x49] sm:$0xff] %vm280, %v2291
      %2356 = vst.msk [vmem:[%s368 + $0x51] sm:$0xff] %vm280, %v2292
      %2357 = vst.msk [vmem:[%s368 + $0x61] sm:$0xff] %vm280, %v2293
      %2358 = vst.msk [vmem:[%s368 + $0x69] sm:$0xff] %vm280, %v2294
      %2359 = vst.msk [vmem:[%s368 + $0x79] sm:$0xff] %vm280, %v2295
      %2360 = vst.msk [vmem:[%s368 + $0x81] sm:$0xff] %vm280, %v2296
      %2361 = vst.msk [vmem:[%s368 + $0x91] sm:$0xff] %vm280, %v2297
      %2362 = vst.msk [vmem:[%s368 + $0x99] sm:$0xff] %vm280, %v2298
      %2363 = vst.msk [vmem:[%s368 + $0xa9] sm:$0xff] %vm280, %v2299
      %2364 = vst.msk [vmem:[%s368 + $0xb1] sm:$0xff] %vm280, %v2300
      %2365 = vst.msk [vmem:[%s368 + $0xc1] sm:$0xff] %vm280, %v2301
      %2366 = vst.msk [vmem:[%s368 + $0xc9] sm:$0xff] %vm280, %v2302
      %2367 = vst.msk [vmem:[%s368 + $0xd9] sm:$0xff] %vm280, %v2303
      %2368 = vst.msk [vmem:[%s368 + $0xe1] sm:$0xff] %vm280, %v2304
      %2369 = vst.msk [vmem:[%s368 + $0xf1] sm:$0xff] %vm280, %v2305
      %2370 = vst.msk [vmem:[%s368 + $0xf9] sm:$0xff] %vm280, %v2306
      %2371 = vst.msk [vmem:[%s368 + $0x109] sm:$0xff] %vm280, %v2307
      %2372 = vst.msk [vmem:[%s368 + $0x111] sm:$0xff] %vm280, %v2308
      %2373 = vst.msk [vmem:[%s368 + $0x121] sm:$0xff] %vm280, %v2309
      %2374 = vst.msk [vmem:[%s368 + $0x129] sm:$0xff] %vm280, %v2310
      %2375 = vst.msk [vmem:[%s368 + $0x139] sm:$0xff] %vm280, %v2311
      %2376 = vst.msk [vmem:[%s368 + $0x141] sm:$0xff] %vm280, %v2312
      %2377 = vst.msk [vmem:[%s368 + $0x151] sm:$0xff] %vm280, %v2313
      %2378 = vst.msk [vmem:[%s368 + $0x159] sm:$0xff] %vm280, %v2314
      %2379 = vst.msk [vmem:[%s368 + $0x169] sm:$0xff] %vm280, %v2315
      %2380 = vst.msk [vmem:[%s368 + $0x171] sm:$0xff] %vm280, %v2316
      %v2381 = vld [vmem:[#allocation2] sm:$0xff]
      %v2382 = vld [vmem:[#allocation2 + $0x8] sm:$0xff]
      %v2383 = vld [vmem:[#allocation2 + $0x18] sm:$0xff]
      %v2384 = vld [vmem:[#allocation2 + $0x20] sm:$0xff]
      %v2385 = vld [vmem:[#allocation2 + $0x30] sm:$0xff]
      %v2386 = vld [vmem:[#allocation2 + $0x38] sm:$0xff]
      %v2387 = vld [vmem:[#allocation2 + $0x48] sm:$0xff]
      %v2388 = vld [vmem:[#allocation2 + $0x50] sm:$0xff]
      %v2389 = vld [vmem:[#allocation2 + $0x60] sm:$0xff]
      %v2390 = vld [vmem:[#allocation2 + $0x68] sm:$0xff]
      %v2391 = vld [vmem:[#allocation2 + $0x78] sm:$0xff]
      %v2392 = vld [vmem:[#allocation2 + $0x80] sm:$0xff]
      %v2393 = vld [vmem:[#allocation2 + $0x90] sm:$0xff]
      %v2394 = vld [vmem:[#allocation2 + $0x98] sm:$0xff]
      %v2395 = vld [vmem:[#allocation2 + $0xa8] sm:$0xff]
      %v2396 = vld [vmem:[#allocation2 + $0xb0] sm:$0xff]
      %v2397 = vld [vmem:[#allocation2 + $0xc0] sm:$0xff]
      %v2398 = vld [vmem:[#allocation2 + $0xc8] sm:$0xff]
      %v2399 = vld [vmem:[#allocation2 + $0xd8] sm:$0xff]
      %v2400 = vld [vmem:[#allocation2 + $0xe0] sm:$0xff]
      %v2401 = vld [vmem:[#allocation2 + $0xf0] sm:$0xff]
      %v2402 = vld [vmem:[#allocation2 + $0xf8] sm:$0xff]
      %v2403 = vld [vmem:[#allocation2 + $0x108] sm:$0xff]
      %v2404 = vld [vmem:[#allocation2 + $0x110] sm:$0xff]
      %v2405 = vld [vmem:[#allocation2 + $0x120] sm:$0xff]
      %v2406 = vld [vmem:[#allocation2 + $0x128] sm:$0xff]
      %v2407 = vld [vmem:[#allocation2 + $0x138] sm:$0xff]
      %v2408 = vld [vmem:[#allocation2 + $0x140] sm:$0xff]
      %v2409 = vld [vmem:[#allocation2 + $0x150] sm:$0xff]
      %v2410 = vld [vmem:[#allocation2 + $0x158] sm:$0xff]
      %v2411 = vld [vmem:[#allocation2 + $0x168] sm:$0xff]
      %v2412 = vld [vmem:[#allocation2 + $0x170] sm:$0xff]
      %v2413 = vld [vmem:[#allocation2 + $0x1] sm:$0xff]
      %v2414 = vld [vmem:[#allocation2 + $0x9] sm:$0xff]
      %v2415 = vld [vmem:[#allocation2 + $0x19] sm:$0xff]
      %v2416 = vld [vmem:[#allocation2 + $0x21] sm:$0xff]
      %v2417 = vld [vmem:[#allocation2 + $0x31] sm:$0xff]
      %v2418 = vld [vmem:[#allocation2 + $0x39] sm:$0xff]
      %v2419 = vld [vmem:[#allocation2 + $0x49] sm:$0xff]
      %v2420 = vld [vmem:[#allocation2 + $0x51] sm:$0xff]
      %v2421 = vld [vmem:[#allocation2 + $0x61] sm:$0xff]
      %v2422 = vld [vmem:[#allocation2 + $0x69] sm:$0xff]
      %v2423 = vld [vmem:[#allocation2 + $0x79] sm:$0xff]
      %v2424 = vld [vmem:[#allocation2 + $0x81] sm:$0xff]
      %v2425 = vld [vmem:[#allocation2 + $0x91] sm:$0xff]
      %v2426 = vld [vmem:[#allocation2 + $0x99] sm:$0xff]
      %v2427 = vld [vmem:[#allocation2 + $0xa9] sm:$0xff]
      %v2428 = vld [vmem:[#allocation2 + $0xb1] sm:$0xff]
      %v2429 = vld [vmem:[#allocation2 + $0xc1] sm:$0xff]
      %v2430 = vld [vmem:[#allocation2 + $0xc9] sm:$0xff]
      %v2431 = vld [vmem:[#allocation2 + $0xd9] sm:$0xff]
      %v2432 = vld [vmem:[#allocation2 + $0xe1] sm:$0xff]
      %v2433 = vld [vmem:[#allocation2 + $0xf1] sm:$0xff]
      %v2434 = vld [vmem:[#allocation2 + $0xf9] sm:$0xff]
      %v2435 = vld [vmem:[#allocation2 + $0x109] sm:$0xff]
      %v2436 = vld [vmem:[#allocation2 + $0x111] sm:$0xff]
      %v2437 = vld [vmem:[#allocation2 + $0x121] sm:$0xff]
      %v2438 = vld [vmem:[#allocation2 + $0x129] sm:$0xff]
      %v2439 = vld [vmem:[#allocation2 + $0x139] sm:$0xff]
      %v2440 = vld [vmem:[#allocation2 + $0x141] sm:$0xff]
      %v2441 = vld [vmem:[#allocation2 + $0x151] sm:$0xff]
      %v2442 = vld [vmem:[#allocation2 + $0x159] sm:$0xff]
      %v2443 = vld [vmem:[#allocation2 + $0x169] sm:$0xff]
      %v2444 = vld [vmem:[#allocation2 + $0x171] sm:$0xff]
      %v2445 = vld [vmem:[#allocation2 + $0x2] sm:$0xff]
      %v2446 = vld [vmem:[#allocation2 + $0xa] sm:$0xff]
      %v2447 = vld [vmem:[#allocation2 + $0x1a] sm:$0xff]
      %v2448 = vld [vmem:[#allocation2 + $0x22] sm:$0xff]
      %v2449 = vld [vmem:[#allocation2 + $0x32] sm:$0xff]
      %v2450 = vld [vmem:[#allocation2 + $0x3a] sm:$0xff]
      %v2451 = vld [vmem:[#allocation2 + $0x4a] sm:$0xff]
      %v2452 = vld [vmem:[#allocation2 + $0x52] sm:$0xff]
      %v2453 = vld [vmem:[#allocation2 + $0x62] sm:$0xff]
      %v2454 = vld [vmem:[#allocation2 + $0x6a] sm:$0xff]
      %v2455 = vld [vmem:[#allocation2 + $0x7a] sm:$0xff]
      %v2456 = vld [vmem:[#allocation2 + $0x82] sm:$0xff]
      %v2457 = vld [vmem:[#allocation2 + $0x92] sm:$0xff]
      %v2458 = vld [vmem:[#allocation2 + $0x9a] sm:$0xff]
      %v2459 = vld [vmem:[#allocation2 + $0xaa] sm:$0xff]
      %v2460 = vld [vmem:[#allocation2 + $0xb2] sm:$0xff]
      %v2461 = vld [vmem:[#allocation2 + $0xc2] sm:$0xff]
      %v2462 = vld [vmem:[#allocation2 + $0xca] sm:$0xff]
      %v2463 = vld [vmem:[#allocation2 + $0xda] sm:$0xff]
      %v2464 = vld [vmem:[#allocation2 + $0xe2] sm:$0xff]
      %v2465 = vld [vmem:[#allocation2 + $0xf2] sm:$0xff]
      %v2466 = vld [vmem:[#allocation2 + $0xfa] sm:$0xff]
      %v2467 = vld [vmem:[#allocation2 + $0x10a] sm:$0xff]
      %v2468 = vld [vmem:[#allocation2 + $0x112] sm:$0xff]
      %v2469 = vld [vmem:[#allocation2 + $0x122] sm:$0xff]
      %v2470 = vld [vmem:[#allocation2 + $0x12a] sm:$0xff]
      %v2471 = vld [vmem:[#allocation2 + $0x13a] sm:$0xff]
      %v2472 = vld [vmem:[#allocation2 + $0x142] sm:$0xff]
      %v2473 = vld [vmem:[#allocation2 + $0x152] sm:$0xff]
      %v2474 = vld [vmem:[#allocation2 + $0x15a] sm:$0xff]
      %v2475 = vld [vmem:[#allocation2 + $0x16a] sm:$0xff]
      %v2476 = vld [vmem:[#allocation2 + $0x172] sm:$0xff]
      %v2477 = vld [vmem:[%s368] sm:$0xff]
      %v2478 = vld [vmem:[%s368 + $0x8] sm:$0xff]
      %v2479 = vld [vmem:[%s368 + $0x18] sm:$0xff]
      %v2480 = vld [vmem:[%s368 + $0x20] sm:$0xff]
      %v2481 = vld [vmem:[%s368 + $0x30] sm:$0xff]
      %v2482 = vld [vmem:[%s368 + $0x38] sm:$0xff]
      %v2483 = vld [vmem:[%s368 + $0x48] sm:$0xff]
      %v2484 = vld [vmem:[%s368 + $0x50] sm:$0xff]
      %v2485 = vld [vmem:[%s368 + $0x60] sm:$0xff]
      %v2486 = vld [vmem:[%s368 + $0x68] sm:$0xff]
      %v2487 = vld [vmem:[%s368 + $0x78] sm:$0xff]
      %v2488 = vld [vmem:[%s368 + $0x80] sm:$0xff]
      %v2489 = vld [vmem:[%s368 + $0x90] sm:$0xff]
      %v2490 = vld [vmem:[%s368 + $0x98] sm:$0xff]
      %v2491 = vld [vmem:[%s368 + $0xa8] sm:$0xff]
      %v2492 = vld [vmem:[%s368 + $0xb0] sm:$0xff]
      %v2493 = vld [vmem:[%s368 + $0xc0] sm:$0xff]
      %v2494 = vld [vmem:[%s368 + $0xc8] sm:$0xff]
      %v2495 = vld [vmem:[%s368 + $0xd8] sm:$0xff]
      %v2496 = vld [vmem:[%s368 + $0xe0] sm:$0xff]
      %v2497 = vld [vmem:[%s368 + $0xf0] sm:$0xff]
      %v2498 = vld [vmem:[%s368 + $0xf8] sm:$0xff]
      %v2499 = vld [vmem:[%s368 + $0x108] sm:$0xff]
      %v2500 = vld [vmem:[%s368 + $0x110] sm:$0xff]
      %v2501 = vld [vmem:[%s368 + $0x120] sm:$0xff]
      %v2502 = vld [vmem:[%s368 + $0x128] sm:$0xff]
      %v2503 = vld [vmem:[%s368 + $0x138] sm:$0xff]
      %v2504 = vld [vmem:[%s368 + $0x140] sm:$0xff]
      %v2505 = vld [vmem:[%s368 + $0x150] sm:$0xff]
      %v2506 = vld [vmem:[%s368 + $0x158] sm:$0xff]
      %v2507 = vld [vmem:[%s368 + $0x168] sm:$0xff]
      %v2508 = vld [vmem:[%s368 + $0x170] sm:$0xff]
      %v2509 = vld [vmem:[%s368 + $0x1] sm:$0xff]
      %v2510 = vld [vmem:[%s368 + $0x9] sm:$0xff]
      %v2511 = vld [vmem:[%s368 + $0x19] sm:$0xff]
      %v2512 = vld [vmem:[%s368 + $0x21] sm:$0xff]
      %v2513 = vld [vmem:[%s368 + $0x31] sm:$0xff]
      %v2514 = vld [vmem:[%s368 + $0x39] sm:$0xff]
      %v2515 = vld [vmem:[%s368 + $0x49] sm:$0xff]
      %v2516 = vld [vmem:[%s368 + $0x51] sm:$0xff]
      %v2517 = vld [vmem:[%s368 + $0x61] sm:$0xff]
      %v2518 = vld [vmem:[%s368 + $0x69] sm:$0xff]
      %v2519 = vld [vmem:[%s368 + $0x79] sm:$0xff]
      %v2520 = vld [vmem:[%s368 + $0x81] sm:$0xff]
      %v2521 = vld [vmem:[%s368 + $0x91] sm:$0xff]
      %v2522 = vld [vmem:[%s368 + $0x99] sm:$0xff]
      %v2523 = vld [vmem:[%s368 + $0xa9] sm:$0xff]
      %v2524 = vld [vmem:[%s368 + $0xb1] sm:$0xff]
      %v2525 = vld [vmem:[%s368 + $0xc1] sm:$0xff]
      %v2526 = vld [vmem:[%s368 + $0xc9] sm:$0xff]
      %v2527 = vld [vmem:[%s368 + $0xd9] sm:$0xff]
      %v2528 = vld [vmem:[%s368 + $0xe1] sm:$0xff]
      %v2529 = vld [vmem:[%s368 + $0xf1] sm:$0xff]
      %v2530 = vld [vmem:[%s368 + $0xf9] sm:$0xff]
      %v2531 = vld [vmem:[%s368 + $0x109] sm:$0xff]
      %v2532 = vld [vmem:[%s368 + $0x111] sm:$0xff]
      %v2533 = vld [vmem:[%s368 + $0x121] sm:$0xff]
      %v2534 = vld [vmem:[%s368 + $0x129] sm:$0xff]
      %v2535 = vld [vmem:[%s368 + $0x139] sm:$0xff]
      %v2536 = vld [vmem:[%s368 + $0x141] sm:$0xff]
      %v2537 = vld [vmem:[%s368 + $0x151] sm:$0xff]
      %v2538 = vld [vmem:[%s368 + $0x159] sm:$0xff]
      %v2539 = vld [vmem:[%s368 + $0x169] sm:$0xff]
      %v2540 = vld [vmem:[%s368 + $0x171] sm:$0xff]
      %v2541 = vld [vmem:[%s368 + $0x2] sm:$0xff]
      %v2542 = vld [vmem:[%s368 + $0xa] sm:$0xff]
      %v2543 = vld [vmem:[%s368 + $0x1a] sm:$0xff]
      %v2544 = vld [vmem:[%s368 + $0x22] sm:$0xff]
      %v2545 = vld [vmem:[%s368 + $0x32] sm:$0xff]
      %v2546 = vld [vmem:[%s368 + $0x3a] sm:$0xff]
      %v2547 = vld [vmem:[%s368 + $0x4a] sm:$0xff]
      %v2548 = vld [vmem:[%s368 + $0x52] sm:$0xff]
      %v2549 = vld [vmem:[%s368 + $0x62] sm:$0xff]
      %v2550 = vld [vmem:[%s368 + $0x6a] sm:$0xff]
      %v2551 = vld [vmem:[%s368 + $0x7a] sm:$0xff]
      %v2552 = vld [vmem:[%s368 + $0x82] sm:$0xff]
      %v2553 = vld [vmem:[%s368 + $0x92] sm:$0xff]
      %v2554 = vld [vmem:[%s368 + $0x9a] sm:$0xff]
      %v2555 = vld [vmem:[%s368 + $0xaa] sm:$0xff]
      %v2556 = vld [vmem:[%s368 + $0xb2] sm:$0xff]
      %v2557 = vld [vmem:[%s368 + $0xc2] sm:$0xff]
      %v2558 = vld [vmem:[%s368 + $0xca] sm:$0xff]
      %v2559 = vld [vmem:[%s368 + $0xda] sm:$0xff]
      %v2560 = vld [vmem:[%s368 + $0xe2] sm:$0xff]
      %v2561 = vld [vmem:[%s368 + $0xf2] sm:$0xff]
      %v2562 = vld [vmem:[%s368 + $0xfa] sm:$0xff]
      %v2563 = vld [vmem:[%s368 + $0x10a] sm:$0xff]
      %v2564 = vld [vmem:[%s368 + $0x112] sm:$0xff]
      %v2565 = vld [vmem:[%s368 + $0x122] sm:$0xff]
      %v2566 = vld [vmem:[%s368 + $0x12a] sm:$0xff]
      %v2567 = vld [vmem:[%s368 + $0x13a] sm:$0xff]
      %v2568 = vld [vmem:[%s368 + $0x142] sm:$0xff]
      %v2569 = vld [vmem:[%s368 + $0x152] sm:$0xff]
      %v2570 = vld [vmem:[%s368 + $0x15a] sm:$0xff]
      %v2571 = vld [vmem:[%s368 + $0x16a] sm:$0xff]
      %v2572 = vld [vmem:[%s368 + $0x172] sm:$0xff]
      %v2573 = vld [vmem:[%s593] sm:$0xff]
      %v2574 = vld [vmem:[%s593 + $0x8] sm:$0xff]
      %v2575 = vld [vmem:[%s593 + $0x18] sm:$0xff]
      %v2576 = vld [vmem:[%s593 + $0x20] sm:$0xff]
      %v2577 = vld [vmem:[%s593 + $0x30] sm:$0xff]
      %v2578 = vld [vmem:[%s593 + $0x38] sm:$0xff]
      %v2579 = vld [vmem:[%s593 + $0x48] sm:$0xff]
      %v2580 = vld [vmem:[%s593 + $0x50] sm:$0xff]
      %v2581 = vld [vmem:[%s593 + $0x60] sm:$0xff]
      %v2582 = vld [vmem:[%s593 + $0x68] sm:$0xff]
      %v2583 = vld [vmem:[%s593 + $0x78] sm:$0xff]
      %v2584 = vld [vmem:[%s593 + $0x80] sm:$0xff]
      %v2585 = vld [vmem:[%s593 + $0x90] sm:$0xff]
      %v2586 = vld [vmem:[%s593 + $0x98] sm:$0xff]
      %v2587 = vld [vmem:[%s593 + $0xa8] sm:$0xff]
      %v2588 = vld [vmem:[%s593 + $0xb0] sm:$0xff]
      %v2589 = vld [vmem:[%s593 + $0xc0] sm:$0xff]
      %v2590 = vld [vmem:[%s593 + $0xc8] sm:$0xff]
      %v2591 = vld [vmem:[%s593 + $0xd8] sm:$0xff]
      %v2592 = vld [vmem:[%s593 + $0xe0] sm:$0xff]
      %v2593 = vld [vmem:[%s593 + $0xf0] sm:$0xff]
      %v2594 = vld [vmem:[%s593 + $0xf8] sm:$0xff]
      %v2595 = vld [vmem:[%s593 + $0x108] sm:$0xff]
      %v2596 = vld [vmem:[%s593 + $0x110] sm:$0xff]
      %v2597 = vld [vmem:[%s593 + $0x120] sm:$0xff]
      %v2598 = vld [vmem:[%s593 + $0x128] sm:$0xff]
      %v2599 = vld [vmem:[%s593 + $0x138] sm:$0xff]
      %v2600 = vld [vmem:[%s593 + $0x140] sm:$0xff]
      %v2601 = vld [vmem:[%s593 + $0x150] sm:$0xff]
      %v2602 = vld [vmem:[%s593 + $0x158] sm:$0xff]
      %v2603 = vld [vmem:[%s593 + $0x168] sm:$0xff]
      %v2604 = vld [vmem:[%s593 + $0x170] sm:$0xff]
      %v2605 = vld [vmem:[%s593 + $0x1] sm:$0xff]
      %v2606 = vld [vmem:[%s593 + $0x9] sm:$0xff]
      %v2607 = vld [vmem:[%s593 + $0x19] sm:$0xff]
      %v2608 = vld [vmem:[%s593 + $0x21] sm:$0xff]
      %v2609 = vld [vmem:[%s593 + $0x31] sm:$0xff]
      %v2610 = vld [vmem:[%s593 + $0x39] sm:$0xff]
      %v2611 = vld [vmem:[%s593 + $0x49] sm:$0xff]
      %v2612 = vld [vmem:[%s593 + $0x51] sm:$0xff]
      %v2613 = vld [vmem:[%s593 + $0x61] sm:$0xff]
      %v2614 = vld [vmem:[%s593 + $0x69] sm:$0xff]
      %v2615 = vld [vmem:[%s593 + $0x79] sm:$0xff]
      %v2616 = vld [vmem:[%s593 + $0x81] sm:$0xff]
      %v2617 = vld [vmem:[%s593 + $0x91] sm:$0xff]
      %v2618 = vld [vmem:[%s593 + $0x99] sm:$0xff]
      %v2619 = vld [vmem:[%s593 + $0xa9] sm:$0xff]
      %v2620 = vld [vmem:[%s593 + $0xb1] sm:$0xff]
      %v2621 = vld [vmem:[%s593 + $0xc1] sm:$0xff]
      %v2622 = vld [vmem:[%s593 + $0xc9] sm:$0xff]
      %v2623 = vld [vmem:[%s593 + $0xd9] sm:$0xff]
      %v2624 = vld [vmem:[%s593 + $0xe1] sm:$0xff]
      %v2625 = vld [vmem:[%s593 + $0xf1] sm:$0xff]
      %v2626 = vld [vmem:[%s593 + $0xf9] sm:$0xff]
      %v2627 = vld [vmem:[%s593 + $0x109] sm:$0xff]
      %v2628 = vld [vmem:[%s593 + $0x111] sm:$0xff]
      %v2629 = vld [vmem:[%s593 + $0x121] sm:$0xff]
      %v2630 = vld [vmem:[%s593 + $0x129] sm:$0xff]
      %v2631 = vld [vmem:[%s593 + $0x139] sm:$0xff]
      %v2632 = vld [vmem:[%s593 + $0x141] sm:$0xff]
      %v2633 = vld [vmem:[%s593 + $0x151] sm:$0xff]
      %v2634 = vld [vmem:[%s593 + $0x159] sm:$0xff]
      %v2635 = vld [vmem:[%s593 + $0x169] sm:$0xff]
      %v2636 = vld [vmem:[%s593 + $0x171] sm:$0xff]
      %v2637 = vld [vmem:[%s593 + $0x2] sm:$0xff]
      %v2638 = vld [vmem:[%s593 + $0xa] sm:$0xff]
      %v2639 = vld [vmem:[%s593 + $0x1a] sm:$0xff]
      %v2640 = vld [vmem:[%s593 + $0x22] sm:$0xff]
      %v2641 = vld [vmem:[%s593 + $0x32] sm:$0xff]
      %v2642 = vld [vmem:[%s593 + $0x3a] sm:$0xff]
      %v2643 = vld [vmem:[%s593 + $0x4a] sm:$0xff]
      %v2644 = vld [vmem:[%s593 + $0x52] sm:$0xff]
      %v2645 = vld [vmem:[%s593 + $0x62] sm:$0xff]
      %v2646 = vld [vmem:[%s593 + $0x6a] sm:$0xff]
      %v2647 = vld [vmem:[%s593 + $0x7a] sm:$0xff]
      %v2648 = vld [vmem:[%s593 + $0x82] sm:$0xff]
      %v2649 = vld [vmem:[%s593 + $0x92] sm:$0xff]
      %v2650 = vld [vmem:[%s593 + $0x9a] sm:$0xff]
      %v2651 = vld [vmem:[%s593 + $0xaa] sm:$0xff]
      %v2652 = vld [vmem:[%s593 + $0xb2] sm:$0xff]
      %v2653 = vld [vmem:[%s593 + $0xc2] sm:$0xff]
      %v2654 = vld [vmem:[%s593 + $0xca] sm:$0xff]
      %v2655 = vld [vmem:[%s593 + $0xda] sm:$0xff]
      %v2656 = vld [vmem:[%s593 + $0xe2] sm:$0xff]
      %v2657 = vld [vmem:[%s593 + $0xf2] sm:$0xff]
      %v2658 = vld [vmem:[%s593 + $0xfa] sm:$0xff]
      %v2659 = vld [vmem:[%s593 + $0x10a] sm:$0xff]
      %v2660 = vld [vmem:[%s593 + $0x112] sm:$0xff]
      %v2661 = vld [vmem:[%s593 + $0x122] sm:$0xff]
      %v2662 = vld [vmem:[%s593 + $0x12a] sm:$0xff]
      %v2663 = vld [vmem:[%s593 + $0x13a] sm:$0xff]
      %v2664 = vld [vmem:[%s593 + $0x142] sm:$0xff]
      %v2665 = vld [vmem:[%s593 + $0x152] sm:$0xff]
      %v2666 = vld [vmem:[%s593 + $0x15a] sm:$0xff]
      %v2667 = vld [vmem:[%s593 + $0x16a] sm:$0xff]
      %v2668 = vld [vmem:[%s593 + $0x172] sm:$0xff]
      %2701 = vrot.lane.b32.xlu0 %v2413, 32
      %v2702 = vpop.permute.xlu0 %2701
      %2703 = vrot.lane.b32.xlu0 %v2414, 32
      %v2704 = vpop.permute.xlu0 %2703
      %2705 = vrot.lane.b32.xlu0 %v2415, 32
      %v2706 = vpop.permute.xlu0 %2705
      %2707 = vrot.lane.b32.xlu0 %v2416, 32
      %v2708 = vpop.permute.xlu0 %2707
      %2709 = vrot.lane.b32.xlu0 %v2417, 32
      %v2710 = vpop.permute.xlu0 %2709
      %2711 = vrot.lane.b32.xlu0 %v2418, 32
      %v2712 = vpop.permute.xlu0 %2711
      %2713 = vrot.lane.b32.xlu0 %v2419, 32
      %v2714 = vpop.permute.xlu0 %2713
      %2715 = vrot.lane.b32.xlu0 %v2420, 32
      %v2716 = vpop.permute.xlu0 %2715
      %2717 = vrot.lane.b32.xlu0 %v2421, 32
      %v2718 = vpop.permute.xlu0 %2717
      %2719 = vrot.lane.b32.xlu0 %v2422, 32
      %v2720 = vpop.permute.xlu0 %2719
      %2721 = vrot.lane.b32.xlu0 %v2423, 32
      %v2722 = vpop.permute.xlu0 %2721
      %2723 = vrot.lane.b32.xlu0 %v2424, 32
      %v2724 = vpop.permute.xlu0 %2723
      %2725 = vrot.lane.b32.xlu0 %v2425, 32
      %v2726 = vpop.permute.xlu0 %2725
      %2727 = vrot.lane.b32.xlu0 %v2426, 32
      %v2728 = vpop.permute.xlu0 %2727
      %2729 = vrot.lane.b32.xlu0 %v2427, 32
      %v2730 = vpop.permute.xlu0 %2729
      %2731 = vrot.lane.b32.xlu0 %v2428, 32
      %v2732 = vpop.permute.xlu0 %2731
      %2733 = vrot.lane.b32.xlu0 %v2429, 32
      %v2734 = vpop.permute.xlu0 %2733
      %2735 = vrot.lane.b32.xlu0 %v2430, 32
      %v2736 = vpop.permute.xlu0 %2735
      %2737 = vrot.lane.b32.xlu0 %v2431, 32
      %v2738 = vpop.permute.xlu0 %2737
      %2739 = vrot.lane.b32.xlu0 %v2432, 32
      %v2740 = vpop.permute.xlu0 %2739
      %2741 = vrot.lane.b32.xlu0 %v2433, 32
      %v2742 = vpop.permute.xlu0 %2741
      %2743 = vrot.lane.b32.xlu0 %v2434, 32
      %v2744 = vpop.permute.xlu0 %2743
      %2745 = vrot.lane.b32.xlu0 %v2435, 32
      %v2746 = vpop.permute.xlu0 %2745
      %2747 = vrot.lane.b32.xlu0 %v2436, 32
      %v2748 = vpop.permute.xlu0 %2747
      %2749 = vrot.lane.b32.xlu0 %v2437, 32
      %v2750 = vpop.permute.xlu0 %2749
      %2751 = vrot.lane.b32.xlu0 %v2438, 32
      %v2752 = vpop.permute.xlu0 %2751
      %2753 = vrot.lane.b32.xlu0 %v2439, 32
      %v2754 = vpop.permute.xlu0 %2753
      %2755 = vrot.lane.b32.xlu0 %v2440, 32
      %v2756 = vpop.permute.xlu0 %2755
      %2757 = vrot.lane.b32.xlu0 %v2441, 32
      %v2758 = vpop.permute.xlu0 %2757
      %2759 = vrot.lane.b32.xlu0 %v2442, 32
      %v2760 = vpop.permute.xlu0 %2759
      %2761 = vrot.lane.b32.xlu0 %v2443, 32
      %v2762 = vpop.permute.xlu0 %2761
      %2763 = vrot.lane.b32.xlu0 %v2444, 32
      %v2764 = vpop.permute.xlu0 %2763
      %2829 = vrot.lane.b32.xlu0 %v2445, 64
      %v2830 = vpop.permute.xlu0 %2829
      %2831 = vrot.lane.b32.xlu0 %v2446, 64
      %v2832 = vpop.permute.xlu0 %2831
      %2833 = vrot.lane.b32.xlu0 %v2447, 64
      %v2834 = vpop.permute.xlu0 %2833
      %2835 = vrot.lane.b32.xlu0 %v2448, 64
      %v2836 = vpop.permute.xlu0 %2835
      %2837 = vrot.lane.b32.xlu0 %v2449, 64
      %v2838 = vpop.permute.xlu0 %2837
      %2839 = vrot.lane.b32.xlu0 %v2450, 64
      %v2840 = vpop.permute.xlu0 %2839
      %2841 = vrot.lane.b32.xlu0 %v2451, 64
      %v2842 = vpop.permute.xlu0 %2841
      %2843 = vrot.lane.b32.xlu0 %v2452, 64
      %v2844 = vpop.permute.xlu0 %2843
      %2845 = vrot.lane.b32.xlu0 %v2453, 64
      %v2846 = vpop.permute.xlu0 %2845
      %2847 = vrot.lane.b32.xlu0 %v2454, 64
      %v2848 = vpop.permute.xlu0 %2847
      %2849 = vrot.lane.b32.xlu0 %v2455, 64
      %v2850 = vpop.permute.xlu0 %2849
      %2851 = vrot.lane.b32.xlu0 %v2456, 64
      %v2852 = vpop.permute.xlu0 %2851
      %2853 = vrot.lane.b32.xlu0 %v2457, 64
      %v2854 = vpop.permute.xlu0 %2853
      %2855 = vrot.lane.b32.xlu0 %v2458, 64
      %v2856 = vpop.permute.xlu0 %2855
      %2857 = vrot.lane.b32.xlu0 %v2459, 64
      %v2858 = vpop.permute.xlu0 %2857
      %2859 = vrot.lane.b32.xlu0 %v2460, 64
      %v2860 = vpop.permute.xlu0 %2859
      %2861 = vrot.lane.b32.xlu0 %v2461, 64
      %v2862 = vpop.permute.xlu0 %2861
      %2863 = vrot.lane.b32.xlu0 %v2462, 64
      %v2864 = vpop.permute.xlu0 %2863
      %2865 = vrot.lane.b32.xlu0 %v2463, 64
      %v2866 = vpop.permute.xlu0 %2865
      %2867 = vrot.lane.b32.xlu0 %v2464, 64
      %v2868 = vpop.permute.xlu0 %2867
      %2869 = vrot.lane.b32.xlu0 %v2465, 64
      %v2870 = vpop.permute.xlu0 %2869
      %2871 = vrot.lane.b32.xlu0 %v2466, 64
      %v2872 = vpop.permute.xlu0 %2871
      %2873 = vrot.lane.b32.xlu0 %v2467, 64
      %v2874 = vpop.permute.xlu0 %2873
      %2875 = vrot.lane.b32.xlu0 %v2468, 64
      %v2876 = vpop.permute.xlu0 %2875
      %2877 = vrot.lane.b32.xlu0 %v2469, 64
      %v2878 = vpop.permute.xlu0 %2877
      %2879 = vrot.lane.b32.xlu0 %v2470, 64
      %v2880 = vpop.permute.xlu0 %2879
      %2881 = vrot.lane.b32.xlu0 %v2471, 64
      %v2882 = vpop.permute.xlu0 %2881
      %2883 = vrot.lane.b32.xlu0 %v2472, 64
      %v2884 = vpop.permute.xlu0 %2883
      %2885 = vrot.lane.b32.xlu0 %v2473, 64
      %v2886 = vpop.permute.xlu0 %2885
      %2887 = vrot.lane.b32.xlu0 %v2474, 64
      %v2888 = vpop.permute.xlu0 %2887
      %2889 = vrot.lane.b32.xlu0 %v2475, 64
      %v2890 = vpop.permute.xlu0 %2889
      %2891 = vrot.lane.b32.xlu0 %v2476, 64
      %v2892 = vpop.permute.xlu0 %2891
      %2957 = vrot.lane.b32.xlu0 %v2477, 96
      %v2958 = vpop.permute.xlu0 %2957
      %2959 = vrot.lane.b32.xlu0 %v2478, 96
      %v2960 = vpop.permute.xlu0 %2959
      %2961 = vrot.lane.b32.xlu0 %v2479, 96
      %v2962 = vpop.permute.xlu0 %2961
      %2963 = vrot.lane.b32.xlu0 %v2480, 96
      %v2964 = vpop.permute.xlu0 %2963
      %2965 = vrot.lane.b32.xlu0 %v2481, 96
      %v2966 = vpop.permute.xlu0 %2965
      %2967 = vrot.lane.b32.xlu0 %v2482, 96
      %v2968 = vpop.permute.xlu0 %2967
      %2969 = vrot.lane.b32.xlu0 %v2483, 96
      %v2970 = vpop.permute.xlu0 %2969
      %2971 = vrot.lane.b32.xlu0 %v2484, 96
      %v2972 = vpop.permute.xlu0 %2971
      %2973 = vrot.lane.b32.xlu0 %v2485, 96
      %v2974 = vpop.permute.xlu0 %2973
      %2975 = vrot.lane.b32.xlu0 %v2486, 96
      %v2976 = vpop.permute.xlu0 %2975
      %2977 = vrot.lane.b32.xlu0 %v2487, 96
      %v2978 = vpop.permute.xlu0 %2977
      %2979 = vrot.lane.b32.xlu0 %v2488, 96
      %v2980 = vpop.permute.xlu0 %2979
      %2981 = vrot.lane.b32.xlu0 %v2489, 96
      %v2982 = vpop.permute.xlu0 %2981
      %2983 = vrot.lane.b32.xlu0 %v2490, 96
      %v2984 = vpop.permute.xlu0 %2983
      %2985 = vrot.lane.b32.xlu0 %v2491, 96
      %v2986 = vpop.permute.xlu0 %2985
      %2987 = vrot.lane.b32.xlu0 %v2492, 96
      %v2988 = vpop.permute.xlu0 %2987
      %2989 = vrot.lane.b32.xlu0 %v2493, 96
      %v2990 = vpop.permute.xlu0 %2989
      %2991 = vrot.lane.b32.xlu0 %v2494, 96
      %v2992 = vpop.permute.xlu0 %2991
      %2993 = vrot.lane.b32.xlu0 %v2495, 96
      %v2994 = vpop.permute.xlu0 %2993
      %2995 = vrot.lane.b32.xlu0 %v2496, 96
      %v2996 = vpop.permute.xlu0 %2995
      %2997 = vrot.lane.b32.xlu0 %v2497, 96
      %v2998 = vpop.permute.xlu0 %2997
      %2999 = vrot.lane.b32.xlu0 %v2498, 96
      %v3000 = vpop.permute.xlu0 %2999
      %3001 = vrot.lane.b32.xlu0 %v2499, 96
      %v3002 = vpop.permute.xlu0 %3001
      %3003 = vrot.lane.b32.xlu0 %v2500, 96
      %v3004 = vpop.permute.xlu0 %3003
      %3005 = vrot.lane.b32.xlu0 %v2501, 96
      %v3006 = vpop.permute.xlu0 %3005
      %3007 = vrot.lane.b32.xlu0 %v2502, 96
      %v3008 = vpop.permute.xlu0 %3007
      %3009 = vrot.lane.b32.xlu0 %v2503, 96
      %v3010 = vpop.permute.xlu0 %3009
      %3011 = vrot.lane.b32.xlu0 %v2504, 96
      %v3012 = vpop.permute.xlu0 %3011
      %3013 = vrot.lane.b32.xlu0 %v2505, 96
      %v3014 = vpop.permute.xlu0 %3013
      %3015 = vrot.lane.b32.xlu0 %v2506, 96
      %v3016 = vpop.permute.xlu0 %3015
      %3017 = vrot.lane.b32.xlu0 %v2507, 96
      %v3018 = vpop.permute.xlu0 %3017
      %3019 = vrot.lane.b32.xlu0 %v2508, 96
      %v3020 = vpop.permute.xlu0 %3019
      %3085 = vrot.lane.b32.xlu0 %v2541, 32
      %v3086 = vpop.permute.xlu0 %3085
      %3087 = vrot.lane.b32.xlu0 %v2542, 32
      %v3088 = vpop.permute.xlu0 %3087
      %3089 = vrot.lane.b32.xlu0 %v2543, 32
      %v3090 = vpop.permute.xlu0 %3089
      %3091 = vrot.lane.b32.xlu0 %v2544, 32
      %v3092 = vpop.permute.xlu0 %3091
      %3093 = vrot.lane.b32.xlu0 %v2545, 32
      %v3094 = vpop.permute.xlu0 %3093
      %3095 = vrot.lane.b32.xlu0 %v2546, 32
      %v3096 = vpop.permute.xlu0 %3095
      %3097 = vrot.lane.b32.xlu0 %v2547, 32
      %v3098 = vpop.permute.xlu0 %3097
      %3099 = vrot.lane.b32.xlu0 %v2548, 32
      %v3100 = vpop.permute.xlu0 %3099
      %3101 = vrot.lane.b32.xlu0 %v2549, 32
      %v3102 = vpop.permute.xlu0 %3101
      %3103 = vrot.lane.b32.xlu0 %v2550, 32
      %v3104 = vpop.permute.xlu0 %3103
      %3105 = vrot.lane.b32.xlu0 %v2551, 32
      %v3106 = vpop.permute.xlu0 %3105
      %3107 = vrot.lane.b32.xlu0 %v2552, 32
      %v3108 = vpop.permute.xlu0 %3107
      %3109 = vrot.lane.b32.xlu0 %v2553, 32
      %v3110 = vpop.permute.xlu0 %3109
      %3111 = vrot.lane.b32.xlu0 %v2554, 32
      %v3112 = vpop.permute.xlu0 %3111
      %3113 = vrot.lane.b32.xlu0 %v2555, 32
      %v3114 = vpop.permute.xlu0 %3113
      %3115 = vrot.lane.b32.xlu0 %v2556, 32
      %v3116 = vpop.permute.xlu0 %3115
      %3117 = vrot.lane.b32.xlu0 %v2557, 32
      %v3118 = vpop.permute.xlu0 %3117
      %3119 = vrot.lane.b32.xlu0 %v2558, 32
      %v3120 = vpop.permute.xlu0 %3119
      %3121 = vrot.lane.b32.xlu0 %v2559, 32
      %v3122 = vpop.permute.xlu0 %3121
      %3123 = vrot.lane.b32.xlu0 %v2560, 32
      %v3124 = vpop.permute.xlu0 %3123
      %3125 = vrot.lane.b32.xlu0 %v2561, 32
      %v3126 = vpop.permute.xlu0 %3125
      %3127 = vrot.lane.b32.xlu0 %v2562, 32
      %v3128 = vpop.permute.xlu0 %3127
      %3129 = vrot.lane.b32.xlu0 %v2563, 32
      %v3130 = vpop.permute.xlu0 %3129
      %3131 = vrot.lane.b32.xlu0 %v2564, 32
      %v3132 = vpop.permute.xlu0 %3131
      %3133 = vrot.lane.b32.xlu0 %v2565, 32
      %v3134 = vpop.permute.xlu0 %3133
      %3135 = vrot.lane.b32.xlu0 %v2566, 32
      %v3136 = vpop.permute.xlu0 %3135
      %3137 = vrot.lane.b32.xlu0 %v2567, 32
      %v3138 = vpop.permute.xlu0 %3137
      %3139 = vrot.lane.b32.xlu0 %v2568, 32
      %v3140 = vpop.permute.xlu0 %3139
      %3141 = vrot.lane.b32.xlu0 %v2569, 32
      %v3142 = vpop.permute.xlu0 %3141
      %3143 = vrot.lane.b32.xlu0 %v2570, 32
      %v3144 = vpop.permute.xlu0 %3143
      %3145 = vrot.lane.b32.xlu0 %v2571, 32
      %v3146 = vpop.permute.xlu0 %3145
      %3147 = vrot.lane.b32.xlu0 %v2572, 32
      %v3148 = vpop.permute.xlu0 %3147
      %3213 = vrot.lane.b32.xlu0 %v2573, 64
      %v3214 = vpop.permute.xlu0 %3213
      %3215 = vrot.lane.b32.xlu0 %v2574, 64
      %v3216 = vpop.permute.xlu0 %3215
      %3217 = vrot.lane.b32.xlu0 %v2575, 64
      %v3218 = vpop.permute.xlu0 %3217
      %3219 = vrot.lane.b32.xlu0 %v2576, 64
      %v3220 = vpop.permute.xlu0 %3219
      %3221 = vrot.lane.b32.xlu0 %v2577, 64
      %v3222 = vpop.permute.xlu0 %3221
      %3223 = vrot.lane.b32.xlu0 %v2578, 64
      %v3224 = vpop.permute.xlu0 %3223
      %3225 = vrot.lane.b32.xlu0 %v2579, 64
      %v3226 = vpop.permute.xlu0 %3225
      %3227 = vrot.lane.b32.xlu0 %v2580, 64
      %v3228 = vpop.permute.xlu0 %3227
      %3229 = vrot.lane.b32.xlu0 %v2581, 64
      %v3230 = vpop.permute.xlu0 %3229
      %3231 = vrot.lane.b32.xlu0 %v2582, 64
      %v3232 = vpop.permute.xlu0 %3231
      %3233 = vrot.lane.b32.xlu0 %v2583, 64
      %v3234 = vpop.permute.xlu0 %3233
      %3235 = vrot.lane.b32.xlu0 %v2584, 64
      %v3236 = vpop.permute.xlu0 %3235
      %3237 = vrot.lane.b32.xlu0 %v2585, 64
      %v3238 = vpop.permute.xlu0 %3237
      %3239 = vrot.lane.b32.xlu0 %v2586, 64
      %v3240 = vpop.permute.xlu0 %3239
      %3241 = vrot.lane.b32.xlu0 %v2587, 64
      %v3242 = vpop.permute.xlu0 %3241
      %3243 = vrot.lane.b32.xlu0 %v2588, 64
      %v3244 = vpop.permute.xlu0 %3243
      %3245 = vrot.lane.b32.xlu0 %v2589, 64
      %v3246 = vpop.permute.xlu0 %3245
      %3247 = vrot.lane.b32.xlu0 %v2590, 64
      %v3248 = vpop.permute.xlu0 %3247
      %3249 = vrot.lane.b32.xlu0 %v2591, 64
      %v3250 = vpop.permute.xlu0 %3249
      %3251 = vrot.lane.b32.xlu0 %v2592, 64
      %v3252 = vpop.permute.xlu0 %3251
      %3253 = vrot.lane.b32.xlu0 %v2593, 64
      %v3254 = vpop.permute.xlu0 %3253
      %3255 = vrot.lane.b32.xlu0 %v2594, 64
      %v3256 = vpop.permute.xlu0 %3255
      %3257 = vrot.lane.b32.xlu0 %v2595, 64
      %v3258 = vpop.permute.xlu0 %3257
      %3259 = vrot.lane.b32.xlu0 %v2596, 64
      %v3260 = vpop.permute.xlu0 %3259
      %3261 = vrot.lane.b32.xlu0 %v2597, 64
      %v3262 = vpop.permute.xlu0 %3261
      %3263 = vrot.lane.b32.xlu0 %v2598, 64
      %v3264 = vpop.permute.xlu0 %3263
      %3265 = vrot.lane.b32.xlu0 %v2599, 64
      %v3266 = vpop.permute.xlu0 %3265
      %3267 = vrot.lane.b32.xlu0 %v2600, 64
      %v3268 = vpop.permute.xlu0 %3267
      %3269 = vrot.lane.b32.xlu0 %v2601, 64
      %v3270 = vpop.permute.xlu0 %3269
      %3271 = vrot.lane.b32.xlu0 %v2602, 64
      %v3272 = vpop.permute.xlu0 %3271
      %3273 = vrot.lane.b32.xlu0 %v2603, 64
      %v3274 = vpop.permute.xlu0 %3273
      %3275 = vrot.lane.b32.xlu0 %v2604, 64
      %v3276 = vpop.permute.xlu0 %3275
      %3341 = vrot.lane.b32.xlu0 %v2605, 96
      %v3342 = vpop.permute.xlu0 %3341
      %3343 = vrot.lane.b32.xlu0 %v2606, 96
      %v3344 = vpop.permute.xlu0 %3343
      %3345 = vrot.lane.b32.xlu0 %v2607, 96
      %v3346 = vpop.permute.xlu0 %3345
      %3347 = vrot.lane.b32.xlu0 %v2608, 96
      %v3348 = vpop.permute.xlu0 %3347
      %3349 = vrot.lane.b32.xlu0 %v2609, 96
      %v3350 = vpop.permute.xlu0 %3349
      %3351 = vrot.lane.b32.xlu0 %v2610, 96
      %v3352 = vpop.permute.xlu0 %3351
      %3353 = vrot.lane.b32.xlu0 %v2611, 96
      %v3354 = vpop.permute.xlu0 %3353
      %3355 = vrot.lane.b32.xlu0 %v2612, 96
      %v3356 = vpop.permute.xlu0 %3355
      %3357 = vrot.lane.b32.xlu0 %v2613, 96
      %v3358 = vpop.permute.xlu0 %3357
      %3359 = vrot.lane.b32.xlu0 %v2614, 96
      %v3360 = vpop.permute.xlu0 %3359
      %3361 = vrot.lane.b32.xlu0 %v2615, 96
      %v3362 = vpop.permute.xlu0 %3361
      %3363 = vrot.lane.b32.xlu0 %v2616, 96
      %v3364 = vpop.permute.xlu0 %3363
      %3365 = vrot.lane.b32.xlu0 %v2617, 96
      %v3366 = vpop.permute.xlu0 %3365
      %3367 = vrot.lane.b32.xlu0 %v2618, 96
      %v3368 = vpop.permute.xlu0 %3367
      %3369 = vrot.lane.b32.xlu0 %v2619, 96
      %v3370 = vpop.permute.xlu0 %3369
      %3371 = vrot.lane.b32.xlu0 %v2620, 96
      %v3372 = vpop.permute.xlu0 %3371
      %3373 = vrot.lane.b32.xlu0 %v2621, 96
      %v3374 = vpop.permute.xlu0 %3373
      %3375 = vrot.lane.b32.xlu0 %v2622, 96
      %v3376 = vpop.permute.xlu0 %3375
      %3377 = vrot.lane.b32.xlu0 %v2623, 96
      %v3378 = vpop.permute.xlu0 %3377
      %3379 = vrot.lane.b32.xlu0 %v2624, 96
      %v3380 = vpop.permute.xlu0 %3379
      %3381 = vrot.lane.b32.xlu0 %v2625, 96
      %v3382 = vpop.permute.xlu0 %3381
      %3383 = vrot.lane.b32.xlu0 %v2626, 96
      %v3384 = vpop.permute.xlu0 %3383
      %3385 = vrot.lane.b32.xlu0 %v2627, 96
      %v3386 = vpop.permute.xlu0 %3385
      %3387 = vrot.lane.b32.xlu0 %v2628, 96
      %v3388 = vpop.permute.xlu0 %3387
      %3389 = vrot.lane.b32.xlu0 %v2629, 96
      %v3390 = vpop.permute.xlu0 %3389
      %3391 = vrot.lane.b32.xlu0 %v2630, 96
      %v3392 = vpop.permute.xlu0 %3391
      %3393 = vrot.lane.b32.xlu0 %v2631, 96
      %v3394 = vpop.permute.xlu0 %3393
      %3395 = vrot.lane.b32.xlu0 %v2632, 96
      %v3396 = vpop.permute.xlu0 %3395
      %3397 = vrot.lane.b32.xlu0 %v2633, 96
      %v3398 = vpop.permute.xlu0 %3397
      %3399 = vrot.lane.b32.xlu0 %v2634, 96
      %v3400 = vpop.permute.xlu0 %3399
      %3401 = vrot.lane.b32.xlu0 %v2635, 96
      %v3402 = vpop.permute.xlu0 %3401
      %3403 = vrot.lane.b32.xlu0 %v2636, 96
      %v3404 = vpop.permute.xlu0 %3403
      %v3437 = vsel %vm280, %v2381, %v2702
      %v3438 = vsel %vm280, %v2382, %v2704
      %v3439 = vsel %vm280, %v2383, %v2706
      %v3440 = vsel %vm280, %v2384, %v2708
      %v3441 = vsel %vm280, %v2385, %v2710
      %v3442 = vsel %vm280, %v2386, %v2712
      %v3443 = vsel %vm280, %v2387, %v2714
      %v3444 = vsel %vm280, %v2388, %v2716
      %v3445 = vsel %vm280, %v2389, %v2718
      %v3446 = vsel %vm280, %v2390, %v2720
      %v3447 = vsel %vm280, %v2391, %v2722
      %v3448 = vsel %vm280, %v2392, %v2724
      %v3449 = vsel %vm280, %v2393, %v2726
      %v3450 = vsel %vm280, %v2394, %v2728
      %v3451 = vsel %vm280, %v2395, %v2730
      %v3452 = vsel %vm280, %v2396, %v2732
      %v3453 = vsel %vm280, %v2397, %v2734
      %v3454 = vsel %vm280, %v2398, %v2736
      %v3455 = vsel %vm280, %v2399, %v2738
      %v3456 = vsel %vm280, %v2400, %v2740
      %v3457 = vsel %vm280, %v2401, %v2742
      %v3458 = vsel %vm280, %v2402, %v2744
      %v3459 = vsel %vm280, %v2403, %v2746
      %v3460 = vsel %vm280, %v2404, %v2748
      %v3461 = vsel %vm280, %v2405, %v2750
      %v3462 = vsel %vm280, %v2406, %v2752
      %v3463 = vsel %vm280, %v2407, %v2754
      %v3464 = vsel %vm280, %v2408, %v2756
      %v3465 = vsel %vm280, %v2409, %v2758
      %v3466 = vsel %vm280, %v2410, %v2760
      %v3467 = vsel %vm280, %v2411, %v2762
      %v3468 = vsel %vm280, %v2412, %v2764
      %v3469 = vsel %vm1490, %v3437, %v2830
      %v3470 = vsel %vm1490, %v3438, %v2832
      %v3471 = vsel %vm1490, %v3439, %v2834
      %v3472 = vsel %vm1490, %v3440, %v2836
      %v3473 = vsel %vm1490, %v3441, %v2838
      %v3474 = vsel %vm1490, %v3442, %v2840
      %v3475 = vsel %vm1490, %v3443, %v2842
      %v3476 = vsel %vm1490, %v3444, %v2844
      %v3477 = vsel %vm1490, %v3445, %v2846
      %v3478 = vsel %vm1490, %v3446, %v2848
      %v3479 = vsel %vm1490, %v3447, %v2850
      %v3480 = vsel %vm1490, %v3448, %v2852
      %v3481 = vsel %vm1490, %v3449, %v2854
      %v3482 = vsel %vm1490, %v3450, %v2856
      %v3483 = vsel %vm1490, %v3451, %v2858
      %v3484 = vsel %vm1490, %v3452, %v2860
      %v3485 = vsel %vm1490, %v3453, %v2862
      %v3486 = vsel %vm1490, %v3454, %v2864
      %v3487 = vsel %vm1490, %v3455, %v2866
      %v3488 = vsel %vm1490, %v3456, %v2868
      %v3489 = vsel %vm1490, %v3457, %v2870
      %v3490 = vsel %vm1490, %v3458, %v2872
      %v3491 = vsel %vm1490, %v3459, %v2874
      %v3492 = vsel %vm1490, %v3460, %v2876
      %v3493 = vsel %vm1490, %v3461, %v2878
      %v3494 = vsel %vm1490, %v3462, %v2880
      %v3495 = vsel %vm1490, %v3463, %v2882
      %v3496 = vsel %vm1490, %v3464, %v2884
      %v3497 = vsel %vm1490, %v3465, %v2886
      %v3498 = vsel %vm1490, %v3466, %v2888
      %v3499 = vsel %vm1490, %v3467, %v2890
      %v3500 = vsel %vm1490, %v3468, %v2892
      %v3501 = vsel %vm1523, %v3469, %v2958
      %v3502 = vsel %vm1523, %v3470, %v2960
      %v3503 = vsel %vm1523, %v3471, %v2962
      %v3504 = vsel %vm1523, %v3472, %v2964
      %v3505 = vsel %vm1523, %v3473, %v2966
      %v3506 = vsel %vm1523, %v3474, %v2968
      %v3507 = vsel %vm1523, %v3475, %v2970
      %v3508 = vsel %vm1523, %v3476, %v2972
      %v3509 = vsel %vm1523, %v3477, %v2974
      %v3510 = vsel %vm1523, %v3478, %v2976
      %v3511 = vsel %vm1523, %v3479, %v2978
      %v3512 = vsel %vm1523, %v3480, %v2980
      %v3513 = vsel %vm1523, %v3481, %v2982
      %v3514 = vsel %vm1523, %v3482, %v2984
      %v3515 = vsel %vm1523, %v3483, %v2986
      %v3516 = vsel %vm1523, %v3484, %v2988
      %v3517 = vsel %vm1523, %v3485, %v2990
      %v3518 = vsel %vm1523, %v3486, %v2992
      %v3519 = vsel %vm1523, %v3487, %v2994
      %v3520 = vsel %vm1523, %v3488, %v2996
      %v3521 = vsel %vm1523, %v3489, %v2998
      %v3522 = vsel %vm1523, %v3490, %v3000
      %v3523 = vsel %vm1523, %v3491, %v3002
      %v3524 = vsel %vm1523, %v3492, %v3004
      %v3525 = vsel %vm1523, %v3493, %v3006
      %v3526 = vsel %vm1523, %v3494, %v3008
      %v3527 = vsel %vm1523, %v3495, %v3010
      %v3528 = vsel %vm1523, %v3496, %v3012
      %v3529 = vsel %vm1523, %v3497, %v3014
      %v3530 = vsel %vm1523, %v3498, %v3016
      %v3531 = vsel %vm1523, %v3499, %v3018
      %v3532 = vsel %vm1523, %v3500, %v3020
      %v3533 = vsel %vm280, %v2509, %v3086
      %v3534 = vsel %vm280, %v2510, %v3088
      %v3535 = vsel %vm280, %v2511, %v3090
      %v3536 = vsel %vm280, %v2512, %v3092
      %v3537 = vsel %vm280, %v2513, %v3094
      %v3538 = vsel %vm280, %v2514, %v3096
      %v3539 = vsel %vm280, %v2515, %v3098
      %v3540 = vsel %vm280, %v2516, %v3100
      %v3541 = vsel %vm280, %v2517, %v3102
      %v3542 = vsel %vm280, %v2518, %v3104
      %v3543 = vsel %vm280, %v2519, %v3106
      %v3544 = vsel %vm280, %v2520, %v3108
      %v3545 = vsel %vm280, %v2521, %v3110
      %v3546 = vsel %vm280, %v2522, %v3112
      %v3547 = vsel %vm280, %v2523, %v3114
      %v3548 = vsel %vm280, %v2524, %v3116
      %v3549 = vsel %vm280, %v2525, %v3118
      %v3550 = vsel %vm280, %v2526, %v3120
      %v3551 = vsel %vm280, %v2527, %v3122
      %v3552 = vsel %vm280, %v2528, %v3124
      %v3553 = vsel %vm280, %v2529, %v3126
      %v3554 = vsel %vm280, %v2530, %v3128
      %v3555 = vsel %vm280, %v2531, %v3130
      %v3556 = vsel %vm280, %v2532, %v3132
      %v3557 = vsel %vm280, %v2533, %v3134
      %v3558 = vsel %vm280, %v2534, %v3136
      %v3559 = vsel %vm280, %v2535, %v3138
      %v3560 = vsel %vm280, %v2536, %v3140
      %v3561 = vsel %vm280, %v2537, %v3142
      %v3562 = vsel %vm280, %v2538, %v3144
      %v3563 = vsel %vm280, %v2539, %v3146
      %v3564 = vsel %vm280, %v2540, %v3148
      %v3565 = vsel %vm1490, %v3533, %v3214
      %v3566 = vsel %vm1490, %v3534, %v3216
      %v3567 = vsel %vm1490, %v3535, %v3218
      %v3568 = vsel %vm1490, %v3536, %v3220
      %v3569 = vsel %vm1490, %v3537, %v3222
      %v3570 = vsel %vm1490, %v3538, %v3224
      %v3571 = vsel %vm1490, %v3539, %v3226
      %v3572 = vsel %vm1490, %v3540, %v3228
      %v3573 = vsel %vm1490, %v3541, %v3230
      %v3574 = vsel %vm1490, %v3542, %v3232
      %v3575 = vsel %vm1490, %v3543, %v3234
      %v3576 = vsel %vm1490, %v3544, %v3236
      %v3577 = vsel %vm1490, %v3545, %v3238
      %v3578 = vsel %vm1490, %v3546, %v3240
      %v3579 = vsel %vm1490, %v3547, %v3242
      %v3580 = vsel %vm1490, %v3548, %v3244
      %v3581 = vsel %vm1490, %v3549, %v3246
      %v3582 = vsel %vm1490, %v3550, %v3248
      %v3583 = vsel %vm1490, %v3551, %v3250
      %v3584 = vsel %vm1490, %v3552, %v3252
      %v3585 = vsel %vm1490, %v3553, %v3254
      %v3586 = vsel %vm1490, %v3554, %v3256
      %v3587 = vsel %vm1490, %v3555, %v3258
      %v3588 = vsel %vm1490, %v3556, %v3260
      %v3589 = vsel %vm1490, %v3557, %v3262
      %v3590 = vsel %vm1490, %v3558, %v3264
      %v3591 = vsel %vm1490, %v3559, %v3266
      %v3592 = vsel %vm1490, %v3560, %v3268
      %v3593 = vsel %vm1490, %v3561, %v3270
      %v3594 = vsel %vm1490, %v3562, %v3272
      %v3595 = vsel %vm1490, %v3563, %v3274
      %v3596 = vsel %vm1490, %v3564, %v3276
      %v3597 = vsel %vm1523, %v3565, %v3342
      %v3598 = vsel %vm1523, %v3566, %v3344
      %v3599 = vsel %vm1523, %v3567, %v3346
      %v3600 = vsel %vm1523, %v3568, %v3348
      %v3601 = vsel %vm1523, %v3569, %v3350
      %v3602 = vsel %vm1523, %v3570, %v3352
      %v3603 = vsel %vm1523, %v3571, %v3354
      %v3604 = vsel %vm1523, %v3572, %v3356
      %v3605 = vsel %vm1523, %v3573, %v3358
      %v3606 = vsel %vm1523, %v3574, %v3360
      %v3607 = vsel %vm1523, %v3575, %v3362
      %v3608 = vsel %vm1523, %v3576, %v3364
      %v3609 = vsel %vm1523, %v3577, %v3366
      %v3610 = vsel %vm1523, %v3578, %v3368
      %v3611 = vsel %vm1523, %v3579, %v3370
      %v3612 = vsel %vm1523, %v3580, %v3372
      %v3613 = vsel %vm1523, %v3581, %v3374
      %v3614 = vsel %vm1523, %v3582, %v3376
      %v3615 = vsel %vm1523, %v3583, %v3378
      %v3616 = vsel %vm1523, %v3584, %v3380
      %v3617 = vsel %vm1523, %v3585, %v3382
      %v3618 = vsel %vm1523, %v3586, %v3384
      %v3619 = vsel %vm1523, %v3587, %v3386
      %v3620 = vsel %vm1523, %v3588, %v3388
      %v3621 = vsel %vm1523, %v3589, %v3390
      %v3622 = vsel %vm1523, %v3590, %v3392
      %v3623 = vsel %vm1523, %v3591, %v3394
      %v3624 = vsel %vm1523, %v3592, %v3396
      %v3625 = vsel %vm1523, %v3593, %v3398
      %v3626 = vsel %vm1523, %v3594, %v3400
      %v3627 = vsel %vm1523, %v3595, %v3402
      %v3628 = vsel %vm1523, %v3596, %v3404
      %v3629 = vpack.c.bf16 %v3502, %v3501
      %v3630 = vpack.c.bf16 %v3598, %v3597
      %v3631 = vpack.c.bf16 %v2638, %v2637
      %v3632 = vpack.c.bf16 %v3504, %v3503
      %v3633 = vpack.c.bf16 %v3600, %v3599
      %v3634 = vpack.c.bf16 %v2640, %v2639
      %v3635 = vpack.c.bf16 %v3506, %v3505
      %v3636 = vpack.c.bf16 %v3602, %v3601
      %v3637 = vpack.c.bf16 %v2642, %v2641
      %v3638 = vpack.c.bf16 %v3508, %v3507
      %v3639 = vpack.c.bf16 %v3604, %v3603
      %v3640 = vpack.c.bf16 %v2644, %v2643
      %v3641 = vpack.c.bf16 %v3510, %v3509
      %v3642 = vpack.c.bf16 %v3606, %v3605
      %v3643 = vpack.c.bf16 %v2646, %v2645
      %v3644 = vpack.c.bf16 %v3512, %v3511
      %v3645 = vpack.c.bf16 %v3608, %v3607
      %v3646 = vpack.c.bf16 %v2648, %v2647
      %v3647 = vpack.c.bf16 %v3514, %v3513
      %v3648 = vpack.c.bf16 %v3610, %v3609
      %v3649 = vpack.c.bf16 %v2650, %v2649
      %v3650 = vpack.c.bf16 %v3516, %v3515
      %v3651 = vpack.c.bf16 %v3612, %v3611
      %v3652 = vpack.c.bf16 %v2652, %v2651
      %v3653 = vpack.c.bf16 %v3518, %v3517
      %v3654 = vpack.c.bf16 %v3614, %v3613
      %v3655 = vpack.c.bf16 %v2654, %v2653
      %v3656 = vpack.c.bf16 %v3520, %v3519
      %v3657 = vpack.c.bf16 %v3616, %v3615
      %v3658 = vpack.c.bf16 %v2656, %v2655
      %v3659 = vpack.c.bf16 %v3522, %v3521
      %v3660 = vpack.c.bf16 %v3618, %v3617
      %v3661 = vpack.c.bf16 %v2658, %v2657
      %v3662 = vpack.c.bf16 %v3524, %v3523
      %v3663 = vpack.c.bf16 %v3620, %v3619
      %v3664 = vpack.c.bf16 %v2660, %v2659
      %v3665 = vpack.c.bf16 %v3526, %v3525
      %v3666 = vpack.c.bf16 %v3622, %v3621
      %v3667 = vpack.c.bf16 %v2662, %v2661
      %v3668 = vpack.c.bf16 %v3528, %v3527
      %v3669 = vpack.c.bf16 %v3624, %v3623
      %v3670 = vpack.c.bf16 %v2664, %v2663
      %v3671 = vpack.c.bf16 %v3530, %v3529
      %v3672 = vpack.c.bf16 %v3626, %v3625
      %v3673 = vpack.c.bf16 %v2666, %v2665
      %v3674 = vpack.c.bf16 %v3532, %v3531
      %v3675 = vpack.c.bf16 %v3628, %v3627
      %v3676 = vpack.c.bf16 %v2668, %v2667
      %v3677 = vld [vmem:[%s3] sm:$0xf]
      %v3678 = vld [vmem:[%s3 + $0x4] sm:$0xf]
      %v3679 = vld [vmem:[%s3 + $0x8] sm:$0xf]
      %v3680 = vld [vmem:[%s3 + $0xc] sm:$0xf]
      %v3681 = vld [vmem:[%s3 + $0x10] sm:$0xf]
      %v3682 = vld [vmem:[%s3 + $0x14] sm:$0xf]
      %v3683 = vld [vmem:[%s3 + $0x18] sm:$0xf]
      %v3684 = vld [vmem:[%s3 + $0x1c] sm:$0xf]
      %v3685 = vld [vmem:[%s3 + $0x20] sm:$0xf]
      %v3686 = vld [vmem:[%s3 + $0x24] sm:$0xf]
      %v3687 = vld [vmem:[%s3 + $0x28] sm:$0xf]
      %v3688 = vld [vmem:[%s3 + $0x2c] sm:$0xf]
      %v3689 = vld [vmem:[%s3 + $0x30] sm:$0xf]
      %v3690 = vld [vmem:[%s3 + $0x34] sm:$0xf]
      %v3691 = vld [vmem:[%s3 + $0x38] sm:$0xf]
      %v3692 = vld [vmem:[%s3 + $0x3c] sm:$0xf]
      %v3693 = vld [vmem:[%s3 + $0x40] sm:$0xf]
      %v3694 = vld [vmem:[%s3 + $0x44] sm:$0xf]
      %v3695 = vld [vmem:[%s3 + $0x48] sm:$0xf]
      %v3696 = vld [vmem:[%s3 + $0x4c] sm:$0xf]
      %v3697 = vld [vmem:[%s3 + $0x50] sm:$0xf]
      %v3698 = vld [vmem:[%s3 + $0x54] sm:$0xf]
      %v3699 = vld [vmem:[%s3 + $0x58] sm:$0xf]
      %v3700 = vld [vmem:[%s3 + $0x5c] sm:$0xf]
      %v3701 = vld [vmem:[%s3 + $0x60] sm:$0xf]
      %v3702 = vld [vmem:[%s3 + $0x64] sm:$0xf]
      %v3703 = vld [vmem:[%s3 + $0x68] sm:$0xf]
      %v3704 = vld [vmem:[%s3 + $0x6c] sm:$0xf]
      %v3705 = vld [vmem:[%s3 + $0x70] sm:$0xf]
      %v3706 = vld [vmem:[%s3 + $0x74] sm:$0xf]
      %v3707 = vld [vmem:[%s3 + $0x78] sm:$0xf]
      %v3708 = vld [vmem:[%s3 + $0x7c] sm:$0xf]
      %v3709 = vld [vmem:[%s3 + $0x80] sm:$0xf]
      %v3710 = vld [vmem:[%s3 + $0x84] sm:$0xf]
      %v3711 = vld [vmem:[%s3 + $0x88] sm:$0xf]
      %v3712 = vld [vmem:[%s3 + $0x8c] sm:$0xf]
      %v3749 = vunpack.c.l.b16 %v3677
      %v3750 = vunpack.c.l.b16 %v3678
      %v3751 = vunpack.c.l.b16 %v3679
      %v3752 = vunpack.c.l.b16 %v3680
      %v3753 = vunpack.c.l.b16 %v3681
      %v3754 = vunpack.c.l.b16 %v3682
      %v3755 = vunpack.c.l.b16 %v3683
      %v3756 = vunpack.c.l.b16 %v3684
      %v3757 = vunpack.c.l.b16 %v3685
      %v3758 = vunpack.c.l.b16 %v3686
      %v3759 = vunpack.c.l.b16 %v3687
      %v3760 = vunpack.c.l.b16 %v3688
      %v3761 = vunpack.c.l.b16 %v3689
      %v3762 = vunpack.c.l.b16 %v3690
      %v3763 = vunpack.c.l.b16 %v3691
      %v3764 = vunpack.c.l.b16 %v3692
      %v3765 = vunpack.c.l.b16 %v3693
      %v3766 = vunpack.c.l.b16 %v3694
      %v3767 = vunpack.c.l.b16 %v3695
      %v3768 = vunpack.c.l.b16 %v3696
      %v3769 = vunpack.c.l.b16 %v3697
      %v3770 = vunpack.c.l.b16 %v3698
      %v3771 = vunpack.c.l.b16 %v3699
      %v3772 = vunpack.c.l.b16 %v3700
      %v3773 = vunpack.c.l.b16 %v3701
      %v3774 = vunpack.c.l.b16 %v3702
      %v3775 = vunpack.c.l.b16 %v3703
      %v3776 = vunpack.c.l.b16 %v3704
      %v3777 = vunpack.c.l.b16 %v3705
      %v3778 = vunpack.c.l.b16 %v3706
      %v3779 = vunpack.c.l.b16 %v3707
      %v3780 = vunpack.c.l.b16 %v3708
      %v3781 = vunpack.c.l.b16 %v3709
      %v3782 = vunpack.c.l.b16 %v3710
      %v3783 = vunpack.c.l.b16 %v3711
      %v3784 = vunpack.c.l.b16 %v3712
      %v3785 = vpack.c.b16 %v3750, %v3749
      %v3786 = vpack.c.b16 %v3752, %v3751
      %v3787 = vpack.c.b16 %v3754, %v3753
      %v3788 = vpack.c.b16 %v3756, %v3755
      %v3789 = vpack.c.b16 %v3758, %v3757
      %v3790 = vpack.c.b16 %v3760, %v3759
      %v3791 = vpack.c.b16 %v3762, %v3761
      %v3792 = vpack.c.b16 %v3764, %v3763
      %v3793 = vpack.c.b16 %v3766, %v3765
      %v3794 = vpack.c.b16 %v3768, %v3767
      %v3795 = vpack.c.b16 %v3770, %v3769
      %v3796 = vpack.c.b16 %v3772, %v3771
      %v3797 = vpack.c.b16 %v3774, %v3773
      %v3798 = vpack.c.b16 %v3776, %v3775
      %v3799 = vpack.c.b16 %v3778, %v3777
      %v3800 = vpack.c.b16 %v3780, %v3779
      %v3801 = vpack.c.b16 %v3782, %v3781
      %v3802 = vpack.c.b16 %v3784, %v3783
      %v3822 = vsel %vm280, %v3631, 0
      %v3825 = vsel %vm280, %v3634, 0
      %v3828 = vsel %vm280, %v3637, 0
      %v3831 = vsel %vm280, %v3640, 0
      %v3834 = vsel %vm280, %v3643, 0
      %v3837 = vsel %vm280, %v3646, 0
      %v3840 = vsel %vm280, %v3649, 0
      %v3843 = vsel %vm280, %v3652, 0
      %v3846 = vsel %vm280, %v3655, 0
      %v3849 = vsel %vm280, %v3658, 0
      %v3852 = vsel %vm280, %v3661, 0
      %v3855 = vsel %vm280, %v3664, 0
      %v3858 = vsel %vm280, %v3667, 0
      %v3861 = vsel %vm280, %v3670, 0
      %v3864 = vsel %vm280, %v3673, 0
      %v3867 = vsel %vm280, %v3676, 0
      %3869 = vmatprep.subr.bf16.mxu0 0
      %3870 = vmatpush1.bf16.msra.mxu0 %v3785
      %3871 = vmatprep.subr.bf16.mxu0 0
      %3872 = vmatpush1.bf16.msra.mxu0 %v3786
      %3873 = vmatprep.subr.bf16.mxu0 0
      %3874 = vmatpush1.bf16.msra.mxu0 %v3787
      %3875 = vmatprep.subr.bf16.mxu0 0
      %3876 = vmatpush1.bf16.msra.mxu0 %v3788
      %3877 = vmatprep.subr.bf16.mxu0 0
      %3878 = vmatpush1.bf16.msra.mxu0 %v3789
      %3879 = vmatprep.subr.bf16.mxu0 0
      %3880 = vmatpush1.bf16.msra.mxu0 %v3790
      %3881 = vmatprep.subr.bf16.mxu0 0
      %3882 = vmatpush1.bf16.msra.mxu0 %v3791
      %3883 = vmatprep.subr.bf16.mxu0 0
      %3884 = vmatpush1.bf16.msra.mxu0 %v3792
      %3885 = vmatprep.subr.bf16.mxu0 0
      %3886 = vmatpush1.bf16.msra.mxu0 %v3793
      %3887 = vmatprep.subr.bf16.mxu0 0
      %3888 = vmatpush1.bf16.msra.mxu0 %v3794
      %3889 = vmatprep.subr.bf16.mxu0 0
      %3890 = vmatpush1.bf16.msra.mxu0 %v3795
      %3891 = vmatprep.subr.bf16.mxu0 0
      %3892 = vmatpush1.bf16.msra.mxu0 %v3796
      %3893 = vmatprep.subr.bf16.mxu0 0
      %3894 = vmatpush1.bf16.msra.mxu0 %v3797
      %3895 = vmatprep.subr.bf16.mxu0 0
      %3896 = vmatpush1.bf16.msra.mxu0 %v3798
      %3897 = vmatprep.subr.bf16.mxu0 0
      %3898 = vmatpush1.bf16.msra.mxu0 %v3799
      %3899 = vmatprep.subr.bf16.mxu0 0
      %3900 = vmatpush1.bf16.msra.mxu0 %v3800
      %3901 = vmatprep.mubr.bf16.mxu0 %v3630
      %3902 = vmatmul.mubr.bf16.gmra.mrb[0].mxu0 %v3629
      %v3903 = vpop.f32.mrb[0].mxu0
      %v3904 = vadd.f32 0.0, %v3903
      %v3905 = vpop.f32.mrb[0].mxu0
      %v3906 = vpop.f32.mrb[0].mxu0
      %v3907 = vadd.f32 0.0, %v3906
      %v3908 = vpop.f32.mrb[0].mxu0
      %3909 = vmatprep.mubr.bf16.mxu0 %v3633
      %3910 = vmatmul.mubr.bf16.gmra.mrb[0].mxu0 %v3632
      %v3911 = vpop.f32.mrb[0].mxu0
      %v3912 = vadd.f32 0.0, %v3911
      %v3913 = vpop.f32.mrb[0].mxu0
      %v3914 = vpop.f32.mrb[0].mxu0
      %v3915 = vadd.f32 0.0, %v3914
      %v3916 = vpop.f32.mrb[0].mxu0
      %3917 = vmatprep.mubr.bf16.mxu0 %v3636
      %3918 = vmatmul.mubr.bf16.gmra.mrb[0].mxu0 %v3635
      %v3919 = vpop.f32.mrb[0].mxu0
      %v3920 = vadd.f32 0.0, %v3919
      %v3921 = vpop.f32.mrb[0].mxu0
      %v3922 = vpop.f32.mrb[0].mxu0
      %v3923 = vadd.f32 0.0, %v3922
      %v3924 = vpop.f32.mrb[0].mxu0
      %3925 = vmatprep.mubr.bf16.mxu0 %v3639
      %3926 = vmatmul.mubr.bf16.gmra.mrb[0].mxu0 %v3638
      %v3927 = vpop.f32.mrb[0].mxu0
      %v3928 = vadd.f32 0.0, %v3927
      %v3929 = vpop.f32.mrb[0].mxu0
      %v3930 = vpop.f32.mrb[0].mxu0
      %v3931 = vadd.f32 0.0, %v3930
      %v3932 = vpop.f32.mrb[0].mxu0
      %3933 = vmatprep.mubr.bf16.mxu0 %v3642
      %3934 = vmatmul.mubr.bf16.gmra.mrb[0].mxu0 %v3641
      %v3935 = vpop.f32.mrb[0].mxu0
      %v3936 = vadd.f32 0.0, %v3935
      %v3937 = vpop.f32.mrb[0].mxu0
      %v3938 = vpop.f32.mrb[0].mxu0
      %v3939 = vadd.f32 0.0, %v3938
      %v3940 = vpop.f32.mrb[0].mxu0
      %3941 = vmatprep.mubr.bf16.mxu0 %v3645
      %3942 = vmatmul.mubr.bf16.gmra.mrb[0].mxu0 %v3644
      %v3943 = vpop.f32.mrb[0].mxu0
      %v3944 = vadd.f32 0.0, %v3943
      %v3945 = vpop.f32.mrb[0].mxu0
      %v3946 = vpop.f32.mrb[0].mxu0
      %v3947 = vadd.f32 0.0, %v3946
      %v3948 = vpop.f32.mrb[0].mxu0
      %3949 = vmatprep.mubr.bf16.mxu0 %v3648
      %3950 = vmatmul.mubr.bf16.gmra.mrb[0].mxu0 %v3647
      %v3951 = vpop.f32.mrb[0].mxu0
      %v3952 = vadd.f32 0.0, %v3951
      %v3953 = vpop.f32.mrb[0].mxu0
      %v3954 = vpop.f32.mrb[0].mxu0
      %v3955 = vadd.f32 0.0, %v3954
      %v3956 = vpop.f32.mrb[0].mxu0
      %3957 = vmatprep.mubr.bf16.mxu0 %v3651
      %3958 = vmatmul.mubr.bf16.gmra.mrb[0].mxu0 %v3650
      %v3959 = vpop.f32.mrb[0].mxu0
      %v3960 = vadd.f32 0.0, %v3959
      %v3961 = vpop.f32.mrb[0].mxu0
      %v3962 = vpop.f32.mrb[0].mxu0
      %v3963 = vadd.f32 0.0, %v3962
      %v3964 = vpop.f32.mrb[0].mxu0
      %3965 = vmatprep.mubr.bf16.mxu0 %v3654
      %3966 = vmatmul.mubr.bf16.gmra.mrb[0].mxu0 %v3653
      %v3967 = vpop.f32.mrb[0].mxu0
      %v3968 = vadd.f32 0.0, %v3967
      %v3969 = vpop.f32.mrb[0].mxu0
      %v3970 = vpop.f32.mrb[0].mxu0
      %v3971 = vadd.f32 0.0, %v3970
      %v3972 = vpop.f32.mrb[0].mxu0
      %3973 = vmatprep.mubr.bf16.mxu0 %v3657
      %3974 = vmatmul.mubr.bf16.gmra.mrb[0].mxu0 %v3656
      %v3975 = vpop.f32.mrb[0].mxu0
      %v3976 = vadd.f32 0.0, %v3975
      %v3977 = vpop.f32.mrb[0].mxu0
      %v3978 = vpop.f32.mrb[0].mxu0
      %v3979 = vadd.f32 0.0, %v3978
      %v3980 = vpop.f32.mrb[0].mxu0
      %3981 = vmatprep.mubr.bf16.mxu0 %v3660
      %3982 = vmatmul.mubr.bf16.gmra.mrb[0].mxu0 %v3659
      %v3983 = vpop.f32.mrb[0].mxu0
      %v3984 = vadd.f32 0.0, %v3983
      %v3985 = vpop.f32.mrb[0].mxu0
      %v3986 = vpop.f32.mrb[0].mxu0
      %v3987 = vadd.f32 0.0, %v3986
      %v3988 = vpop.f32.mrb[0].mxu0
      %3989 = vmatprep.mubr.bf16.mxu0 %v3663
      %3990 = vmatmul.mubr.bf16.gmra.mrb[0].mxu0 %v3662
      %v3991 = vpop.f32.mrb[0].mxu0
      %v3992 = vadd.f32 0.0, %v3991
      %v3993 = vpop.f32.mrb[0].mxu0
      %v3994 = vpop.f32.mrb[0].mxu0
      %v3995 = vadd.f32 0.0, %v3994
      %v3996 = vpop.f32.mrb[0].mxu0
      %3997 = vmatprep.mubr.bf16.mxu0 %v3666
      %3998 = vmatmul.mubr.bf16.gmra.mrb[0].mxu0 %v3665
      %v3999 = vpop.f32.mrb[0].mxu0
      %v4000 = vadd.f32 0.0, %v3999
      %v4001 = vpop.f32.mrb[0].mxu0
      %v4002 = vpop.f32.mrb[0].mxu0
      %v4003 = vadd.f32 0.0, %v4002
      %v4004 = vpop.f32.mrb[0].mxu0
      %4005 = vmatprep.mubr.bf16.mxu0 %v3669
      %4006 = vmatmul.mubr.bf16.gmra.mrb[0].mxu0 %v3668
      %v4007 = vpop.f32.mrb[0].mxu0
      %v4008 = vadd.f32 0.0, %v4007
      %v4009 = vpop.f32.mrb[0].mxu0
      %v4010 = vpop.f32.mrb[0].mxu0
      %v4011 = vadd.f32 0.0, %v4010
      %v4012 = vpop.f32.mrb[0].mxu0
      %4013 = vmatprep.mubr.bf16.mxu0 %v3672
      %4014 = vmatmul.mubr.bf16.gmra.mrb[0].mxu0 %v3671
      %v4015 = vpop.f32.mrb[0].mxu0
      %v4016 = vadd.f32 0.0, %v4015
      %v4017 = vpop.f32.mrb[0].mxu0
      %v4018 = vpop.f32.mrb[0].mxu0
      %v4019 = vadd.f32 0.0, %v4018
      %v4020 = vpop.f32.mrb[0].mxu0
      %4021 = vmatprep.mubr.bf16.mxu0 %v3675
      %4022 = vmatmul.mubr.bf16.gmra.mrb[0].mxu0 %v3674
      %v4023 = vpop.f32.mrb[0].mxu0
      %v4024 = vadd.f32 0.0, %v4023
      %v4025 = vpop.f32.mrb[0].mxu0
      %v4026 = vpop.f32.mrb[0].mxu0
      %v4027 = vadd.f32 0.0, %v4026
      %v4028 = vpop.f32.mrb[0].mxu0
      %4029 = vdwg.mxu0
      %4030 = vmatprep.subr.bf16.mxu0 0
      %4031 = vmatpush1.bf16.msra.mxu0 %v3801
      %4032 = vmatprep.subr.bf16.mxu0 0
      %4033 = vmatpush1.bf16.msra.mxu0 %v3802
      %4034 = vmatprep.subr.bf16.mxu0 0
      %4035 = vmatpush1.bf16.msra.mxu0 0
      %4036 = vmatprep.subr.bf16.mxu0 0
      %4037 = vmatpush1.bf16.msra.mxu0 0
      %4038 = vmatprep.subr.bf16.mxu0 0
      %4039 = vmatpush1.bf16.msra.mxu0 0
      %4040 = vmatprep.subr.bf16.mxu0 0
      %4041 = vmatpush1.bf16.msra.mxu0 0
      %4042 = vmatprep.subr.bf16.mxu0 0
      %4043 = vmatpush1.bf16.msra.mxu0 0
      %4044 = vmatprep.subr.bf16.mxu0 0
      %4045 = vmatpush1.bf16.msra.mxu0 0
      %4046 = vmatprep.subr.bf16.mxu0 0
      %4047 = vmatpush1.bf16.msra.mxu0 0
      %4048 = vmatprep.subr.bf16.mxu0 0
      %4049 = vmatpush1.bf16.msra.mxu0 0
      %4050 = vmatprep.subr.bf16.mxu0 0
      %4051 = vmatpush1.bf16.msra.mxu0 0
      %4052 = vmatprep.subr.bf16.mxu0 0
      %4053 = vmatpush1.bf16.msra.mxu0 0
      %4054 = vmatprep.subr.bf16.mxu0 0
      %4055 = vmatpush1.bf16.msra.mxu0 0
      %4056 = vmatprep.subr.bf16.mxu0 0
      %4057 = vmatpush1.bf16.msra.mxu0 0
      %4058 = vmatprep.subr.bf16.mxu0 0
      %4059 = vmatpush1.bf16.msra.mxu0 0
      %4060 = vmatprep.subr.bf16.mxu0 0
      %4061 = vmatpush1.bf16.msra.mxu0 0
      %4062 = vmatprep.mubr.bf16.mxu0 0
      %4063 = vmatmul.mubr.bf16.gmra.mrb[0].mxu0 %v3822
      %v4064 = vpop.f32.mrb[0].mxu0
      %v4065 = vadd.f32 %v3904, %v4064
      %v4066 = vpop.f32.mrb[0].mxu0
      %v4067 = vpop.f32.mrb[0].mxu0
      %v4068 = vadd.f32 %v3907, %v4067
      %v4069 = vpop.f32.mrb[0].mxu0
      %4070 = vmatprep.mubr.bf16.mxu0 0
      %4071 = vmatmul.mubr.bf16.gmra.mrb[0].mxu0 %v3825
      %v4072 = vpop.f32.mrb[0].mxu0
      %v4073 = vadd.f32 %v3912, %v4072
      %v4074 = vpop.f32.mrb[0].mxu0
      %v4075 = vpop.f32.mrb[0].mxu0
      %v4076 = vadd.f32 %v3915, %v4075
      %v4077 = vpop.f32.mrb[0].mxu0
      %4078 = vmatprep.mubr.bf16.mxu0 0
      %4079 = vmatmul.mubr.bf16.gmra.mrb[0].mxu0 %v3828
      %v4080 = vpop.f32.mrb[0].mxu0
      %v4081 = vadd.f32 %v3920, %v4080
      %v4082 = vpop.f32.mrb[0].mxu0
      %v4083 = vpop.f32.mrb[0].mxu0
      %v4084 = vadd.f32 %v3923, %v4083
      %v4085 = vpop.f32.mrb[0].mxu0
      %4086 = vmatprep.mubr.bf16.mxu0 0
      %4087 = vmatmul.mubr.bf16.gmra.mrb[0].mxu0 %v3831
      %v4088 = vpop.f32.mrb[0].mxu0
      %v4089 = vadd.f32 %v3928, %v4088
      %v4090 = vpop.f32.mrb[0].mxu0
      %v4091 = vpop.f32.mrb[0].mxu0
      %v4092 = vadd.f32 %v3931, %v4091
      %v4093 = vpop.f32.mrb[0].mxu0
      %4094 = vmatprep.mubr.bf16.mxu0 0
      %4095 = vmatmul.mubr.bf16.gmra.mrb[0].mxu0 %v3834
      %v4096 = vpop.f32.mrb[0].mxu0
      %v4097 = vadd.f32 %v3936, %v4096
      %v4098 = vpop.f32.mrb[0].mxu0
      %v4099 = vpop.f32.mrb[0].mxu0
      %v4100 = vadd.f32 %v3939, %v4099
      %v4101 = vpop.f32.mrb[0].mxu0
      %4102 = vmatprep.mubr.bf16.mxu0 0
      %4103 = vmatmul.mubr.bf16.gmra.mrb[0].mxu0 %v3837
      %v4104 = vpop.f32.mrb[0].mxu0
      %v4105 = vadd.f32 %v3944, %v4104
      %v4106 = vpop.f32.mrb[0].mxu0
      %v4107 = vpop.f32.mrb[0].mxu0
      %v4108 = vadd.f32 %v3947, %v4107
      %v4109 = vpop.f32.mrb[0].mxu0
      %4110 = vmatprep.mubr.bf16.mxu0 0
      %4111 = vmatmul.mubr.bf16.gmra.mrb[0].mxu0 %v3840
      %v4112 = vpop.f32.mrb[0].mxu0
      %v4113 = vadd.f32 %v3952, %v4112
      %v4114 = vpop.f32.mrb[0].mxu0
      %v4115 = vpop.f32.mrb[0].mxu0
      %v4116 = vadd.f32 %v3955, %v4115
      %v4117 = vpop.f32.mrb[0].mxu0
      %4118 = vmatprep.mubr.bf16.mxu0 0
      %4119 = vmatmul.mubr.bf16.gmra.mrb[0].mxu0 %v3843
      %v4120 = vpop.f32.mrb[0].mxu0
      %v4121 = vadd.f32 %v3960, %v4120
      %v4122 = vpop.f32.mrb[0].mxu0
      %v4123 = vpop.f32.mrb[0].mxu0
      %v4124 = vadd.f32 %v3963, %v4123
      %v4125 = vpop.f32.mrb[0].mxu0
      %4126 = vmatprep.mubr.bf16.mxu0 0
      %4127 = vmatmul.mubr.bf16.gmra.mrb[0].mxu0 %v3846
      %v4128 = vpop.f32.mrb[0].mxu0
      %v4129 = vadd.f32 %v3968, %v4128
      %v4130 = vpop.f32.mrb[0].mxu0
      %v4131 = vpop.f32.mrb[0].mxu0
      %v4132 = vadd.f32 %v3971, %v4131
      %v4133 = vpop.f32.mrb[0].mxu0
      %4134 = vmatprep.mubr.bf16.mxu0 0
      %4135 = vmatmul.mubr.bf16.gmra.mrb[0].mxu0 %v3849
      %v4136 = vpop.f32.mrb[0].mxu0
      %v4137 = vadd.f32 %v3976, %v4136
      %v4138 = vpop.f32.mrb[0].mxu0
      %v4139 = vpop.f32.mrb[0].mxu0
      %v4140 = vadd.f32 %v3979, %v4139
      %v4141 = vpop.f32.mrb[0].mxu0
      %4142 = vmatprep.mubr.bf16.mxu0 0
      %4143 = vmatmul.mubr.bf16.gmra.mrb[0].mxu0 %v3852
      %v4144 = vpop.f32.mrb[0].mxu0
      %v4145 = vadd.f32 %v3984, %v4144
      %v4146 = vpop.f32.mrb[0].mxu0
      %v4147 = vpop.f32.mrb[0].mxu0
      %v4148 = vadd.f32 %v3987, %v4147
      %v4149 = vpop.f32.mrb[0].mxu0
      %4150 = vmatprep.mubr.bf16.mxu0 0
      %4151 = vmatmul.mubr.bf16.gmra.mrb[0].mxu0 %v3855
      %v4152 = vpop.f32.mrb[0].mxu0
      %v4153 = vadd.f32 %v3992, %v4152
      %v4154 = vpop.f32.mrb[0].mxu0
      %v4155 = vpop.f32.mrb[0].mxu0
      %v4156 = vadd.f32 %v3995, %v4155
      %v4157 = vpop.f32.mrb[0].mxu0
      %4158 = vmatprep.mubr.bf16.mxu0 0
      %4159 = vmatmul.mubr.bf16.gmra.mrb[0].mxu0 %v3858
      %v4160 = vpop.f32.mrb[0].mxu0
      %v4161 = vadd.f32 %v4000, %v4160
      %v4162 = vpop.f32.mrb[0].mxu0
      %v4163 = vpop.f32.mrb[0].mxu0
      %v4164 = vadd.f32 %v4003, %v4163
      %v4165 = vpop.f32.mrb[0].mxu0
      %4166 = vmatprep.mubr.bf16.mxu0 0
      %4167 = vmatmul.mubr.bf16.gmra.mrb[0].mxu0 %v3861
      %v4168 = vpop.f32.mrb[0].mxu0
      %v4169 = vadd.f32 %v4008, %v4168
      %v4170 = vpop.f32.mrb[0].mxu0
      %v4171 = vpop.f32.mrb[0].mxu0
      %v4172 = vadd.f32 %v4011, %v4171
      %v4173 = vpop.f32.mrb[0].mxu0
      %4174 = vmatprep.mubr.bf16.mxu0 0
      %4175 = vmatmul.mubr.bf16.gmra.mrb[0].mxu0 %v3864
      %v4176 = vpop.f32.mrb[0].mxu0
      %v4177 = vadd.f32 %v4016, %v4176
      %v4178 = vpop.f32.mrb[0].mxu0
      %v4179 = vpop.f32.mrb[0].mxu0
      %v4180 = vadd.f32 %v4019, %v4179
      %v4181 = vpop.f32.mrb[0].mxu0
      %4182 = vmatprep.mubr.bf16.mxu0 0
      %4183 = vmatmul.mubr.bf16.gmra.mrb[0].mxu0 %v3867
      %v4184 = vpop.f32.mrb[0].mxu0
      %v4185 = vadd.f32 %v4024, %v4184
      %v4186 = vpop.f32.mrb[0].mxu0
      %v4187 = vpop.f32.mrb[0].mxu0
      %v4188 = vadd.f32 %v4027, %v4187
      %v4189 = vpop.f32.mrb[0].mxu0
      %4190 = vdwg.mxu0
      %vm4191 = vcmp.gt.f32.partialorder %v4065, 0.0
      %vm4192 = vcmp.gt.f32.partialorder %v4068, 0.0
      %vm4193 = vcmp.gt.f32.partialorder %v4073, 0.0
      %vm4194 = vcmp.gt.f32.partialorder %v4076, 0.0
      %vm4195 = vcmp.gt.f32.partialorder %v4081, 0.0
      %vm4196 = vcmp.gt.f32.partialorder %v4084, 0.0
      %vm4197 = vcmp.gt.f32.partialorder %v4089, 0.0
      %vm4198 = vcmp.gt.f32.partialorder %v4092, 0.0
      %vm4199 = vcmp.gt.f32.partialorder %v4097, 0.0
      %vm4200 = vcmp.gt.f32.partialorder %v4100, 0.0
      %vm4201 = vcmp.gt.f32.partialorder %v4105, 0.0
      %vm4202 = vcmp.gt.f32.partialorder %v4108, 0.0
      %vm4203 = vcmp.gt.f32.partialorder %v4113, 0.0
      %vm4204 = vcmp.gt.f32.partialorder %v4116, 0.0
      %vm4205 = vcmp.gt.f32.partialorder %v4121, 0.0
      %vm4206 = vcmp.gt.f32.partialorder %v4124, 0.0
      %vm4207 = vcmp.gt.f32.partialorder %v4129, 0.0
      %vm4208 = vcmp.gt.f32.partialorder %v4132, 0.0
      %vm4209 = vcmp.gt.f32.partialorder %v4137, 0.0
      %vm4210 = vcmp.gt.f32.partialorder %v4140, 0.0
      %vm4211 = vcmp.gt.f32.partialorder %v4145, 0.0
      %vm4212 = vcmp.gt.f32.partialorder %v4148, 0.0
      %vm4213 = vcmp.gt.f32.partialorder %v4153, 0.0
      %vm4214 = vcmp.gt.f32.partialorder %v4156, 0.0
      %vm4215 = vcmp.gt.f32.partialorder %v4161, 0.0
      %vm4216 = vcmp.gt.f32.partialorder %v4164, 0.0
      %vm4217 = vcmp.gt.f32.partialorder %v4169, 0.0
      %vm4218 = vcmp.gt.f32.partialorder %v4172, 0.0
      %vm4219 = vcmp.gt.f32.partialorder %v4177, 0.0
      %vm4220 = vcmp.gt.f32.partialorder %v4180, 0.0
      %vm4221 = vcmp.gt.f32.partialorder %v4185, 0.0
      %vm4222 = vcmp.gt.f32.partialorder %v4188, 0.0
      %v4223 = vmul.f32 %v4065, 0.1
      %v4224 = vmul.f32 %v4068, 0.1
      %v4225 = vmul.f32 %v4073, 0.1
      %v4226 = vmul.f32 %v4076, 0.1
      %v4227 = vmul.f32 %v4081, 0.1
      %v4228 = vmul.f32 %v4084, 0.1
      %v4229 = vmul.f32 %v4089, 0.1
      %v4230 = vmul.f32 %v4092, 0.1
      %v4231 = vmul.f32 %v4097, 0.1
      %v4232 = vmul.f32 %v4100, 0.1
      %v4233 = vmul.f32 %v4105, 0.1
      %v4234 = vmul.f32 %v4108, 0.1
      %v4235 = vmul.f32 %v4113, 0.1
      %v4236 = vmul.f32 %v4116, 0.1
      %v4237 = vmul.f32 %v4121, 0.1
      %v4238 = vmul.f32 %v4124, 0.1
      %v4239 = vmul.f32 %v4129, 0.1
      %v4240 = vmul.f32 %v4132, 0.1
      %v4241 = vmul.f32 %v4137, 0.1
      %v4242 = vmul.f32 %v4140, 0.1
      %v4243 = vmul.f32 %v4145, 0.1
      %v4244 = vmul.f32 %v4148, 0.1
      %v4245 = vmul.f32 %v4153, 0.1
      %v4246 = vmul.f32 %v4156, 0.1
      %v4247 = vmul.f32 %v4161, 0.1
      %v4248 = vmul.f32 %v4164, 0.1
      %v4249 = vmul.f32 %v4169, 0.1
      %v4250 = vmul.f32 %v4172, 0.1
      %v4251 = vmul.f32 %v4177, 0.1
      %v4252 = vmul.f32 %v4180, 0.1
      %v4253 = vmul.f32 %v4185, 0.1
      %v4254 = vmul.f32 %v4188, 0.1
      %v4255 = vsel %vm4191, %v4065, %v4223
      %v4256 = vsel %vm4192, %v4068, %v4224
      %v4257 = vsel %vm4193, %v4073, %v4225
      %v4258 = vsel %vm4194, %v4076, %v4226
      %v4259 = vsel %vm4195, %v4081, %v4227
      %v4260 = vsel %vm4196, %v4084, %v4228
      %v4261 = vsel %vm4197, %v4089, %v4229
      %v4262 = vsel %vm4198, %v4092, %v4230
      %v4263 = vsel %vm4199, %v4097, %v4231
      %v4264 = vsel %vm4200, %v4100, %v4232
      %v4265 = vsel %vm4201, %v4105, %v4233
      %v4266 = vsel %vm4202, %v4108, %v4234
      %v4267 = vsel %vm4203, %v4113, %v4235
      %v4268 = vsel %vm4204, %v4116, %v4236
      %v4269 = vsel %vm4205, %v4121, %v4237
      %v4270 = vsel %vm4206, %v4124, %v4238
      %v4271 = vsel %vm4207, %v4129, %v4239
      %v4272 = vsel %vm4208, %v4132, %v4240
      %v4273 = vsel %vm4209, %v4137, %v4241
      %v4274 = vsel %vm4210, %v4140, %v4242
      %v4275 = vsel %vm4211, %v4145, %v4243
      %v4276 = vsel %vm4212, %v4148, %v4244
      %v4277 = vsel %vm4213, %v4153, %v4245
      %v4278 = vsel %vm4214, %v4156, %v4246
      %v4279 = vsel %vm4215, %v4161, %v4247
      %v4280 = vsel %vm4216, %v4164, %v4248
      %v4281 = vsel %vm4217, %v4169, %v4249
      %v4282 = vsel %vm4218, %v4172, %v4250
      %v4283 = vsel %vm4219, %v4177, %v4251
      %v4284 = vsel %vm4220, %v4180, %v4252
      %v4285 = vsel %vm4221, %v4185, %v4253
      %v4286 = vsel %vm4222, %v4188, %v4254
      %4287 = vst.msk [vmem:[%s368 + $0x1] sm:$0xff] %vm280, %v4255
      %4288 = vst.msk [vmem:[%s368 + $0x9] sm:$0xff] %vm280, %v4256
      %4289 = vst.msk [vmem:[%s368 + $0x19] sm:$0xff] %vm280, %v4257
      %4290 = vst.msk [vmem:[%s368 + $0x21] sm:$0xff] %vm280, %v4258
      %4291 = vst.msk [vmem:[%s368 + $0x31] sm:$0xff] %vm280, %v4259
      %4292 = vst.msk [vmem:[%s368 + $0x39] sm:$0xff] %vm280, %v4260
      %4293 = vst.msk [vmem:[%s368 + $0x49] sm:$0xff] %vm280, %v4261
      %4294 = vst.msk [vmem:[%s368 + $0x51] sm:$0xff] %vm280, %v4262
      %4295 = vst.msk [vmem:[%s368 + $0x61] sm:$0xff] %vm280, %v4263
      %4296 = vst.msk [vmem:[%s368 + $0x69] sm:$0xff] %vm280, %v4264
      %4297 = vst.msk [vmem:[%s368 + $0x79] sm:$0xff] %vm280, %v4265
      %4298 = vst.msk [vmem:[%s368 + $0x81] sm:$0xff] %vm280, %v4266
      %4299 = vst.msk [vmem:[%s368 + $0x91] sm:$0xff] %vm280, %v4267
      %4300 = vst.msk [vmem:[%s368 + $0x99] sm:$0xff] %vm280, %v4268
      %4301 = vst.msk [vmem:[%s368 + $0xa9] sm:$0xff] %vm280, %v4269
      %4302 = vst.msk [vmem:[%s368 + $0xb1] sm:$0xff] %vm280, %v4270
      %4303 = vst.msk [vmem:[%s368 + $0xc1] sm:$0xff] %vm280, %v4271
      %4304 = vst.msk [vmem:[%s368 + $0xc9] sm:$0xff] %vm280, %v4272
      %4305 = vst.msk [vmem:[%s368 + $0xd9] sm:$0xff] %vm280, %v4273
      %4306 = vst.msk [vmem:[%s368 + $0xe1] sm:$0xff] %vm280, %v4274
      %4307 = vst.msk [vmem:[%s368 + $0xf1] sm:$0xff] %vm280, %v4275
      %4308 = vst.msk [vmem:[%s368 + $0xf9] sm:$0xff] %vm280, %v4276
      %4309 = vst.msk [vmem:[%s368 + $0x109] sm:$0xff] %vm280, %v4277
      %4310 = vst.msk [vmem:[%s368 + $0x111] sm:$0xff] %vm280, %v4278
      %4311 = vst.msk [vmem:[%s368 + $0x121] sm:$0xff] %vm280, %v4279
      %4312 = vst.msk [vmem:[%s368 + $0x129] sm:$0xff] %vm280, %v4280
      %4313 = vst.msk [vmem:[%s368 + $0x139] sm:$0xff] %vm280, %v4281
      %4314 = vst.msk [vmem:[%s368 + $0x141] sm:$0xff] %vm280, %v4282
      %4315 = vst.msk [vmem:[%s368 + $0x151] sm:$0xff] %vm280, %v4283
      %4316 = vst.msk [vmem:[%s368 + $0x159] sm:$0xff] %vm280, %v4284
      %4317 = vst.msk [vmem:[%s368 + $0x169] sm:$0xff] %vm280, %v4285
      %4318 = vst.msk [vmem:[%s368 + $0x171] sm:$0xff] %vm280, %v4286
      %v4319 = vld [vmem:[#allocation2] sm:$0xff]
      %v4320 = vld [vmem:[#allocation2 + $0x8] sm:$0xff]
      %v4321 = vld [vmem:[#allocation2 + $0x18] sm:$0xff]
      %v4322 = vld [vmem:[#allocation2 + $0x20] sm:$0xff]
      %v4323 = vld [vmem:[#allocation2 + $0x30] sm:$0xff]
      %v4324 = vld [vmem:[#allocation2 + $0x38] sm:$0xff]
      %v4325 = vld [vmem:[#allocation2 + $0x48] sm:$0xff]
      %v4326 = vld [vmem:[#allocation2 + $0x50] sm:$0xff]
      %v4327 = vld [vmem:[#allocation2 + $0x60] sm:$0xff]
      %v4328 = vld [vmem:[#allocation2 + $0x68] sm:$0xff]
      %v4329 = vld [vmem:[#allocation2 + $0x78] sm:$0xff]
      %v4330 = vld [vmem:[#allocation2 + $0x80] sm:$0xff]
      %v4331 = vld [vmem:[#allocation2 + $0x90] sm:$0xff]
      %v4332 = vld [vmem:[#allocation2 + $0x98] sm:$0xff]
      %v4333 = vld [vmem:[#allocation2 + $0xa8] sm:$0xff]
      %v4334 = vld [vmem:[#allocation2 + $0xb0] sm:$0xff]
      %v4335 = vld [vmem:[#allocation2 + $0xc0] sm:$0xff]
      %v4336 = vld [vmem:[#allocation2 + $0xc8] sm:$0xff]
      %v4337 = vld [vmem:[#allocation2 + $0xd8] sm:$0xff]
      %v4338 = vld [vmem:[#allocation2 + $0xe0] sm:$0xff]
      %v4339 = vld [vmem:[#allocation2 + $0xf0] sm:$0xff]
      %v4340 = vld [vmem:[#allocation2 + $0xf8] sm:$0xff]
      %v4341 = vld [vmem:[#allocation2 + $0x108] sm:$0xff]
      %v4342 = vld [vmem:[#allocation2 + $0x110] sm:$0xff]
      %v4343 = vld [vmem:[#allocation2 + $0x120] sm:$0xff]
      %v4344 = vld [vmem:[#allocation2 + $0x128] sm:$0xff]
      %v4345 = vld [vmem:[#allocation2 + $0x138] sm:$0xff]
      %v4346 = vld [vmem:[#allocation2 + $0x140] sm:$0xff]
      %v4347 = vld [vmem:[#allocation2 + $0x150] sm:$0xff]
      %v4348 = vld [vmem:[#allocation2 + $0x158] sm:$0xff]
      %v4349 = vld [vmem:[#allocation2 + $0x168] sm:$0xff]
      %v4350 = vld [vmem:[#allocation2 + $0x170] sm:$0xff]
      %v4351 = vld [vmem:[#allocation2 + $0x1] sm:$0xff]
      %v4352 = vld [vmem:[#allocation2 + $0x9] sm:$0xff]
      %v4353 = vld [vmem:[#allocation2 + $0x19] sm:$0xff]
      %v4354 = vld [vmem:[#allocation2 + $0x21] sm:$0xff]
      %v4355 = vld [vmem:[#allocation2 + $0x31] sm:$0xff]
      %v4356 = vld [vmem:[#allocation2 + $0x39] sm:$0xff]
      %v4357 = vld [vmem:[#allocation2 + $0x49] sm:$0xff]
      %v4358 = vld [vmem:[#allocation2 + $0x51] sm:$0xff]
      %v4359 = vld [vmem:[#allocation2 + $0x61] sm:$0xff]
      %v4360 = vld [vmem:[#allocation2 + $0x69] sm:$0xff]
      %v4361 = vld [vmem:[#allocation2 + $0x79] sm:$0xff]
      %v4362 = vld [vmem:[#allocation2 + $0x81] sm:$0xff]
      %v4363 = vld [vmem:[#allocation2 + $0x91] sm:$0xff]
      %v4364 = vld [vmem:[#allocation2 + $0x99] sm:$0xff]
      %v4365 = vld [vmem:[#allocation2 + $0xa9] sm:$0xff]
      %v4366 = vld [vmem:[#allocation2 + $0xb1] sm:$0xff]
      %v4367 = vld [vmem:[#allocation2 + $0xc1] sm:$0xff]
      %v4368 = vld [vmem:[#allocation2 + $0xc9] sm:$0xff]
      %v4369 = vld [vmem:[#allocation2 + $0xd9] sm:$0xff]
      %v4370 = vld [vmem:[#allocation2 + $0xe1] sm:$0xff]
      %v4371 = vld [vmem:[#allocation2 + $0xf1] sm:$0xff]
      %v4372 = vld [vmem:[#allocation2 + $0xf9] sm:$0xff]
      %v4373 = vld [vmem:[#allocation2 + $0x109] sm:$0xff]
      %v4374 = vld [vmem:[#allocation2 + $0x111] sm:$0xff]
      %v4375 = vld [vmem:[#allocation2 + $0x121] sm:$0xff]
      %v4376 = vld [vmem:[#allocation2 + $0x129] sm:$0xff]
      %v4377 = vld [vmem:[#allocation2 + $0x139] sm:$0xff]
      %v4378 = vld [vmem:[#allocation2 + $0x141] sm:$0xff]
      %v4379 = vld [vmem:[#allocation2 + $0x151] sm:$0xff]
      %v4380 = vld [vmem:[#allocation2 + $0x159] sm:$0xff]
      %v4381 = vld [vmem:[#allocation2 + $0x169] sm:$0xff]
      %v4382 = vld [vmem:[#allocation2 + $0x171] sm:$0xff]
      %v4383 = vld [vmem:[#allocation2 + $0x2] sm:$0xff]
      %v4384 = vld [vmem:[#allocation2 + $0xa] sm:$0xff]
      %v4385 = vld [vmem:[#allocation2 + $0x1a] sm:$0xff]
      %v4386 = vld [vmem:[#allocation2 + $0x22] sm:$0xff]
      %v4387 = vld [vmem:[#allocation2 + $0x32] sm:$0xff]
      %v4388 = vld [vmem:[#allocation2 + $0x3a] sm:$0xff]
      %v4389 = vld [vmem:[#allocation2 + $0x4a] sm:$0xff]
      %v4390 = vld [vmem:[#allocation2 + $0x52] sm:$0xff]
      %v4391 = vld [vmem:[#allocation2 + $0x62] sm:$0xff]
      %v4392 = vld [vmem:[#allocation2 + $0x6a] sm:$0xff]
      %v4393 = vld [vmem:[#allocation2 + $0x7a] sm:$0xff]
      %v4394 = vld [vmem:[#allocation2 + $0x82] sm:$0xff]
      %v4395 = vld [vmem:[#allocation2 + $0x92] sm:$0xff]
      %v4396 = vld [vmem:[#allocation2 + $0x9a] sm:$0xff]
      %v4397 = vld [vmem:[#allocation2 + $0xaa] sm:$0xff]
      %v4398 = vld [vmem:[#allocation2 + $0xb2] sm:$0xff]
      %v4399 = vld [vmem:[#allocation2 + $0xc2] sm:$0xff]
      %v4400 = vld [vmem:[#allocation2 + $0xca] sm:$0xff]
      %v4401 = vld [vmem:[#allocation2 + $0xda] sm:$0xff]
      %v4402 = vld [vmem:[#allocation2 + $0xe2] sm:$0xff]
      %v4403 = vld [vmem:[#allocation2 + $0xf2] sm:$0xff]
      %v4404 = vld [vmem:[#allocation2 + $0xfa] sm:$0xff]
      %v4405 = vld [vmem:[#allocation2 + $0x10a] sm:$0xff]
      %v4406 = vld [vmem:[#allocation2 + $0x112] sm:$0xff]
      %v4407 = vld [vmem:[#allocation2 + $0x122] sm:$0xff]
      %v4408 = vld [vmem:[#allocation2 + $0x12a] sm:$0xff]
      %v4409 = vld [vmem:[#allocation2 + $0x13a] sm:$0xff]
      %v4410 = vld [vmem:[#allocation2 + $0x142] sm:$0xff]
      %v4411 = vld [vmem:[#allocation2 + $0x152] sm:$0xff]
      %v4412 = vld [vmem:[#allocation2 + $0x15a] sm:$0xff]
      %v4413 = vld [vmem:[#allocation2 + $0x16a] sm:$0xff]
      %v4414 = vld [vmem:[#allocation2 + $0x172] sm:$0xff]
      %v4415 = vld [vmem:[%s368] sm:$0xff]
      %v4416 = vld [vmem:[%s368 + $0x8] sm:$0xff]
      %v4417 = vld [vmem:[%s368 + $0x18] sm:$0xff]
      %v4418 = vld [vmem:[%s368 + $0x20] sm:$0xff]
      %v4419 = vld [vmem:[%s368 + $0x30] sm:$0xff]
      %v4420 = vld [vmem:[%s368 + $0x38] sm:$0xff]
      %v4421 = vld [vmem:[%s368 + $0x48] sm:$0xff]
      %v4422 = vld [vmem:[%s368 + $0x50] sm:$0xff]
      %v4423 = vld [vmem:[%s368 + $0x60] sm:$0xff]
      %v4424 = vld [vmem:[%s368 + $0x68] sm:$0xff]
      %v4425 = vld [vmem:[%s368 + $0x78] sm:$0xff]
      %v4426 = vld [vmem:[%s368 + $0x80] sm:$0xff]
      %v4427 = vld [vmem:[%s368 + $0x90] sm:$0xff]
      %v4428 = vld [vmem:[%s368 + $0x98] sm:$0xff]
      %v4429 = vld [vmem:[%s368 + $0xa8] sm:$0xff]
      %v4430 = vld [vmem:[%s368 + $0xb0] sm:$0xff]
      %v4431 = vld [vmem:[%s368 + $0xc0] sm:$0xff]
      %v4432 = vld [vmem:[%s368 + $0xc8] sm:$0xff]
      %v4433 = vld [vmem:[%s368 + $0xd8] sm:$0xff]
      %v4434 = vld [vmem:[%s368 + $0xe0] sm:$0xff]
      %v4435 = vld [vmem:[%s368 + $0xf0] sm:$0xff]
      %v4436 = vld [vmem:[%s368 + $0xf8] sm:$0xff]
      %v4437 = vld [vmem:[%s368 + $0x108] sm:$0xff]
      %v4438 = vld [vmem:[%s368 + $0x110] sm:$0xff]
      %v4439 = vld [vmem:[%s368 + $0x120] sm:$0xff]
      %v4440 = vld [vmem:[%s368 + $0x128] sm:$0xff]
      %v4441 = vld [vmem:[%s368 + $0x138] sm:$0xff]
      %v4442 = vld [vmem:[%s368 + $0x140] sm:$0xff]
      %v4443 = vld [vmem:[%s368 + $0x150] sm:$0xff]
      %v4444 = vld [vmem:[%s368 + $0x158] sm:$0xff]
      %v4445 = vld [vmem:[%s368 + $0x168] sm:$0xff]
      %v4446 = vld [vmem:[%s368 + $0x170] sm:$0xff]
      %v4447 = vld [vmem:[%s368 + $0x1] sm:$0xff]
      %v4448 = vld [vmem:[%s368 + $0x9] sm:$0xff]
      %v4449 = vld [vmem:[%s368 + $0x19] sm:$0xff]
      %v4450 = vld [vmem:[%s368 + $0x21] sm:$0xff]
      %v4451 = vld [vmem:[%s368 + $0x31] sm:$0xff]
      %v4452 = vld [vmem:[%s368 + $0x39] sm:$0xff]
      %v4453 = vld [vmem:[%s368 + $0x49] sm:$0xff]
      %v4454 = vld [vmem:[%s368 + $0x51] sm:$0xff]
      %v4455 = vld [vmem:[%s368 + $0x61] sm:$0xff]
      %v4456 = vld [vmem:[%s368 + $0x69] sm:$0xff]
      %v4457 = vld [vmem:[%s368 + $0x79] sm:$0xff]
      %v4458 = vld [vmem:[%s368 + $0x81] sm:$0xff]
      %v4459 = vld [vmem:[%s368 + $0x91] sm:$0xff]
      %v4460 = vld [vmem:[%s368 + $0x99] sm:$0xff]
      %v4461 = vld [vmem:[%s368 + $0xa9] sm:$0xff]
      %v4462 = vld [vmem:[%s368 + $0xb1] sm:$0xff]
      %v4463 = vld [vmem:[%s368 + $0xc1] sm:$0xff]
      %v4464 = vld [vmem:[%s368 + $0xc9] sm:$0xff]
      %v4465 = vld [vmem:[%s368 + $0xd9] sm:$0xff]
      %v4466 = vld [vmem:[%s368 + $0xe1] sm:$0xff]
      %v4467 = vld [vmem:[%s368 + $0xf1] sm:$0xff]
      %v4468 = vld [vmem:[%s368 + $0xf9] sm:$0xff]
      %v4469 = vld [vmem:[%s368 + $0x109] sm:$0xff]
      %v4470 = vld [vmem:[%s368 + $0x111] sm:$0xff]
      %v4471 = vld [vmem:[%s368 + $0x121] sm:$0xff]
      %v4472 = vld [vmem:[%s368 + $0x129] sm:$0xff]
      %v4473 = vld [vmem:[%s368 + $0x139] sm:$0xff]
      %v4474 = vld [vmem:[%s368 + $0x141] sm:$0xff]
      %v4475 = vld [vmem:[%s368 + $0x151] sm:$0xff]
      %v4476 = vld [vmem:[%s368 + $0x159] sm:$0xff]
      %v4477 = vld [vmem:[%s368 + $0x169] sm:$0xff]
      %v4478 = vld [vmem:[%s368 + $0x171] sm:$0xff]
      %v4479 = vld [vmem:[%s368 + $0x2] sm:$0xff]
      %v4480 = vld [vmem:[%s368 + $0xa] sm:$0xff]
      %v4481 = vld [vmem:[%s368 + $0x1a] sm:$0xff]
      %v4482 = vld [vmem:[%s368 + $0x22] sm:$0xff]
      %v4483 = vld [vmem:[%s368 + $0x32] sm:$0xff]
      %v4484 = vld [vmem:[%s368 + $0x3a] sm:$0xff]
      %v4485 = vld [vmem:[%s368 + $0x4a] sm:$0xff]
      %v4486 = vld [vmem:[%s368 + $0x52] sm:$0xff]
      %v4487 = vld [vmem:[%s368 + $0x62] sm:$0xff]
      %v4488 = vld [vmem:[%s368 + $0x6a] sm:$0xff]
      %v4489 = vld [vmem:[%s368 + $0x7a] sm:$0xff]
      %v4490 = vld [vmem:[%s368 + $0x82] sm:$0xff]
      %v4491 = vld [vmem:[%s368 + $0x92] sm:$0xff]
      %v4492 = vld [vmem:[%s368 + $0x9a] sm:$0xff]
      %v4493 = vld [vmem:[%s368 + $0xaa] sm:$0xff]
      %v4494 = vld [vmem:[%s368 + $0xb2] sm:$0xff]
      %v4495 = vld [vmem:[%s368 + $0xc2] sm:$0xff]
      %v4496 = vld [vmem:[%s368 + $0xca] sm:$0xff]
      %v4497 = vld [vmem:[%s368 + $0xda] sm:$0xff]
      %v4498 = vld [vmem:[%s368 + $0xe2] sm:$0xff]
      %v4499 = vld [vmem:[%s368 + $0xf2] sm:$0xff]
      %v4500 = vld [vmem:[%s368 + $0xfa] sm:$0xff]
      %v4501 = vld [vmem:[%s368 + $0x10a] sm:$0xff]
      %v4502 = vld [vmem:[%s368 + $0x112] sm:$0xff]
      %v4503 = vld [vmem:[%s368 + $0x122] sm:$0xff]
      %v4504 = vld [vmem:[%s368 + $0x12a] sm:$0xff]
      %v4505 = vld [vmem:[%s368 + $0x13a] sm:$0xff]
      %v4506 = vld [vmem:[%s368 + $0x142] sm:$0xff]
      %v4507 = vld [vmem:[%s368 + $0x152] sm:$0xff]
      %v4508 = vld [vmem:[%s368 + $0x15a] sm:$0xff]
      %v4509 = vld [vmem:[%s368 + $0x16a] sm:$0xff]
      %v4510 = vld [vmem:[%s368 + $0x172] sm:$0xff]
      %v4511 = vld [vmem:[%s593] sm:$0xff]
      %v4512 = vld [vmem:[%s593 + $0x8] sm:$0xff]
      %v4513 = vld [vmem:[%s593 + $0x18] sm:$0xff]
      %v4514 = vld [vmem:[%s593 + $0x20] sm:$0xff]
      %v4515 = vld [vmem:[%s593 + $0x30] sm:$0xff]
      %v4516 = vld [vmem:[%s593 + $0x38] sm:$0xff]
      %v4517 = vld [vmem:[%s593 + $0x48] sm:$0xff]
      %v4518 = vld [vmem:[%s593 + $0x50] sm:$0xff]
      %v4519 = vld [vmem:[%s593 + $0x60] sm:$0xff]
      %v4520 = vld [vmem:[%s593 + $0x68] sm:$0xff]
      %v4521 = vld [vmem:[%s593 + $0x78] sm:$0xff]
      %v4522 = vld [vmem:[%s593 + $0x80] sm:$0xff]
      %v4523 = vld [vmem:[%s593 + $0x90] sm:$0xff]
      %v4524 = vld [vmem:[%s593 + $0x98] sm:$0xff]
      %v4525 = vld [vmem:[%s593 + $0xa8] sm:$0xff]
      %v4526 = vld [vmem:[%s593 + $0xb0] sm:$0xff]
      %v4527 = vld [vmem:[%s593 + $0xc0] sm:$0xff]
      %v4528 = vld [vmem:[%s593 + $0xc8] sm:$0xff]
      %v4529 = vld [vmem:[%s593 + $0xd8] sm:$0xff]
      %v4530 = vld [vmem:[%s593 + $0xe0] sm:$0xff]
      %v4531 = vld [vmem:[%s593 + $0xf0] sm:$0xff]
      %v4532 = vld [vmem:[%s593 + $0xf8] sm:$0xff]
      %v4533 = vld [vmem:[%s593 + $0x108] sm:$0xff]
      %v4534 = vld [vmem:[%s593 + $0x110] sm:$0xff]
      %v4535 = vld [vmem:[%s593 + $0x120] sm:$0xff]
      %v4536 = vld [vmem:[%s593 + $0x128] sm:$0xff]
      %v4537 = vld [vmem:[%s593 + $0x138] sm:$0xff]
      %v4538 = vld [vmem:[%s593 + $0x140] sm:$0xff]
      %v4539 = vld [vmem:[%s593 + $0x150] sm:$0xff]
      %v4540 = vld [vmem:[%s593 + $0x158] sm:$0xff]
      %v4541 = vld [vmem:[%s593 + $0x168] sm:$0xff]
      %v4542 = vld [vmem:[%s593 + $0x170] sm:$0xff]
      %v4543 = vld [vmem:[%s593 + $0x1] sm:$0xff]
      %v4544 = vld [vmem:[%s593 + $0x9] sm:$0xff]
      %v4545 = vld [vmem:[%s593 + $0x19] sm:$0xff]
      %v4546 = vld [vmem:[%s593 + $0x21] sm:$0xff]
      %v4547 = vld [vmem:[%s593 + $0x31] sm:$0xff]
      %v4548 = vld [vmem:[%s593 + $0x39] sm:$0xff]
      %v4549 = vld [vmem:[%s593 + $0x49] sm:$0xff]
      %v4550 = vld [vmem:[%s593 + $0x51] sm:$0xff]
      %v4551 = vld [vmem:[%s593 + $0x61] sm:$0xff]
      %v4552 = vld [vmem:[%s593 + $0x69] sm:$0xff]
      %v4553 = vld [vmem:[%s593 + $0x79] sm:$0xff]
      %v4554 = vld [vmem:[%s593 + $0x81] sm:$0xff]
      %v4555 = vld [vmem:[%s593 + $0x91] sm:$0xff]
      %v4556 = vld [vmem:[%s593 + $0x99] sm:$0xff]
      %v4557 = vld [vmem:[%s593 + $0xa9] sm:$0xff]
      %v4558 = vld [vmem:[%s593 + $0xb1] sm:$0xff]
      %v4559 = vld [vmem:[%s593 + $0xc1] sm:$0xff]
      %v4560 = vld [vmem:[%s593 + $0xc9] sm:$0xff]
      %v4561 = vld [vmem:[%s593 + $0xd9] sm:$0xff]
      %v4562 = vld [vmem:[%s593 + $0xe1] sm:$0xff]
      %v4563 = vld [vmem:[%s593 + $0xf1] sm:$0xff]
      %v4564 = vld [vmem:[%s593 + $0xf9] sm:$0xff]
      %v4565 = vld [vmem:[%s593 + $0x109] sm:$0xff]
      %v4566 = vld [vmem:[%s593 + $0x111] sm:$0xff]
      %v4567 = vld [vmem:[%s593 + $0x121] sm:$0xff]
      %v4568 = vld [vmem:[%s593 + $0x129] sm:$0xff]
      %v4569 = vld [vmem:[%s593 + $0x139] sm:$0xff]
      %v4570 = vld [vmem:[%s593 + $0x141] sm:$0xff]
      %v4571 = vld [vmem:[%s593 + $0x151] sm:$0xff]
      %v4572 = vld [vmem:[%s593 + $0x159] sm:$0xff]
      %v4573 = vld [vmem:[%s593 + $0x169] sm:$0xff]
      %v4574 = vld [vmem:[%s593 + $0x171] sm:$0xff]
      %v4575 = vld [vmem:[%s593 + $0x2] sm:$0xff]
      %v4576 = vld [vmem:[%s593 + $0xa] sm:$0xff]
      %v4577 = vld [vmem:[%s593 + $0x1a] sm:$0xff]
      %v4578 = vld [vmem:[%s593 + $0x22] sm:$0xff]
      %v4579 = vld [vmem:[%s593 + $0x32] sm:$0xff]
      %v4580 = vld [vmem:[%s593 + $0x3a] sm:$0xff]
      %v4581 = vld [vmem:[%s593 + $0x4a] sm:$0xff]
      %v4582 = vld [vmem:[%s593 + $0x52] sm:$0xff]
      %v4583 = vld [vmem:[%s593 + $0x62] sm:$0xff]
      %v4584 = vld [vmem:[%s593 + $0x6a] sm:$0xff]
      %v4585 = vld [vmem:[%s593 + $0x7a] sm:$0xff]
      %v4586 = vld [vmem:[%s593 + $0x82] sm:$0xff]
      %v4587 = vld [vmem:[%s593 + $0x92] sm:$0xff]
      %v4588 = vld [vmem:[%s593 + $0x9a] sm:$0xff]
      %v4589 = vld [vmem:[%s593 + $0xaa] sm:$0xff]
      %v4590 = vld [vmem:[%s593 + $0xb2] sm:$0xff]
      %v4591 = vld [vmem:[%s593 + $0xc2] sm:$0xff]
      %v4592 = vld [vmem:[%s593 + $0xca] sm:$0xff]
      %v4593 = vld [vmem:[%s593 + $0xda] sm:$0xff]
      %v4594 = vld [vmem:[%s593 + $0xe2] sm:$0xff]
      %v4595 = vld [vmem:[%s593 + $0xf2] sm:$0xff]
      %v4596 = vld [vmem:[%s593 + $0xfa] sm:$0xff]
      %v4597 = vld [vmem:[%s593 + $0x10a] sm:$0xff]
      %v4598 = vld [vmem:[%s593 + $0x112] sm:$0xff]
      %v4599 = vld [vmem:[%s593 + $0x122] sm:$0xff]
      %v4600 = vld [vmem:[%s593 + $0x12a] sm:$0xff]
      %v4601 = vld [vmem:[%s593 + $0x13a] sm:$0xff]
      %v4602 = vld [vmem:[%s593 + $0x142] sm:$0xff]
      %v4603 = vld [vmem:[%s593 + $0x152] sm:$0xff]
      %v4604 = vld [vmem:[%s593 + $0x15a] sm:$0xff]
      %v4605 = vld [vmem:[%s593 + $0x16a] sm:$0xff]
      %v4606 = vld [vmem:[%s593 + $0x172] sm:$0xff]
      %4639 = vrot.lane.b32.xlu0 %v4351, 32
      %v4640 = vpop.permute.xlu0 %4639
      %4641 = vrot.lane.b32.xlu0 %v4352, 32
      %v4642 = vpop.permute.xlu0 %4641
      %4643 = vrot.lane.b32.xlu0 %v4353, 32
      %v4644 = vpop.permute.xlu0 %4643
      %4645 = vrot.lane.b32.xlu0 %v4354, 32
      %v4646 = vpop.permute.xlu0 %4645
      %4647 = vrot.lane.b32.xlu0 %v4355, 32
      %v4648 = vpop.permute.xlu0 %4647
      %4649 = vrot.lane.b32.xlu0 %v4356, 32
      %v4650 = vpop.permute.xlu0 %4649
      %4651 = vrot.lane.b32.xlu0 %v4357, 32
      %v4652 = vpop.permute.xlu0 %4651
      %4653 = vrot.lane.b32.xlu0 %v4358, 32
      %v4654 = vpop.permute.xlu0 %4653
      %4655 = vrot.lane.b32.xlu0 %v4359, 32
      %v4656 = vpop.permute.xlu0 %4655
      %4657 = vrot.lane.b32.xlu0 %v4360, 32
      %v4658 = vpop.permute.xlu0 %4657
      %4659 = vrot.lane.b32.xlu0 %v4361, 32
      %v4660 = vpop.permute.xlu0 %4659
      %4661 = vrot.lane.b32.xlu0 %v4362, 32
      %v4662 = vpop.permute.xlu0 %4661
      %4663 = vrot.lane.b32.xlu0 %v4363, 32
      %v4664 = vpop.permute.xlu0 %4663
      %4665 = vrot.lane.b32.xlu0 %v4364, 32
      %v4666 = vpop.permute.xlu0 %4665
      %4667 = vrot.lane.b32.xlu0 %v4365, 32
      %v4668 = vpop.permute.xlu0 %4667
      %4669 = vrot.lane.b32.xlu0 %v4366, 32
      %v4670 = vpop.permute.xlu0 %4669
      %4671 = vrot.lane.b32.xlu0 %v4367, 32
      %v4672 = vpop.permute.xlu0 %4671
      %4673 = vrot.lane.b32.xlu0 %v4368, 32
      %v4674 = vpop.permute.xlu0 %4673
      %4675 = vrot.lane.b32.xlu0 %v4369, 32
      %v4676 = vpop.permute.xlu0 %4675
      %4677 = vrot.lane.b32.xlu0 %v4370, 32
      %v4678 = vpop.permute.xlu0 %4677
      %4679 = vrot.lane.b32.xlu0 %v4371, 32
      %v4680 = vpop.permute.xlu0 %4679
      %4681 = vrot.lane.b32.xlu0 %v4372, 32
      %v4682 = vpop.permute.xlu0 %4681
      %4683 = vrot.lane.b32.xlu0 %v4373, 32
      %v4684 = vpop.permute.xlu0 %4683
      %4685 = vrot.lane.b32.xlu0 %v4374, 32
      %v4686 = vpop.permute.xlu0 %4685
      %4687 = vrot.lane.b32.xlu0 %v4375, 32
      %v4688 = vpop.permute.xlu0 %4687
      %4689 = vrot.lane.b32.xlu0 %v4376, 32
      %v4690 = vpop.permute.xlu0 %4689
      %4691 = vrot.lane.b32.xlu0 %v4377, 32
      %v4692 = vpop.permute.xlu0 %4691
      %4693 = vrot.lane.b32.xlu0 %v4378, 32
      %v4694 = vpop.permute.xlu0 %4693
      %4695 = vrot.lane.b32.xlu0 %v4379, 32
      %v4696 = vpop.permute.xlu0 %4695
      %4697 = vrot.lane.b32.xlu0 %v4380, 32
      %v4698 = vpop.permute.xlu0 %4697
      %4699 = vrot.lane.b32.xlu0 %v4381, 32
      %v4700 = vpop.permute.xlu0 %4699
      %4701 = vrot.lane.b32.xlu0 %v4382, 32
      %v4702 = vpop.permute.xlu0 %4701
      %4767 = vrot.lane.b32.xlu0 %v4383, 64
      %v4768 = vpop.permute.xlu0 %4767
      %4769 = vrot.lane.b32.xlu0 %v4384, 64
      %v4770 = vpop.permute.xlu0 %4769
      %4771 = vrot.lane.b32.xlu0 %v4385, 64
      %v4772 = vpop.permute.xlu0 %4771
      %4773 = vrot.lane.b32.xlu0 %v4386, 64
      %v4774 = vpop.permute.xlu0 %4773
      %4775 = vrot.lane.b32.xlu0 %v4387, 64
      %v4776 = vpop.permute.xlu0 %4775
      %4777 = vrot.lane.b32.xlu0 %v4388, 64
      %v4778 = vpop.permute.xlu0 %4777
      %4779 = vrot.lane.b32.xlu0 %v4389, 64
      %v4780 = vpop.permute.xlu0 %4779
      %4781 = vrot.lane.b32.xlu0 %v4390, 64
      %v4782 = vpop.permute.xlu0 %4781
      %4783 = vrot.lane.b32.xlu0 %v4391, 64
      %v4784 = vpop.permute.xlu0 %4783
      %4785 = vrot.lane.b32.xlu0 %v4392, 64
      %v4786 = vpop.permute.xlu0 %4785
      %4787 = vrot.lane.b32.xlu0 %v4393, 64
      %v4788 = vpop.permute.xlu0 %4787
      %4789 = vrot.lane.b32.xlu0 %v4394, 64
      %v4790 = vpop.permute.xlu0 %4789
      %4791 = vrot.lane.b32.xlu0 %v4395, 64
      %v4792 = vpop.permute.xlu0 %4791
      %4793 = vrot.lane.b32.xlu0 %v4396, 64
      %v4794 = vpop.permute.xlu0 %4793
      %4795 = vrot.lane.b32.xlu0 %v4397, 64
      %v4796 = vpop.permute.xlu0 %4795
      %4797 = vrot.lane.b32.xlu0 %v4398, 64
      %v4798 = vpop.permute.xlu0 %4797
      %4799 = vrot.lane.b32.xlu0 %v4399, 64
      %v4800 = vpop.permute.xlu0 %4799
      %4801 = vrot.lane.b32.xlu0 %v4400, 64
      %v4802 = vpop.permute.xlu0 %4801
      %4803 = vrot.lane.b32.xlu0 %v4401, 64
      %v4804 = vpop.permute.xlu0 %4803
      %4805 = vrot.lane.b32.xlu0 %v4402, 64
      %v4806 = vpop.permute.xlu0 %4805
      %4807 = vrot.lane.b32.xlu0 %v4403, 64
      %v4808 = vpop.permute.xlu0 %4807
      %4809 = vrot.lane.b32.xlu0 %v4404, 64
      %v4810 = vpop.permute.xlu0 %4809
      %4811 = vrot.lane.b32.xlu0 %v4405, 64
      %v4812 = vpop.permute.xlu0 %4811
      %4813 = vrot.lane.b32.xlu0 %v4406, 64
      %v4814 = vpop.permute.xlu0 %4813
      %4815 = vrot.lane.b32.xlu0 %v4407, 64
      %v4816 = vpop.permute.xlu0 %4815
      %4817 = vrot.lane.b32.xlu0 %v4408, 64
      %v4818 = vpop.permute.xlu0 %4817
      %4819 = vrot.lane.b32.xlu0 %v4409, 64
      %v4820 = vpop.permute.xlu0 %4819
      %4821 = vrot.lane.b32.xlu0 %v4410, 64
      %v4822 = vpop.permute.xlu0 %4821
      %4823 = vrot.lane.b32.xlu0 %v4411, 64
      %v4824 = vpop.permute.xlu0 %4823
      %4825 = vrot.lane.b32.xlu0 %v4412, 64
      %v4826 = vpop.permute.xlu0 %4825
      %4827 = vrot.lane.b32.xlu0 %v4413, 64
      %v4828 = vpop.permute.xlu0 %4827
      %4829 = vrot.lane.b32.xlu0 %v4414, 64
      %v4830 = vpop.permute.xlu0 %4829
      %4895 = vrot.lane.b32.xlu0 %v4415, 96
      %v4896 = vpop.permute.xlu0 %4895
      %4897 = vrot.lane.b32.xlu0 %v4416, 96
      %v4898 = vpop.permute.xlu0 %4897
      %4899 = vrot.lane.b32.xlu0 %v4417, 96
      %v4900 = vpop.permute.xlu0 %4899
      %4901 = vrot.lane.b32.xlu0 %v4418, 96
      %v4902 = vpop.permute.xlu0 %4901
      %4903 = vrot.lane.b32.xlu0 %v4419, 96
      %v4904 = vpop.permute.xlu0 %4903
      %4905 = vrot.lane.b32.xlu0 %v4420, 96
      %v4906 = vpop.permute.xlu0 %4905
      %4907 = vrot.lane.b32.xlu0 %v4421, 96
      %v4908 = vpop.permute.xlu0 %4907
      %4909 = vrot.lane.b32.xlu0 %v4422, 96
      %v4910 = vpop.permute.xlu0 %4909
      %4911 = vrot.lane.b32.xlu0 %v4423, 96
      %v4912 = vpop.permute.xlu0 %4911
      %4913 = vrot.lane.b32.xlu0 %v4424, 96
      %v4914 = vpop.permute.xlu0 %4913
      %4915 = vrot.lane.b32.xlu0 %v4425, 96
      %v4916 = vpop.permute.xlu0 %4915
      %4917 = vrot.lane.b32.xlu0 %v4426, 96
      %v4918 = vpop.permute.xlu0 %4917
      %4919 = vrot.lane.b32.xlu0 %v4427, 96
      %v4920 = vpop.permute.xlu0 %4919
      %4921 = vrot.lane.b32.xlu0 %v4428, 96
      %v4922 = vpop.permute.xlu0 %4921
      %4923 = vrot.lane.b32.xlu0 %v4429, 96
      %v4924 = vpop.permute.xlu0 %4923
      %4925 = vrot.lane.b32.xlu0 %v4430, 96
      %v4926 = vpop.permute.xlu0 %4925
      %4927 = vrot.lane.b32.xlu0 %v4431, 96
      %v4928 = vpop.permute.xlu0 %4927
      %4929 = vrot.lane.b32.xlu0 %v4432, 96
      %v4930 = vpop.permute.xlu0 %4929
      %4931 = vrot.lane.b32.xlu0 %v4433, 96
      %v4932 = vpop.permute.xlu0 %4931
      %4933 = vrot.lane.b32.xlu0 %v4434, 96
      %v4934 = vpop.permute.xlu0 %4933
      %4935 = vrot.lane.b32.xlu0 %v4435, 96
      %v4936 = vpop.permute.xlu0 %4935
      %4937 = vrot.lane.b32.xlu0 %v4436, 96
      %v4938 = vpop.permute.xlu0 %4937
      %4939 = vrot.lane.b32.xlu0 %v4437, 96
      %v4940 = vpop.permute.xlu0 %4939
      %4941 = vrot.lane.b32.xlu0 %v4438, 96
      %v4942 = vpop.permute.xlu0 %4941
      %4943 = vrot.lane.b32.xlu0 %v4439, 96
      %v4944 = vpop.permute.xlu0 %4943
      %4945 = vrot.lane.b32.xlu0 %v4440, 96
      %v4946 = vpop.permute.xlu0 %4945
      %4947 = vrot.lane.b32.xlu0 %v4441, 96
      %v4948 = vpop.permute.xlu0 %4947
      %4949 = vrot.lane.b32.xlu0 %v4442, 96
      %v4950 = vpop.permute.xlu0 %4949
      %4951 = vrot.lane.b32.xlu0 %v4443, 96
      %v4952 = vpop.permute.xlu0 %4951
      %4953 = vrot.lane.b32.xlu0 %v4444, 96
      %v4954 = vpop.permute.xlu0 %4953
      %4955 = vrot.lane.b32.xlu0 %v4445, 96
      %v4956 = vpop.permute.xlu0 %4955
      %4957 = vrot.lane.b32.xlu0 %v4446, 96
      %v4958 = vpop.permute.xlu0 %4957
      %5023 = vrot.lane.b32.xlu0 %v4479, 32
      %v5024 = vpop.permute.xlu0 %5023
      %5025 = vrot.lane.b32.xlu0 %v4480, 32
      %v5026 = vpop.permute.xlu0 %5025
      %5027 = vrot.lane.b32.xlu0 %v4481, 32
      %v5028 = vpop.permute.xlu0 %5027
      %5029 = vrot.lane.b32.xlu0 %v4482, 32
      %v5030 = vpop.permute.xlu0 %5029
      %5031 = vrot.lane.b32.xlu0 %v4483, 32
      %v5032 = vpop.permute.xlu0 %5031
      %5033 = vrot.lane.b32.xlu0 %v4484, 32
      %v5034 = vpop.permute.xlu0 %5033
      %5035 = vrot.lane.b32.xlu0 %v4485, 32
      %v5036 = vpop.permute.xlu0 %5035
      %5037 = vrot.lane.b32.xlu0 %v4486, 32
      %v5038 = vpop.permute.xlu0 %5037
      %5039 = vrot.lane.b32.xlu0 %v4487, 32
      %v5040 = vpop.permute.xlu0 %5039
      %5041 = vrot.lane.b32.xlu0 %v4488, 32
      %v5042 = vpop.permute.xlu0 %5041
      %5043 = vrot.lane.b32.xlu0 %v4489, 32
      %v5044 = vpop.permute.xlu0 %5043
      %5045 = vrot.lane.b32.xlu0 %v4490, 32
      %v5046 = vpop.permute.xlu0 %5045
      %5047 = vrot.lane.b32.xlu0 %v4491, 32
      %v5048 = vpop.permute.xlu0 %5047
      %5049 = vrot.lane.b32.xlu0 %v4492, 32
      %v5050 = vpop.permute.xlu0 %5049
      %5051 = vrot.lane.b32.xlu0 %v4493, 32
      %v5052 = vpop.permute.xlu0 %5051
      %5053 = vrot.lane.b32.xlu0 %v4494, 32
      %v5054 = vpop.permute.xlu0 %5053
      %5055 = vrot.lane.b32.xlu0 %v4495, 32
      %v5056 = vpop.permute.xlu0 %5055
      %5057 = vrot.lane.b32.xlu0 %v4496, 32
      %v5058 = vpop.permute.xlu0 %5057
      %5059 = vrot.lane.b32.xlu0 %v4497, 32
      %v5060 = vpop.permute.xlu0 %5059
      %5061 = vrot.lane.b32.xlu0 %v4498, 32
      %v5062 = vpop.permute.xlu0 %5061
      %5063 = vrot.lane.b32.xlu0 %v4499, 32
      %v5064 = vpop.permute.xlu0 %5063
      %5065 = vrot.lane.b32.xlu0 %v4500, 32
      %v5066 = vpop.permute.xlu0 %5065
      %5067 = vrot.lane.b32.xlu0 %v4501, 32
      %v5068 = vpop.permute.xlu0 %5067
      %5069 = vrot.lane.b32.xlu0 %v4502, 32
      %v5070 = vpop.permute.xlu0 %5069
      %5071 = vrot.lane.b32.xlu0 %v4503, 32
      %v5072 = vpop.permute.xlu0 %5071
      %5073 = vrot.lane.b32.xlu0 %v4504, 32
      %v5074 = vpop.permute.xlu0 %5073
      %5075 = vrot.lane.b32.xlu0 %v4505, 32
      %v5076 = vpop.permute.xlu0 %5075
      %5077 = vrot.lane.b32.xlu0 %v4506, 32
      %v5078 = vpop.permute.xlu0 %5077
      %5079 = vrot.lane.b32.xlu0 %v4507, 32
      %v5080 = vpop.permute.xlu0 %5079
      %5081 = vrot.lane.b32.xlu0 %v4508, 32
      %v5082 = vpop.permute.xlu0 %5081
      %5083 = vrot.lane.b32.xlu0 %v4509, 32
      %v5084 = vpop.permute.xlu0 %5083
      %5085 = vrot.lane.b32.xlu0 %v4510, 32
      %v5086 = vpop.permute.xlu0 %5085
      %5151 = vrot.lane.b32.xlu0 %v4511, 64
      %v5152 = vpop.permute.xlu0 %5151
      %5153 = vrot.lane.b32.xlu0 %v4512, 64
      %v5154 = vpop.permute.xlu0 %5153
      %5155 = vrot.lane.b32.xlu0 %v4513, 64
      %v5156 = vpop.permute.xlu0 %5155
      %5157 = vrot.lane.b32.xlu0 %v4514, 64
      %v5158 = vpop.permute.xlu0 %5157
      %5159 = vrot.lane.b32.xlu0 %v4515, 64
      %v5160 = vpop.permute.xlu0 %5159
      %5161 = vrot.lane.b32.xlu0 %v4516, 64
      %v5162 = vpop.permute.xlu0 %5161
      %5163 = vrot.lane.b32.xlu0 %v4517, 64
      %v5164 = vpop.permute.xlu0 %5163
      %5165 = vrot.lane.b32.xlu0 %v4518, 64
      %v5166 = vpop.permute.xlu0 %5165
      %5167 = vrot.lane.b32.xlu0 %v4519, 64
      %v5168 = vpop.permute.xlu0 %5167
      %5169 = vrot.lane.b32.xlu0 %v4520, 64
      %v5170 = vpop.permute.xlu0 %5169
      %5171 = vrot.lane.b32.xlu0 %v4521, 64
      %v5172 = vpop.permute.xlu0 %5171
      %5173 = vrot.lane.b32.xlu0 %v4522, 64
      %v5174 = vpop.permute.xlu0 %5173
      %5175 = vrot.lane.b32.xlu0 %v4523, 64
      %v5176 = vpop.permute.xlu0 %5175
      %5177 = vrot.lane.b32.xlu0 %v4524, 64
      %v5178 = vpop.permute.xlu0 %5177
      %5179 = vrot.lane.b32.xlu0 %v4525, 64
      %v5180 = vpop.permute.xlu0 %5179
      %5181 = vrot.lane.b32.xlu0 %v4526, 64
      %v5182 = vpop.permute.xlu0 %5181
      %5183 = vrot.lane.b32.xlu0 %v4527, 64
      %v5184 = vpop.permute.xlu0 %5183
      %5185 = vrot.lane.b32.xlu0 %v4528, 64
      %v5186 = vpop.permute.xlu0 %5185
      %5187 = vrot.lane.b32.xlu0 %v4529, 64
      %v5188 = vpop.permute.xlu0 %5187
      %5189 = vrot.lane.b32.xlu0 %v4530, 64
      %v5190 = vpop.permute.xlu0 %5189
      %5191 = vrot.lane.b32.xlu0 %v4531, 64
      %v5192 = vpop.permute.xlu0 %5191
      %5193 = vrot.lane.b32.xlu0 %v4532, 64
      %v5194 = vpop.permute.xlu0 %5193
      %5195 = vrot.lane.b32.xlu0 %v4533, 64
      %v5196 = vpop.permute.xlu0 %5195
      %5197 = vrot.lane.b32.xlu0 %v4534, 64
      %v5198 = vpop.permute.xlu0 %5197
      %5199 = vrot.lane.b32.xlu0 %v4535, 64
      %v5200 = vpop.permute.xlu0 %5199
      %5201 = vrot.lane.b32.xlu0 %v4536, 64
      %v5202 = vpop.permute.xlu0 %5201
      %5203 = vrot.lane.b32.xlu0 %v4537, 64
      %v5204 = vpop.permute.xlu0 %5203
      %5205 = vrot.lane.b32.xlu0 %v4538, 64
      %v5206 = vpop.permute.xlu0 %5205
      %5207 = vrot.lane.b32.xlu0 %v4539, 64
      %v5208 = vpop.permute.xlu0 %5207
      %5209 = vrot.lane.b32.xlu0 %v4540, 64
      %v5210 = vpop.permute.xlu0 %5209
      %5211 = vrot.lane.b32.xlu0 %v4541, 64
      %v5212 = vpop.permute.xlu0 %5211
      %5213 = vrot.lane.b32.xlu0 %v4542, 64
      %v5214 = vpop.permute.xlu0 %5213
      %5279 = vrot.lane.b32.xlu0 %v4543, 96
      %v5280 = vpop.permute.xlu0 %5279
      %5281 = vrot.lane.b32.xlu0 %v4544, 96
      %v5282 = vpop.permute.xlu0 %5281
      %5283 = vrot.lane.b32.xlu0 %v4545, 96
      %v5284 = vpop.permute.xlu0 %5283
      %5285 = vrot.lane.b32.xlu0 %v4546, 96
      %v5286 = vpop.permute.xlu0 %5285
      %5287 = vrot.lane.b32.xlu0 %v4547, 96
      %v5288 = vpop.permute.xlu0 %5287
      %5289 = vrot.lane.b32.xlu0 %v4548, 96
      %v5290 = vpop.permute.xlu0 %5289
      %5291 = vrot.lane.b32.xlu0 %v4549, 96
      %v5292 = vpop.permute.xlu0 %5291
      %5293 = vrot.lane.b32.xlu0 %v4550, 96
      %v5294 = vpop.permute.xlu0 %5293
      %5295 = vrot.lane.b32.xlu0 %v4551, 96
      %v5296 = vpop.permute.xlu0 %5295
      %5297 = vrot.lane.b32.xlu0 %v4552, 96
      %v5298 = vpop.permute.xlu0 %5297
      %5299 = vrot.lane.b32.xlu0 %v4553, 96
      %v5300 = vpop.permute.xlu0 %5299
      %5301 = vrot.lane.b32.xlu0 %v4554, 96
      %v5302 = vpop.permute.xlu0 %5301
      %5303 = vrot.lane.b32.xlu0 %v4555, 96
      %v5304 = vpop.permute.xlu0 %5303
      %5305 = vrot.lane.b32.xlu0 %v4556, 96
      %v5306 = vpop.permute.xlu0 %5305
      %5307 = vrot.lane.b32.xlu0 %v4557, 96
      %v5308 = vpop.permute.xlu0 %5307
      %5309 = vrot.lane.b32.xlu0 %v4558, 96
      %v5310 = vpop.permute.xlu0 %5309
      %5311 = vrot.lane.b32.xlu0 %v4559, 96
      %v5312 = vpop.permute.xlu0 %5311
      %5313 = vrot.lane.b32.xlu0 %v4560, 96
      %v5314 = vpop.permute.xlu0 %5313
      %5315 = vrot.lane.b32.xlu0 %v4561, 96
      %v5316 = vpop.permute.xlu0 %5315
      %5317 = vrot.lane.b32.xlu0 %v4562, 96
      %v5318 = vpop.permute.xlu0 %5317
      %5319 = vrot.lane.b32.xlu0 %v4563, 96
      %v5320 = vpop.permute.xlu0 %5319
      %5321 = vrot.lane.b32.xlu0 %v4564, 96
      %v5322 = vpop.permute.xlu0 %5321
      %5323 = vrot.lane.b32.xlu0 %v4565, 96
      %v5324 = vpop.permute.xlu0 %5323
      %5325 = vrot.lane.b32.xlu0 %v4566, 96
      %v5326 = vpop.permute.xlu0 %5325
      %5327 = vrot.lane.b32.xlu0 %v4567, 96
      %v5328 = vpop.permute.xlu0 %5327
      %5329 = vrot.lane.b32.xlu0 %v4568, 96
      %v5330 = vpop.permute.xlu0 %5329
      %5331 = vrot.lane.b32.xlu0 %v4569, 96
      %v5332 = vpop.permute.xlu0 %5331
      %5333 = vrot.lane.b32.xlu0 %v4570, 96
      %v5334 = vpop.permute.xlu0 %5333
      %5335 = vrot.lane.b32.xlu0 %v4571, 96
      %v5336 = vpop.permute.xlu0 %5335
      %5337 = vrot.lane.b32.xlu0 %v4572, 96
      %v5338 = vpop.permute.xlu0 %5337
      %5339 = vrot.lane.b32.xlu0 %v4573, 96
      %v5340 = vpop.permute.xlu0 %5339
      %5341 = vrot.lane.b32.xlu0 %v4574, 96
      %v5342 = vpop.permute.xlu0 %5341
      %v5375 = vsel %vm280, %v4319, %v4640
      %v5376 = vsel %vm280, %v4320, %v4642
      %v5377 = vsel %vm280, %v4321, %v4644
      %v5378 = vsel %vm280, %v4322, %v4646
      %v5379 = vsel %vm280, %v4323, %v4648
      %v5380 = vsel %vm280, %v4324, %v4650
      %v5381 = vsel %vm280, %v4325, %v4652
      %v5382 = vsel %vm280, %v4326, %v4654
      %v5383 = vsel %vm280, %v4327, %v4656
      %v5384 = vsel %vm280, %v4328, %v4658
      %v5385 = vsel %vm280, %v4329, %v4660
      %v5386 = vsel %vm280, %v4330, %v4662
      %v5387 = vsel %vm280, %v4331, %v4664
      %v5388 = vsel %vm280, %v4332, %v4666
      %v5389 = vsel %vm280, %v4333, %v4668
      %v5390 = vsel %vm280, %v4334, %v4670
      %v5391 = vsel %vm280, %v4335, %v4672
      %v5392 = vsel %vm280, %v4336, %v4674
      %v5393 = vsel %vm280, %v4337, %v4676
      %v5394 = vsel %vm280, %v4338, %v4678
      %v5395 = vsel %vm280, %v4339, %v4680
      %v5396 = vsel %vm280, %v4340, %v4682
      %v5397 = vsel %vm280, %v4341, %v4684
      %v5398 = vsel %vm280, %v4342, %v4686
      %v5399 = vsel %vm280, %v4343, %v4688
      %v5400 = vsel %vm280, %v4344, %v4690
      %v5401 = vsel %vm280, %v4345, %v4692
      %v5402 = vsel %vm280, %v4346, %v4694
      %v5403 = vsel %vm280, %v4347, %v4696
      %v5404 = vsel %vm280, %v4348, %v4698
      %v5405 = vsel %vm280, %v4349, %v4700
      %v5406 = vsel %vm280, %v4350, %v4702
      %v5407 = vsel %vm1490, %v5375, %v4768
      %v5408 = vsel %vm1490, %v5376, %v4770
      %v5409 = vsel %vm1490, %v5377, %v4772
      %v5410 = vsel %vm1490, %v5378, %v4774
      %v5411 = vsel %vm1490, %v5379, %v4776
      %v5412 = vsel %vm1490, %v5380, %v4778
      %v5413 = vsel %vm1490, %v5381, %v4780
      %v5414 = vsel %vm1490, %v5382, %v4782
      %v5415 = vsel %vm1490, %v5383, %v4784
      %v5416 = vsel %vm1490, %v5384, %v4786
      %v5417 = vsel %vm1490, %v5385, %v4788
      %v5418 = vsel %vm1490, %v5386, %v4790
      %v5419 = vsel %vm1490, %v5387, %v4792
      %v5420 = vsel %vm1490, %v5388, %v4794
      %v5421 = vsel %vm1490, %v5389, %v4796
      %v5422 = vsel %vm1490, %v5390, %v4798
      %v5423 = vsel %vm1490, %v5391, %v4800
      %v5424 = vsel %vm1490, %v5392, %v4802
      %v5425 = vsel %vm1490, %v5393, %v4804
      %v5426 = vsel %vm1490, %v5394, %v4806
      %v5427 = vsel %vm1490, %v5395, %v4808
      %v5428 = vsel %vm1490, %v5396, %v4810
      %v5429 = vsel %vm1490, %v5397, %v4812
      %v5430 = vsel %vm1490, %v5398, %v4814
      %v5431 = vsel %vm1490, %v5399, %v4816
      %v5432 = vsel %vm1490, %v5400, %v4818
      %v5433 = vsel %vm1490, %v5401, %v4820
      %v5434 = vsel %vm1490, %v5402, %v4822
      %v5435 = vsel %vm1490, %v5403, %v4824
      %v5436 = vsel %vm1490, %v5404, %v4826
      %v5437 = vsel %vm1490, %v5405, %v4828
      %v5438 = vsel %vm1490, %v5406, %v4830
      %v5439 = vsel %vm1523, %v5407, %v4896
      %v5440 = vsel %vm1523, %v5408, %v4898
      %v5441 = vsel %vm1523, %v5409, %v4900
      %v5442 = vsel %vm1523, %v5410, %v4902
      %v5443 = vsel %vm1523, %v5411, %v4904
      %v5444 = vsel %vm1523, %v5412, %v4906
      %v5445 = vsel %vm1523, %v5413, %v4908
      %v5446 = vsel %vm1523, %v5414, %v4910
      %v5447 = vsel %vm1523, %v5415, %v4912
      %v5448 = vsel %vm1523, %v5416, %v4914
      %v5449 = vsel %vm1523, %v5417, %v4916
      %v5450 = vsel %vm1523, %v5418, %v4918
      %v5451 = vsel %vm1523, %v5419, %v4920
      %v5452 = vsel %vm1523, %v5420, %v4922
      %v5453 = vsel %vm1523, %v5421, %v4924
      %v5454 = vsel %vm1523, %v5422, %v4926
      %v5455 = vsel %vm1523, %v5423, %v4928
      %v5456 = vsel %vm1523, %v5424, %v4930
      %v5457 = vsel %vm1523, %v5425, %v4932
      %v5458 = vsel %vm1523, %v5426, %v4934
      %v5459 = vsel %vm1523, %v5427, %v4936
      %v5460 = vsel %vm1523, %v5428, %v4938
      %v5461 = vsel %vm1523, %v5429, %v4940
      %v5462 = vsel %vm1523, %v5430, %v4942
      %v5463 = vsel %vm1523, %v5431, %v4944
      %v5464 = vsel %vm1523, %v5432, %v4946
      %v5465 = vsel %vm1523, %v5433, %v4948
      %v5466 = vsel %vm1523, %v5434, %v4950
      %v5467 = vsel %vm1523, %v5435, %v4952
      %v5468 = vsel %vm1523, %v5436, %v4954
      %v5469 = vsel %vm1523, %v5437, %v4956
      %v5470 = vsel %vm1523, %v5438, %v4958
      %v5471 = vsel %vm280, %v4447, %v5024
      %v5472 = vsel %vm280, %v4448, %v5026
      %v5473 = vsel %vm280, %v4449, %v5028
      %v5474 = vsel %vm280, %v4450, %v5030
      %v5475 = vsel %vm280, %v4451, %v5032
      %v5476 = vsel %vm280, %v4452, %v5034
      %v5477 = vsel %vm280, %v4453, %v5036
      %v5478 = vsel %vm280, %v4454, %v5038
      %v5479 = vsel %vm280, %v4455, %v5040
      %v5480 = vsel %vm280, %v4456, %v5042
      %v5481 = vsel %vm280, %v4457, %v5044
      %v5482 = vsel %vm280, %v4458, %v5046
      %v5483 = vsel %vm280, %v4459, %v5048
      %v5484 = vsel %vm280, %v4460, %v5050
      %v5485 = vsel %vm280, %v4461, %v5052
      %v5486 = vsel %vm280, %v4462, %v5054
      %v5487 = vsel %vm280, %v4463, %v5056
      %v5488 = vsel %vm280, %v4464, %v5058
      %v5489 = vsel %vm280, %v4465, %v5060
      %v5490 = vsel %vm280, %v4466, %v5062
      %v5491 = vsel %vm280, %v4467, %v5064
      %v5492 = vsel %vm280, %v4468, %v5066
      %v5493 = vsel %vm280, %v4469, %v5068
      %v5494 = vsel %vm280, %v4470, %v5070
      %v5495 = vsel %vm280, %v4471, %v5072
      %v5496 = vsel %vm280, %v4472, %v5074
      %v5497 = vsel %vm280, %v4473, %v5076
      %v5498 = vsel %vm280, %v4474, %v5078
      %v5499 = vsel %vm280, %v4475, %v5080
      %v5500 = vsel %vm280, %v4476, %v5082
      %v5501 = vsel %vm280, %v4477, %v5084
      %v5502 = vsel %vm280, %v4478, %v5086
      %v5503 = vsel %vm1490, %v5471, %v5152
      %v5504 = vsel %vm1490, %v5472, %v5154
      %v5505 = vsel %vm1490, %v5473, %v5156
      %v5506 = vsel %vm1490, %v5474, %v5158
      %v5507 = vsel %vm1490, %v5475, %v5160
      %v5508 = vsel %vm1490, %v5476, %v5162
      %v5509 = vsel %vm1490, %v5477, %v5164
      %v5510 = vsel %vm1490, %v5478, %v5166
      %v5511 = vsel %vm1490, %v5479, %v5168
      %v5512 = vsel %vm1490, %v5480, %v5170
      %v5513 = vsel %vm1490, %v5481, %v5172
      %v5514 = vsel %vm1490, %v5482, %v5174
      %v5515 = vsel %vm1490, %v5483, %v5176
      %v5516 = vsel %vm1490, %v5484, %v5178
      %v5517 = vsel %vm1490, %v5485, %v5180
      %v5518 = vsel %vm1490, %v5486, %v5182
      %v5519 = vsel %vm1490, %v5487, %v5184
      %v5520 = vsel %vm1490, %v5488, %v5186
      %v5521 = vsel %vm1490, %v5489, %v5188
      %v5522 = vsel %vm1490, %v5490, %v5190
      %v5523 = vsel %vm1490, %v5491, %v5192
      %v5524 = vsel %vm1490, %v5492, %v5194
      %v5525 = vsel %vm1490, %v5493, %v5196
      %v5526 = vsel %vm1490, %v5494, %v5198
      %v5527 = vsel %vm1490, %v5495, %v5200
      %v5528 = vsel %vm1490, %v5496, %v5202
      %v5529 = vsel %vm1490, %v5497, %v5204
      %v5530 = vsel %vm1490, %v5498, %v5206
      %v5531 = vsel %vm1490, %v5499, %v5208
      %v5532 = vsel %vm1490, %v5500, %v5210
      %v5533 = vsel %vm1490, %v5501, %v5212
      %v5534 = vsel %vm1490, %v5502, %v5214
      %v5535 = vsel %vm1523, %v5503, %v5280
      %v5536 = vsel %vm1523, %v5504, %v5282
      %v5537 = vsel %vm1523, %v5505, %v5284
      %v5538 = vsel %vm1523, %v5506, %v5286
      %v5539 = vsel %vm1523, %v5507, %v5288
      %v5540 = vsel %vm1523, %v5508, %v5290
      %v5541 = vsel %vm1523, %v5509, %v5292
      %v5542 = vsel %vm1523, %v5510, %v5294
      %v5543 = vsel %vm1523, %v5511, %v5296
      %v5544 = vsel %vm1523, %v5512, %v5298
      %v5545 = vsel %vm1523, %v5513, %v5300
      %v5546 = vsel %vm1523, %v5514, %v5302
      %v5547 = vsel %vm1523, %v5515, %v5304
      %v5548 = vsel %vm1523, %v5516, %v5306
      %v5549 = vsel %vm1523, %v5517, %v5308
      %v5550 = vsel %vm1523, %v5518, %v5310
      %v5551 = vsel %vm1523, %v5519, %v5312
      %v5552 = vsel %vm1523, %v5520, %v5314
      %v5553 = vsel %vm1523, %v5521, %v5316
      %v5554 = vsel %vm1523, %v5522, %v5318
      %v5555 = vsel %vm1523, %v5523, %v5320
      %v5556 = vsel %vm1523, %v5524, %v5322
      %v5557 = vsel %vm1523, %v5525, %v5324
      %v5558 = vsel %vm1523, %v5526, %v5326
      %v5559 = vsel %vm1523, %v5527, %v5328
      %v5560 = vsel %vm1523, %v5528, %v5330
      %v5561 = vsel %vm1523, %v5529, %v5332
      %v5562 = vsel %vm1523, %v5530, %v5334
      %v5563 = vsel %vm1523, %v5531, %v5336
      %v5564 = vsel %vm1523, %v5532, %v5338
      %v5565 = vsel %vm1523, %v5533, %v5340
      %v5566 = vsel %vm1523, %v5534, %v5342
      %v5567 = vpack.c.bf16 %v5440, %v5439
      %v5568 = vpack.c.bf16 %v5536, %v5535
      %v5569 = vpack.c.bf16 %v4576, %v4575
      %v5570 = vpack.c.bf16 %v5442, %v5441
      %v5571 = vpack.c.bf16 %v5538, %v5537
      %v5572 = vpack.c.bf16 %v4578, %v4577
      %v5573 = vpack.c.bf16 %v5444, %v5443
      %v5574 = vpack.c.bf16 %v5540, %v5539
      %v5575 = vpack.c.bf16 %v4580, %v4579
      %v5576 = vpack.c.bf16 %v5446, %v5445
      %v5577 = vpack.c.bf16 %v5542, %v5541
      %v5578 = vpack.c.bf16 %v4582, %v4581
      %v5579 = vpack.c.bf16 %v5448, %v5447
      %v5580 = vpack.c.bf16 %v5544, %v5543
      %v5581 = vpack.c.bf16 %v4584, %v4583
      %v5582 = vpack.c.bf16 %v5450, %v5449
      %v5583 = vpack.c.bf16 %v5546, %v5545
      %v5584 = vpack.c.bf16 %v4586, %v4585
      %v5585 = vpack.c.bf16 %v5452, %v5451
      %v5586 = vpack.c.bf16 %v5548, %v5547
      %v5587 = vpack.c.bf16 %v4588, %v4587
      %v5588 = vpack.c.bf16 %v5454, %v5453
      %v5589 = vpack.c.bf16 %v5550, %v5549
      %v5590 = vpack.c.bf16 %v4590, %v4589
      %v5591 = vpack.c.bf16 %v5456, %v5455
      %v5592 = vpack.c.bf16 %v5552, %v5551
      %v5593 = vpack.c.bf16 %v4592, %v4591
      %v5594 = vpack.c.bf16 %v5458, %v5457
      %v5595 = vpack.c.bf16 %v5554, %v5553
      %v5596 = vpack.c.bf16 %v4594, %v4593
      %v5597 = vpack.c.bf16 %v5460, %v5459
      %v5598 = vpack.c.bf16 %v5556, %v5555
      %v5599 = vpack.c.bf16 %v4596, %v4595
      %v5600 = vpack.c.bf16 %v5462, %v5461
      %v5601 = vpack.c.bf16 %v5558, %v5557
      %v5602 = vpack.c.bf16 %v4598, %v4597
      %v5603 = vpack.c.bf16 %v5464, %v5463
      %v5604 = vpack.c.bf16 %v5560, %v5559
      %v5605 = vpack.c.bf16 %v4600, %v4599
      %v5606 = vpack.c.bf16 %v5466, %v5465
      %v5607 = vpack.c.bf16 %v5562, %v5561
      %v5608 = vpack.c.bf16 %v4602, %v4601
      %v5609 = vpack.c.bf16 %v5468, %v5467
      %v5610 = vpack.c.bf16 %v5564, %v5563
      %v5611 = vpack.c.bf16 %v4604, %v4603
      %v5612 = vpack.c.bf16 %v5470, %v5469
      %v5613 = vpack.c.bf16 %v5566, %v5565
      %v5614 = vpack.c.bf16 %v4606, %v4605
      %v5615 = vld [vmem:[%s4] sm:$0xf]
      %v5616 = vld [vmem:[%s4 + $0x4] sm:$0xf]
      %v5617 = vld [vmem:[%s4 + $0x8] sm:$0xf]
      %v5618 = vld [vmem:[%s4 + $0xc] sm:$0xf]
      %v5619 = vld [vmem:[%s4 + $0x10] sm:$0xf]
      %v5620 = vld [vmem:[%s4 + $0x14] sm:$0xf]
      %v5621 = vld [vmem:[%s4 + $0x18] sm:$0xf]
      %v5622 = vld [vmem:[%s4 + $0x1c] sm:$0xf]
      %v5623 = vld [vmem:[%s4 + $0x20] sm:$0xf]
      %v5624 = vld [vmem:[%s4 + $0x24] sm:$0xf]
      %v5625 = vld [vmem:[%s4 + $0x28] sm:$0xf]
      %v5626 = vld [vmem:[%s4 + $0x2c] sm:$0xf]
      %v5627 = vld [vmem:[%s4 + $0x30] sm:$0xf]
      %v5628 = vld [vmem:[%s4 + $0x34] sm:$0xf]
      %v5629 = vld [vmem:[%s4 + $0x38] sm:$0xf]
      %v5630 = vld [vmem:[%s4 + $0x3c] sm:$0xf]
      %v5631 = vld [vmem:[%s4 + $0x40] sm:$0xf]
      %v5632 = vld [vmem:[%s4 + $0x44] sm:$0xf]
      %v5633 = vld [vmem:[%s4 + $0x48] sm:$0xf]
      %v5634 = vld [vmem:[%s4 + $0x4c] sm:$0xf]
      %v5635 = vld [vmem:[%s4 + $0x50] sm:$0xf]
      %v5636 = vld [vmem:[%s4 + $0x54] sm:$0xf]
      %v5637 = vld [vmem:[%s4 + $0x58] sm:$0xf]
      %v5638 = vld [vmem:[%s4 + $0x5c] sm:$0xf]
      %v5639 = vld [vmem:[%s4 + $0x60] sm:$0xf]
      %v5640 = vld [vmem:[%s4 + $0x64] sm:$0xf]
      %v5641 = vld [vmem:[%s4 + $0x68] sm:$0xf]
      %v5642 = vld [vmem:[%s4 + $0x6c] sm:$0xf]
      %v5643 = vld [vmem:[%s4 + $0x70] sm:$0xf]
      %v5644 = vld [vmem:[%s4 + $0x74] sm:$0xf]
      %v5645 = vld [vmem:[%s4 + $0x78] sm:$0xf]
      %v5646 = vld [vmem:[%s4 + $0x7c] sm:$0xf]
      %v5647 = vld [vmem:[%s4 + $0x80] sm:$0xf]
      %v5648 = vld [vmem:[%s4 + $0x84] sm:$0xf]
      %v5649 = vld [vmem:[%s4 + $0x88] sm:$0xf]
      %v5650 = vld [vmem:[%s4 + $0x8c] sm:$0xf]
      %v5687 = vunpack.c.l.b16 %v5615
      %v5688 = vunpack.c.l.b16 %v5616
      %v5689 = vunpack.c.l.b16 %v5617
      %v5690 = vunpack.c.l.b16 %v5618
      %v5691 = vunpack.c.l.b16 %v5619
      %v5692 = vunpack.c.l.b16 %v5620
      %v5693 = vunpack.c.l.b16 %v5621
      %v5694 = vunpack.c.l.b16 %v5622
      %v5695 = vunpack.c.l.b16 %v5623
      %v5696 = vunpack.c.l.b16 %v5624
      %v5697 = vunpack.c.l.b16 %v5625
      %v5698 = vunpack.c.l.b16 %v5626
      %v5699 = vunpack.c.l.b16 %v5627
      %v5700 = vunpack.c.l.b16 %v5628
      %v5701 = vunpack.c.l.b16 %v5629
      %v5702 = vunpack.c.l.b16 %v5630
      %v5703 = vunpack.c.l.b16 %v5631
      %v5704 = vunpack.c.l.b16 %v5632
      %v5705 = vunpack.c.l.b16 %v5633
      %v5706 = vunpack.c.l.b16 %v5634
      %v5707 = vunpack.c.l.b16 %v5635
      %v5708 = vunpack.c.l.b16 %v5636
      %v5709 = vunpack.c.l.b16 %v5637
      %v5710 = vunpack.c.l.b16 %v5638
      %v5711 = vunpack.c.l.b16 %v5639
      %v5712 = vunpack.c.l.b16 %v5640
      %v5713 = vunpack.c.l.b16 %v5641
      %v5714 = vunpack.c.l.b16 %v5642
      %v5715 = vunpack.c.l.b16 %v5643
      %v5716 = vunpack.c.l.b16 %v5644
      %v5717 = vunpack.c.l.b16 %v5645
      %v5718 = vunpack.c.l.b16 %v5646
      %v5719 = vunpack.c.l.b16 %v5647
      %v5720 = vunpack.c.l.b16 %v5648
      %v5721 = vunpack.c.l.b16 %v5649
      %v5722 = vunpack.c.l.b16 %v5650
      %v5723 = vpack.c.b16 %v5688, %v5687
      %v5724 = vpack.c.b16 %v5690, %v5689
      %v5725 = vpack.c.b16 %v5692, %v5691
      %v5726 = vpack.c.b16 %v5694, %v5693
      %v5727 = vpack.c.b16 %v5696, %v5695
      %v5728 = vpack.c.b16 %v5698, %v5697
      %v5729 = vpack.c.b16 %v5700, %v5699
      %v5730 = vpack.c.b16 %v5702, %v5701
      %v5731 = vpack.c.b16 %v5704, %v5703
      %v5732 = vpack.c.b16 %v5706, %v5705
      %v5733 = vpack.c.b16 %v5708, %v5707
      %v5734 = vpack.c.b16 %v5710, %v5709
      %v5735 = vpack.c.b16 %v5712, %v5711
      %v5736 = vpack.c.b16 %v5714, %v5713
      %v5737 = vpack.c.b16 %v5716, %v5715
      %v5738 = vpack.c.b16 %v5718, %v5717
      %v5739 = vpack.c.b16 %v5720, %v5719
      %v5740 = vpack.c.b16 %v5722, %v5721
      %v5760 = vsel %vm280, %v5569, 0
      %v5763 = vsel %vm280, %v5572, 0
      %v5766 = vsel %vm280, %v5575, 0
      %v5769 = vsel %vm280, %v5578, 0
      %v5772 = vsel %vm280, %v5581, 0
      %v5775 = vsel %vm280, %v5584, 0
      %v5778 = vsel %vm280, %v5587, 0
      %v5781 = vsel %vm280, %v5590, 0
      %v5784 = vsel %vm280, %v5593, 0
      %v5787 = vsel %vm280, %v5596, 0
      %v5790 = vsel %vm280, %v5599, 0
      %v5793 = vsel %vm280, %v5602, 0
      %v5796 = vsel %vm280, %v5605, 0
      %v5799 = vsel %vm280, %v5608, 0
      %v5802 = vsel %vm280, %v5611, 0
      %v5805 = vsel %vm280, %v5614, 0
      %5807 = vmatprep.subr.bf16.mxu0 0
      %5808 = vmatpush1.bf16.msra.mxu0 %v5723
      %5809 = vmatprep.subr.bf16.mxu0 0
      %5810 = vmatpush1.bf16.msra.mxu0 %v5724
      %5811 = vmatprep.subr.bf16.mxu0 0
      %5812 = vmatpush1.bf16.msra.mxu0 %v5725
      %5813 = vmatprep.subr.bf16.mxu0 0
      %5814 = vmatpush1.bf16.msra.mxu0 %v5726
      %5815 = vmatprep.subr.bf16.mxu0 0
      %5816 = vmatpush1.bf16.msra.mxu0 %v5727
      %5817 = vmatprep.subr.bf16.mxu0 0
      %5818 = vmatpush1.bf16.msra.mxu0 %v5728
      %5819 = vmatprep.subr.bf16.mxu0 0
      %5820 = vmatpush1.bf16.msra.mxu0 %v5729
      %5821 = vmatprep.subr.bf16.mxu0 0
      %5822 = vmatpush1.bf16.msra.mxu0 %v5730
      %5823 = vmatprep.subr.bf16.mxu0 0
      %5824 = vmatpush1.bf16.msra.mxu0 %v5731
      %5825 = vmatprep.subr.bf16.mxu0 0
      %5826 = vmatpush1.bf16.msra.mxu0 %v5732
      %5827 = vmatprep.subr.bf16.mxu0 0
      %5828 = vmatpush1.bf16.msra.mxu0 %v5733
      %5829 = vmatprep.subr.bf16.mxu0 0
      %5830 = vmatpush1.bf16.msra.mxu0 %v5734
      %5831 = vmatprep.subr.bf16.mxu0 0
      %5832 = vmatpush1.bf16.msra.mxu0 %v5735
      %5833 = vmatprep.subr.bf16.mxu0 0
      %5834 = vmatpush1.bf16.msra.mxu0 %v5736
      %5835 = vmatprep.subr.bf16.mxu0 0
      %5836 = vmatpush1.bf16.msra.mxu0 %v5737
      %5837 = vmatprep.subr.bf16.mxu0 0
      %5838 = vmatpush1.bf16.msra.mxu0 %v5738
      %5839 = vmatprep.mubr.bf16.mxu0 %v5568
      %5840 = vmatmul.mubr.bf16.gmra.mrb[0].mxu0 %v5567
      %v5841 = vpop.f32.mrb[0].mxu0
      %v5842 = vadd.f32 0.0, %v5841
      %v5843 = vpop.f32.mrb[0].mxu0
      %v5844 = vpop.f32.mrb[0].mxu0
      %v5845 = vadd.f32 0.0, %v5844
      %v5846 = vpop.f32.mrb[0].mxu0
      %5847 = vmatprep.mubr.bf16.mxu0 %v5571
      %5848 = vmatmul.mubr.bf16.gmra.mrb[0].mxu0 %v5570
      %v5849 = vpop.f32.mrb[0].mxu0
      %v5850 = vadd.f32 0.0, %v5849
      %v5851 = vpop.f32.mrb[0].mxu0
      %v5852 = vpop.f32.mrb[0].mxu0
      %v5853 = vadd.f32 0.0, %v5852
      %v5854 = vpop.f32.mrb[0].mxu0
      %5855 = vmatprep.mubr.bf16.mxu0 %v5574
      %5856 = vmatmul.mubr.bf16.gmra.mrb[0].mxu0 %v5573
      %v5857 = vpop.f32.mrb[0].mxu0
      %v5858 = vadd.f32 0.0, %v5857
      %v5859 = vpop.f32.mrb[0].mxu0
      %v5860 = vpop.f32.mrb[0].mxu0
      %v5861 = vadd.f32 0.0, %v5860
      %v5862 = vpop.f32.mrb[0].mxu0
      %5863 = vmatprep.mubr.bf16.mxu0 %v5577
      %5864 = vmatmul.mubr.bf16.gmra.mrb[0].mxu0 %v5576
      %v5865 = vpop.f32.mrb[0].mxu0
      %v5866 = vadd.f32 0.0, %v5865
      %v5867 = vpop.f32.mrb[0].mxu0
      %v5868 = vpop.f32.mrb[0].mxu0
      %v5869 = vadd.f32 0.0, %v5868
      %v5870 = vpop.f32.mrb[0].mxu0
      %5871 = vmatprep.mubr.bf16.mxu0 %v5580
      %5872 = vmatmul.mubr.bf16.gmra.mrb[0].mxu0 %v5579
      %v5873 = vpop.f32.mrb[0].mxu0
      %v5874 = vadd.f32 0.0, %v5873
      %v5875 = vpop.f32.mrb[0].mxu0
      %v5876 = vpop.f32.mrb[0].mxu0
      %v5877 = vadd.f32 0.0, %v5876
      %v5878 = vpop.f32.mrb[0].mxu0
      %5879 = vmatprep.mubr.bf16.mxu0 %v5583
      %5880 = vmatmul.mubr.bf16.gmra.mrb[0].mxu0 %v5582
      %v5881 = vpop.f32.mrb[0].mxu0
      %v5882 = vadd.f32 0.0, %v5881
      %v5883 = vpop.f32.mrb[0].mxu0
      %v5884 = vpop.f32.mrb[0].mxu0
      %v5885 = vadd.f32 0.0, %v5884
      %v5886 = vpop.f32.mrb[0].mxu0
      %5887 = vmatprep.mubr.bf16.mxu0 %v5586
      %5888 = vmatmul.mubr.bf16.gmra.mrb[0].mxu0 %v5585
      %v5889 = vpop.f32.mrb[0].mxu0
      %v5890 = vadd.f32 0.0, %v5889
      %v5891 = vpop.f32.mrb[0].mxu0
      %v5892 = vpop.f32.mrb[0].mxu0
      %v5893 = vadd.f32 0.0, %v5892
      %v5894 = vpop.f32.mrb[0].mxu0
      %5895 = vmatprep.mubr.bf16.mxu0 %v5589
      %5896 = vmatmul.mubr.bf16.gmra.mrb[0].mxu0 %v5588
      %v5897 = vpop.f32.mrb[0].mxu0
      %v5898 = vadd.f32 0.0, %v5897
      %v5899 = vpop.f32.mrb[0].mxu0
      %v5900 = vpop.f32.mrb[0].mxu0
      %v5901 = vadd.f32 0.0, %v5900
      %v5902 = vpop.f32.mrb[0].mxu0
      %5903 = vmatprep.mubr.bf16.mxu0 %v5592
      %5904 = vmatmul.mubr.bf16.gmra.mrb[0].mxu0 %v5591
      %v5905 = vpop.f32.mrb[0].mxu0
      %v5906 = vadd.f32 0.0, %v5905
      %v5907 = vpop.f32.mrb[0].mxu0
      %v5908 = vpop.f32.mrb[0].mxu0
      %v5909 = vadd.f32 0.0, %v5908
      %v5910 = vpop.f32.mrb[0].mxu0
      %5911 = vmatprep.mubr.bf16.mxu0 %v5595
      %5912 = vmatmul.mubr.bf16.gmra.mrb[0].mxu0 %v5594
      %v5913 = vpop.f32.mrb[0].mxu0
      %v5914 = vadd.f32 0.0, %v5913
      %v5915 = vpop.f32.mrb[0].mxu0
      %v5916 = vpop.f32.mrb[0].mxu0
      %v5917 = vadd.f32 0.0, %v5916
      %v5918 = vpop.f32.mrb[0].mxu0
      %5919 = vmatprep.mubr.bf16.mxu0 %v5598
      %5920 = vmatmul.mubr.bf16.gmra.mrb[0].mxu0 %v5597
      %v5921 = vpop.f32.mrb[0].mxu0
      %v5922 = vadd.f32 0.0, %v5921
      %v5923 = vpop.f32.mrb[0].mxu0
      %v5924 = vpop.f32.mrb[0].mxu0
      %v5925 = vadd.f32 0.0, %v5924
      %v5926 = vpop.f32.mrb[0].mxu0
      %5927 = vmatprep.mubr.bf16.mxu0 %v5601
      %5928 = vmatmul.mubr.bf16.gmra.mrb[0].mxu0 %v5600
      %v5929 = vpop.f32.mrb[0].mxu0
      %v5930 = vadd.f32 0.0, %v5929
      %v5931 = vpop.f32.mrb[0].mxu0
      %v5932 = vpop.f32.mrb[0].mxu0
      %v5933 = vadd.f32 0.0, %v5932
      %v5934 = vpop.f32.mrb[0].mxu0
      %5935 = vmatprep.mubr.bf16.mxu0 %v5604
      %5936 = vmatmul.mubr.bf16.gmra.mrb[0].mxu0 %v5603
      %v5937 = vpop.f32.mrb[0].mxu0
      %v5938 = vadd.f32 0.0, %v5937
      %v5939 = vpop.f32.mrb[0].mxu0
      %v5940 = vpop.f32.mrb[0].mxu0
      %v5941 = vadd.f32 0.0, %v5940
      %v5942 = vpop.f32.mrb[0].mxu0
      %5943 = vmatprep.mubr.bf16.mxu0 %v5607
      %5944 = vmatmul.mubr.bf16.gmra.mrb[0].mxu0 %v5606
      %v5945 = vpop.f32.mrb[0].mxu0
      %v5946 = vadd.f32 0.0, %v5945
      %v5947 = vpop.f32.mrb[0].mxu0
      %v5948 = vpop.f32.mrb[0].mxu0
      %v5949 = vadd.f32 0.0, %v5948
      %v5950 = vpop.f32.mrb[0].mxu0
      %5951 = vmatprep.mubr.bf16.mxu0 %v5610
      %5952 = vmatmul.mubr.bf16.gmra.mrb[0].mxu0 %v5609
      %v5953 = vpop.f32.mrb[0].mxu0
      %v5954 = vadd.f32 0.0, %v5953
      %v5955 = vpop.f32.mrb[0].mxu0
      %v5956 = vpop.f32.mrb[0].mxu0
      %v5957 = vadd.f32 0.0, %v5956
      %v5958 = vpop.f32.mrb[0].mxu0
      %5959 = vmatprep.mubr.bf16.mxu0 %v5613
      %5960 = vmatmul.mubr.bf16.gmra.mrb[0].mxu0 %v5612
      %v5961 = vpop.f32.mrb[0].mxu0
      %v5962 = vadd.f32 0.0, %v5961
      %v5963 = vpop.f32.mrb[0].mxu0
      %v5964 = vpop.f32.mrb[0].mxu0
      %v5965 = vadd.f32 0.0, %v5964
      %v5966 = vpop.f32.mrb[0].mxu0
      %5967 = vdwg.mxu0
      %5968 = vmatprep.subr.bf16.mxu0 0
      %5969 = vmatpush1.bf16.msra.mxu0 %v5739
      %5970 = vmatprep.subr.bf16.mxu0 0
      %5971 = vmatpush1.bf16.msra.mxu0 %v5740
      %5972 = vmatprep.subr.bf16.mxu0 0
      %5973 = vmatpush1.bf16.msra.mxu0 0
      %5974 = vmatprep.subr.bf16.mxu0 0
      %5975 = vmatpush1.bf16.msra.mxu0 0
      %5976 = vmatprep.subr.bf16.mxu0 0
      %5977 = vmatpush1.bf16.msra.mxu0 0
      %5978 = vmatprep.subr.bf16.mxu0 0
      %5979 = vmatpush1.bf16.msra.mxu0 0
      %5980 = vmatprep.subr.bf16.mxu0 0
      %5981 = vmatpush1.bf16.msra.mxu0 0
      %5982 = vmatprep.subr.bf16.mxu0 0
      %5983 = vmatpush1.bf16.msra.mxu0 0
      %5984 = vmatprep.subr.bf16.mxu0 0
      %5985 = vmatpush1.bf16.msra.mxu0 0
      %5986 = vmatprep.subr.bf16.mxu0 0
      %5987 = vmatpush1.bf16.msra.mxu0 0
      %5988 = vmatprep.subr.bf16.mxu0 0
      %5989 = vmatpush1.bf16.msra.mxu0 0
      %5990 = vmatprep.subr.bf16.mxu0 0
      %5991 = vmatpush1.bf16.msra.mxu0 0
      %5992 = vmatprep.subr.bf16.mxu0 0
      %5993 = vmatpush1.bf16.msra.mxu0 0
      %5994 = vmatprep.subr.bf16.mxu0 0
      %5995 = vmatpush1.bf16.msra.mxu0 0
      %5996 = vmatprep.subr.bf16.mxu0 0
      %5997 = vmatpush1.bf16.msra.mxu0 0
      %5998 = vmatprep.subr.bf16.mxu0 0
      %5999 = vmatpush1.bf16.msra.mxu0 0
      %6000 = vmatprep.mubr.bf16.mxu0 0
      %6001 = vmatmul.mubr.bf16.gmra.mrb[0].mxu0 %v5760
      %v6002 = vpop.f32.mrb[0].mxu0
      %v6003 = vadd.f32 %v5842, %v6002
      %v6004 = vpop.f32.mrb[0].mxu0
      %v6005 = vpop.f32.mrb[0].mxu0
      %v6006 = vadd.f32 %v5845, %v6005
      %v6007 = vpop.f32.mrb[0].mxu0
      %6008 = vmatprep.mubr.bf16.mxu0 0
      %6009 = vmatmul.mubr.bf16.gmra.mrb[0].mxu0 %v5763
      %v6010 = vpop.f32.mrb[0].mxu0
      %v6011 = vadd.f32 %v5850, %v6010
      %v6012 = vpop.f32.mrb[0].mxu0
      %v6013 = vpop.f32.mrb[0].mxu0
      %v6014 = vadd.f32 %v5853, %v6013
      %v6015 = vpop.f32.mrb[0].mxu0
      %6016 = vmatprep.mubr.bf16.mxu0 0
      %6017 = vmatmul.mubr.bf16.gmra.mrb[0].mxu0 %v5766
      %v6018 = vpop.f32.mrb[0].mxu0
      %v6019 = vadd.f32 %v5858, %v6018
      %v6020 = vpop.f32.mrb[0].mxu0
      %v6021 = vpop.f32.mrb[0].mxu0
      %v6022 = vadd.f32 %v5861, %v6021
      %v6023 = vpop.f32.mrb[0].mxu0
      %6024 = vmatprep.mubr.bf16.mxu0 0
      %6025 = vmatmul.mubr.bf16.gmra.mrb[0].mxu0 %v5769
      %v6026 = vpop.f32.mrb[0].mxu0
      %v6027 = vadd.f32 %v5866, %v6026
      %v6028 = vpop.f32.mrb[0].mxu0
      %v6029 = vpop.f32.mrb[0].mxu0
      %v6030 = vadd.f32 %v5869, %v6029
      %v6031 = vpop.f32.mrb[0].mxu0
      %6032 = vmatprep.mubr.bf16.mxu0 0
      %6033 = vmatmul.mubr.bf16.gmra.mrb[0].mxu0 %v5772
      %v6034 = vpop.f32.mrb[0].mxu0
      %v6035 = vadd.f32 %v5874, %v6034
      %v6036 = vpop.f32.mrb[0].mxu0
      %v6037 = vpop.f32.mrb[0].mxu0
      %v6038 = vadd.f32 %v5877, %v6037
      %v6039 = vpop.f32.mrb[0].mxu0
      %6040 = vmatprep.mubr.bf16.mxu0 0
      %6041 = vmatmul.mubr.bf16.gmra.mrb[0].mxu0 %v5775
      %v6042 = vpop.f32.mrb[0].mxu0
      %v6043 = vadd.f32 %v5882, %v6042
      %v6044 = vpop.f32.mrb[0].mxu0
      %v6045 = vpop.f32.mrb[0].mxu0
      %v6046 = vadd.f32 %v5885, %v6045
      %v6047 = vpop.f32.mrb[0].mxu0
      %6048 = vmatprep.mubr.bf16.mxu0 0
      %6049 = vmatmul.mubr.bf16.gmra.mrb[0].mxu0 %v5778
      %v6050 = vpop.f32.mrb[0].mxu0
      %v6051 = vadd.f32 %v5890, %v6050
      %v6052 = vpop.f32.mrb[0].mxu0
      %v6053 = vpop.f32.mrb[0].mxu0
      %v6054 = vadd.f32 %v5893, %v6053
      %v6055 = vpop.f32.mrb[0].mxu0
      %6056 = vmatprep.mubr.bf16.mxu0 0
      %6057 = vmatmul.mubr.bf16.gmra.mrb[0].mxu0 %v5781
      %v6058 = vpop.f32.mrb[0].mxu0
      %v6059 = vadd.f32 %v5898, %v6058
      %v6060 = vpop.f32.mrb[0].mxu0
      %v6061 = vpop.f32.mrb[0].mxu0
      %v6062 = vadd.f32 %v5901, %v6061
      %v6063 = vpop.f32.mrb[0].mxu0
      %6064 = vmatprep.mubr.bf16.mxu0 0
      %6065 = vmatmul.mubr.bf16.gmra.mrb[0].mxu0 %v5784
      %v6066 = vpop.f32.mrb[0].mxu0
      %v6067 = vadd.f32 %v5906, %v6066
      %v6068 = vpop.f32.mrb[0].mxu0
      %v6069 = vpop.f32.mrb[0].mxu0
      %v6070 = vadd.f32 %v5909, %v6069
      %v6071 = vpop.f32.mrb[0].mxu0
      %6072 = vmatprep.mubr.bf16.mxu0 0
      %6073 = vmatmul.mubr.bf16.gmra.mrb[0].mxu0 %v5787
      %v6074 = vpop.f32.mrb[0].mxu0
      %v6075 = vadd.f32 %v5914, %v6074
      %v6076 = vpop.f32.mrb[0].mxu0
      %v6077 = vpop.f32.mrb[0].mxu0
      %v6078 = vadd.f32 %v5917, %v6077
      %v6079 = vpop.f32.mrb[0].mxu0
      %6080 = vmatprep.mubr.bf16.mxu0 0
      %6081 = vmatmul.mubr.bf16.gmra.mrb[0].mxu0 %v5790
      %v6082 = vpop.f32.mrb[0].mxu0
      %v6083 = vadd.f32 %v5922, %v6082
      %v6084 = vpop.f32.mrb[0].mxu0
      %v6085 = vpop.f32.mrb[0].mxu0
      %v6086 = vadd.f32 %v5925, %v6085
      %v6087 = vpop.f32.mrb[0].mxu0
      %6088 = vmatprep.mubr.bf16.mxu0 0
      %6089 = vmatmul.mubr.bf16.gmra.mrb[0].mxu0 %v5793
      %v6090 = vpop.f32.mrb[0].mxu0
      %v6091 = vadd.f32 %v5930, %v6090
      %v6092 = vpop.f32.mrb[0].mxu0
      %v6093 = vpop.f32.mrb[0].mxu0
      %v6094 = vadd.f32 %v5933, %v6093
      %v6095 = vpop.f32.mrb[0].mxu0
      %6096 = vmatprep.mubr.bf16.mxu0 0
      %6097 = vmatmul.mubr.bf16.gmra.mrb[0].mxu0 %v5796
      %v6098 = vpop.f32.mrb[0].mxu0
      %v6099 = vadd.f32 %v5938, %v6098
      %v6100 = vpop.f32.mrb[0].mxu0
      %v6101 = vpop.f32.mrb[0].mxu0
      %v6102 = vadd.f32 %v5941, %v6101
      %v6103 = vpop.f32.mrb[0].mxu0
      %6104 = vmatprep.mubr.bf16.mxu0 0
      %6105 = vmatmul.mubr.bf16.gmra.mrb[0].mxu0 %v5799
      %v6106 = vpop.f32.mrb[0].mxu0
      %v6107 = vadd.f32 %v5946, %v6106
      %v6108 = vpop.f32.mrb[0].mxu0
      %v6109 = vpop.f32.mrb[0].mxu0
      %v6110 = vadd.f32 %v5949, %v6109
      %v6111 = vpop.f32.mrb[0].mxu0
      %6112 = vmatprep.mubr.bf16.mxu0 0
      %6113 = vmatmul.mubr.bf16.gmra.mrb[0].mxu0 %v5802
      %v6114 = vpop.f32.mrb[0].mxu0
      %v6115 = vadd.f32 %v5954, %v6114
      %v6116 = vpop.f32.mrb[0].mxu0
      %v6117 = vpop.f32.mrb[0].mxu0
      %v6118 = vadd.f32 %v5957, %v6117
      %v6119 = vpop.f32.mrb[0].mxu0
      %6120 = vmatprep.mubr.bf16.mxu0 0
      %6121 = vmatmul.mubr.bf16.gmra.mrb[0].mxu0 %v5805
      %v6122 = vpop.f32.mrb[0].mxu0
      %v6123 = vadd.f32 %v5962, %v6122
      %v6124 = vpop.f32.mrb[0].mxu0
      %v6125 = vpop.f32.mrb[0].mxu0
      %v6126 = vadd.f32 %v5965, %v6125
      %v6127 = vpop.f32.mrb[0].mxu0
      %6128 = vdwg.mxu0
      %vm6129 = vcmp.gt.f32.partialorder %v6003, 0.0
      %vm6130 = vcmp.gt.f32.partialorder %v6006, 0.0
      %vm6131 = vcmp.gt.f32.partialorder %v6011, 0.0
      %vm6132 = vcmp.gt.f32.partialorder %v6014, 0.0
      %vm6133 = vcmp.gt.f32.partialorder %v6019, 0.0
      %vm6134 = vcmp.gt.f32.partialorder %v6022, 0.0
      %vm6135 = vcmp.gt.f32.partialorder %v6027, 0.0
      %vm6136 = vcmp.gt.f32.partialorder %v6030, 0.0
      %vm6137 = vcmp.gt.f32.partialorder %v6035, 0.0
      %vm6138 = vcmp.gt.f32.partialorder %v6038, 0.0
      %vm6139 = vcmp.gt.f32.partialorder %v6043, 0.0
      %vm6140 = vcmp.gt.f32.partialorder %v6046, 0.0
      %vm6141 = vcmp.gt.f32.partialorder %v6051, 0.0
      %vm6142 = vcmp.gt.f32.partialorder %v6054, 0.0
      %vm6143 = vcmp.gt.f32.partialorder %v6059, 0.0
      %vm6144 = vcmp.gt.f32.partialorder %v6062, 0.0
      %vm6145 = vcmp.gt.f32.partialorder %v6067, 0.0
      %vm6146 = vcmp.gt.f32.partialorder %v6070, 0.0
      %vm6147 = vcmp.gt.f32.partialorder %v6075, 0.0
      %vm6148 = vcmp.gt.f32.partialorder %v6078, 0.0
      %vm6149 = vcmp.gt.f32.partialorder %v6083, 0.0
      %vm6150 = vcmp.gt.f32.partialorder %v6086, 0.0
      %vm6151 = vcmp.gt.f32.partialorder %v6091, 0.0
      %vm6152 = vcmp.gt.f32.partialorder %v6094, 0.0
      %vm6153 = vcmp.gt.f32.partialorder %v6099, 0.0
      %vm6154 = vcmp.gt.f32.partialorder %v6102, 0.0
      %vm6155 = vcmp.gt.f32.partialorder %v6107, 0.0
      %vm6156 = vcmp.gt.f32.partialorder %v6110, 0.0
      %vm6157 = vcmp.gt.f32.partialorder %v6115, 0.0
      %vm6158 = vcmp.gt.f32.partialorder %v6118, 0.0
      %vm6159 = vcmp.gt.f32.partialorder %v6123, 0.0
      %vm6160 = vcmp.gt.f32.partialorder %v6126, 0.0
      %v6161 = vmul.f32 %v6003, 0.1
      %v6162 = vmul.f32 %v6006, 0.1
      %v6163 = vmul.f32 %v6011, 0.1
      %v6164 = vmul.f32 %v6014, 0.1
      %v6165 = vmul.f32 %v6019, 0.1
      %v6166 = vmul.f32 %v6022, 0.1
      %v6167 = vmul.f32 %v6027, 0.1
      %v6168 = vmul.f32 %v6030, 0.1
      %v6169 = vmul.f32 %v6035, 0.1
      %v6170 = vmul.f32 %v6038, 0.1
      %v6171 = vmul.f32 %v6043, 0.1
      %v6172 = vmul.f32 %v6046, 0.1
      %v6173 = vmul.f32 %v6051, 0.1
      %v6174 = vmul.f32 %v6054, 0.1
      %v6175 = vmul.f32 %v6059, 0.1
      %v6176 = vmul.f32 %v6062, 0.1
      %v6177 = vmul.f32 %v6067, 0.1
      %v6178 = vmul.f32 %v6070, 0.1
      %v6179 = vmul.f32 %v6075, 0.1
      %v6180 = vmul.f32 %v6078, 0.1
      %v6181 = vmul.f32 %v6083, 0.1
      %v6182 = vmul.f32 %v6086, 0.1
      %v6183 = vmul.f32 %v6091, 0.1
      %v6184 = vmul.f32 %v6094, 0.1
      %v6185 = vmul.f32 %v6099, 0.1
      %v6186 = vmul.f32 %v6102, 0.1
      %v6187 = vmul.f32 %v6107, 0.1
      %v6188 = vmul.f32 %v6110, 0.1
      %v6189 = vmul.f32 %v6115, 0.1
      %v6190 = vmul.f32 %v6118, 0.1
      %v6191 = vmul.f32 %v6123, 0.1
      %v6192 = vmul.f32 %v6126, 0.1
      %v6193 = vsel %vm6129, %v6003, %v6161
      %v6194 = vsel %vm6130, %v6006, %v6162
      %v6195 = vsel %vm6131, %v6011, %v6163
      %v6196 = vsel %vm6132, %v6014, %v6164
      %v6197 = vsel %vm6133, %v6019, %v6165
      %v6198 = vsel %vm6134, %v6022, %v6166
      %v6199 = vsel %vm6135, %v6027, %v6167
      %v6200 = vsel %vm6136, %v6030, %v6168
      %v6201 = vsel %vm6137, %v6035, %v6169
      %v6202 = vsel %vm6138, %v6038, %v6170
      %v6203 = vsel %vm6139, %v6043, %v6171
      %v6204 = vsel %vm6140, %v6046, %v6172
      %v6205 = vsel %vm6141, %v6051, %v6173
      %v6206 = vsel %vm6142, %v6054, %v6174
      %v6207 = vsel %vm6143, %v6059, %v6175
      %v6208 = vsel %vm6144, %v6062, %v6176
      %v6209 = vsel %vm6145, %v6067, %v6177
      %v6210 = vsel %vm6146, %v6070, %v6178
      %v6211 = vsel %vm6147, %v6075, %v6179
      %v6212 = vsel %vm6148, %v6078, %v6180
      %v6213 = vsel %vm6149, %v6083, %v6181
      %v6214 = vsel %vm6150, %v6086, %v6182
      %v6215 = vsel %vm6151, %v6091, %v6183
      %v6216 = vsel %vm6152, %v6094, %v6184
      %v6217 = vsel %vm6153, %v6099, %v6185
      %v6218 = vsel %vm6154, %v6102, %v6186
      %v6219 = vsel %vm6155, %v6107, %v6187
      %v6220 = vsel %vm6156, %v6110, %v6188
      %v6221 = vsel %vm6157, %v6115, %v6189
      %v6222 = vsel %vm6158, %v6118, %v6190
      %v6223 = vsel %vm6159, %v6123, %v6191
      %v6224 = vsel %vm6160, %v6126, %v6192
      %6225 = vst.msk [vmem:[%s368 + $0x1] sm:$0xff] %vm280, %v6193
      %6226 = vst.msk [vmem:[%s368 + $0x9] sm:$0xff] %vm280, %v6194
      %6227 = vst.msk [vmem:[%s368 + $0x19] sm:$0xff] %vm280, %v6195
      %6228 = vst.msk [vmem:[%s368 + $0x21] sm:$0xff] %vm280, %v6196
      %6229 = vst.msk [vmem:[%s368 + $0x31] sm:$0xff] %vm280, %v6197
      %6230 = vst.msk [vmem:[%s368 + $0x39] sm:$0xff] %vm280, %v6198
      %6231 = vst.msk [vmem:[%s368 + $0x49] sm:$0xff] %vm280, %v6199
      %6232 = vst.msk [vmem:[%s368 + $0x51] sm:$0xff] %vm280, %v6200
      %6233 = vst.msk [vmem:[%s368 + $0x61] sm:$0xff] %vm280, %v6201
      %6234 = vst.msk [vmem:[%s368 + $0x69] sm:$0xff] %vm280, %v6202
      %6235 = vst.msk [vmem:[%s368 + $0x79] sm:$0xff] %vm280, %v6203
      %6236 = vst.msk [vmem:[%s368 + $0x81] sm:$0xff] %vm280, %v6204
      %6237 = vst.msk [vmem:[%s368 + $0x91] sm:$0xff] %vm280, %v6205
      %6238 = vst.msk [vmem:[%s368 + $0x99] sm:$0xff] %vm280, %v6206
      %6239 = vst.msk [vmem:[%s368 + $0xa9] sm:$0xff] %vm280, %v6207
      %6240 = vst.msk [vmem:[%s368 + $0xb1] sm:$0xff] %vm280, %v6208
      %6241 = vst.msk [vmem:[%s368 + $0xc1] sm:$0xff] %vm280, %v6209
      %6242 = vst.msk [vmem:[%s368 + $0xc9] sm:$0xff] %vm280, %v6210
      %6243 = vst.msk [vmem:[%s368 + $0xd9] sm:$0xff] %vm280, %v6211
      %6244 = vst.msk [vmem:[%s368 + $0xe1] sm:$0xff] %vm280, %v6212
      %6245 = vst.msk [vmem:[%s368 + $0xf1] sm:$0xff] %vm280, %v6213
      %6246 = vst.msk [vmem:[%s368 + $0xf9] sm:$0xff] %vm280, %v6214
      %6247 = vst.msk [vmem:[%s368 + $0x109] sm:$0xff] %vm280, %v6215
      %6248 = vst.msk [vmem:[%s368 + $0x111] sm:$0xff] %vm280, %v6216
      %6249 = vst.msk [vmem:[%s368 + $0x121] sm:$0xff] %vm280, %v6217
      %6250 = vst.msk [vmem:[%s368 + $0x129] sm:$0xff] %vm280, %v6218
      %6251 = vst.msk [vmem:[%s368 + $0x139] sm:$0xff] %vm280, %v6219
      %6252 = vst.msk [vmem:[%s368 + $0x141] sm:$0xff] %vm280, %v6220
      %6253 = vst.msk [vmem:[%s368 + $0x151] sm:$0xff] %vm280, %v6221
      %6254 = vst.msk [vmem:[%s368 + $0x159] sm:$0xff] %vm280, %v6222
      %6255 = vst.msk [vmem:[%s368 + $0x169] sm:$0xff] %vm280, %v6223
      %6256 = vst.msk [vmem:[%s368 + $0x171] sm:$0xff] %vm280, %v6224
      %v6257 = vld [vmem:[#allocation2] sm:$0xff]
      %v6258 = vld [vmem:[#allocation2 + $0x8] sm:$0xff]
      %v6259 = vld [vmem:[#allocation2 + $0x18] sm:$0xff]
      %v6260 = vld [vmem:[#allocation2 + $0x20] sm:$0xff]
      %v6261 = vld [vmem:[#allocation2 + $0x30] sm:$0xff]
      %v6262 = vld [vmem:[#allocation2 + $0x38] sm:$0xff]
      %v6263 = vld [vmem:[#allocation2 + $0x48] sm:$0xff]
      %v6264 = vld [vmem:[#allocation2 + $0x50] sm:$0xff]
      %v6265 = vld [vmem:[#allocation2 + $0x60] sm:$0xff]
      %v6266 = vld [vmem:[#allocation2 + $0x68] sm:$0xff]
      %v6267 = vld [vmem:[#allocation2 + $0x78] sm:$0xff]
      %v6268 = vld [vmem:[#allocation2 + $0x80] sm:$0xff]
      %v6269 = vld [vmem:[#allocation2 + $0x90] sm:$0xff]
      %v6270 = vld [vmem:[#allocation2 + $0x98] sm:$0xff]
      %v6271 = vld [vmem:[#allocation2 + $0xa8] sm:$0xff]
      %v6272 = vld [vmem:[#allocation2 + $0xb0] sm:$0xff]
      %v6273 = vld [vmem:[#allocation2 + $0xc0] sm:$0xff]
      %v6274 = vld [vmem:[#allocation2 + $0xc8] sm:$0xff]
      %v6275 = vld [vmem:[#allocation2 + $0xd8] sm:$0xff]
      %v6276 = vld [vmem:[#allocation2 + $0xe0] sm:$0xff]
      %v6277 = vld [vmem:[#allocation2 + $0xf0] sm:$0xff]
      %v6278 = vld [vmem:[#allocation2 + $0xf8] sm:$0xff]
      %v6279 = vld [vmem:[#allocation2 + $0x108] sm:$0xff]
      %v6280 = vld [vmem:[#allocation2 + $0x110] sm:$0xff]
      %v6281 = vld [vmem:[#allocation2 + $0x120] sm:$0xff]
      %v6282 = vld [vmem:[#allocation2 + $0x128] sm:$0xff]
      %v6283 = vld [vmem:[#allocation2 + $0x138] sm:$0xff]
      %v6284 = vld [vmem:[#allocation2 + $0x140] sm:$0xff]
      %v6285 = vld [vmem:[#allocation2 + $0x150] sm:$0xff]
      %v6286 = vld [vmem:[#allocation2 + $0x158] sm:$0xff]
      %v6287 = vld [vmem:[#allocation2 + $0x168] sm:$0xff]
      %v6288 = vld [vmem:[#allocation2 + $0x170] sm:$0xff]
      %v6289 = vld [vmem:[#allocation2 + $0x1] sm:$0xff]
      %v6290 = vld [vmem:[#allocation2 + $0x9] sm:$0xff]
      %v6291 = vld [vmem:[#allocation2 + $0x19] sm:$0xff]
      %v6292 = vld [vmem:[#allocation2 + $0x21] sm:$0xff]
      %v6293 = vld [vmem:[#allocation2 + $0x31] sm:$0xff]
      %v6294 = vld [vmem:[#allocation2 + $0x39] sm:$0xff]
      %v6295 = vld [vmem:[#allocation2 + $0x49] sm:$0xff]
      %v6296 = vld [vmem:[#allocation2 + $0x51] sm:$0xff]
      %v6297 = vld [vmem:[#allocation2 + $0x61] sm:$0xff]
      %v6298 = vld [vmem:[#allocation2 + $0x69] sm:$0xff]
      %v6299 = vld [vmem:[#allocation2 + $0x79] sm:$0xff]
      %v6300 = vld [vmem:[#allocation2 + $0x81] sm:$0xff]
      %v6301 = vld [vmem:[#allocation2 + $0x91] sm:$0xff]
      %v6302 = vld [vmem:[#allocation2 + $0x99] sm:$0xff]
      %v6303 = vld [vmem:[#allocation2 + $0xa9] sm:$0xff]
      %v6304 = vld [vmem:[#allocation2 + $0xb1] sm:$0xff]
      %v6305 = vld [vmem:[#allocation2 + $0xc1] sm:$0xff]
      %v6306 = vld [vmem:[#allocation2 + $0xc9] sm:$0xff]
      %v6307 = vld [vmem:[#allocation2 + $0xd9] sm:$0xff]
      %v6308 = vld [vmem:[#allocation2 + $0xe1] sm:$0xff]
      %v6309 = vld [vmem:[#allocation2 + $0xf1] sm:$0xff]
      %v6310 = vld [vmem:[#allocation2 + $0xf9] sm:$0xff]
      %v6311 = vld [vmem:[#allocation2 + $0x109] sm:$0xff]
      %v6312 = vld [vmem:[#allocation2 + $0x111] sm:$0xff]
      %v6313 = vld [vmem:[#allocation2 + $0x121] sm:$0xff]
      %v6314 = vld [vmem:[#allocation2 + $0x129] sm:$0xff]
      %v6315 = vld [vmem:[#allocation2 + $0x139] sm:$0xff]
      %v6316 = vld [vmem:[#allocation2 + $0x141] sm:$0xff]
      %v6317 = vld [vmem:[#allocation2 + $0x151] sm:$0xff]
      %v6318 = vld [vmem:[#allocation2 + $0x159] sm:$0xff]
      %v6319 = vld [vmem:[#allocation2 + $0x169] sm:$0xff]
      %v6320 = vld [vmem:[#allocation2 + $0x171] sm:$0xff]
      %v6321 = vld [vmem:[#allocation2 + $0x2] sm:$0xff]
      %v6322 = vld [vmem:[#allocation2 + $0xa] sm:$0xff]
      %v6323 = vld [vmem:[#allocation2 + $0x1a] sm:$0xff]
      %v6324 = vld [vmem:[#allocation2 + $0x22] sm:$0xff]
      %v6325 = vld [vmem:[#allocation2 + $0x32] sm:$0xff]
      %v6326 = vld [vmem:[#allocation2 + $0x3a] sm:$0xff]
      %v6327 = vld [vmem:[#allocation2 + $0x4a] sm:$0xff]
      %v6328 = vld [vmem:[#allocation2 + $0x52] sm:$0xff]
      %v6329 = vld [vmem:[#allocation2 + $0x62] sm:$0xff]
      %v6330 = vld [vmem:[#allocation2 + $0x6a] sm:$0xff]
      %v6331 = vld [vmem:[#allocation2 + $0x7a] sm:$0xff]
      %v6332 = vld [vmem:[#allocation2 + $0x82] sm:$0xff]
      %v6333 = vld [vmem:[#allocation2 + $0x92] sm:$0xff]
      %v6334 = vld [vmem:[#allocation2 + $0x9a] sm:$0xff]
      %v6335 = vld [vmem:[#allocation2 + $0xaa] sm:$0xff]
      %v6336 = vld [vmem:[#allocation2 + $0xb2] sm:$0xff]
      %v6337 = vld [vmem:[#allocation2 + $0xc2] sm:$0xff]
      %v6338 = vld [vmem:[#allocation2 + $0xca] sm:$0xff]
      %v6339 = vld [vmem:[#allocation2 + $0xda] sm:$0xff]
      %v6340 = vld [vmem:[#allocation2 + $0xe2] sm:$0xff]
      %v6341 = vld [vmem:[#allocation2 + $0xf2] sm:$0xff]
      %v6342 = vld [vmem:[#allocation2 + $0xfa] sm:$0xff]
      %v6343 = vld [vmem:[#allocation2 + $0x10a] sm:$0xff]
      %v6344 = vld [vmem:[#allocation2 + $0x112] sm:$0xff]
      %v6345 = vld [vmem:[#allocation2 + $0x122] sm:$0xff]
      %v6346 = vld [vmem:[#allocation2 + $0x12a] sm:$0xff]
      %v6347 = vld [vmem:[#allocation2 + $0x13a] sm:$0xff]
      %v6348 = vld [vmem:[#allocation2 + $0x142] sm:$0xff]
      %v6349 = vld [vmem:[#allocation2 + $0x152] sm:$0xff]
      %v6350 = vld [vmem:[#allocation2 + $0x15a] sm:$0xff]
      %v6351 = vld [vmem:[#allocation2 + $0x16a] sm:$0xff]
      %v6352 = vld [vmem:[#allocation2 + $0x172] sm:$0xff]
      %v6353 = vld [vmem:[%s368] sm:$0xff]
      %v6354 = vld [vmem:[%s368 + $0x8] sm:$0xff]
      %v6355 = vld [vmem:[%s368 + $0x18] sm:$0xff]
      %v6356 = vld [vmem:[%s368 + $0x20] sm:$0xff]
      %v6357 = vld [vmem:[%s368 + $0x30] sm:$0xff]
      %v6358 = vld [vmem:[%s368 + $0x38] sm:$0xff]
      %v6359 = vld [vmem:[%s368 + $0x48] sm:$0xff]
      %v6360 = vld [vmem:[%s368 + $0x50] sm:$0xff]
      %v6361 = vld [vmem:[%s368 + $0x60] sm:$0xff]
      %v6362 = vld [vmem:[%s368 + $0x68] sm:$0xff]
      %v6363 = vld [vmem:[%s368 + $0x78] sm:$0xff]
      %v6364 = vld [vmem:[%s368 + $0x80] sm:$0xff]
      %v6365 = vld [vmem:[%s368 + $0x90] sm:$0xff]
      %v6366 = vld [vmem:[%s368 + $0x98] sm:$0xff]
      %v6367 = vld [vmem:[%s368 + $0xa8] sm:$0xff]
      %v6368 = vld [vmem:[%s368 + $0xb0] sm:$0xff]
      %v6369 = vld [vmem:[%s368 + $0xc0] sm:$0xff]
      %v6370 = vld [vmem:[%s368 + $0xc8] sm:$0xff]
      %v6371 = vld [vmem:[%s368 + $0xd8] sm:$0xff]
      %v6372 = vld [vmem:[%s368 + $0xe0] sm:$0xff]
      %v6373 = vld [vmem:[%s368 + $0xf0] sm:$0xff]
      %v6374 = vld [vmem:[%s368 + $0xf8] sm:$0xff]
      %v6375 = vld [vmem:[%s368 + $0x108] sm:$0xff]
      %v6376 = vld [vmem:[%s368 + $0x110] sm:$0xff]
      %v6377 = vld [vmem:[%s368 + $0x120] sm:$0xff]
      %v6378 = vld [vmem:[%s368 + $0x128] sm:$0xff]
      %v6379 = vld [vmem:[%s368 + $0x138] sm:$0xff]
      %v6380 = vld [vmem:[%s368 + $0x140] sm:$0xff]
      %v6381 = vld [vmem:[%s368 + $0x150] sm:$0xff]
      %v6382 = vld [vmem:[%s368 + $0x158] sm:$0xff]
      %v6383 = vld [vmem:[%s368 + $0x168] sm:$0xff]
      %v6384 = vld [vmem:[%s368 + $0x170] sm:$0xff]
      %v6385 = vld [vmem:[%s368 + $0x1] sm:$0xff]
      %v6386 = vld [vmem:[%s368 + $0x9] sm:$0xff]
      %v6387 = vld [vmem:[%s368 + $0x19] sm:$0xff]
      %v6388 = vld [vmem:[%s368 + $0x21] sm:$0xff]
      %v6389 = vld [vmem:[%s368 + $0x31] sm:$0xff]
      %v6390 = vld [vmem:[%s368 + $0x39] sm:$0xff]
      %v6391 = vld [vmem:[%s368 + $0x49] sm:$0xff]
      %v6392 = vld [vmem:[%s368 + $0x51] sm:$0xff]
      %v6393 = vld [vmem:[%s368 + $0x61] sm:$0xff]
      %v6394 = vld [vmem:[%s368 + $0x69] sm:$0xff]
      %v6395 = vld [vmem:[%s368 + $0x79] sm:$0xff]
      %v6396 = vld [vmem:[%s368 + $0x81] sm:$0xff]
      %v6397 = vld [vmem:[%s368 + $0x91] sm:$0xff]
      %v6398 = vld [vmem:[%s368 + $0x99] sm:$0xff]
      %v6399 = vld [vmem:[%s368 + $0xa9] sm:$0xff]
      %v6400 = vld [vmem:[%s368 + $0xb1] sm:$0xff]
      %v6401 = vld [vmem:[%s368 + $0xc1] sm:$0xff]
      %v6402 = vld [vmem:[%s368 + $0xc9] sm:$0xff]
      %v6403 = vld [vmem:[%s368 + $0xd9] sm:$0xff]
      %v6404 = vld [vmem:[%s368 + $0xe1] sm:$0xff]
      %v6405 = vld [vmem:[%s368 + $0xf1] sm:$0xff]
      %v6406 = vld [vmem:[%s368 + $0xf9] sm:$0xff]
      %v6407 = vld [vmem:[%s368 + $0x109] sm:$0xff]
      %v6408 = vld [vmem:[%s368 + $0x111] sm:$0xff]
      %v6409 = vld [vmem:[%s368 + $0x121] sm:$0xff]
      %v6410 = vld [vmem:[%s368 + $0x129] sm:$0xff]
      %v6411 = vld [vmem:[%s368 + $0x139] sm:$0xff]
      %v6412 = vld [vmem:[%s368 + $0x141] sm:$0xff]
      %v6413 = vld [vmem:[%s368 + $0x151] sm:$0xff]
      %v6414 = vld [vmem:[%s368 + $0x159] sm:$0xff]
      %v6415 = vld [vmem:[%s368 + $0x169] sm:$0xff]
      %v6416 = vld [vmem:[%s368 + $0x171] sm:$0xff]
      %v6417 = vld [vmem:[%s368 + $0x2] sm:$0xff]
      %v6418 = vld [vmem:[%s368 + $0xa] sm:$0xff]
      %v6419 = vld [vmem:[%s368 + $0x1a] sm:$0xff]
      %v6420 = vld [vmem:[%s368 + $0x22] sm:$0xff]
      %v6421 = vld [vmem:[%s368 + $0x32] sm:$0xff]
      %v6422 = vld [vmem:[%s368 + $0x3a] sm:$0xff]
      %v6423 = vld [vmem:[%s368 + $0x4a] sm:$0xff]
      %v6424 = vld [vmem:[%s368 + $0x52] sm:$0xff]
      %v6425 = vld [vmem:[%s368 + $0x62] sm:$0xff]
      %v6426 = vld [vmem:[%s368 + $0x6a] sm:$0xff]
      %v6427 = vld [vmem:[%s368 + $0x7a] sm:$0xff]
      %v6428 = vld [vmem:[%s368 + $0x82] sm:$0xff]
      %v6429 = vld [vmem:[%s368 + $0x92] sm:$0xff]
      %v6430 = vld [vmem:[%s368 + $0x9a] sm:$0xff]
      %v6431 = vld [vmem:[%s368 + $0xaa] sm:$0xff]
      %v6432 = vld [vmem:[%s368 + $0xb2] sm:$0xff]
      %v6433 = vld [vmem:[%s368 + $0xc2] sm:$0xff]
      %v6434 = vld [vmem:[%s368 + $0xca] sm:$0xff]
      %v6435 = vld [vmem:[%s368 + $0xda] sm:$0xff]
      %v6436 = vld [vmem:[%s368 + $0xe2] sm:$0xff]
      %v6437 = vld [vmem:[%s368 + $0xf2] sm:$0xff]
      %v6438 = vld [vmem:[%s368 + $0xfa] sm:$0xff]
      %v6439 = vld [vmem:[%s368 + $0x10a] sm:$0xff]
      %v6440 = vld [vmem:[%s368 + $0x112] sm:$0xff]
      %v6441 = vld [vmem:[%s368 + $0x122] sm:$0xff]
      %v6442 = vld [vmem:[%s368 + $0x12a] sm:$0xff]
      %v6443 = vld [vmem:[%s368 + $0x13a] sm:$0xff]
      %v6444 = vld [vmem:[%s368 + $0x142] sm:$0xff]
      %v6445 = vld [vmem:[%s368 + $0x152] sm:$0xff]
      %v6446 = vld [vmem:[%s368 + $0x15a] sm:$0xff]
      %v6447 = vld [vmem:[%s368 + $0x16a] sm:$0xff]
      %v6448 = vld [vmem:[%s368 + $0x172] sm:$0xff]
      %v6449 = vld [vmem:[%s593] sm:$0xff]
      %v6450 = vld [vmem:[%s593 + $0x8] sm:$0xff]
      %v6451 = vld [vmem:[%s593 + $0x18] sm:$0xff]
      %v6452 = vld [vmem:[%s593 + $0x20] sm:$0xff]
      %v6453 = vld [vmem:[%s593 + $0x30] sm:$0xff]
      %v6454 = vld [vmem:[%s593 + $0x38] sm:$0xff]
      %v6455 = vld [vmem:[%s593 + $0x48] sm:$0xff]
      %v6456 = vld [vmem:[%s593 + $0x50] sm:$0xff]
      %v6457 = vld [vmem:[%s593 + $0x60] sm:$0xff]
      %v6458 = vld [vmem:[%s593 + $0x68] sm:$0xff]
      %v6459 = vld [vmem:[%s593 + $0x78] sm:$0xff]
      %v6460 = vld [vmem:[%s593 + $0x80] sm:$0xff]
      %v6461 = vld [vmem:[%s593 + $0x90] sm:$0xff]
      %v6462 = vld [vmem:[%s593 + $0x98] sm:$0xff]
      %v6463 = vld [vmem:[%s593 + $0xa8] sm:$0xff]
      %v6464 = vld [vmem:[%s593 + $0xb0] sm:$0xff]
      %v6465 = vld [vmem:[%s593 + $0xc0] sm:$0xff]
      %v6466 = vld [vmem:[%s593 + $0xc8] sm:$0xff]
      %v6467 = vld [vmem:[%s593 + $0xd8] sm:$0xff]
      %v6468 = vld [vmem:[%s593 + $0xe0] sm:$0xff]
      %v6469 = vld [vmem:[%s593 + $0xf0] sm:$0xff]
      %v6470 = vld [vmem:[%s593 + $0xf8] sm:$0xff]
      %v6471 = vld [vmem:[%s593 + $0x108] sm:$0xff]
      %v6472 = vld [vmem:[%s593 + $0x110] sm:$0xff]
      %v6473 = vld [vmem:[%s593 + $0x120] sm:$0xff]
      %v6474 = vld [vmem:[%s593 + $0x128] sm:$0xff]
      %v6475 = vld [vmem:[%s593 + $0x138] sm:$0xff]
      %v6476 = vld [vmem:[%s593 + $0x140] sm:$0xff]
      %v6477 = vld [vmem:[%s593 + $0x150] sm:$0xff]
      %v6478 = vld [vmem:[%s593 + $0x158] sm:$0xff]
      %v6479 = vld [vmem:[%s593 + $0x168] sm:$0xff]
      %v6480 = vld [vmem:[%s593 + $0x170] sm:$0xff]
      %v6481 = vld [vmem:[%s593 + $0x1] sm:$0xff]
      %v6482 = vld [vmem:[%s593 + $0x9] sm:$0xff]
      %v6483 = vld [vmem:[%s593 + $0x19] sm:$0xff]
      %v6484 = vld [vmem:[%s593 + $0x21] sm:$0xff]
      %v6485 = vld [vmem:[%s593 + $0x31] sm:$0xff]
      %v6486 = vld [vmem:[%s593 + $0x39] sm:$0xff]
      %v6487 = vld [vmem:[%s593 + $0x49] sm:$0xff]
      %v6488 = vld [vmem:[%s593 + $0x51] sm:$0xff]
      %v6489 = vld [vmem:[%s593 + $0x61] sm:$0xff]
      %v6490 = vld [vmem:[%s593 + $0x69] sm:$0xff]
      %v6491 = vld [vmem:[%s593 + $0x79] sm:$0xff]
      %v6492 = vld [vmem:[%s593 + $0x81] sm:$0xff]
      %v6493 = vld [vmem:[%s593 + $0x91] sm:$0xff]
      %v6494 = vld [vmem:[%s593 + $0x99] sm:$0xff]
      %v6495 = vld [vmem:[%s593 + $0xa9] sm:$0xff]
      %v6496 = vld [vmem:[%s593 + $0xb1] sm:$0xff]
      %v6497 = vld [vmem:[%s593 + $0xc1] sm:$0xff]
      %v6498 = vld [vmem:[%s593 + $0xc9] sm:$0xff]
      %v6499 = vld [vmem:[%s593 + $0xd9] sm:$0xff]
      %v6500 = vld [vmem:[%s593 + $0xe1] sm:$0xff]
      %v6501 = vld [vmem:[%s593 + $0xf1] sm:$0xff]
      %v6502 = vld [vmem:[%s593 + $0xf9] sm:$0xff]
      %v6503 = vld [vmem:[%s593 + $0x109] sm:$0xff]
      %v6504 = vld [vmem:[%s593 + $0x111] sm:$0xff]
      %v6505 = vld [vmem:[%s593 + $0x121] sm:$0xff]
      %v6506 = vld [vmem:[%s593 + $0x129] sm:$0xff]
      %v6507 = vld [vmem:[%s593 + $0x139] sm:$0xff]
      %v6508 = vld [vmem:[%s593 + $0x141] sm:$0xff]
      %v6509 = vld [vmem:[%s593 + $0x151] sm:$0xff]
      %v6510 = vld [vmem:[%s593 + $0x159] sm:$0xff]
      %v6511 = vld [vmem:[%s593 + $0x169] sm:$0xff]
      %v6512 = vld [vmem:[%s593 + $0x171] sm:$0xff]
      %v6513 = vld [vmem:[%s593 + $0x2] sm:$0xff]
      %v6514 = vld [vmem:[%s593 + $0xa] sm:$0xff]
      %v6515 = vld [vmem:[%s593 + $0x1a] sm:$0xff]
      %v6516 = vld [vmem:[%s593 + $0x22] sm:$0xff]
      %v6517 = vld [vmem:[%s593 + $0x32] sm:$0xff]
      %v6518 = vld [vmem:[%s593 + $0x3a] sm:$0xff]
      %v6519 = vld [vmem:[%s593 + $0x4a] sm:$0xff]
      %v6520 = vld [vmem:[%s593 + $0x52] sm:$0xff]
      %v6521 = vld [vmem:[%s593 + $0x62] sm:$0xff]
      %v6522 = vld [vmem:[%s593 + $0x6a] sm:$0xff]
      %v6523 = vld [vmem:[%s593 + $0x7a] sm:$0xff]
      %v6524 = vld [vmem:[%s593 + $0x82] sm:$0xff]
      %v6525 = vld [vmem:[%s593 + $0x92] sm:$0xff]
      %v6526 = vld [vmem:[%s593 + $0x9a] sm:$0xff]
      %v6527 = vld [vmem:[%s593 + $0xaa] sm:$0xff]
      %v6528 = vld [vmem:[%s593 + $0xb2] sm:$0xff]
      %v6529 = vld [vmem:[%s593 + $0xc2] sm:$0xff]
      %v6530 = vld [vmem:[%s593 + $0xca] sm:$0xff]
      %v6531 = vld [vmem:[%s593 + $0xda] sm:$0xff]
      %v6532 = vld [vmem:[%s593 + $0xe2] sm:$0xff]
      %v6533 = vld [vmem:[%s593 + $0xf2] sm:$0xff]
      %v6534 = vld [vmem:[%s593 + $0xfa] sm:$0xff]
      %v6535 = vld [vmem:[%s593 + $0x10a] sm:$0xff]
      %v6536 = vld [vmem:[%s593 + $0x112] sm:$0xff]
      %v6537 = vld [vmem:[%s593 + $0x122] sm:$0xff]
      %v6538 = vld [vmem:[%s593 + $0x12a] sm:$0xff]
      %v6539 = vld [vmem:[%s593 + $0x13a] sm:$0xff]
      %v6540 = vld [vmem:[%s593 + $0x142] sm:$0xff]
      %v6541 = vld [vmem:[%s593 + $0x152] sm:$0xff]
      %v6542 = vld [vmem:[%s593 + $0x15a] sm:$0xff]
      %v6543 = vld [vmem:[%s593 + $0x16a] sm:$0xff]
      %v6544 = vld [vmem:[%s593 + $0x172] sm:$0xff]
      %6577 = vrot.lane.b32.xlu0 %v6289, 32
      %v6578 = vpop.permute.xlu0 %6577
      %6579 = vrot.lane.b32.xlu0 %v6290, 32
      %v6580 = vpop.permute.xlu0 %6579
      %6581 = vrot.lane.b32.xlu0 %v6291, 32
      %v6582 = vpop.permute.xlu0 %6581
      %6583 = vrot.lane.b32.xlu0 %v6292, 32
      %v6584 = vpop.permute.xlu0 %6583
      %6585 = vrot.lane.b32.xlu0 %v6293, 32
      %v6586 = vpop.permute.xlu0 %6585
      %6587 = vrot.lane.b32.xlu0 %v6294, 32
      %v6588 = vpop.permute.xlu0 %6587
      %6589 = vrot.lane.b32.xlu0 %v6295, 32
      %v6590 = vpop.permute.xlu0 %6589
      %6591 = vrot.lane.b32.xlu0 %v6296, 32
      %v6592 = vpop.permute.xlu0 %6591
      %6593 = vrot.lane.b32.xlu0 %v6297, 32
      %v6594 = vpop.permute.xlu0 %6593
      %6595 = vrot.lane.b32.xlu0 %v6298, 32
      %v6596 = vpop.permute.xlu0 %6595
      %6597 = vrot.lane.b32.xlu0 %v6299, 32
      %v6598 = vpop.permute.xlu0 %6597
      %6599 = vrot.lane.b32.xlu0 %v6300, 32
      %v6600 = vpop.permute.xlu0 %6599
      %6601 = vrot.lane.b32.xlu0 %v6301, 32
      %v6602 = vpop.permute.xlu0 %6601
      %6603 = vrot.lane.b32.xlu0 %v6302, 32
      %v6604 = vpop.permute.xlu0 %6603
      %6605 = vrot.lane.b32.xlu0 %v6303, 32
      %v6606 = vpop.permute.xlu0 %6605
      %6607 = vrot.lane.b32.xlu0 %v6304, 32
      %v6608 = vpop.permute.xlu0 %6607
      %6609 = vrot.lane.b32.xlu0 %v6305, 32
      %v6610 = vpop.permute.xlu0 %6609
      %6611 = vrot.lane.b32.xlu0 %v6306, 32
      %v6612 = vpop.permute.xlu0 %6611
      %6613 = vrot.lane.b32.xlu0 %v6307, 32
      %v6614 = vpop.permute.xlu0 %6613
      %6615 = vrot.lane.b32.xlu0 %v6308, 32
      %v6616 = vpop.permute.xlu0 %6615
      %6617 = vrot.lane.b32.xlu0 %v6309, 32
      %v6618 = vpop.permute.xlu0 %6617
      %6619 = vrot.lane.b32.xlu0 %v6310, 32
      %v6620 = vpop.permute.xlu0 %6619
      %6621 = vrot.lane.b32.xlu0 %v6311, 32
      %v6622 = vpop.permute.xlu0 %6621
      %6623 = vrot.lane.b32.xlu0 %v6312, 32
      %v6624 = vpop.permute.xlu0 %6623
      %6625 = vrot.lane.b32.xlu0 %v6313, 32
      %v6626 = vpop.permute.xlu0 %6625
      %6627 = vrot.lane.b32.xlu0 %v6314, 32
      %v6628 = vpop.permute.xlu0 %6627
      %6629 = vrot.lane.b32.xlu0 %v6315, 32
      %v6630 = vpop.permute.xlu0 %6629
      %6631 = vrot.lane.b32.xlu0 %v6316, 32
      %v6632 = vpop.permute.xlu0 %6631
      %6633 = vrot.lane.b32.xlu0 %v6317, 32
      %v6634 = vpop.permute.xlu0 %6633
      %6635 = vrot.lane.b32.xlu0 %v6318, 32
      %v6636 = vpop.permute.xlu0 %6635
      %6637 = vrot.lane.b32.xlu0 %v6319, 32
      %v6638 = vpop.permute.xlu0 %6637
      %6639 = vrot.lane.b32.xlu0 %v6320, 32
      %v6640 = vpop.permute.xlu0 %6639
      %6705 = vrot.lane.b32.xlu0 %v6321, 64
      %v6706 = vpop.permute.xlu0 %6705
      %6707 = vrot.lane.b32.xlu0 %v6322, 64
      %v6708 = vpop.permute.xlu0 %6707
      %6709 = vrot.lane.b32.xlu0 %v6323, 64
      %v6710 = vpop.permute.xlu0 %6709
      %6711 = vrot.lane.b32.xlu0 %v6324, 64
      %v6712 = vpop.permute.xlu0 %6711
      %6713 = vrot.lane.b32.xlu0 %v6325, 64
      %v6714 = vpop.permute.xlu0 %6713
      %6715 = vrot.lane.b32.xlu0 %v6326, 64
      %v6716 = vpop.permute.xlu0 %6715
      %6717 = vrot.lane.b32.xlu0 %v6327, 64
      %v6718 = vpop.permute.xlu0 %6717
      %6719 = vrot.lane.b32.xlu0 %v6328, 64
      %v6720 = vpop.permute.xlu0 %6719
      %6721 = vrot.lane.b32.xlu0 %v6329, 64
      %v6722 = vpop.permute.xlu0 %6721
      %6723 = vrot.lane.b32.xlu0 %v6330, 64
      %v6724 = vpop.permute.xlu0 %6723
      %6725 = vrot.lane.b32.xlu0 %v6331, 64
      %v6726 = vpop.permute.xlu0 %6725
      %6727 = vrot.lane.b32.xlu0 %v6332, 64
      %v6728 = vpop.permute.xlu0 %6727
      %6729 = vrot.lane.b32.xlu0 %v6333, 64
      %v6730 = vpop.permute.xlu0 %6729
      %6731 = vrot.lane.b32.xlu0 %v6334, 64
      %v6732 = vpop.permute.xlu0 %6731
      %6733 = vrot.lane.b32.xlu0 %v6335, 64
      %v6734 = vpop.permute.xlu0 %6733
      %6735 = vrot.lane.b32.xlu0 %v6336, 64
      %v6736 = vpop.permute.xlu0 %6735
      %6737 = vrot.lane.b32.xlu0 %v6337, 64
      %v6738 = vpop.permute.xlu0 %6737
      %6739 = vrot.lane.b32.xlu0 %v6338, 64
      %v6740 = vpop.permute.xlu0 %6739
      %6741 = vrot.lane.b32.xlu0 %v6339, 64
      %v6742 = vpop.permute.xlu0 %6741
      %6743 = vrot.lane.b32.xlu0 %v6340, 64
      %v6744 = vpop.permute.xlu0 %6743
      %6745 = vrot.lane.b32.xlu0 %v6341, 64
      %v6746 = vpop.permute.xlu0 %6745
      %6747 = vrot.lane.b32.xlu0 %v6342, 64
      %v6748 = vpop.permute.xlu0 %6747
      %6749 = vrot.lane.b32.xlu0 %v6343, 64
      %v6750 = vpop.permute.xlu0 %6749
      %6751 = vrot.lane.b32.xlu0 %v6344, 64
      %v6752 = vpop.permute.xlu0 %6751
      %6753 = vrot.lane.b32.xlu0 %v6345, 64
      %v6754 = vpop.permute.xlu0 %6753
      %6755 = vrot.lane.b32.xlu0 %v6346, 64
      %v6756 = vpop.permute.xlu0 %6755
      %6757 = vrot.lane.b32.xlu0 %v6347, 64
      %v6758 = vpop.permute.xlu0 %6757
      %6759 = vrot.lane.b32.xlu0 %v6348, 64
      %v6760 = vpop.permute.xlu0 %6759
      %6761 = vrot.lane.b32.xlu0 %v6349, 64
      %v6762 = vpop.permute.xlu0 %6761
      %6763 = vrot.lane.b32.xlu0 %v6350, 64
      %v6764 = vpop.permute.xlu0 %6763
      %6765 = vrot.lane.b32.xlu0 %v6351, 64
      %v6766 = vpop.permute.xlu0 %6765
      %6767 = vrot.lane.b32.xlu0 %v6352, 64
      %v6768 = vpop.permute.xlu0 %6767
      %6833 = vrot.lane.b32.xlu0 %v6353, 96
      %v6834 = vpop.permute.xlu0 %6833
      %6835 = vrot.lane.b32.xlu0 %v6354, 96
      %v6836 = vpop.permute.xlu0 %6835
      %6837 = vrot.lane.b32.xlu0 %v6355, 96
      %v6838 = vpop.permute.xlu0 %6837
      %6839 = vrot.lane.b32.xlu0 %v6356, 96
      %v6840 = vpop.permute.xlu0 %6839
      %6841 = vrot.lane.b32.xlu0 %v6357, 96
      %v6842 = vpop.permute.xlu0 %6841
      %6843 = vrot.lane.b32.xlu0 %v6358, 96
      %v6844 = vpop.permute.xlu0 %6843
      %6845 = vrot.lane.b32.xlu0 %v6359, 96
      %v6846 = vpop.permute.xlu0 %6845
      %6847 = vrot.lane.b32.xlu0 %v6360, 96
      %v6848 = vpop.permute.xlu0 %6847
      %6849 = vrot.lane.b32.xlu0 %v6361, 96
      %v6850 = vpop.permute.xlu0 %6849
      %6851 = vrot.lane.b32.xlu0 %v6362, 96
      %v6852 = vpop.permute.xlu0 %6851
      %6853 = vrot.lane.b32.xlu0 %v6363, 96
      %v6854 = vpop.permute.xlu0 %6853
      %6855 = vrot.lane.b32.xlu0 %v6364, 96
      %v6856 = vpop.permute.xlu0 %6855
      %6857 = vrot.lane.b32.xlu0 %v6365, 96
      %v6858 = vpop.permute.xlu0 %6857
      %6859 = vrot.lane.b32.xlu0 %v6366, 96
      %v6860 = vpop.permute.xlu0 %6859
      %6861 = vrot.lane.b32.xlu0 %v6367, 96
      %v6862 = vpop.permute.xlu0 %6861
      %6863 = vrot.lane.b32.xlu0 %v6368, 96
      %v6864 = vpop.permute.xlu0 %6863
      %6865 = vrot.lane.b32.xlu0 %v6369, 96
      %v6866 = vpop.permute.xlu0 %6865
      %6867 = vrot.lane.b32.xlu0 %v6370, 96
      %v6868 = vpop.permute.xlu0 %6867
      %6869 = vrot.lane.b32.xlu0 %v6371, 96
      %v6870 = vpop.permute.xlu0 %6869
      %6871 = vrot.lane.b32.xlu0 %v6372, 96
      %v6872 = vpop.permute.xlu0 %6871
      %6873 = vrot.lane.b32.xlu0 %v6373, 96
      %v6874 = vpop.permute.xlu0 %6873
      %6875 = vrot.lane.b32.xlu0 %v6374, 96
      %v6876 = vpop.permute.xlu0 %6875
      %6877 = vrot.lane.b32.xlu0 %v6375, 96
      %v6878 = vpop.permute.xlu0 %6877
      %6879 = vrot.lane.b32.xlu0 %v6376, 96
      %v6880 = vpop.permute.xlu0 %6879
      %6881 = vrot.lane.b32.xlu0 %v6377, 96
      %v6882 = vpop.permute.xlu0 %6881
      %6883 = vrot.lane.b32.xlu0 %v6378, 96
      %v6884 = vpop.permute.xlu0 %6883
      %6885 = vrot.lane.b32.xlu0 %v6379, 96
      %v6886 = vpop.permute.xlu0 %6885
      %6887 = vrot.lane.b32.xlu0 %v6380, 96
      %v6888 = vpop.permute.xlu0 %6887
      %6889 = vrot.lane.b32.xlu0 %v6381, 96
      %v6890 = vpop.permute.xlu0 %6889
      %6891 = vrot.lane.b32.xlu0 %v6382, 96
      %v6892 = vpop.permute.xlu0 %6891
      %6893 = vrot.lane.b32.xlu0 %v6383, 96
      %v6894 = vpop.permute.xlu0 %6893
      %6895 = vrot.lane.b32.xlu0 %v6384, 96
      %v6896 = vpop.permute.xlu0 %6895
      %6961 = vrot.lane.b32.xlu0 %v6417, 32
      %v6962 = vpop.permute.xlu0 %6961
      %6963 = vrot.lane.b32.xlu0 %v6418, 32
      %v6964 = vpop.permute.xlu0 %6963
      %6965 = vrot.lane.b32.xlu0 %v6419, 32
      %v6966 = vpop.permute.xlu0 %6965
      %6967 = vrot.lane.b32.xlu0 %v6420, 32
      %v6968 = vpop.permute.xlu0 %6967
      %6969 = vrot.lane.b32.xlu0 %v6421, 32
      %v6970 = vpop.permute.xlu0 %6969
      %6971 = vrot.lane.b32.xlu0 %v6422, 32
      %v6972 = vpop.permute.xlu0 %6971
      %6973 = vrot.lane.b32.xlu0 %v6423, 32
      %v6974 = vpop.permute.xlu0 %6973
      %6975 = vrot.lane.b32.xlu0 %v6424, 32
      %v6976 = vpop.permute.xlu0 %6975
      %6977 = vrot.lane.b32.xlu0 %v6425, 32
      %v6978 = vpop.permute.xlu0 %6977
      %6979 = vrot.lane.b32.xlu0 %v6426, 32
      %v6980 = vpop.permute.xlu0 %6979
      %6981 = vrot.lane.b32.xlu0 %v6427, 32
      %v6982 = vpop.permute.xlu0 %6981
      %6983 = vrot.lane.b32.xlu0 %v6428, 32
      %v6984 = vpop.permute.xlu0 %6983
      %6985 = vrot.lane.b32.xlu0 %v6429, 32
      %v6986 = vpop.permute.xlu0 %6985
      %6987 = vrot.lane.b32.xlu0 %v6430, 32
      %v6988 = vpop.permute.xlu0 %6987
      %6989 = vrot.lane.b32.xlu0 %v6431, 32
      %v6990 = vpop.permute.xlu0 %6989
      %6991 = vrot.lane.b32.xlu0 %v6432, 32
      %v6992 = vpop.permute.xlu0 %6991
      %6993 = vrot.lane.b32.xlu0 %v6433, 32
      %v6994 = vpop.permute.xlu0 %6993
      %6995 = vrot.lane.b32.xlu0 %v6434, 32
      %v6996 = vpop.permute.xlu0 %6995
      %6997 = vrot.lane.b32.xlu0 %v6435, 32
      %v6998 = vpop.permute.xlu0 %6997
      %6999 = vrot.lane.b32.xlu0 %v6436, 32
      %v7000 = vpop.permute.xlu0 %6999
      %7001 = vrot.lane.b32.xlu0 %v6437, 32
      %v7002 = vpop.permute.xlu0 %7001
      %7003 = vrot.lane.b32.xlu0 %v6438, 32
      %v7004 = vpop.permute.xlu0 %7003
      %7005 = vrot.lane.b32.xlu0 %v6439, 32
      %v7006 = vpop.permute.xlu0 %7005
      %7007 = vrot.lane.b32.xlu0 %v6440, 32
      %v7008 = vpop.permute.xlu0 %7007
      %7009 = vrot.lane.b32.xlu0 %v6441, 32
      %v7010 = vpop.permute.xlu0 %7009
      %7011 = vrot.lane.b32.xlu0 %v6442, 32
      %v7012 = vpop.permute.xlu0 %7011
      %7013 = vrot.lane.b32.xlu0 %v6443, 32
      %v7014 = vpop.permute.xlu0 %7013
      %7015 = vrot.lane.b32.xlu0 %v6444, 32
      %v7016 = vpop.permute.xlu0 %7015
      %7017 = vrot.lane.b32.xlu0 %v6445, 32
      %v7018 = vpop.permute.xlu0 %7017
      %7019 = vrot.lane.b32.xlu0 %v6446, 32
      %v7020 = vpop.permute.xlu0 %7019
      %7021 = vrot.lane.b32.xlu0 %v6447, 32
      %v7022 = vpop.permute.xlu0 %7021
      %7023 = vrot.lane.b32.xlu0 %v6448, 32
      %v7024 = vpop.permute.xlu0 %7023
      %7089 = vrot.lane.b32.xlu0 %v6449, 64
      %v7090 = vpop.permute.xlu0 %7089
      %7091 = vrot.lane.b32.xlu0 %v6450, 64
      %v7092 = vpop.permute.xlu0 %7091
      %7093 = vrot.lane.b32.xlu0 %v6451, 64
      %v7094 = vpop.permute.xlu0 %7093
      %7095 = vrot.lane.b32.xlu0 %v6452, 64
      %v7096 = vpop.permute.xlu0 %7095
      %7097 = vrot.lane.b32.xlu0 %v6453, 64
      %v7098 = vpop.permute.xlu0 %7097
      %7099 = vrot.lane.b32.xlu0 %v6454, 64
      %v7100 = vpop.permute.xlu0 %7099
      %7101 = vrot.lane.b32.xlu0 %v6455, 64
      %v7102 = vpop.permute.xlu0 %7101
      %7103 = vrot.lane.b32.xlu0 %v6456, 64
      %v7104 = vpop.permute.xlu0 %7103
      %7105 = vrot.lane.b32.xlu0 %v6457, 64
      %v7106 = vpop.permute.xlu0 %7105
      %7107 = vrot.lane.b32.xlu0 %v6458, 64
      %v7108 = vpop.permute.xlu0 %7107
      %7109 = vrot.lane.b32.xlu0 %v6459, 64
      %v7110 = vpop.permute.xlu0 %7109
      %7111 = vrot.lane.b32.xlu0 %v6460, 64
      %v7112 = vpop.permute.xlu0 %7111
      %7113 = vrot.lane.b32.xlu0 %v6461, 64
      %v7114 = vpop.permute.xlu0 %7113
      %7115 = vrot.lane.b32.xlu0 %v6462, 64
      %v7116 = vpop.permute.xlu0 %7115
      %7117 = vrot.lane.b32.xlu0 %v6463, 64
      %v7118 = vpop.permute.xlu0 %7117
      %7119 = vrot.lane.b32.xlu0 %v6464, 64
      %v7120 = vpop.permute.xlu0 %7119
      %7121 = vrot.lane.b32.xlu0 %v6465, 64
      %v7122 = vpop.permute.xlu0 %7121
      %7123 = vrot.lane.b32.xlu0 %v6466, 64
      %v7124 = vpop.permute.xlu0 %7123
      %7125 = vrot.lane.b32.xlu0 %v6467, 64
      %v7126 = vpop.permute.xlu0 %7125
      %7127 = vrot.lane.b32.xlu0 %v6468, 64
      %v7128 = vpop.permute.xlu0 %7127
      %7129 = vrot.lane.b32.xlu0 %v6469, 64
      %v7130 = vpop.permute.xlu0 %7129
      %7131 = vrot.lane.b32.xlu0 %v6470, 64
      %v7132 = vpop.permute.xlu0 %7131
      %7133 = vrot.lane.b32.xlu0 %v6471, 64
      %v7134 = vpop.permute.xlu0 %7133
      %7135 = vrot.lane.b32.xlu0 %v6472, 64
      %v7136 = vpop.permute.xlu0 %7135
      %7137 = vrot.lane.b32.xlu0 %v6473, 64
      %v7138 = vpop.permute.xlu0 %7137
      %7139 = vrot.lane.b32.xlu0 %v6474, 64
      %v7140 = vpop.permute.xlu0 %7139
      %7141 = vrot.lane.b32.xlu0 %v6475, 64
      %v7142 = vpop.permute.xlu0 %7141
      %7143 = vrot.lane.b32.xlu0 %v6476, 64
      %v7144 = vpop.permute.xlu0 %7143
      %7145 = vrot.lane.b32.xlu0 %v6477, 64
      %v7146 = vpop.permute.xlu0 %7145
      %7147 = vrot.lane.b32.xlu0 %v6478, 64
      %v7148 = vpop.permute.xlu0 %7147
      %7149 = vrot.lane.b32.xlu0 %v6479, 64
      %v7150 = vpop.permute.xlu0 %7149
      %7151 = vrot.lane.b32.xlu0 %v6480, 64
      %v7152 = vpop.permute.xlu0 %7151
      %7217 = vrot.lane.b32.xlu0 %v6481, 96
      %v7218 = vpop.permute.xlu0 %7217
      %7219 = vrot.lane.b32.xlu0 %v6482, 96
      %v7220 = vpop.permute.xlu0 %7219
      %7221 = vrot.lane.b32.xlu0 %v6483, 96
      %v7222 = vpop.permute.xlu0 %7221
      %7223 = vrot.lane.b32.xlu0 %v6484, 96
      %v7224 = vpop.permute.xlu0 %7223
      %7225 = vrot.lane.b32.xlu0 %v6485, 96
      %v7226 = vpop.permute.xlu0 %7225
      %7227 = vrot.lane.b32.xlu0 %v6486, 96
      %v7228 = vpop.permute.xlu0 %7227
      %7229 = vrot.lane.b32.xlu0 %v6487, 96
      %v7230 = vpop.permute.xlu0 %7229
      %7231 = vrot.lane.b32.xlu0 %v6488, 96
      %v7232 = vpop.permute.xlu0 %7231
      %7233 = vrot.lane.b32.xlu0 %v6489, 96
      %v7234 = vpop.permute.xlu0 %7233
      %7235 = vrot.lane.b32.xlu0 %v6490, 96
      %v7236 = vpop.permute.xlu0 %7235
      %7237 = vrot.lane.b32.xlu0 %v6491, 96
      %v7238 = vpop.permute.xlu0 %7237
      %7239 = vrot.lane.b32.xlu0 %v6492, 96
      %v7240 = vpop.permute.xlu0 %7239
      %7241 = vrot.lane.b32.xlu0 %v6493, 96
      %v7242 = vpop.permute.xlu0 %7241
      %7243 = vrot.lane.b32.xlu0 %v6494, 96
      %v7244 = vpop.permute.xlu0 %7243
      %7245 = vrot.lane.b32.xlu0 %v6495, 96
      %v7246 = vpop.permute.xlu0 %7245
      %7247 = vrot.lane.b32.xlu0 %v6496, 96
      %v7248 = vpop.permute.xlu0 %7247
      %7249 = vrot.lane.b32.xlu0 %v6497, 96
      %v7250 = vpop.permute.xlu0 %7249
      %7251 = vrot.lane.b32.xlu0 %v6498, 96
      %v7252 = vpop.permute.xlu0 %7251
      %7253 = vrot.lane.b32.xlu0 %v6499, 96
      %v7254 = vpop.permute.xlu0 %7253
      %7255 = vrot.lane.b32.xlu0 %v6500, 96
      %v7256 = vpop.permute.xlu0 %7255
      %7257 = vrot.lane.b32.xlu0 %v6501, 96
      %v7258 = vpop.permute.xlu0 %7257
      %7259 = vrot.lane.b32.xlu0 %v6502, 96
      %v7260 = vpop.permute.xlu0 %7259
      %7261 = vrot.lane.b32.xlu0 %v6503, 96
      %v7262 = vpop.permute.xlu0 %7261
      %7263 = vrot.lane.b32.xlu0 %v6504, 96
      %v7264 = vpop.permute.xlu0 %7263
      %7265 = vrot.lane.b32.xlu0 %v6505, 96
      %v7266 = vpop.permute.xlu0 %7265
      %7267 = vrot.lane.b32.xlu0 %v6506, 96
      %v7268 = vpop.permute.xlu0 %7267
      %7269 = vrot.lane.b32.xlu0 %v6507, 96
      %v7270 = vpop.permute.xlu0 %7269
      %7271 = vrot.lane.b32.xlu0 %v6508, 96
      %v7272 = vpop.permute.xlu0 %7271
      %7273 = vrot.lane.b32.xlu0 %v6509, 96
      %v7274 = vpop.permute.xlu0 %7273
      %7275 = vrot.lane.b32.xlu0 %v6510, 96
      %v7276 = vpop.permute.xlu0 %7275
      %7277 = vrot.lane.b32.xlu0 %v6511, 96
      %v7278 = vpop.permute.xlu0 %7277
      %7279 = vrot.lane.b32.xlu0 %v6512, 96
      %v7280 = vpop.permute.xlu0 %7279
      %v7313 = vsel %vm280, %v6257, %v6578
      %v7314 = vsel %vm280, %v6258, %v6580
      %v7315 = vsel %vm280, %v6259, %v6582
      %v7316 = vsel %vm280, %v6260, %v6584
      %v7317 = vsel %vm280, %v6261, %v6586
      %v7318 = vsel %vm280, %v6262, %v6588
      %v7319 = vsel %vm280, %v6263, %v6590
      %v7320 = vsel %vm280, %v6264, %v6592
      %v7321 = vsel %vm280, %v6265, %v6594
      %v7322 = vsel %vm280, %v6266, %v6596
      %v7323 = vsel %vm280, %v6267, %v6598
      %v7324 = vsel %vm280, %v6268, %v6600
      %v7325 = vsel %vm280, %v6269, %v6602
      %v7326 = vsel %vm280, %v6270, %v6604
      %v7327 = vsel %vm280, %v6271, %v6606
      %v7328 = vsel %vm280, %v6272, %v6608
      %v7329 = vsel %vm280, %v6273, %v6610
      %v7330 = vsel %vm280, %v6274, %v6612
      %v7331 = vsel %vm280, %v6275, %v6614
      %v7332 = vsel %vm280, %v6276, %v6616
      %v7333 = vsel %vm280, %v6277, %v6618
      %v7334 = vsel %vm280, %v6278, %v6620
      %v7335 = vsel %vm280, %v6279, %v6622
      %v7336 = vsel %vm280, %v6280, %v6624
      %v7337 = vsel %vm280, %v6281, %v6626
      %v7338 = vsel %vm280, %v6282, %v6628
      %v7339 = vsel %vm280, %v6283, %v6630
      %v7340 = vsel %vm280, %v6284, %v6632
      %v7341 = vsel %vm280, %v6285, %v6634
      %v7342 = vsel %vm280, %v6286, %v6636
      %v7343 = vsel %vm280, %v6287, %v6638
      %v7344 = vsel %vm280, %v6288, %v6640
      %v7345 = vsel %vm1490, %v7313, %v6706
      %v7346 = vsel %vm1490, %v7314, %v6708
      %v7347 = vsel %vm1490, %v7315, %v6710
      %v7348 = vsel %vm1490, %v7316, %v6712
      %v7349 = vsel %vm1490, %v7317, %v6714
      %v7350 = vsel %vm1490, %v7318, %v6716
      %v7351 = vsel %vm1490, %v7319, %v6718
      %v7352 = vsel %vm1490, %v7320, %v6720
      %v7353 = vsel %vm1490, %v7321, %v6722
      %v7354 = vsel %vm1490, %v7322, %v6724
      %v7355 = vsel %vm1490, %v7323, %v6726
      %v7356 = vsel %vm1490, %v7324, %v6728
      %v7357 = vsel %vm1490, %v7325, %v6730
      %v7358 = vsel %vm1490, %v7326, %v6732
      %v7359 = vsel %vm1490, %v7327, %v6734
      %v7360 = vsel %vm1490, %v7328, %v6736
      %v7361 = vsel %vm1490, %v7329, %v6738
      %v7362 = vsel %vm1490, %v7330, %v6740
      %v7363 = vsel %vm1490, %v7331, %v6742
      %v7364 = vsel %vm1490, %v7332, %v6744
      %v7365 = vsel %vm1490, %v7333, %v6746
      %v7366 = vsel %vm1490, %v7334, %v6748
      %v7367 = vsel %vm1490, %v7335, %v6750
      %v7368 = vsel %vm1490, %v7336, %v6752
      %v7369 = vsel %vm1490, %v7337, %v6754
      %v7370 = vsel %vm1490, %v7338, %v6756
      %v7371 = vsel %vm1490, %v7339, %v6758
      %v7372 = vsel %vm1490, %v7340, %v6760
      %v7373 = vsel %vm1490, %v7341, %v6762
      %v7374 = vsel %vm1490, %v7342, %v6764
      %v7375 = vsel %vm1490, %v7343, %v6766
      %v7376 = vsel %vm1490, %v7344, %v6768
      %v7377 = vsel %vm1523, %v7345, %v6834
      %v7378 = vsel %vm1523, %v7346, %v6836
      %v7379 = vsel %vm1523, %v7347, %v6838
      %v7380 = vsel %vm1523, %v7348, %v6840
      %v7381 = vsel %vm1523, %v7349, %v6842
      %v7382 = vsel %vm1523, %v7350, %v6844
      %v7383 = vsel %vm1523, %v7351, %v6846
      %v7384 = vsel %vm1523, %v7352, %v6848
      %v7385 = vsel %vm1523, %v7353, %v6850
      %v7386 = vsel %vm1523, %v7354, %v6852
      %v7387 = vsel %vm1523, %v7355, %v6854
      %v7388 = vsel %vm1523, %v7356, %v6856
      %v7389 = vsel %vm1523, %v7357, %v6858
      %v7390 = vsel %vm1523, %v7358, %v6860
      %v7391 = vsel %vm1523, %v7359, %v6862
      %v7392 = vsel %vm1523, %v7360, %v6864
      %v7393 = vsel %vm1523, %v7361, %v6866
      %v7394 = vsel %vm1523, %v7362, %v6868
      %v7395 = vsel %vm1523, %v7363, %v6870
      %v7396 = vsel %vm1523, %v7364, %v6872
      %v7397 = vsel %vm1523, %v7365, %v6874
      %v7398 = vsel %vm1523, %v7366, %v6876
      %v7399 = vsel %vm1523, %v7367, %v6878
      %v7400 = vsel %vm1523, %v7368, %v6880
      %v7401 = vsel %vm1523, %v7369, %v6882
      %v7402 = vsel %vm1523, %v7370, %v6884
      %v7403 = vsel %vm1523, %v7371, %v6886
      %v7404 = vsel %vm1523, %v7372, %v6888
      %v7405 = vsel %vm1523, %v7373, %v6890
      %v7406 = vsel %vm1523, %v7374, %v6892
      %v7407 = vsel %vm1523, %v7375, %v6894
      %v7408 = vsel %vm1523, %v7376, %v6896
      %v7409 = vsel %vm280, %v6385, %v6962
      %v7410 = vsel %vm280, %v6386, %v6964
      %v7411 = vsel %vm280, %v6387, %v6966
      %v7412 = vsel %vm280, %v6388, %v6968
      %v7413 = vsel %vm280, %v6389, %v6970
      %v7414 = vsel %vm280, %v6390, %v6972
      %v7415 = vsel %vm280, %v6391, %v6974
      %v7416 = vsel %vm280, %v6392, %v6976
      %v7417 = vsel %vm280, %v6393, %v6978
      %v7418 = vsel %vm280, %v6394, %v6980
      %v7419 = vsel %vm280, %v6395, %v6982
      %v7420 = vsel %vm280, %v6396, %v6984
      %v7421 = vsel %vm280, %v6397, %v6986
      %v7422 = vsel %vm280, %v6398, %v6988
      %v7423 = vsel %vm280, %v6399, %v6990
      %v7424 = vsel %vm280, %v6400, %v6992
      %v7425 = vsel %vm280, %v6401, %v6994
      %v7426 = vsel %vm280, %v6402, %v6996
      %v7427 = vsel %vm280, %v6403, %v6998
      %v7428 = vsel %vm280, %v6404, %v7000
      %v7429 = vsel %vm280, %v6405, %v7002
      %v7430 = vsel %vm280, %v6406, %v7004
      %v7431 = vsel %vm280, %v6407, %v7006
      %v7432 = vsel %vm280, %v6408, %v7008
      %v7433 = vsel %vm280, %v6409, %v7010
      %v7434 = vsel %vm280, %v6410, %v7012
      %v7435 = vsel %vm280, %v6411, %v7014
      %v7436 = vsel %vm280, %v6412, %v7016
      %v7437 = vsel %vm280, %v6413, %v7018
      %v7438 = vsel %vm280, %v6414, %v7020
      %v7439 = vsel %vm280, %v6415, %v7022
      %v7440 = vsel %vm280, %v6416, %v7024
      %v7441 = vsel %vm1490, %v7409, %v7090
      %v7442 = vsel %vm1490, %v7410, %v7092
      %v7443 = vsel %vm1490, %v7411, %v7094
      %v7444 = vsel %vm1490, %v7412, %v7096
      %v7445 = vsel %vm1490, %v7413, %v7098
      %v7446 = vsel %vm1490, %v7414, %v7100
      %v7447 = vsel %vm1490, %v7415, %v7102
      %v7448 = vsel %vm1490, %v7416, %v7104
      %v7449 = vsel %vm1490, %v7417, %v7106
      %v7450 = vsel %vm1490, %v7418, %v7108
      %v7451 = vsel %vm1490, %v7419, %v7110
      %v7452 = vsel %vm1490, %v7420, %v7112
      %v7453 = vsel %vm1490, %v7421, %v7114
      %v7454 = vsel %vm1490, %v7422, %v7116
      %v7455 = vsel %vm1490, %v7423, %v7118
      %v7456 = vsel %vm1490, %v7424, %v7120
      %v7457 = vsel %vm1490, %v7425, %v7122
      %v7458 = vsel %vm1490, %v7426, %v7124
      %v7459 = vsel %vm1490, %v7427, %v7126
      %v7460 = vsel %vm1490, %v7428, %v7128
      %v7461 = vsel %vm1490, %v7429, %v7130
      %v7462 = vsel %vm1490, %v7430, %v7132
      %v7463 = vsel %vm1490, %v7431, %v7134
      %v7464 = vsel %vm1490, %v7432, %v7136
      %v7465 = vsel %vm1490, %v7433, %v7138
      %v7466 = vsel %vm1490, %v7434, %v7140
      %v7467 = vsel %vm1490, %v7435, %v7142
      %v7468 = vsel %vm1490, %v7436, %v7144
      %v7469 = vsel %vm1490, %v7437, %v7146
      %v7470 = vsel %vm1490, %v7438, %v7148
      %v7471 = vsel %vm1490, %v7439, %v7150
      %v7472 = vsel %vm1490, %v7440, %v7152
      %v7473 = vsel %vm1523, %v7441, %v7218
      %v7474 = vsel %vm1523, %v7442, %v7220
      %v7475 = vsel %vm1523, %v7443, %v7222
      %v7476 = vsel %vm1523, %v7444, %v7224
      %v7477 = vsel %vm1523, %v7445, %v7226
      %v7478 = vsel %vm1523, %v7446, %v7228
      %v7479 = vsel %vm1523, %v7447, %v7230
      %v7480 = vsel %vm1523, %v7448, %v7232
      %v7481 = vsel %vm1523, %v7449, %v7234
      %v7482 = vsel %vm1523, %v7450, %v7236
      %v7483 = vsel %vm1523, %v7451, %v7238
      %v7484 = vsel %vm1523, %v7452, %v7240
      %v7485 = vsel %vm1523, %v7453, %v7242
      %v7486 = vsel %vm1523, %v7454, %v7244
      %v7487 = vsel %vm1523, %v7455, %v7246
      %v7488 = vsel %vm1523, %v7456, %v7248
      %v7489 = vsel %vm1523, %v7457, %v7250
      %v7490 = vsel %vm1523, %v7458, %v7252
      %v7491 = vsel %vm1523, %v7459, %v7254
      %v7492 = vsel %vm1523, %v7460, %v7256
      %v7493 = vsel %vm1523, %v7461, %v7258
      %v7494 = vsel %vm1523, %v7462, %v7260
      %v7495 = vsel %vm1523, %v7463, %v7262
      %v7496 = vsel %vm1523, %v7464, %v7264
      %v7497 = vsel %vm1523, %v7465, %v7266
      %v7498 = vsel %vm1523, %v7466, %v7268
      %v7499 = vsel %vm1523, %v7467, %v7270
      %v7500 = vsel %vm1523, %v7468, %v7272
      %v7501 = vsel %vm1523, %v7469, %v7274
      %v7502 = vsel %vm1523, %v7470, %v7276
      %v7503 = vsel %vm1523, %v7471, %v7278
      %v7504 = vsel %vm1523, %v7472, %v7280
      %v7505 = vpack.c.bf16 %v7378, %v7377
      %v7506 = vpack.c.bf16 %v7474, %v7473
      %v7507 = vpack.c.bf16 %v6514, %v6513
      %v7508 = vpack.c.bf16 %v7380, %v7379
      %v7509 = vpack.c.bf16 %v7476, %v7475
      %v7510 = vpack.c.bf16 %v6516, %v6515
      %v7511 = vpack.c.bf16 %v7382, %v7381
      %v7512 = vpack.c.bf16 %v7478, %v7477
      %v7513 = vpack.c.bf16 %v6518, %v6517
      %v7514 = vpack.c.bf16 %v7384, %v7383
      %v7515 = vpack.c.bf16 %v7480, %v7479
      %v7516 = vpack.c.bf16 %v6520, %v6519
      %v7517 = vpack.c.bf16 %v7386, %v7385
      %v7518 = vpack.c.bf16 %v7482, %v7481
      %v7519 = vpack.c.bf16 %v6522, %v6521
      %v7520 = vpack.c.bf16 %v7388, %v7387
      %v7521 = vpack.c.bf16 %v7484, %v7483
      %v7522 = vpack.c.bf16 %v6524, %v6523
      %v7523 = vpack.c.bf16 %v7390, %v7389
      %v7524 = vpack.c.bf16 %v7486, %v7485
      %v7525 = vpack.c.bf16 %v6526, %v6525
      %v7526 = vpack.c.bf16 %v7392, %v7391
      %v7527 = vpack.c.bf16 %v7488, %v7487
      %v7528 = vpack.c.bf16 %v6528, %v6527
      %v7529 = vpack.c.bf16 %v7394, %v7393
      %v7530 = vpack.c.bf16 %v7490, %v7489
      %v7531 = vpack.c.bf16 %v6530, %v6529
      %v7532 = vpack.c.bf16 %v7396, %v7395
      %v7533 = vpack.c.bf16 %v7492, %v7491
      %v7534 = vpack.c.bf16 %v6532, %v6531
      %v7535 = vpack.c.bf16 %v7398, %v7397
      %v7536 = vpack.c.bf16 %v7494, %v7493
      %v7537 = vpack.c.bf16 %v6534, %v6533
      %v7538 = vpack.c.bf16 %v7400, %v7399
      %v7539 = vpack.c.bf16 %v7496, %v7495
      %v7540 = vpack.c.bf16 %v6536, %v6535
      %v7541 = vpack.c.bf16 %v7402, %v7401
      %v7542 = vpack.c.bf16 %v7498, %v7497
      %v7543 = vpack.c.bf16 %v6538, %v6537
      %v7544 = vpack.c.bf16 %v7404, %v7403
      %v7545 = vpack.c.bf16 %v7500, %v7499
      %v7546 = vpack.c.bf16 %v6540, %v6539
      %v7547 = vpack.c.bf16 %v7406, %v7405
      %v7548 = vpack.c.bf16 %v7502, %v7501
      %v7549 = vpack.c.bf16 %v6542, %v6541
      %v7550 = vpack.c.bf16 %v7408, %v7407
      %v7551 = vpack.c.bf16 %v7504, %v7503
      %v7552 = vpack.c.bf16 %v6544, %v6543
      %v7553 = vld [vmem:[%s4] sm:$0xf]
      %v7554 = vld [vmem:[%s4 + $0x4] sm:$0xf]
      %v7555 = vld [vmem:[%s4 + $0x8] sm:$0xf]
      %v7556 = vld [vmem:[%s4 + $0xc] sm:$0xf]
      %v7557 = vld [vmem:[%s4 + $0x10] sm:$0xf]
      %v7558 = vld [vmem:[%s4 + $0x14] sm:$0xf]
      %v7559 = vld [vmem:[%s4 + $0x18] sm:$0xf]
      %v7560 = vld [vmem:[%s4 + $0x1c] sm:$0xf]
      %v7561 = vld [vmem:[%s4 + $0x20] sm:$0xf]
      %v7562 = vld [vmem:[%s4 + $0x24] sm:$0xf]
      %v7563 = vld [vmem:[%s4 + $0x28] sm:$0xf]
      %v7564 = vld [vmem:[%s4 + $0x2c] sm:$0xf]
      %v7565 = vld [vmem:[%s4 + $0x30] sm:$0xf]
      %v7566 = vld [vmem:[%s4 + $0x34] sm:$0xf]
      %v7567 = vld [vmem:[%s4 + $0x38] sm:$0xf]
      %v7568 = vld [vmem:[%s4 + $0x3c] sm:$0xf]
      %v7569 = vld [vmem:[%s4 + $0x40] sm:$0xf]
      %v7570 = vld [vmem:[%s4 + $0x44] sm:$0xf]
      %v7571 = vld [vmem:[%s4 + $0x48] sm:$0xf]
      %v7572 = vld [vmem:[%s4 + $0x4c] sm:$0xf]
      %v7573 = vld [vmem:[%s4 + $0x50] sm:$0xf]
      %v7574 = vld [vmem:[%s4 + $0x54] sm:$0xf]
      %v7575 = vld [vmem:[%s4 + $0x58] sm:$0xf]
      %v7576 = vld [vmem:[%s4 + $0x5c] sm:$0xf]
      %v7577 = vld [vmem:[%s4 + $0x60] sm:$0xf]
      %v7578 = vld [vmem:[%s4 + $0x64] sm:$0xf]
      %v7579 = vld [vmem:[%s4 + $0x68] sm:$0xf]
      %v7580 = vld [vmem:[%s4 + $0x6c] sm:$0xf]
      %v7581 = vld [vmem:[%s4 + $0x70] sm:$0xf]
      %v7582 = vld [vmem:[%s4 + $0x74] sm:$0xf]
      %v7583 = vld [vmem:[%s4 + $0x78] sm:$0xf]
      %v7584 = vld [vmem:[%s4 + $0x7c] sm:$0xf]
      %v7585 = vld [vmem:[%s4 + $0x80] sm:$0xf]
      %v7586 = vld [vmem:[%s4 + $0x84] sm:$0xf]
      %v7587 = vld [vmem:[%s4 + $0x88] sm:$0xf]
      %v7588 = vld [vmem:[%s4 + $0x8c] sm:$0xf]
      %v7625 = vunpack.c.l.b16 %v7553
      %v7626 = vunpack.c.l.b16 %v7554
      %v7627 = vunpack.c.l.b16 %v7555
      %v7628 = vunpack.c.l.b16 %v7556
      %v7629 = vunpack.c.l.b16 %v7557
      %v7630 = vunpack.c.l.b16 %v7558
      %v7631 = vunpack.c.l.b16 %v7559
      %v7632 = vunpack.c.l.b16 %v7560
      %v7633 = vunpack.c.l.b16 %v7561
      %v7634 = vunpack.c.l.b16 %v7562
      %v7635 = vunpack.c.l.b16 %v7563
      %v7636 = vunpack.c.l.b16 %v7564
      %v7637 = vunpack.c.l.b16 %v7565
      %v7638 = vunpack.c.l.b16 %v7566
      %v7639 = vunpack.c.l.b16 %v7567
      %v7640 = vunpack.c.l.b16 %v7568
      %v7641 = vunpack.c.l.b16 %v7569
      %v7642 = vunpack.c.l.b16 %v7570
      %v7643 = vunpack.c.l.b16 %v7571
      %v7644 = vunpack.c.l.b16 %v7572
      %v7645 = vunpack.c.l.b16 %v7573
      %v7646 = vunpack.c.l.b16 %v7574
      %v7647 = vunpack.c.l.b16 %v7575
      %v7648 = vunpack.c.l.b16 %v7576
      %v7649 = vunpack.c.l.b16 %v7577
      %v7650 = vunpack.c.l.b16 %v7578
      %v7651 = vunpack.c.l.b16 %v7579
      %v7652 = vunpack.c.l.b16 %v7580
      %v7653 = vunpack.c.l.b16 %v7581
      %v7654 = vunpack.c.l.b16 %v7582
      %v7655 = vunpack.c.l.b16 %v7583
      %v7656 = vunpack.c.l.b16 %v7584
      %v7657 = vunpack.c.l.b16 %v7585
      %v7658 = vunpack.c.l.b16 %v7586
      %v7659 = vunpack.c.l.b16 %v7587
      %v7660 = vunpack.c.l.b16 %v7588
      %v7661 = vpack.c.b16 %v7626, %v7625
      %v7662 = vpack.c.b16 %v7628, %v7627
      %v7663 = vpack.c.b16 %v7630, %v7629
      %v7664 = vpack.c.b16 %v7632, %v7631
      %v7665 = vpack.c.b16 %v7634, %v7633
      %v7666 = vpack.c.b16 %v7636, %v7635
      %v7667 = vpack.c.b16 %v7638, %v7637
      %v7668 = vpack.c.b16 %v7640, %v7639
      %v7669 = vpack.c.b16 %v7642, %v7641
      %v7670 = vpack.c.b16 %v7644, %v7643
      %v7671 = vpack.c.b16 %v7646, %v7645
      %v7672 = vpack.c.b16 %v7648, %v7647
      %v7673 = vpack.c.b16 %v7650, %v7649
      %v7674 = vpack.c.b16 %v7652, %v7651
      %v7675 = vpack.c.b16 %v7654, %v7653
      %v7676 = vpack.c.b16 %v7656, %v7655
      %v7677 = vpack.c.b16 %v7658, %v7657
      %v7678 = vpack.c.b16 %v7660, %v7659
      %v7698 = vsel %vm280, %v7507, 0
      %v7701 = vsel %vm280, %v7510, 0
      %v7704 = vsel %vm280, %v7513, 0
      %v7707 = vsel %vm280, %v7516, 0
      %v7710 = vsel %vm280, %v7519, 0
      %v7713 = vsel %vm280, %v7522, 0
      %v7716 = vsel %vm280, %v7525, 0
      %v7719 = vsel %vm280, %v7528, 0
      %v7722 = vsel %vm280, %v7531, 0
      %v7725 = vsel %vm280, %v7534, 0
      %v7728 = vsel %vm280, %v7537, 0
      %v7731 = vsel %vm280, %v7540, 0
      %v7734 = vsel %vm280, %v7543, 0
      %v7737 = vsel %vm280, %v7546, 0
      %v7740 = vsel %vm280, %v7549, 0
      %v7743 = vsel %vm280, %v7552, 0
      %7745 = vmatprep.subr.bf16.mxu0 0
      %7746 = vmatpush1.bf16.msra.mxu0 %v7661
      %7747 = vmatprep.subr.bf16.mxu0 0
      %7748 = vmatpush1.bf16.msra.mxu0 %v7662
      %7749 = vmatprep.subr.bf16.mxu0 0
      %7750 = vmatpush1.bf16.msra.mxu0 %v7663
      %7751 = vmatprep.subr.bf16.mxu0 0
      %7752 = vmatpush1.bf16.msra.mxu0 %v7664
      %7753 = vmatprep.subr.bf16.mxu0 0
      %7754 = vmatpush1.bf16.msra.mxu0 %v7665
      %7755 = vmatprep.subr.bf16.mxu0 0
      %7756 = vmatpush1.bf16.msra.mxu0 %v7666
      %7757 = vmatprep.subr.bf16.mxu0 0
      %7758 = vmatpush1.bf16.msra.mxu0 %v7667
      %7759 = vmatprep.subr.bf16.mxu0 0
      %7760 = vmatpush1.bf16.msra.mxu0 %v7668
      %7761 = vmatprep.subr.bf16.mxu0 0
      %7762 = vmatpush1.bf16.msra.mxu0 %v7669
      %7763 = vmatprep.subr.bf16.mxu0 0
      %7764 = vmatpush1.bf16.msra.mxu0 %v7670
      %7765 = vmatprep.subr.bf16.mxu0 0
      %7766 = vmatpush1.bf16.msra.mxu0 %v7671
      %7767 = vmatprep.subr.bf16.mxu0 0
      %7768 = vmatpush1.bf16.msra.mxu0 %v7672
      %7769 = vmatprep.subr.bf16.mxu0 0
      %7770 = vmatpush1.bf16.msra.mxu0 %v7673
      %7771 = vmatprep.subr.bf16.mxu0 0
      %7772 = vmatpush1.bf16.msra.mxu0 %v7674
      %7773 = vmatprep.subr.bf16.mxu0 0
      %7774 = vmatpush1.bf16.msra.mxu0 %v7675
      %7775 = vmatprep.subr.bf16.mxu0 0
      %7776 = vmatpush1.bf16.msra.mxu0 %v7676
      %7777 = vmatprep.mubr.bf16.mxu0 %v7506
      %7778 = vmatmul.mubr.bf16.gmra.mrb[0].mxu0 %v7505
      %v7779 = vpop.f32.mrb[0].mxu0
      %v7780 = vadd.f32 0.0, %v7779
      %v7781 = vpop.f32.mrb[0].mxu0
      %v7782 = vpop.f32.mrb[0].mxu0
      %v7783 = vadd.f32 0.0, %v7782
      %v7784 = vpop.f32.mrb[0].mxu0
      %7785 = vmatprep.mubr.bf16.mxu0 %v7509
      %7786 = vmatmul.mubr.bf16.gmra.mrb[0].mxu0 %v7508
      %v7787 = vpop.f32.mrb[0].mxu0
      %v7788 = vadd.f32 0.0, %v7787
      %v7789 = vpop.f32.mrb[0].mxu0
      %v7790 = vpop.f32.mrb[0].mxu0
      %v7791 = vadd.f32 0.0, %v7790
      %v7792 = vpop.f32.mrb[0].mxu0
      %7793 = vmatprep.mubr.bf16.mxu0 %v7512
      %7794 = vmatmul.mubr.bf16.gmra.mrb[0].mxu0 %v7511
      %v7795 = vpop.f32.mrb[0].mxu0
      %v7796 = vadd.f32 0.0, %v7795
      %v7797 = vpop.f32.mrb[0].mxu0
      %v7798 = vpop.f32.mrb[0].mxu0
      %v7799 = vadd.f32 0.0, %v7798
      %v7800 = vpop.f32.mrb[0].mxu0
      %7801 = vmatprep.mubr.bf16.mxu0 %v7515
      %7802 = vmatmul.mubr.bf16.gmra.mrb[0].mxu0 %v7514
      %v7803 = vpop.f32.mrb[0].mxu0
      %v7804 = vadd.f32 0.0, %v7803
      %v7805 = vpop.f32.mrb[0].mxu0
      %v7806 = vpop.f32.mrb[0].mxu0
      %v7807 = vadd.f32 0.0, %v7806
      %v7808 = vpop.f32.mrb[0].mxu0
      %7809 = vmatprep.mubr.bf16.mxu0 %v7518
      %7810 = vmatmul.mubr.bf16.gmra.mrb[0].mxu0 %v7517
      %v7811 = vpop.f32.mrb[0].mxu0
      %v7812 = vadd.f32 0.0, %v7811
      %v7813 = vpop.f32.mrb[0].mxu0
      %v7814 = vpop.f32.mrb[0].mxu0
      %v7815 = vadd.f32 0.0, %v7814
      %v7816 = vpop.f32.mrb[0].mxu0
      %7817 = vmatprep.mubr.bf16.mxu0 %v7521
      %7818 = vmatmul.mubr.bf16.gmra.mrb[0].mxu0 %v7520
      %v7819 = vpop.f32.mrb[0].mxu0
      %v7820 = vadd.f32 0.0, %v7819
      %v7821 = vpop.f32.mrb[0].mxu0
      %v7822 = vpop.f32.mrb[0].mxu0
      %v7823 = vadd.f32 0.0, %v7822
      %v7824 = vpop.f32.mrb[0].mxu0
      %7825 = vmatprep.mubr.bf16.mxu0 %v7524
      %7826 = vmatmul.mubr.bf16.gmra.mrb[0].mxu0 %v7523
      %v7827 = vpop.f32.mrb[0].mxu0
      %v7828 = vadd.f32 0.0, %v7827
      %v7829 = vpop.f32.mrb[0].mxu0
      %v7830 = vpop.f32.mrb[0].mxu0
      %v7831 = vadd.f32 0.0, %v7830
      %v7832 = vpop.f32.mrb[0].mxu0
      %7833 = vmatprep.mubr.bf16.mxu0 %v7527
      %7834 = vmatmul.mubr.bf16.gmra.mrb[0].mxu0 %v7526
      %v7835 = vpop.f32.mrb[0].mxu0
      %v7836 = vadd.f32 0.0, %v7835
      %v7837 = vpop.f32.mrb[0].mxu0
      %v7838 = vpop.f32.mrb[0].mxu0
      %v7839 = vadd.f32 0.0, %v7838
      %v7840 = vpop.f32.mrb[0].mxu0
      %7841 = vmatprep.mubr.bf16.mxu0 %v7530
      %7842 = vmatmul.mubr.bf16.gmra.mrb[0].mxu0 %v7529
      %v7843 = vpop.f32.mrb[0].mxu0
      %v7844 = vadd.f32 0.0, %v7843
      %v7845 = vpop.f32.mrb[0].mxu0
      %v7846 = vpop.f32.mrb[0].mxu0
      %v7847 = vadd.f32 0.0, %v7846
      %v7848 = vpop.f32.mrb[0].mxu0
      %7849 = vmatprep.mubr.bf16.mxu0 %v7533
      %7850 = vmatmul.mubr.bf16.gmra.mrb[0].mxu0 %v7532
      %v7851 = vpop.f32.mrb[0].mxu0
      %v7852 = vadd.f32 0.0, %v7851
      %v7853 = vpop.f32.mrb[0].mxu0
      %v7854 = vpop.f32.mrb[0].mxu0
      %v7855 = vadd.f32 0.0, %v7854
      %v7856 = vpop.f32.mrb[0].mxu0
      %7857 = vmatprep.mubr.bf16.mxu0 %v7536
      %7858 = vmatmul.mubr.bf16.gmra.mrb[0].mxu0 %v7535
      %v7859 = vpop.f32.mrb[0].mxu0
      %v7860 = vadd.f32 0.0, %v7859
      %v7861 = vpop.f32.mrb[0].mxu0
      %v7862 = vpop.f32.mrb[0].mxu0
      %v7863 = vadd.f32 0.0, %v7862
      %v7864 = vpop.f32.mrb[0].mxu0
      %7865 = vmatprep.mubr.bf16.mxu0 %v7539
      %7866 = vmatmul.mubr.bf16.gmra.mrb[0].mxu0 %v7538
      %v7867 = vpop.f32.mrb[0].mxu0
      %v7868 = vadd.f32 0.0, %v7867
      %v7869 = vpop.f32.mrb[0].mxu0
      %v7870 = vpop.f32.mrb[0].mxu0
      %v7871 = vadd.f32 0.0, %v7870
      %v7872 = vpop.f32.mrb[0].mxu0
      %7873 = vmatprep.mubr.bf16.mxu0 %v7542
      %7874 = vmatmul.mubr.bf16.gmra.mrb[0].mxu0 %v7541
      %v7875 = vpop.f32.mrb[0].mxu0
      %v7876 = vadd.f32 0.0, %v7875
      %v7877 = vpop.f32.mrb[0].mxu0
      %v7878 = vpop.f32.mrb[0].mxu0
      %v7879 = vadd.f32 0.0, %v7878
      %v7880 = vpop.f32.mrb[0].mxu0
      %7881 = vmatprep.mubr.bf16.mxu0 %v7545
      %7882 = vmatmul.mubr.bf16.gmra.mrb[0].mxu0 %v7544
      %v7883 = vpop.f32.mrb[0].mxu0
      %v7884 = vadd.f32 0.0, %v7883
      %v7885 = vpop.f32.mrb[0].mxu0
      %v7886 = vpop.f32.mrb[0].mxu0
      %v7887 = vadd.f32 0.0, %v7886
      %v7888 = vpop.f32.mrb[0].mxu0
      %7889 = vmatprep.mubr.bf16.mxu0 %v7548
      %7890 = vmatmul.mubr.bf16.gmra.mrb[0].mxu0 %v7547
      %v7891 = vpop.f32.mrb[0].mxu0
      %v7892 = vadd.f32 0.0, %v7891
      %v7893 = vpop.f32.mrb[0].mxu0
      %v7894 = vpop.f32.mrb[0].mxu0
      %v7895 = vadd.f32 0.0, %v7894
      %v7896 = vpop.f32.mrb[0].mxu0
      %7897 = vmatprep.mubr.bf16.mxu0 %v7551
      %7898 = vmatmul.mubr.bf16.gmra.mrb[0].mxu0 %v7550
      %v7899 = vpop.f32.mrb[0].mxu0
      %v7900 = vadd.f32 0.0, %v7899
      %v7901 = vpop.f32.mrb[0].mxu0
      %v7902 = vpop.f32.mrb[0].mxu0
      %v7903 = vadd.f32 0.0, %v7902
      %v7904 = vpop.f32.mrb[0].mxu0
      %7905 = vdwg.mxu0
      %7906 = vmatprep.subr.bf16.mxu0 0
      %7907 = vmatpush1.bf16.msra.mxu0 %v7677
      %7908 = vmatprep.subr.bf16.mxu0 0
      %7909 = vmatpush1.bf16.msra.mxu0 %v7678
      %7910 = vmatprep.subr.bf16.mxu0 0
      %7911 = vmatpush1.bf16.msra.mxu0 0
      %7912 = vmatprep.subr.bf16.mxu0 0
      %7913 = vmatpush1.bf16.msra.mxu0 0
      %7914 = vmatprep.subr.bf16.mxu0 0
      %7915 = vmatpush1.bf16.msra.mxu0 0
      %7916 = vmatprep.subr.bf16.mxu0 0
      %7917 = vmatpush1.bf16.msra.mxu0 0
      %7918 = vmatprep.subr.bf16.mxu0 0
      %7919 = vmatpush1.bf16.msra.mxu0 0
      %7920 = vmatprep.subr.bf16.mxu0 0
      %7921 = vmatpush1.bf16.msra.mxu0 0
      %7922 = vmatprep.subr.bf16.mxu0 0
      %7923 = vmatpush1.bf16.msra.mxu0 0
      %7924 = vmatprep.subr.bf16.mxu0 0
      %7925 = vmatpush1.bf16.msra.mxu0 0
      %7926 = vmatprep.subr.bf16.mxu0 0
      %7927 = vmatpush1.bf16.msra.mxu0 0
      %7928 = vmatprep.subr.bf16.mxu0 0
      %7929 = vmatpush1.bf16.msra.mxu0 0
      %7930 = vmatprep.subr.bf16.mxu0 0
      %7931 = vmatpush1.bf16.msra.mxu0 0
      %7932 = vmatprep.subr.bf16.mxu0 0
      %7933 = vmatpush1.bf16.msra.mxu0 0
      %7934 = vmatprep.subr.bf16.mxu0 0
      %7935 = vmatpush1.bf16.msra.mxu0 0
      %7936 = vmatprep.subr.bf16.mxu0 0
      %7937 = vmatpush1.bf16.msra.mxu0 0
      %7938 = vmatprep.mubr.bf16.mxu0 0
      %7939 = vmatmul.mubr.bf16.gmra.mrb[0].mxu0 %v7698
      %v7940 = vpop.f32.mrb[0].mxu0
      %v7941 = vadd.f32 %v7780, %v7940
      %v7942 = vpop.f32.mrb[0].mxu0
      %v7943 = vpop.f32.mrb[0].mxu0
      %v7944 = vadd.f32 %v7783, %v7943
      %v7945 = vpop.f32.mrb[0].mxu0
      %7946 = vmatprep.mubr.bf16.mxu0 0
      %7947 = vmatmul.mubr.bf16.gmra.mrb[0].mxu0 %v7701
      %v7948 = vpop.f32.mrb[0].mxu0
      %v7949 = vadd.f32 %v7788, %v7948
      %v7950 = vpop.f32.mrb[0].mxu0
      %v7951 = vpop.f32.mrb[0].mxu0
      %v7952 = vadd.f32 %v7791, %v7951
      %v7953 = vpop.f32.mrb[0].mxu0
      %7954 = vmatprep.mubr.bf16.mxu0 0
      %7955 = vmatmul.mubr.bf16.gmra.mrb[0].mxu0 %v7704
      %v7956 = vpop.f32.mrb[0].mxu0
      %v7957 = vadd.f32 %v7796, %v7956
      %v7958 = vpop.f32.mrb[0].mxu0
      %v7959 = vpop.f32.mrb[0].mxu0
      %v7960 = vadd.f32 %v7799, %v7959
      %v7961 = vpop.f32.mrb[0].mxu0
      %7962 = vmatprep.mubr.bf16.mxu0 0
      %7963 = vmatmul.mubr.bf16.gmra.mrb[0].mxu0 %v7707
      %v7964 = vpop.f32.mrb[0].mxu0
      %v7965 = vadd.f32 %v7804, %v7964
      %v7966 = vpop.f32.mrb[0].mxu0
      %v7967 = vpop.f32.mrb[0].mxu0
      %v7968 = vadd.f32 %v7807, %v7967
      %v7969 = vpop.f32.mrb[0].mxu0
      %7970 = vmatprep.mubr.bf16.mxu0 0
      %7971 = vmatmul.mubr.bf16.gmra.mrb[0].mxu0 %v7710
      %v7972 = vpop.f32.mrb[0].mxu0
      %v7973 = vadd.f32 %v7812, %v7972
      %v7974 = vpop.f32.mrb[0].mxu0
      %v7975 = vpop.f32.mrb[0].mxu0
      %v7976 = vadd.f32 %v7815, %v7975
      %v7977 = vpop.f32.mrb[0].mxu0
      %7978 = vmatprep.mubr.bf16.mxu0 0
      %7979 = vmatmul.mubr.bf16.gmra.mrb[0].mxu0 %v7713
      %v7980 = vpop.f32.mrb[0].mxu0
      %v7981 = vadd.f32 %v7820, %v7980
      %v7982 = vpop.f32.mrb[0].mxu0
      %v7983 = vpop.f32.mrb[0].mxu0
      %v7984 = vadd.f32 %v7823, %v7983
      %v7985 = vpop.f32.mrb[0].mxu0
      %7986 = vmatprep.mubr.bf16.mxu0 0
      %7987 = vmatmul.mubr.bf16.gmra.mrb[0].mxu0 %v7716
      %v7988 = vpop.f32.mrb[0].mxu0
      %v7989 = vadd.f32 %v7828, %v7988
      %v7990 = vpop.f32.mrb[0].mxu0
      %v7991 = vpop.f32.mrb[0].mxu0
      %v7992 = vadd.f32 %v7831, %v7991
      %v7993 = vpop.f32.mrb[0].mxu0
      %7994 = vmatprep.mubr.bf16.mxu0 0
      %7995 = vmatmul.mubr.bf16.gmra.mrb[0].mxu0 %v7719
      %v7996 = vpop.f32.mrb[0].mxu0
      %v7997 = vadd.f32 %v7836, %v7996
      %v7998 = vpop.f32.mrb[0].mxu0
      %v7999 = vpop.f32.mrb[0].mxu0
      %v8000 = vadd.f32 %v7839, %v7999
      %v8001 = vpop.f32.mrb[0].mxu0
      %8002 = vmatprep.mubr.bf16.mxu0 0
      %8003 = vmatmul.mubr.bf16.gmra.mrb[0].mxu0 %v7722
      %v8004 = vpop.f32.mrb[0].mxu0
      %v8005 = vadd.f32 %v7844, %v8004
      %v8006 = vpop.f32.mrb[0].mxu0
      %v8007 = vpop.f32.mrb[0].mxu0
      %v8008 = vadd.f32 %v7847, %v8007
      %v8009 = vpop.f32.mrb[0].mxu0
      %8010 = vmatprep.mubr.bf16.mxu0 0
      %8011 = vmatmul.mubr.bf16.gmra.mrb[0].mxu0 %v7725
      %v8012 = vpop.f32.mrb[0].mxu0
      %v8013 = vadd.f32 %v7852, %v8012
      %v8014 = vpop.f32.mrb[0].mxu0
      %v8015 = vpop.f32.mrb[0].mxu0
      %v8016 = vadd.f32 %v7855, %v8015
      %v8017 = vpop.f32.mrb[0].mxu0
      %8018 = vmatprep.mubr.bf16.mxu0 0
      %8019 = vmatmul.mubr.bf16.gmra.mrb[0].mxu0 %v7728
      %v8020 = vpop.f32.mrb[0].mxu0
      %v8021 = vadd.f32 %v7860, %v8020
      %v8022 = vpop.f32.mrb[0].mxu0
      %v8023 = vpop.f32.mrb[0].mxu0
      %v8024 = vadd.f32 %v7863, %v8023
      %v8025 = vpop.f32.mrb[0].mxu0
      %8026 = vmatprep.mubr.bf16.mxu0 0
      %8027 = vmatmul.mubr.bf16.gmra.mrb[0].mxu0 %v7731
      %v8028 = vpop.f32.mrb[0].mxu0
      %v8029 = vadd.f32 %v7868, %v8028
      %v8030 = vpop.f32.mrb[0].mxu0
      %v8031 = vpop.f32.mrb[0].mxu0
      %v8032 = vadd.f32 %v7871, %v8031
      %v8033 = vpop.f32.mrb[0].mxu0
      %8034 = vmatprep.mubr.bf16.mxu0 0
      %8035 = vmatmul.mubr.bf16.gmra.mrb[0].mxu0 %v7734
      %v8036 = vpop.f32.mrb[0].mxu0
      %v8037 = vadd.f32 %v7876, %v8036
      %v8038 = vpop.f32.mrb[0].mxu0
      %v8039 = vpop.f32.mrb[0].mxu0
      %v8040 = vadd.f32 %v7879, %v8039
      %v8041 = vpop.f32.mrb[0].mxu0
      %8042 = vmatprep.mubr.bf16.mxu0 0
      %8043 = vmatmul.mubr.bf16.gmra.mrb[0].mxu0 %v7737
      %v8044 = vpop.f32.mrb[0].mxu0
      %v8045 = vadd.f32 %v7884, %v8044
      %v8046 = vpop.f32.mrb[0].mxu0
      %v8047 = vpop.f32.mrb[0].mxu0
      %v8048 = vadd.f32 %v7887, %v8047
      %v8049 = vpop.f32.mrb[0].mxu0
      %8050 = vmatprep.mubr.bf16.mxu0 0
      %8051 = vmatmul.mubr.bf16.gmra.mrb[0].mxu0 %v7740
      %v8052 = vpop.f32.mrb[0].mxu0
      %v8053 = vadd.f32 %v7892, %v8052
      %v8054 = vpop.f32.mrb[0].mxu0
      %v8055 = vpop.f32.mrb[0].mxu0
      %v8056 = vadd.f32 %v7895, %v8055
      %v8057 = vpop.f32.mrb[0].mxu0
      %8058 = vmatprep.mubr.bf16.mxu0 0
      %8059 = vmatmul.mubr.bf16.gmra.mrb[0].mxu0 %v7743
      %v8060 = vpop.f32.mrb[0].mxu0
      %v8061 = vadd.f32 %v7900, %v8060
      %v8062 = vpop.f32.mrb[0].mxu0
      %v8063 = vpop.f32.mrb[0].mxu0
      %v8064 = vadd.f32 %v7903, %v8063
      %v8065 = vpop.f32.mrb[0].mxu0
      %8066 = vdwg.mxu0
      %vm8067 = vcmp.gt.f32.partialorder %v7941, 0.0
      %vm8068 = vcmp.gt.f32.partialorder %v7944, 0.0
      %vm8069 = vcmp.gt.f32.partialorder %v7949, 0.0
      %vm8070 = vcmp.gt.f32.partialorder %v7952, 0.0
      %vm8071 = vcmp.gt.f32.partialorder %v7957, 0.0
      %vm8072 = vcmp.gt.f32.partialorder %v7960, 0.0
      %vm8073 = vcmp.gt.f32.partialorder %v7965, 0.0
      %vm8074 = vcmp.gt.f32.partialorder %v7968, 0.0
      %vm8075 = vcmp.gt.f32.partialorder %v7973, 0.0
      %vm8076 = vcmp.gt.f32.partialorder %v7976, 0.0
      %vm8077 = vcmp.gt.f32.partialorder %v7981, 0.0
      %vm8078 = vcmp.gt.f32.partialorder %v7984, 0.0
      %vm8079 = vcmp.gt.f32.partialorder %v7989, 0.0
      %vm8080 = vcmp.gt.f32.partialorder %v7992, 0.0
      %vm8081 = vcmp.gt.f32.partialorder %v7997, 0.0
      %vm8082 = vcmp.gt.f32.partialorder %v8000, 0.0
      %vm8083 = vcmp.gt.f32.partialorder %v8005, 0.0
      %vm8084 = vcmp.gt.f32.partialorder %v8008, 0.0
      %vm8085 = vcmp.gt.f32.partialorder %v8013, 0.0
      %vm8086 = vcmp.gt.f32.partialorder %v8016, 0.0
      %vm8087 = vcmp.gt.f32.partialorder %v8021, 0.0
      %vm8088 = vcmp.gt.f32.partialorder %v8024, 0.0
      %vm8089 = vcmp.gt.f32.partialorder %v8029, 0.0
      %vm8090 = vcmp.gt.f32.partialorder %v8032, 0.0
      %vm8091 = vcmp.gt.f32.partialorder %v8037, 0.0
      %vm8092 = vcmp.gt.f32.partialorder %v8040, 0.0
      %vm8093 = vcmp.gt.f32.partialorder %v8045, 0.0
      %vm8094 = vcmp.gt.f32.partialorder %v8048, 0.0
      %vm8095 = vcmp.gt.f32.partialorder %v8053, 0.0
      %vm8096 = vcmp.gt.f32.partialorder %v8056, 0.0
      %vm8097 = vcmp.gt.f32.partialorder %v8061, 0.0
      %vm8098 = vcmp.gt.f32.partialorder %v8064, 0.0
      %v8099 = vmul.f32 %v7941, 0.1
      %v8100 = vmul.f32 %v7944, 0.1
      %v8101 = vmul.f32 %v7949, 0.1
      %v8102 = vmul.f32 %v7952, 0.1
      %v8103 = vmul.f32 %v7957, 0.1
      %v8104 = vmul.f32 %v7960, 0.1
      %v8105 = vmul.f32 %v7965, 0.1
      %v8106 = vmul.f32 %v7968, 0.1
      %v8107 = vmul.f32 %v7973, 0.1
      %v8108 = vmul.f32 %v7976, 0.1
      %v8109 = vmul.f32 %v7981, 0.1
      %v8110 = vmul.f32 %v7984, 0.1
      %v8111 = vmul.f32 %v7989, 0.1
      %v8112 = vmul.f32 %v7992, 0.1
      %v8113 = vmul.f32 %v7997, 0.1
      %v8114 = vmul.f32 %v8000, 0.1
      %v8115 = vmul.f32 %v8005, 0.1
      %v8116 = vmul.f32 %v8008, 0.1
      %v8117 = vmul.f32 %v8013, 0.1
      %v8118 = vmul.f32 %v8016, 0.1
      %v8119 = vmul.f32 %v8021, 0.1
      %v8120 = vmul.f32 %v8024, 0.1
      %v8121 = vmul.f32 %v8029, 0.1
      %v8122 = vmul.f32 %v8032, 0.1
      %v8123 = vmul.f32 %v8037, 0.1
      %v8124 = vmul.f32 %v8040, 0.1
      %v8125 = vmul.f32 %v8045, 0.1
      %v8126 = vmul.f32 %v8048, 0.1
      %v8127 = vmul.f32 %v8053, 0.1
      %v8128 = vmul.f32 %v8056, 0.1
      %v8129 = vmul.f32 %v8061, 0.1
      %v8130 = vmul.f32 %v8064, 0.1
      %v8131 = vsel %vm8067, %v7941, %v8099
      %v8132 = vsel %vm8068, %v7944, %v8100
      %v8133 = vsel %vm8069, %v7949, %v8101
      %v8134 = vsel %vm8070, %v7952, %v8102
      %v8135 = vsel %vm8071, %v7957, %v8103
      %v8136 = vsel %vm8072, %v7960, %v8104
      %v8137 = vsel %vm8073, %v7965, %v8105
      %v8138 = vsel %vm8074, %v7968, %v8106
      %v8139 = vsel %vm8075, %v7973, %v8107
      %v8140 = vsel %vm8076, %v7976, %v8108
      %v8141 = vsel %vm8077, %v7981, %v8109
      %v8142 = vsel %vm8078, %v7984, %v8110
      %v8143 = vsel %vm8079, %v7989, %v8111
      %v8144 = vsel %vm8080, %v7992, %v8112
      %v8145 = vsel %vm8081, %v7997, %v8113
      %v8146 = vsel %vm8082, %v8000, %v8114
      %v8147 = vsel %vm8083, %v8005, %v8115
      %v8148 = vsel %vm8084, %v8008, %v8116
      %v8149 = vsel %vm8085, %v8013, %v8117
      %v8150 = vsel %vm8086, %v8016, %v8118
      %v8151 = vsel %vm8087, %v8021, %v8119
      %v8152 = vsel %vm8088, %v8024, %v8120
      %v8153 = vsel %vm8089, %v8029, %v8121
      %v8154 = vsel %vm8090, %v8032, %v8122
      %v8155 = vsel %vm8091, %v8037, %v8123
      %v8156 = vsel %vm8092, %v8040, %v8124
      %v8157 = vsel %vm8093, %v8045, %v8125
      %v8158 = vsel %vm8094, %v8048, %v8126
      %v8159 = vsel %vm8095, %v8053, %v8127
      %v8160 = vsel %vm8096, %v8056, %v8128
      %v8161 = vsel %vm8097, %v8061, %v8129
      %v8162 = vsel %vm8098, %v8064, %v8130
      %8163 = vst.msk [vmem:[%s368 + $0x1] sm:$0xff] %vm280, %v8131
      %8164 = vst.msk [vmem:[%s368 + $0x9] sm:$0xff] %vm280, %v8132
      %8165 = vst.msk [vmem:[%s368 + $0x19] sm:$0xff] %vm280, %v8133
      %8166 = vst.msk [vmem:[%s368 + $0x21] sm:$0xff] %vm280, %v8134
      %8167 = vst.msk [vmem:[%s368 + $0x31] sm:$0xff] %vm280, %v8135
      %8168 = vst.msk [vmem:[%s368 + $0x39] sm:$0xff] %vm280, %v8136
      %8169 = vst.msk [vmem:[%s368 + $0x49] sm:$0xff] %vm280, %v8137
      %8170 = vst.msk [vmem:[%s368 + $0x51] sm:$0xff] %vm280, %v8138
      %8171 = vst.msk [vmem:[%s368 + $0x61] sm:$0xff] %vm280, %v8139
      %8172 = vst.msk [vmem:[%s368 + $0x69] sm:$0xff] %vm280, %v8140
      %8173 = vst.msk [vmem:[%s368 + $0x79] sm:$0xff] %vm280, %v8141
      %8174 = vst.msk [vmem:[%s368 + $0x81] sm:$0xff] %vm280, %v8142
      %8175 = vst.msk [vmem:[%s368 + $0x91] sm:$0xff] %vm280, %v8143
      %8176 = vst.msk [vmem:[%s368 + $0x99] sm:$0xff] %vm280, %v8144
      %8177 = vst.msk [vmem:[%s368 + $0xa9] sm:$0xff] %vm280, %v8145
      %8178 = vst.msk [vmem:[%s368 + $0xb1] sm:$0xff] %vm280, %v8146
      %8179 = vst.msk [vmem:[%s368 + $0xc1] sm:$0xff] %vm280, %v8147
      %8180 = vst.msk [vmem:[%s368 + $0xc9] sm:$0xff] %vm280, %v8148
      %8181 = vst.msk [vmem:[%s368 + $0xd9] sm:$0xff] %vm280, %v8149
      %8182 = vst.msk [vmem:[%s368 + $0xe1] sm:$0xff] %vm280, %v8150
      %8183 = vst.msk [vmem:[%s368 + $0xf1] sm:$0xff] %vm280, %v8151
      %8184 = vst.msk [vmem:[%s368 + $0xf9] sm:$0xff] %vm280, %v8152
      %8185 = vst.msk [vmem:[%s368 + $0x109] sm:$0xff] %vm280, %v8153
      %8186 = vst.msk [vmem:[%s368 + $0x111] sm:$0xff] %vm280, %v8154
      %8187 = vst.msk [vmem:[%s368 + $0x121] sm:$0xff] %vm280, %v8155
      %8188 = vst.msk [vmem:[%s368 + $0x129] sm:$0xff] %vm280, %v8156
      %8189 = vst.msk [vmem:[%s368 + $0x139] sm:$0xff] %vm280, %v8157
      %8190 = vst.msk [vmem:[%s368 + $0x141] sm:$0xff] %vm280, %v8158
      %8191 = vst.msk [vmem:[%s368 + $0x151] sm:$0xff] %vm280, %v8159
      %8192 = vst.msk [vmem:[%s368 + $0x159] sm:$0xff] %vm280, %v8160
      %8193 = vst.msk [vmem:[%s368 + $0x169] sm:$0xff] %vm280, %v8161
      %8194 = vst.msk [vmem:[%s368 + $0x171] sm:$0xff] %vm280, %v8162
      %v8195 = vld [vmem:[#allocation2] sm:$0xff]
      %v8196 = vld [vmem:[#allocation2 + $0x8] sm:$0xff]
      %v8197 = vld [vmem:[#allocation2 + $0x18] sm:$0xff]
      %v8198 = vld [vmem:[#allocation2 + $0x20] sm:$0xff]
      %v8199 = vld [vmem:[#allocation2 + $0x30] sm:$0xff]
      %v8200 = vld [vmem:[#allocation2 + $0x38] sm:$0xff]
      %v8201 = vld [vmem:[#allocation2 + $0x48] sm:$0xff]
      %v8202 = vld [vmem:[#allocation2 + $0x50] sm:$0xff]
      %v8203 = vld [vmem:[#allocation2 + $0x60] sm:$0xff]
      %v8204 = vld [vmem:[#allocation2 + $0x68] sm:$0xff]
      %v8205 = vld [vmem:[#allocation2 + $0x78] sm:$0xff]
      %v8206 = vld [vmem:[#allocation2 + $0x80] sm:$0xff]
      %v8207 = vld [vmem:[#allocation2 + $0x90] sm:$0xff]
      %v8208 = vld [vmem:[#allocation2 + $0x98] sm:$0xff]
      %v8209 = vld [vmem:[#allocation2 + $0xa8] sm:$0xff]
      %v8210 = vld [vmem:[#allocation2 + $0xb0] sm:$0xff]
      %v8211 = vld [vmem:[#allocation2 + $0xc0] sm:$0xff]
      %v8212 = vld [vmem:[#allocation2 + $0xc8] sm:$0xff]
      %v8213 = vld [vmem:[#allocation2 + $0xd8] sm:$0xff]
      %v8214 = vld [vmem:[#allocation2 + $0xe0] sm:$0xff]
      %v8215 = vld [vmem:[#allocation2 + $0xf0] sm:$0xff]
      %v8216 = vld [vmem:[#allocation2 + $0xf8] sm:$0xff]
      %v8217 = vld [vmem:[#allocation2 + $0x108] sm:$0xff]
      %v8218 = vld [vmem:[#allocation2 + $0x110] sm:$0xff]
      %v8219 = vld [vmem:[#allocation2 + $0x120] sm:$0xff]
      %v8220 = vld [vmem:[#allocation2 + $0x128] sm:$0xff]
      %v8221 = vld [vmem:[#allocation2 + $0x138] sm:$0xff]
      %v8222 = vld [vmem:[#allocation2 + $0x140] sm:$0xff]
      %v8223 = vld [vmem:[#allocation2 + $0x150] sm:$0xff]
      %v8224 = vld [vmem:[#allocation2 + $0x158] sm:$0xff]
      %v8225 = vld [vmem:[#allocation2 + $0x168] sm:$0xff]
      %v8226 = vld [vmem:[#allocation2 + $0x170] sm:$0xff]
      %v8227 = vld [vmem:[#allocation2 + $0x1] sm:$0xff]
      %v8228 = vld [vmem:[#allocation2 + $0x9] sm:$0xff]
      %v8229 = vld [vmem:[#allocation2 + $0x19] sm:$0xff]
      %v8230 = vld [vmem:[#allocation2 + $0x21] sm:$0xff]
      %v8231 = vld [vmem:[#allocation2 + $0x31] sm:$0xff]
      %v8232 = vld [vmem:[#allocation2 + $0x39] sm:$0xff]
      %v8233 = vld [vmem:[#allocation2 + $0x49] sm:$0xff]
      %v8234 = vld [vmem:[#allocation2 + $0x51] sm:$0xff]
      %v8235 = vld [vmem:[#allocation2 + $0x61] sm:$0xff]
      %v8236 = vld [vmem:[#allocation2 + $0x69] sm:$0xff]
      %v8237 = vld [vmem:[#allocation2 + $0x79] sm:$0xff]
      %v8238 = vld [vmem:[#allocation2 + $0x81] sm:$0xff]
      %v8239 = vld [vmem:[#allocation2 + $0x91] sm:$0xff]
      %v8240 = vld [vmem:[#allocation2 + $0x99] sm:$0xff]
      %v8241 = vld [vmem:[#allocation2 + $0xa9] sm:$0xff]
      %v8242 = vld [vmem:[#allocation2 + $0xb1] sm:$0xff]
      %v8243 = vld [vmem:[#allocation2 + $0xc1] sm:$0xff]
      %v8244 = vld [vmem:[#allocation2 + $0xc9] sm:$0xff]
      %v8245 = vld [vmem:[#allocation2 + $0xd9] sm:$0xff]
      %v8246 = vld [vmem:[#allocation2 + $0xe1] sm:$0xff]
      %v8247 = vld [vmem:[#allocation2 + $0xf1] sm:$0xff]
      %v8248 = vld [vmem:[#allocation2 + $0xf9] sm:$0xff]
      %v8249 = vld [vmem:[#allocation2 + $0x109] sm:$0xff]
      %v8250 = vld [vmem:[#allocation2 + $0x111] sm:$0xff]
      %v8251 = vld [vmem:[#allocation2 + $0x121] sm:$0xff]
      %v8252 = vld [vmem:[#allocation2 + $0x129] sm:$0xff]
      %v8253 = vld [vmem:[#allocation2 + $0x139] sm:$0xff]
      %v8254 = vld [vmem:[#allocation2 + $0x141] sm:$0xff]
      %v8255 = vld [vmem:[#allocation2 + $0x151] sm:$0xff]
      %v8256 = vld [vmem:[#allocation2 + $0x159] sm:$0xff]
      %v8257 = vld [vmem:[#allocation2 + $0x169] sm:$0xff]
      %v8258 = vld [vmem:[#allocation2 + $0x171] sm:$0xff]
      %v8259 = vld [vmem:[#allocation2 + $0x2] sm:$0xff]
      %v8260 = vld [vmem:[#allocation2 + $0xa] sm:$0xff]
      %v8261 = vld [vmem:[#allocation2 + $0x1a] sm:$0xff]
      %v8262 = vld [vmem:[#allocation2 + $0x22] sm:$0xff]
      %v8263 = vld [vmem:[#allocation2 + $0x32] sm:$0xff]
      %v8264 = vld [vmem:[#allocation2 + $0x3a] sm:$0xff]
      %v8265 = vld [vmem:[#allocation2 + $0x4a] sm:$0xff]
      %v8266 = vld [vmem:[#allocation2 + $0x52] sm:$0xff]
      %v8267 = vld [vmem:[#allocation2 + $0x62] sm:$0xff]
      %v8268 = vld [vmem:[#allocation2 + $0x6a] sm:$0xff]
      %v8269 = vld [vmem:[#allocation2 + $0x7a] sm:$0xff]
      %v8270 = vld [vmem:[#allocation2 + $0x82] sm:$0xff]
      %v8271 = vld [vmem:[#allocation2 + $0x92] sm:$0xff]
      %v8272 = vld [vmem:[#allocation2 + $0x9a] sm:$0xff]
      %v8273 = vld [vmem:[#allocation2 + $0xaa] sm:$0xff]
      %v8274 = vld [vmem:[#allocation2 + $0xb2] sm:$0xff]
      %v8275 = vld [vmem:[#allocation2 + $0xc2] sm:$0xff]
      %v8276 = vld [vmem:[#allocation2 + $0xca] sm:$0xff]
      %v8277 = vld [vmem:[#allocation2 + $0xda] sm:$0xff]
      %v8278 = vld [vmem:[#allocation2 + $0xe2] sm:$0xff]
      %v8279 = vld [vmem:[#allocation2 + $0xf2] sm:$0xff]
      %v8280 = vld [vmem:[#allocation2 + $0xfa] sm:$0xff]
      %v8281 = vld [vmem:[#allocation2 + $0x10a] sm:$0xff]
      %v8282 = vld [vmem:[#allocation2 + $0x112] sm:$0xff]
      %v8283 = vld [vmem:[#allocation2 + $0x122] sm:$0xff]
      %v8284 = vld [vmem:[#allocation2 + $0x12a] sm:$0xff]
      %v8285 = vld [vmem:[#allocation2 + $0x13a] sm:$0xff]
      %v8286 = vld [vmem:[#allocation2 + $0x142] sm:$0xff]
      %v8287 = vld [vmem:[#allocation2 + $0x152] sm:$0xff]
      %v8288 = vld [vmem:[#allocation2 + $0x15a] sm:$0xff]
      %v8289 = vld [vmem:[#allocation2 + $0x16a] sm:$0xff]
      %v8290 = vld [vmem:[#allocation2 + $0x172] sm:$0xff]
      %v8291 = vld [vmem:[%s368] sm:$0xff]
      %v8292 = vld [vmem:[%s368 + $0x8] sm:$0xff]
      %v8293 = vld [vmem:[%s368 + $0x18] sm:$0xff]
      %v8294 = vld [vmem:[%s368 + $0x20] sm:$0xff]
      %v8295 = vld [vmem:[%s368 + $0x30] sm:$0xff]
      %v8296 = vld [vmem:[%s368 + $0x38] sm:$0xff]
      %v8297 = vld [vmem:[%s368 + $0x48] sm:$0xff]
      %v8298 = vld [vmem:[%s368 + $0x50] sm:$0xff]
      %v8299 = vld [vmem:[%s368 + $0x60] sm:$0xff]
      %v8300 = vld [vmem:[%s368 + $0x68] sm:$0xff]
      %v8301 = vld [vmem:[%s368 + $0x78] sm:$0xff]
      %v8302 = vld [vmem:[%s368 + $0x80] sm:$0xff]
      %v8303 = vld [vmem:[%s368 + $0x90] sm:$0xff]
      %v8304 = vld [vmem:[%s368 + $0x98] sm:$0xff]
      %v8305 = vld [vmem:[%s368 + $0xa8] sm:$0xff]
      %v8306 = vld [vmem:[%s368 + $0xb0] sm:$0xff]
      %v8307 = vld [vmem:[%s368 + $0xc0] sm:$0xff]
      %v8308 = vld [vmem:[%s368 + $0xc8] sm:$0xff]
      %v8309 = vld [vmem:[%s368 + $0xd8] sm:$0xff]
      %v8310 = vld [vmem:[%s368 + $0xe0] sm:$0xff]
      %v8311 = vld [vmem:[%s368 + $0xf0] sm:$0xff]
      %v8312 = vld [vmem:[%s368 + $0xf8] sm:$0xff]
      %v8313 = vld [vmem:[%s368 + $0x108] sm:$0xff]
      %v8314 = vld [vmem:[%s368 + $0x110] sm:$0xff]
      %v8315 = vld [vmem:[%s368 + $0x120] sm:$0xff]
      %v8316 = vld [vmem:[%s368 + $0x128] sm:$0xff]
      %v8317 = vld [vmem:[%s368 + $0x138] sm:$0xff]
      %v8318 = vld [vmem:[%s368 + $0x140] sm:$0xff]
      %v8319 = vld [vmem:[%s368 + $0x150] sm:$0xff]
      %v8320 = vld [vmem:[%s368 + $0x158] sm:$0xff]
      %v8321 = vld [vmem:[%s368 + $0x168] sm:$0xff]
      %v8322 = vld [vmem:[%s368 + $0x170] sm:$0xff]
      %v8323 = vld [vmem:[%s368 + $0x1] sm:$0xff]
      %v8324 = vld [vmem:[%s368 + $0x9] sm:$0xff]
      %v8325 = vld [vmem:[%s368 + $0x19] sm:$0xff]
      %v8326 = vld [vmem:[%s368 + $0x21] sm:$0xff]
      %v8327 = vld [vmem:[%s368 + $0x31] sm:$0xff]
      %v8328 = vld [vmem:[%s368 + $0x39] sm:$0xff]
      %v8329 = vld [vmem:[%s368 + $0x49] sm:$0xff]
      %v8330 = vld [vmem:[%s368 + $0x51] sm:$0xff]
      %v8331 = vld [vmem:[%s368 + $0x61] sm:$0xff]
      %v8332 = vld [vmem:[%s368 + $0x69] sm:$0xff]
      %v8333 = vld [vmem:[%s368 + $0x79] sm:$0xff]
      %v8334 = vld [vmem:[%s368 + $0x81] sm:$0xff]
      %v8335 = vld [vmem:[%s368 + $0x91] sm:$0xff]
      %v8336 = vld [vmem:[%s368 + $0x99] sm:$0xff]
      %v8337 = vld [vmem:[%s368 + $0xa9] sm:$0xff]
      %v8338 = vld [vmem:[%s368 + $0xb1] sm:$0xff]
      %v8339 = vld [vmem:[%s368 + $0xc1] sm:$0xff]
      %v8340 = vld [vmem:[%s368 + $0xc9] sm:$0xff]
      %v8341 = vld [vmem:[%s368 + $0xd9] sm:$0xff]
      %v8342 = vld [vmem:[%s368 + $0xe1] sm:$0xff]
      %v8343 = vld [vmem:[%s368 + $0xf1] sm:$0xff]
      %v8344 = vld [vmem:[%s368 + $0xf9] sm:$0xff]
      %v8345 = vld [vmem:[%s368 + $0x109] sm:$0xff]
      %v8346 = vld [vmem:[%s368 + $0x111] sm:$0xff]
      %v8347 = vld [vmem:[%s368 + $0x121] sm:$0xff]
      %v8348 = vld [vmem:[%s368 + $0x129] sm:$0xff]
      %v8349 = vld [vmem:[%s368 + $0x139] sm:$0xff]
      %v8350 = vld [vmem:[%s368 + $0x141] sm:$0xff]
      %v8351 = vld [vmem:[%s368 + $0x151] sm:$0xff]
      %v8352 = vld [vmem:[%s368 + $0x159] sm:$0xff]
      %v8353 = vld [vmem:[%s368 + $0x169] sm:$0xff]
      %v8354 = vld [vmem:[%s368 + $0x171] sm:$0xff]
      %v8355 = vld [vmem:[%s368 + $0x2] sm:$0xff]
      %v8356 = vld [vmem:[%s368 + $0xa] sm:$0xff]
      %v8357 = vld [vmem:[%s368 + $0x1a] sm:$0xff]
      %v8358 = vld [vmem:[%s368 + $0x22] sm:$0xff]
      %v8359 = vld [vmem:[%s368 + $0x32] sm:$0xff]
      %v8360 = vld [vmem:[%s368 + $0x3a] sm:$0xff]
      %v8361 = vld [vmem:[%s368 + $0x4a] sm:$0xff]
      %v8362 = vld [vmem:[%s368 + $0x52] sm:$0xff]
      %v8363 = vld [vmem:[%s368 + $0x62] sm:$0xff]
      %v8364 = vld [vmem:[%s368 + $0x6a] sm:$0xff]
      %v8365 = vld [vmem:[%s368 + $0x7a] sm:$0xff]
      %v8366 = vld [vmem:[%s368 + $0x82] sm:$0xff]
      %v8367 = vld [vmem:[%s368 + $0x92] sm:$0xff]
      %v8368 = vld [vmem:[%s368 + $0x9a] sm:$0xff]
      %v8369 = vld [vmem:[%s368 + $0xaa] sm:$0xff]
      %v8370 = vld [vmem:[%s368 + $0xb2] sm:$0xff]
      %v8371 = vld [vmem:[%s368 + $0xc2] sm:$0xff]
      %v8372 = vld [vmem:[%s368 + $0xca] sm:$0xff]
      %v8373 = vld [vmem:[%s368 + $0xda] sm:$0xff]
      %v8374 = vld [vmem:[%s368 + $0xe2] sm:$0xff]
      %v8375 = vld [vmem:[%s368 + $0xf2] sm:$0xff]
      %v8376 = vld [vmem:[%s368 + $0xfa] sm:$0xff]
      %v8377 = vld [vmem:[%s368 + $0x10a] sm:$0xff]
      %v8378 = vld [vmem:[%s368 + $0x112] sm:$0xff]
      %v8379 = vld [vmem:[%s368 + $0x122] sm:$0xff]
      %v8380 = vld [vmem:[%s368 + $0x12a] sm:$0xff]
      %v8381 = vld [vmem:[%s368 + $0x13a] sm:$0xff]
      %v8382 = vld [vmem:[%s368 + $0x142] sm:$0xff]
      %v8383 = vld [vmem:[%s368 + $0x152] sm:$0xff]
      %v8384 = vld [vmem:[%s368 + $0x15a] sm:$0xff]
      %v8385 = vld [vmem:[%s368 + $0x16a] sm:$0xff]
      %v8386 = vld [vmem:[%s368 + $0x172] sm:$0xff]
      %v8387 = vld [vmem:[%s593] sm:$0xff]
      %v8388 = vld [vmem:[%s593 + $0x8] sm:$0xff]
      %v8389 = vld [vmem:[%s593 + $0x18] sm:$0xff]
      %v8390 = vld [vmem:[%s593 + $0x20] sm:$0xff]
      %v8391 = vld [vmem:[%s593 + $0x30] sm:$0xff]
      %v8392 = vld [vmem:[%s593 + $0x38] sm:$0xff]
      %v8393 = vld [vmem:[%s593 + $0x48] sm:$0xff]
      %v8394 = vld [vmem:[%s593 + $0x50] sm:$0xff]
      %v8395 = vld [vmem:[%s593 + $0x60] sm:$0xff]
      %v8396 = vld [vmem:[%s593 + $0x68] sm:$0xff]
      %v8397 = vld [vmem:[%s593 + $0x78] sm:$0xff]
      %v8398 = vld [vmem:[%s593 + $0x80] sm:$0xff]
      %v8399 = vld [vmem:[%s593 + $0x90] sm:$0xff]
      %v8400 = vld [vmem:[%s593 + $0x98] sm:$0xff]
      %v8401 = vld [vmem:[%s593 + $0xa8] sm:$0xff]
      %v8402 = vld [vmem:[%s593 + $0xb0] sm:$0xff]
      %v8403 = vld [vmem:[%s593 + $0xc0] sm:$0xff]
      %v8404 = vld [vmem:[%s593 + $0xc8] sm:$0xff]
      %v8405 = vld [vmem:[%s593 + $0xd8] sm:$0xff]
      %v8406 = vld [vmem:[%s593 + $0xe0] sm:$0xff]
      %v8407 = vld [vmem:[%s593 + $0xf0] sm:$0xff]
      %v8408 = vld [vmem:[%s593 + $0xf8] sm:$0xff]
      %v8409 = vld [vmem:[%s593 + $0x108] sm:$0xff]
      %v8410 = vld [vmem:[%s593 + $0x110] sm:$0xff]
      %v8411 = vld [vmem:[%s593 + $0x120] sm:$0xff]
      %v8412 = vld [vmem:[%s593 + $0x128] sm:$0xff]
      %v8413 = vld [vmem:[%s593 + $0x138] sm:$0xff]
      %v8414 = vld [vmem:[%s593 + $0x140] sm:$0xff]
      %v8415 = vld [vmem:[%s593 + $0x150] sm:$0xff]
      %v8416 = vld [vmem:[%s593 + $0x158] sm:$0xff]
      %v8417 = vld [vmem:[%s593 + $0x168] sm:$0xff]
      %v8418 = vld [vmem:[%s593 + $0x170] sm:$0xff]
      %v8419 = vld [vmem:[%s593 + $0x1] sm:$0xff]
      %v8420 = vld [vmem:[%s593 + $0x9] sm:$0xff]
      %v8421 = vld [vmem:[%s593 + $0x19] sm:$0xff]
      %v8422 = vld [vmem:[%s593 + $0x21] sm:$0xff]
      %v8423 = vld [vmem:[%s593 + $0x31] sm:$0xff]
      %v8424 = vld [vmem:[%s593 + $0x39] sm:$0xff]
      %v8425 = vld [vmem:[%s593 + $0x49] sm:$0xff]
      %v8426 = vld [vmem:[%s593 + $0x51] sm:$0xff]
      %v8427 = vld [vmem:[%s593 + $0x61] sm:$0xff]
      %v8428 = vld [vmem:[%s593 + $0x69] sm:$0xff]
      %v8429 = vld [vmem:[%s593 + $0x79] sm:$0xff]
      %v8430 = vld [vmem:[%s593 + $0x81] sm:$0xff]
      %v8431 = vld [vmem:[%s593 + $0x91] sm:$0xff]
      %v8432 = vld [vmem:[%s593 + $0x99] sm:$0xff]
      %v8433 = vld [vmem:[%s593 + $0xa9] sm:$0xff]
      %v8434 = vld [vmem:[%s593 + $0xb1] sm:$0xff]
      %v8435 = vld [vmem:[%s593 + $0xc1] sm:$0xff]
      %v8436 = vld [vmem:[%s593 + $0xc9] sm:$0xff]
      %v8437 = vld [vmem:[%s593 + $0xd9] sm:$0xff]
      %v8438 = vld [vmem:[%s593 + $0xe1] sm:$0xff]
      %v8439 = vld [vmem:[%s593 + $0xf1] sm:$0xff]
      %v8440 = vld [vmem:[%s593 + $0xf9] sm:$0xff]
      %v8441 = vld [vmem:[%s593 + $0x109] sm:$0xff]
      %v8442 = vld [vmem:[%s593 + $0x111] sm:$0xff]
      %v8443 = vld [vmem:[%s593 + $0x121] sm:$0xff]
      %v8444 = vld [vmem:[%s593 + $0x129] sm:$0xff]
      %v8445 = vld [vmem:[%s593 + $0x139] sm:$0xff]
      %v8446 = vld [vmem:[%s593 + $0x141] sm:$0xff]
      %v8447 = vld [vmem:[%s593 + $0x151] sm:$0xff]
      %v8448 = vld [vmem:[%s593 + $0x159] sm:$0xff]
      %v8449 = vld [vmem:[%s593 + $0x169] sm:$0xff]
      %v8450 = vld [vmem:[%s593 + $0x171] sm:$0xff]
      %v8451 = vld [vmem:[%s593 + $0x2] sm:$0xff]
      %v8452 = vld [vmem:[%s593 + $0xa] sm:$0xff]
      %v8453 = vld [vmem:[%s593 + $0x1a] sm:$0xff]
      %v8454 = vld [vmem:[%s593 + $0x22] sm:$0xff]
      %v8455 = vld [vmem:[%s593 + $0x32] sm:$0xff]
      %v8456 = vld [vmem:[%s593 + $0x3a] sm:$0xff]
      %v8457 = vld [vmem:[%s593 + $0x4a] sm:$0xff]
      %v8458 = vld [vmem:[%s593 + $0x52] sm:$0xff]
      %v8459 = vld [vmem:[%s593 + $0x62] sm:$0xff]
      %v8460 = vld [vmem:[%s593 + $0x6a] sm:$0xff]
      %v8461 = vld [vmem:[%s593 + $0x7a] sm:$0xff]
      %v8462 = vld [vmem:[%s593 + $0x82] sm:$0xff]
      %v8463 = vld [vmem:[%s593 + $0x92] sm:$0xff]
      %v8464 = vld [vmem:[%s593 + $0x9a] sm:$0xff]
      %v8465 = vld [vmem:[%s593 + $0xaa] sm:$0xff]
      %v8466 = vld [vmem:[%s593 + $0xb2] sm:$0xff]
      %v8467 = vld [vmem:[%s593 + $0xc2] sm:$0xff]
      %v8468 = vld [vmem:[%s593 + $0xca] sm:$0xff]
      %v8469 = vld [vmem:[%s593 + $0xda] sm:$0xff]
      %v8470 = vld [vmem:[%s593 + $0xe2] sm:$0xff]
      %v8471 = vld [vmem:[%s593 + $0xf2] sm:$0xff]
      %v8472 = vld [vmem:[%s593 + $0xfa] sm:$0xff]
      %v8473 = vld [vmem:[%s593 + $0x10a] sm:$0xff]
      %v8474 = vld [vmem:[%s593 + $0x112] sm:$0xff]
      %v8475 = vld [vmem:[%s593 + $0x122] sm:$0xff]
      %v8476 = vld [vmem:[%s593 + $0x12a] sm:$0xff]
      %v8477 = vld [vmem:[%s593 + $0x13a] sm:$0xff]
      %v8478 = vld [vmem:[%s593 + $0x142] sm:$0xff]
      %v8479 = vld [vmem:[%s593 + $0x152] sm:$0xff]
      %v8480 = vld [vmem:[%s593 + $0x15a] sm:$0xff]
      %v8481 = vld [vmem:[%s593 + $0x16a] sm:$0xff]
      %v8482 = vld [vmem:[%s593 + $0x172] sm:$0xff]
      %8515 = vrot.lane.b32.xlu0 %v8227, 32
      %v8516 = vpop.permute.xlu0 %8515
      %8517 = vrot.lane.b32.xlu0 %v8228, 32
      %v8518 = vpop.permute.xlu0 %8517
      %8519 = vrot.lane.b32.xlu0 %v8229, 32
      %v8520 = vpop.permute.xlu0 %8519
      %8521 = vrot.lane.b32.xlu0 %v8230, 32
      %v8522 = vpop.permute.xlu0 %8521
      %8523 = vrot.lane.b32.xlu0 %v8231, 32
      %v8524 = vpop.permute.xlu0 %8523
      %8525 = vrot.lane.b32.xlu0 %v8232, 32
      %v8526 = vpop.permute.xlu0 %8525
      %8527 = vrot.lane.b32.xlu0 %v8233, 32
      %v8528 = vpop.permute.xlu0 %8527
      %8529 = vrot.lane.b32.xlu0 %v8234, 32
      %v8530 = vpop.permute.xlu0 %8529
      %8531 = vrot.lane.b32.xlu0 %v8235, 32
      %v8532 = vpop.permute.xlu0 %8531
      %8533 = vrot.lane.b32.xlu0 %v8236, 32
      %v8534 = vpop.permute.xlu0 %8533
      %8535 = vrot.lane.b32.xlu0 %v8237, 32
      %v8536 = vpop.permute.xlu0 %8535
      %8537 = vrot.lane.b32.xlu0 %v8238, 32
      %v8538 = vpop.permute.xlu0 %8537
      %8539 = vrot.lane.b32.xlu0 %v8239, 32
      %v8540 = vpop.permute.xlu0 %8539
      %8541 = vrot.lane.b32.xlu0 %v8240, 32
      %v8542 = vpop.permute.xlu0 %8541
      %8543 = vrot.lane.b32.xlu0 %v8241, 32
      %v8544 = vpop.permute.xlu0 %8543
      %8545 = vrot.lane.b32.xlu0 %v8242, 32
      %v8546 = vpop.permute.xlu0 %8545
      %8547 = vrot.lane.b32.xlu0 %v8243, 32
      %v8548 = vpop.permute.xlu0 %8547
      %8549 = vrot.lane.b32.xlu0 %v8244, 32
      %v8550 = vpop.permute.xlu0 %8549
      %8551 = vrot.lane.b32.xlu0 %v8245, 32
      %v8552 = vpop.permute.xlu0 %8551
      %8553 = vrot.lane.b32.xlu0 %v8246, 32
      %v8554 = vpop.permute.xlu0 %8553
      %8555 = vrot.lane.b32.xlu0 %v8247, 32
      %v8556 = vpop.permute.xlu0 %8555
      %8557 = vrot.lane.b32.xlu0 %v8248, 32
      %v8558 = vpop.permute.xlu0 %8557
      %8559 = vrot.lane.b32.xlu0 %v8249, 32
      %v8560 = vpop.permute.xlu0 %8559
      %8561 = vrot.lane.b32.xlu0 %v8250, 32
      %v8562 = vpop.permute.xlu0 %8561
      %8563 = vrot.lane.b32.xlu0 %v8251, 32
      %v8564 = vpop.permute.xlu0 %8563
      %8565 = vrot.lane.b32.xlu0 %v8252, 32
      %v8566 = vpop.permute.xlu0 %8565
      %8567 = vrot.lane.b32.xlu0 %v8253, 32
      %v8568 = vpop.permute.xlu0 %8567
      %8569 = vrot.lane.b32.xlu0 %v8254, 32
      %v8570 = vpop.permute.xlu0 %8569
      %8571 = vrot.lane.b32.xlu0 %v8255, 32
      %v8572 = vpop.permute.xlu0 %8571
      %8573 = vrot.lane.b32.xlu0 %v8256, 32
      %v8574 = vpop.permute.xlu0 %8573
      %8575 = vrot.lane.b32.xlu0 %v8257, 32
      %v8576 = vpop.permute.xlu0 %8575
      %8577 = vrot.lane.b32.xlu0 %v8258, 32
      %v8578 = vpop.permute.xlu0 %8577
      %8643 = vrot.lane.b32.xlu0 %v8259, 64
      %v8644 = vpop.permute.xlu0 %8643
      %8645 = vrot.lane.b32.xlu0 %v8260, 64
      %v8646 = vpop.permute.xlu0 %8645
      %8647 = vrot.lane.b32.xlu0 %v8261, 64
      %v8648 = vpop.permute.xlu0 %8647
      %8649 = vrot.lane.b32.xlu0 %v8262, 64
      %v8650 = vpop.permute.xlu0 %8649
      %8651 = vrot.lane.b32.xlu0 %v8263, 64
      %v8652 = vpop.permute.xlu0 %8651
      %8653 = vrot.lane.b32.xlu0 %v8264, 64
      %v8654 = vpop.permute.xlu0 %8653
      %8655 = vrot.lane.b32.xlu0 %v8265, 64
      %v8656 = vpop.permute.xlu0 %8655
      %8657 = vrot.lane.b32.xlu0 %v8266, 64
      %v8658 = vpop.permute.xlu0 %8657
      %8659 = vrot.lane.b32.xlu0 %v8267, 64
      %v8660 = vpop.permute.xlu0 %8659
      %8661 = vrot.lane.b32.xlu0 %v8268, 64
      %v8662 = vpop.permute.xlu0 %8661
      %8663 = vrot.lane.b32.xlu0 %v8269, 64
      %v8664 = vpop.permute.xlu0 %8663
      %8665 = vrot.lane.b32.xlu0 %v8270, 64
      %v8666 = vpop.permute.xlu0 %8665
      %8667 = vrot.lane.b32.xlu0 %v8271, 64
      %v8668 = vpop.permute.xlu0 %8667
      %8669 = vrot.lane.b32.xlu0 %v8272, 64
      %v8670 = vpop.permute.xlu0 %8669
      %8671 = vrot.lane.b32.xlu0 %v8273, 64
      %v8672 = vpop.permute.xlu0 %8671
      %8673 = vrot.lane.b32.xlu0 %v8274, 64
      %v8674 = vpop.permute.xlu0 %8673
      %8675 = vrot.lane.b32.xlu0 %v8275, 64
      %v8676 = vpop.permute.xlu0 %8675
      %8677 = vrot.lane.b32.xlu0 %v8276, 64
      %v8678 = vpop.permute.xlu0 %8677
      %8679 = vrot.lane.b32.xlu0 %v8277, 64
      %v8680 = vpop.permute.xlu0 %8679
      %8681 = vrot.lane.b32.xlu0 %v8278, 64
      %v8682 = vpop.permute.xlu0 %8681
      %8683 = vrot.lane.b32.xlu0 %v8279, 64
      %v8684 = vpop.permute.xlu0 %8683
      %8685 = vrot.lane.b32.xlu0 %v8280, 64
      %v8686 = vpop.permute.xlu0 %8685
      %8687 = vrot.lane.b32.xlu0 %v8281, 64
      %v8688 = vpop.permute.xlu0 %8687
      %8689 = vrot.lane.b32.xlu0 %v8282, 64
      %v8690 = vpop.permute.xlu0 %8689
      %8691 = vrot.lane.b32.xlu0 %v8283, 64
      %v8692 = vpop.permute.xlu0 %8691
      %8693 = vrot.lane.b32.xlu0 %v8284, 64
      %v8694 = vpop.permute.xlu0 %8693
      %8695 = vrot.lane.b32.xlu0 %v8285, 64
      %v8696 = vpop.permute.xlu0 %8695
      %8697 = vrot.lane.b32.xlu0 %v8286, 64
      %v8698 = vpop.permute.xlu0 %8697
      %8699 = vrot.lane.b32.xlu0 %v8287, 64
      %v8700 = vpop.permute.xlu0 %8699
      %8701 = vrot.lane.b32.xlu0 %v8288, 64
      %v8702 = vpop.permute.xlu0 %8701
      %8703 = vrot.lane.b32.xlu0 %v8289, 64
      %v8704 = vpop.permute.xlu0 %8703
      %8705 = vrot.lane.b32.xlu0 %v8290, 64
      %v8706 = vpop.permute.xlu0 %8705
      %8771 = vrot.lane.b32.xlu0 %v8291, 96
      %v8772 = vpop.permute.xlu0 %8771
      %8773 = vrot.lane.b32.xlu0 %v8292, 96
      %v8774 = vpop.permute.xlu0 %8773
      %8775 = vrot.lane.b32.xlu0 %v8293, 96
      %v8776 = vpop.permute.xlu0 %8775
      %8777 = vrot.lane.b32.xlu0 %v8294, 96
      %v8778 = vpop.permute.xlu0 %8777
      %8779 = vrot.lane.b32.xlu0 %v8295, 96
      %v8780 = vpop.permute.xlu0 %8779
      %8781 = vrot.lane.b32.xlu0 %v8296, 96
      %v8782 = vpop.permute.xlu0 %8781
      %8783 = vrot.lane.b32.xlu0 %v8297, 96
      %v8784 = vpop.permute.xlu0 %8783
      %8785 = vrot.lane.b32.xlu0 %v8298, 96
      %v8786 = vpop.permute.xlu0 %8785
      %8787 = vrot.lane.b32.xlu0 %v8299, 96
      %v8788 = vpop.permute.xlu0 %8787
      %8789 = vrot.lane.b32.xlu0 %v8300, 96
      %v8790 = vpop.permute.xlu0 %8789
      %8791 = vrot.lane.b32.xlu0 %v8301, 96
      %v8792 = vpop.permute.xlu0 %8791
      %8793 = vrot.lane.b32.xlu0 %v8302, 96
      %v8794 = vpop.permute.xlu0 %8793
      %8795 = vrot.lane.b32.xlu0 %v8303, 96
      %v8796 = vpop.permute.xlu0 %8795
      %8797 = vrot.lane.b32.xlu0 %v8304, 96
      %v8798 = vpop.permute.xlu0 %8797
      %8799 = vrot.lane.b32.xlu0 %v8305, 96
      %v8800 = vpop.permute.xlu0 %8799
      %8801 = vrot.lane.b32.xlu0 %v8306, 96
      %v8802 = vpop.permute.xlu0 %8801
      %8803 = vrot.lane.b32.xlu0 %v8307, 96
      %v8804 = vpop.permute.xlu0 %8803
      %8805 = vrot.lane.b32.xlu0 %v8308, 96
      %v8806 = vpop.permute.xlu0 %8805
      %8807 = vrot.lane.b32.xlu0 %v8309, 96
      %v8808 = vpop.permute.xlu0 %8807
      %8809 = vrot.lane.b32.xlu0 %v8310, 96
      %v8810 = vpop.permute.xlu0 %8809
      %8811 = vrot.lane.b32.xlu0 %v8311, 96
      %v8812 = vpop.permute.xlu0 %8811
      %8813 = vrot.lane.b32.xlu0 %v8312, 96
      %v8814 = vpop.permute.xlu0 %8813
      %8815 = vrot.lane.b32.xlu0 %v8313, 96
      %v8816 = vpop.permute.xlu0 %8815
      %8817 = vrot.lane.b32.xlu0 %v8314, 96
      %v8818 = vpop.permute.xlu0 %8817
      %8819 = vrot.lane.b32.xlu0 %v8315, 96
      %v8820 = vpop.permute.xlu0 %8819
      %8821 = vrot.lane.b32.xlu0 %v8316, 96
      %v8822 = vpop.permute.xlu0 %8821
      %8823 = vrot.lane.b32.xlu0 %v8317, 96
      %v8824 = vpop.permute.xlu0 %8823
      %8825 = vrot.lane.b32.xlu0 %v8318, 96
      %v8826 = vpop.permute.xlu0 %8825
      %8827 = vrot.lane.b32.xlu0 %v8319, 96
      %v8828 = vpop.permute.xlu0 %8827
      %8829 = vrot.lane.b32.xlu0 %v8320, 96
      %v8830 = vpop.permute.xlu0 %8829
      %8831 = vrot.lane.b32.xlu0 %v8321, 96
      %v8832 = vpop.permute.xlu0 %8831
      %8833 = vrot.lane.b32.xlu0 %v8322, 96
      %v8834 = vpop.permute.xlu0 %8833
      %8899 = vrot.lane.b32.xlu0 %v8355, 32
      %v8900 = vpop.permute.xlu0 %8899
      %8901 = vrot.lane.b32.xlu0 %v8356, 32
      %v8902 = vpop.permute.xlu0 %8901
      %8903 = vrot.lane.b32.xlu0 %v8357, 32
      %v8904 = vpop.permute.xlu0 %8903
      %8905 = vrot.lane.b32.xlu0 %v8358, 32
      %v8906 = vpop.permute.xlu0 %8905
      %8907 = vrot.lane.b32.xlu0 %v8359, 32
      %v8908 = vpop.permute.xlu0 %8907
      %8909 = vrot.lane.b32.xlu0 %v8360, 32
      %v8910 = vpop.permute.xlu0 %8909
      %8911 = vrot.lane.b32.xlu0 %v8361, 32
      %v8912 = vpop.permute.xlu0 %8911
      %8913 = vrot.lane.b32.xlu0 %v8362, 32
      %v8914 = vpop.permute.xlu0 %8913
      %8915 = vrot.lane.b32.xlu0 %v8363, 32
      %v8916 = vpop.permute.xlu0 %8915
      %8917 = vrot.lane.b32.xlu0 %v8364, 32
      %v8918 = vpop.permute.xlu0 %8917
      %8919 = vrot.lane.b32.xlu0 %v8365, 32
      %v8920 = vpop.permute.xlu0 %8919
      %8921 = vrot.lane.b32.xlu0 %v8366, 32
      %v8922 = vpop.permute.xlu0 %8921
      %8923 = vrot.lane.b32.xlu0 %v8367, 32
      %v8924 = vpop.permute.xlu0 %8923
      %8925 = vrot.lane.b32.xlu0 %v8368, 32
      %v8926 = vpop.permute.xlu0 %8925
      %8927 = vrot.lane.b32.xlu0 %v8369, 32
      %v8928 = vpop.permute.xlu0 %8927
      %8929 = vrot.lane.b32.xlu0 %v8370, 32
      %v8930 = vpop.permute.xlu0 %8929
      %8931 = vrot.lane.b32.xlu0 %v8371, 32
      %v8932 = vpop.permute.xlu0 %8931
      %8933 = vrot.lane.b32.xlu0 %v8372, 32
      %v8934 = vpop.permute.xlu0 %8933
      %8935 = vrot.lane.b32.xlu0 %v8373, 32
      %v8936 = vpop.permute.xlu0 %8935
      %8937 = vrot.lane.b32.xlu0 %v8374, 32
      %v8938 = vpop.permute.xlu0 %8937
      %8939 = vrot.lane.b32.xlu0 %v8375, 32
      %v8940 = vpop.permute.xlu0 %8939
      %8941 = vrot.lane.b32.xlu0 %v8376, 32
      %v8942 = vpop.permute.xlu0 %8941
      %8943 = vrot.lane.b32.xlu0 %v8377, 32
      %v8944 = vpop.permute.xlu0 %8943
      %8945 = vrot.lane.b32.xlu0 %v8378, 32
      %v8946 = vpop.permute.xlu0 %8945
      %8947 = vrot.lane.b32.xlu0 %v8379, 32
      %v8948 = vpop.permute.xlu0 %8947
      %8949 = vrot.lane.b32.xlu0 %v8380, 32
      %v8950 = vpop.permute.xlu0 %8949
      %8951 = vrot.lane.b32.xlu0 %v8381, 32
      %v8952 = vpop.permute.xlu0 %8951
      %8953 = vrot.lane.b32.xlu0 %v8382, 32
      %v8954 = vpop.permute.xlu0 %8953
      %8955 = vrot.lane.b32.xlu0 %v8383, 32
      %v8956 = vpop.permute.xlu0 %8955
      %8957 = vrot.lane.b32.xlu0 %v8384, 32
      %v8958 = vpop.permute.xlu0 %8957
      %8959 = vrot.lane.b32.xlu0 %v8385, 32
      %v8960 = vpop.permute.xlu0 %8959
      %8961 = vrot.lane.b32.xlu0 %v8386, 32
      %v8962 = vpop.permute.xlu0 %8961
      %9027 = vrot.lane.b32.xlu0 %v8387, 64
      %v9028 = vpop.permute.xlu0 %9027
      %9029 = vrot.lane.b32.xlu0 %v8388, 64
      %v9030 = vpop.permute.xlu0 %9029
      %9031 = vrot.lane.b32.xlu0 %v8389, 64
      %v9032 = vpop.permute.xlu0 %9031
      %9033 = vrot.lane.b32.xlu0 %v8390, 64
      %v9034 = vpop.permute.xlu0 %9033
      %9035 = vrot.lane.b32.xlu0 %v8391, 64
      %v9036 = vpop.permute.xlu0 %9035
      %9037 = vrot.lane.b32.xlu0 %v8392, 64
      %v9038 = vpop.permute.xlu0 %9037
      %9039 = vrot.lane.b32.xlu0 %v8393, 64
      %v9040 = vpop.permute.xlu0 %9039
      %9041 = vrot.lane.b32.xlu0 %v8394, 64
      %v9042 = vpop.permute.xlu0 %9041
      %9043 = vrot.lane.b32.xlu0 %v8395, 64
      %v9044 = vpop.permute.xlu0 %9043
      %9045 = vrot.lane.b32.xlu0 %v8396, 64
      %v9046 = vpop.permute.xlu0 %9045
      %9047 = vrot.lane.b32.xlu0 %v8397, 64
      %v9048 = vpop.permute.xlu0 %9047
      %9049 = vrot.lane.b32.xlu0 %v8398, 64
      %v9050 = vpop.permute.xlu0 %9049
      %9051 = vrot.lane.b32.xlu0 %v8399, 64
      %v9052 = vpop.permute.xlu0 %9051
      %9053 = vrot.lane.b32.xlu0 %v8400, 64
      %v9054 = vpop.permute.xlu0 %9053
      %9055 = vrot.lane.b32.xlu0 %v8401, 64
      %v9056 = vpop.permute.xlu0 %9055
      %9057 = vrot.lane.b32.xlu0 %v8402, 64
      %v9058 = vpop.permute.xlu0 %9057
      %9059 = vrot.lane.b32.xlu0 %v8403, 64
      %v9060 = vpop.permute.xlu0 %9059
      %9061 = vrot.lane.b32.xlu0 %v8404, 64
      %v9062 = vpop.permute.xlu0 %9061
      %9063 = vrot.lane.b32.xlu0 %v8405, 64
      %v9064 = vpop.permute.xlu0 %9063
      %9065 = vrot.lane.b32.xlu0 %v8406, 64
      %v9066 = vpop.permute.xlu0 %9065
      %9067 = vrot.lane.b32.xlu0 %v8407, 64
      %v9068 = vpop.permute.xlu0 %9067
      %9069 = vrot.lane.b32.xlu0 %v8408, 64
      %v9070 = vpop.permute.xlu0 %9069
      %9071 = vrot.lane.b32.xlu0 %v8409, 64
      %v9072 = vpop.permute.xlu0 %9071
      %9073 = vrot.lane.b32.xlu0 %v8410, 64
      %v9074 = vpop.permute.xlu0 %9073
      %9075 = vrot.lane.b32.xlu0 %v8411, 64
      %v9076 = vpop.permute.xlu0 %9075
      %9077 = vrot.lane.b32.xlu0 %v8412, 64
      %v9078 = vpop.permute.xlu0 %9077
      %9079 = vrot.lane.b32.xlu0 %v8413, 64
      %v9080 = vpop.permute.xlu0 %9079
      %9081 = vrot.lane.b32.xlu0 %v8414, 64
      %v9082 = vpop.permute.xlu0 %9081
      %9083 = vrot.lane.b32.xlu0 %v8415, 64
      %v9084 = vpop.permute.xlu0 %9083
      %9085 = vrot.lane.b32.xlu0 %v8416, 64
      %v9086 = vpop.permute.xlu0 %9085
      %9087 = vrot.lane.b32.xlu0 %v8417, 64
      %v9088 = vpop.permute.xlu0 %9087
      %9089 = vrot.lane.b32.xlu0 %v8418, 64
      %v9090 = vpop.permute.xlu0 %9089
      %9155 = vrot.lane.b32.xlu0 %v8419, 96
      %v9156 = vpop.permute.xlu0 %9155
      %9157 = vrot.lane.b32.xlu0 %v8420, 96
      %v9158 = vpop.permute.xlu0 %9157
      %9159 = vrot.lane.b32.xlu0 %v8421, 96
      %v9160 = vpop.permute.xlu0 %9159
      %9161 = vrot.lane.b32.xlu0 %v8422, 96
      %v9162 = vpop.permute.xlu0 %9161
      %9163 = vrot.lane.b32.xlu0 %v8423, 96
      %v9164 = vpop.permute.xlu0 %9163
      %9165 = vrot.lane.b32.xlu0 %v8424, 96
      %v9166 = vpop.permute.xlu0 %9165
      %9167 = vrot.lane.b32.xlu0 %v8425, 96
      %v9168 = vpop.permute.xlu0 %9167
      %9169 = vrot.lane.b32.xlu0 %v8426, 96
      %v9170 = vpop.permute.xlu0 %9169
      %9171 = vrot.lane.b32.xlu0 %v8427, 96
      %v9172 = vpop.permute.xlu0 %9171
      %9173 = vrot.lane.b32.xlu0 %v8428, 96
      %v9174 = vpop.permute.xlu0 %9173
      %9175 = vrot.lane.b32.xlu0 %v8429, 96
      %v9176 = vpop.permute.xlu0 %9175
      %9177 = vrot.lane.b32.xlu0 %v8430, 96
      %v9178 = vpop.permute.xlu0 %9177
      %9179 = vrot.lane.b32.xlu0 %v8431, 96
      %v9180 = vpop.permute.xlu0 %9179
      %9181 = vrot.lane.b32.xlu0 %v8432, 96
      %v9182 = vpop.permute.xlu0 %9181
      %9183 = vrot.lane.b32.xlu0 %v8433, 96
      %v9184 = vpop.permute.xlu0 %9183
      %9185 = vrot.lane.b32.xlu0 %v8434, 96
      %v9186 = vpop.permute.xlu0 %9185
      %9187 = vrot.lane.b32.xlu0 %v8435, 96
      %v9188 = vpop.permute.xlu0 %9187
      %9189 = vrot.lane.b32.xlu0 %v8436, 96
      %v9190 = vpop.permute.xlu0 %9189
      %9191 = vrot.lane.b32.xlu0 %v8437, 96
      %v9192 = vpop.permute.xlu0 %9191
      %9193 = vrot.lane.b32.xlu0 %v8438, 96
      %v9194 = vpop.permute.xlu0 %9193
      %9195 = vrot.lane.b32.xlu0 %v8439, 96
      %v9196 = vpop.permute.xlu0 %9195
      %9197 = vrot.lane.b32.xlu0 %v8440, 96
      %v9198 = vpop.permute.xlu0 %9197
      %9199 = vrot.lane.b32.xlu0 %v8441, 96
      %v9200 = vpop.permute.xlu0 %9199
      %9201 = vrot.lane.b32.xlu0 %v8442, 96
      %v9202 = vpop.permute.xlu0 %9201
      %9203 = vrot.lane.b32.xlu0 %v8443, 96
      %v9204 = vpop.permute.xlu0 %9203
      %9205 = vrot.lane.b32.xlu0 %v8444, 96
      %v9206 = vpop.permute.xlu0 %9205
      %9207 = vrot.lane.b32.xlu0 %v8445, 96
      %v9208 = vpop.permute.xlu0 %9207
      %9209 = vrot.lane.b32.xlu0 %v8446, 96
      %v9210 = vpop.permute.xlu0 %9209
      %9211 = vrot.lane.b32.xlu0 %v8447, 96
      %v9212 = vpop.permute.xlu0 %9211
      %9213 = vrot.lane.b32.xlu0 %v8448, 96
      %v9214 = vpop.permute.xlu0 %9213
      %9215 = vrot.lane.b32.xlu0 %v8449, 96
      %v9216 = vpop.permute.xlu0 %9215
      %9217 = vrot.lane.b32.xlu0 %v8450, 96
      %v9218 = vpop.permute.xlu0 %9217
      %v9251 = vsel %vm280, %v8195, %v8516
      %v9252 = vsel %vm280, %v8196, %v8518
      %v9253 = vsel %vm280, %v8197, %v8520
      %v9254 = vsel %vm280, %v8198, %v8522
      %v9255 = vsel %vm280, %v8199, %v8524
      %v9256 = vsel %vm280, %v8200, %v8526
      %v9257 = vsel %vm280, %v8201, %v8528
      %v9258 = vsel %vm280, %v8202, %v8530
      %v9259 = vsel %vm280, %v8203, %v8532
      %v9260 = vsel %vm280, %v8204, %v8534
      %v9261 = vsel %vm280, %v8205, %v8536
      %v9262 = vsel %vm280, %v8206, %v8538
      %v9263 = vsel %vm280, %v8207, %v8540
      %v9264 = vsel %vm280, %v8208, %v8542
      %v9265 = vsel %vm280, %v8209, %v8544
      %v9266 = vsel %vm280, %v8210, %v8546
      %v9267 = vsel %vm280, %v8211, %v8548
      %v9268 = vsel %vm280, %v8212, %v8550
      %v9269 = vsel %vm280, %v8213, %v8552
      %v9270 = vsel %vm280, %v8214, %v8554
      %v9271 = vsel %vm280, %v8215, %v8556
      %v9272 = vsel %vm280, %v8216, %v8558
      %v9273 = vsel %vm280, %v8217, %v8560
      %v9274 = vsel %vm280, %v8218, %v8562
      %v9275 = vsel %vm280, %v8219, %v8564
      %v9276 = vsel %vm280, %v8220, %v8566
      %v9277 = vsel %vm280, %v8221, %v8568
      %v9278 = vsel %vm280, %v8222, %v8570
      %v9279 = vsel %vm280, %v8223, %v8572
      %v9280 = vsel %vm280, %v8224, %v8574
      %v9281 = vsel %vm280, %v8225, %v8576
      %v9282 = vsel %vm280, %v8226, %v8578
      %v9283 = vsel %vm1490, %v9251, %v8644
      %v9284 = vsel %vm1490, %v9252, %v8646
      %v9285 = vsel %vm1490, %v9253, %v8648
      %v9286 = vsel %vm1490, %v9254, %v8650
      %v9287 = vsel %vm1490, %v9255, %v8652
      %v9288 = vsel %vm1490, %v9256, %v8654
      %v9289 = vsel %vm1490, %v9257, %v8656
      %v9290 = vsel %vm1490, %v9258, %v8658
      %v9291 = vsel %vm1490, %v9259, %v8660
      %v9292 = vsel %vm1490, %v9260, %v8662
      %v9293 = vsel %vm1490, %v9261, %v8664
      %v9294 = vsel %vm1490, %v9262, %v8666
      %v9295 = vsel %vm1490, %v9263, %v8668
      %v9296 = vsel %vm1490, %v9264, %v8670
      %v9297 = vsel %vm1490, %v9265, %v8672
      %v9298 = vsel %vm1490, %v9266, %v8674
      %v9299 = vsel %vm1490, %v9267, %v8676
      %v9300 = vsel %vm1490, %v9268, %v8678
      %v9301 = vsel %vm1490, %v9269, %v8680
      %v9302 = vsel %vm1490, %v9270, %v8682
      %v9303 = vsel %vm1490, %v9271, %v8684
      %v9304 = vsel %vm1490, %v9272, %v8686
      %v9305 = vsel %vm1490, %v9273, %v8688
      %v9306 = vsel %vm1490, %v9274, %v8690
      %v9307 = vsel %vm1490, %v9275, %v8692
      %v9308 = vsel %vm1490, %v9276, %v8694
      %v9309 = vsel %vm1490, %v9277, %v8696
      %v9310 = vsel %vm1490, %v9278, %v8698
      %v9311 = vsel %vm1490, %v9279, %v8700
      %v9312 = vsel %vm1490, %v9280, %v8702
      %v9313 = vsel %vm1490, %v9281, %v8704
      %v9314 = vsel %vm1490, %v9282, %v8706
      %v9315 = vsel %vm1523, %v9283, %v8772
      %v9316 = vsel %vm1523, %v9284, %v8774
      %v9317 = vsel %vm1523, %v9285, %v8776
      %v9318 = vsel %vm1523, %v9286, %v8778
      %v9319 = vsel %vm1523, %v9287, %v8780
      %v9320 = vsel %vm1523, %v9288, %v8782
      %v9321 = vsel %vm1523, %v9289, %v8784
      %v9322 = vsel %vm1523, %v9290, %v8786
      %v9323 = vsel %vm1523, %v9291, %v8788
      %v9324 = vsel %vm1523, %v9292, %v8790
      %v9325 = vsel %vm1523, %v9293, %v8792
      %v9326 = vsel %vm1523, %v9294, %v8794
      %v9327 = vsel %vm1523, %v9295, %v8796
      %v9328 = vsel %vm1523, %v9296, %v8798
      %v9329 = vsel %vm1523, %v9297, %v8800
      %v9330 = vsel %vm1523, %v9298, %v8802
      %v9331 = vsel %vm1523, %v9299, %v8804
      %v9332 = vsel %vm1523, %v9300, %v8806
      %v9333 = vsel %vm1523, %v9301, %v8808
      %v9334 = vsel %vm1523, %v9302, %v8810
      %v9335 = vsel %vm1523, %v9303, %v8812
      %v9336 = vsel %vm1523, %v9304, %v8814
      %v9337 = vsel %vm1523, %v9305, %v8816
      %v9338 = vsel %vm1523, %v9306, %v8818
      %v9339 = vsel %vm1523, %v9307, %v8820
      %v9340 = vsel %vm1523, %v9308, %v8822
      %v9341 = vsel %vm1523, %v9309, %v8824
      %v9342 = vsel %vm1523, %v9310, %v8826
      %v9343 = vsel %vm1523, %v9311, %v8828
      %v9344 = vsel %vm1523, %v9312, %v8830
      %v9345 = vsel %vm1523, %v9313, %v8832
      %v9346 = vsel %vm1523, %v9314, %v8834
      %v9347 = vsel %vm280, %v8323, %v8900
      %v9348 = vsel %vm280, %v8324, %v8902
      %v9349 = vsel %vm280, %v8325, %v8904
      %v9350 = vsel %vm280, %v8326, %v8906
      %v9351 = vsel %vm280, %v8327, %v8908
      %v9352 = vsel %vm280, %v8328, %v8910
      %v9353 = vsel %vm280, %v8329, %v8912
      %v9354 = vsel %vm280, %v8330, %v8914
      %v9355 = vsel %vm280, %v8331, %v8916
      %v9356 = vsel %vm280, %v8332, %v8918
      %v9357 = vsel %vm280, %v8333, %v8920
      %v9358 = vsel %vm280, %v8334, %v8922
      %v9359 = vsel %vm280, %v8335, %v8924
      %v9360 = vsel %vm280, %v8336, %v8926
      %v9361 = vsel %vm280, %v8337, %v8928
      %v9362 = vsel %vm280, %v8338, %v8930
      %v9363 = vsel %vm280, %v8339, %v8932
      %v9364 = vsel %vm280, %v8340, %v8934
      %v9365 = vsel %vm280, %v8341, %v8936
      %v9366 = vsel %vm280, %v8342, %v8938
      %v9367 = vsel %vm280, %v8343, %v8940
      %v9368 = vsel %vm280, %v8344, %v8942
      %v9369 = vsel %vm280, %v8345, %v8944
      %v9370 = vsel %vm280, %v8346, %v8946
      %v9371 = vsel %vm280, %v8347, %v8948
      %v9372 = vsel %vm280, %v8348, %v8950
      %v9373 = vsel %vm280, %v8349, %v8952
      %v9374 = vsel %vm280, %v8350, %v8954
      %v9375 = vsel %vm280, %v8351, %v8956
      %v9376 = vsel %vm280, %v8352, %v8958
      %v9377 = vsel %vm280, %v8353, %v8960
      %v9378 = vsel %vm280, %v8354, %v8962
      %v9379 = vsel %vm1490, %v9347, %v9028
      %v9380 = vsel %vm1490, %v9348, %v9030
      %v9381 = vsel %vm1490, %v9349, %v9032
      %v9382 = vsel %vm1490, %v9350, %v9034
      %v9383 = vsel %vm1490, %v9351, %v9036
      %v9384 = vsel %vm1490, %v9352, %v9038
      %v9385 = vsel %vm1490, %v9353, %v9040
      %v9386 = vsel %vm1490, %v9354, %v9042
      %v9387 = vsel %vm1490, %v9355, %v9044
      %v9388 = vsel %vm1490, %v9356, %v9046
      %v9389 = vsel %vm1490, %v9357, %v9048
      %v9390 = vsel %vm1490, %v9358, %v9050
      %v9391 = vsel %vm1490, %v9359, %v9052
      %v9392 = vsel %vm1490, %v9360, %v9054
      %v9393 = vsel %vm1490, %v9361, %v9056
      %v9394 = vsel %vm1490, %v9362, %v9058
      %v9395 = vsel %vm1490, %v9363, %v9060
      %v9396 = vsel %vm1490, %v9364, %v9062
      %v9397 = vsel %vm1490, %v9365, %v9064
      %v9398 = vsel %vm1490, %v9366, %v9066
      %v9399 = vsel %vm1490, %v9367, %v9068
      %v9400 = vsel %vm1490, %v9368, %v9070
      %v9401 = vsel %vm1490, %v9369, %v9072
      %v9402 = vsel %vm1490, %v9370, %v9074
      %v9403 = vsel %vm1490, %v9371, %v9076
      %v9404 = vsel %vm1490, %v9372, %v9078
      %v9405 = vsel %vm1490, %v9373, %v9080
      %v9406 = vsel %vm1490, %v9374, %v9082
      %v9407 = vsel %vm1490, %v9375, %v9084
      %v9408 = vsel %vm1490, %v9376, %v9086
      %v9409 = vsel %vm1490, %v9377, %v9088
      %v9410 = vsel %vm1490, %v9378, %v9090
      %v9411 = vsel %vm1523, %v9379, %v9156
      %v9412 = vsel %vm1523, %v9380, %v9158
      %v9413 = vsel %vm1523, %v9381, %v9160
      %v9414 = vsel %vm1523, %v9382, %v9162
      %v9415 = vsel %vm1523, %v9383, %v9164
      %v9416 = vsel %vm1523, %v9384, %v9166
      %v9417 = vsel %vm1523, %v9385, %v9168
      %v9418 = vsel %vm1523, %v9386, %v9170
      %v9419 = vsel %vm1523, %v9387, %v9172
      %v9420 = vsel %vm1523, %v9388, %v9174
      %v9421 = vsel %vm1523, %v9389, %v9176
      %v9422 = vsel %vm1523, %v9390, %v9178
      %v9423 = vsel %vm1523, %v9391, %v9180
      %v9424 = vsel %vm1523, %v9392, %v9182
      %v9425 = vsel %vm1523, %v9393, %v9184
      %v9426 = vsel %vm1523, %v9394, %v9186
      %v9427 = vsel %vm1523, %v9395, %v9188
      %v9428 = vsel %vm1523, %v9396, %v9190
      %v9429 = vsel %vm1523, %v9397, %v9192
      %v9430 = vsel %vm1523, %v9398, %v9194
      %v9431 = vsel %vm1523, %v9399, %v9196
      %v9432 = vsel %vm1523, %v9400, %v9198
      %v9433 = vsel %vm1523, %v9401, %v9200
      %v9434 = vsel %vm1523, %v9402, %v9202
      %v9435 = vsel %vm1523, %v9403, %v9204
      %v9436 = vsel %vm1523, %v9404, %v9206
      %v9437 = vsel %vm1523, %v9405, %v9208
      %v9438 = vsel %vm1523, %v9406, %v9210
      %v9439 = vsel %vm1523, %v9407, %v9212
      %v9440 = vsel %vm1523, %v9408, %v9214
      %v9441 = vsel %vm1523, %v9409, %v9216
      %v9442 = vsel %vm1523, %v9410, %v9218
      %v9443 = vpack.c.bf16 %v9316, %v9315
      %v9444 = vpack.c.bf16 %v9412, %v9411
      %v9445 = vpack.c.bf16 %v8452, %v8451
      %v9446 = vpack.c.bf16 %v9318, %v9317
      %v9447 = vpack.c.bf16 %v9414, %v9413
      %v9448 = vpack.c.bf16 %v8454, %v8453
      %v9449 = vpack.c.bf16 %v9320, %v9319
      %v9450 = vpack.c.bf16 %v9416, %v9415
      %v9451 = vpack.c.bf16 %v8456, %v8455
      %v9452 = vpack.c.bf16 %v9322, %v9321
      %v9453 = vpack.c.bf16 %v9418, %v9417
      %v9454 = vpack.c.bf16 %v8458, %v8457
      %v9455 = vpack.c.bf16 %v9324, %v9323
      %v9456 = vpack.c.bf16 %v9420, %v9419
      %v9457 = vpack.c.bf16 %v8460, %v8459
      %v9458 = vpack.c.bf16 %v9326, %v9325
      %v9459 = vpack.c.bf16 %v9422, %v9421
      %v9460 = vpack.c.bf16 %v8462, %v8461
      %v9461 = vpack.c.bf16 %v9328, %v9327
      %v9462 = vpack.c.bf16 %v9424, %v9423
      %v9463 = vpack.c.bf16 %v8464, %v8463
      %v9464 = vpack.c.bf16 %v9330, %v9329
      %v9465 = vpack.c.bf16 %v9426, %v9425
      %v9466 = vpack.c.bf16 %v8466, %v8465
      %v9467 = vpack.c.bf16 %v9332, %v9331
      %v9468 = vpack.c.bf16 %v9428, %v9427
      %v9469 = vpack.c.bf16 %v8468, %v8467
      %v9470 = vpack.c.bf16 %v9334, %v9333
      %v9471 = vpack.c.bf16 %v9430, %v9429
      %v9472 = vpack.c.bf16 %v8470, %v8469
      %v9473 = vpack.c.bf16 %v9336, %v9335
      %v9474 = vpack.c.bf16 %v9432, %v9431
      %v9475 = vpack.c.bf16 %v8472, %v8471
      %v9476 = vpack.c.bf16 %v9338, %v9337
      %v9477 = vpack.c.bf16 %v9434, %v9433
      %v9478 = vpack.c.bf16 %v8474, %v8473
      %v9479 = vpack.c.bf16 %v9340, %v9339
      %v9480 = vpack.c.bf16 %v9436, %v9435
      %v9481 = vpack.c.bf16 %v8476, %v8475
      %v9482 = vpack.c.bf16 %v9342, %v9341
      %v9483 = vpack.c.bf16 %v9438, %v9437
      %v9484 = vpack.c.bf16 %v8478, %v8477
      %v9485 = vpack.c.bf16 %v9344, %v9343
      %v9486 = vpack.c.bf16 %v9440, %v9439
      %v9487 = vpack.c.bf16 %v8480, %v8479
      %v9488 = vpack.c.bf16 %v9346, %v9345
      %v9489 = vpack.c.bf16 %v9442, %v9441
      %v9490 = vpack.c.bf16 %v8482, %v8481
      %v9491 = vld [vmem:[%s5] sm:$0xf]
      %v9492 = vld [vmem:[%s5 + $0x4] sm:$0xf]
      %v9493 = vld [vmem:[%s5 + $0x8] sm:$0xf]
      %v9494 = vld [vmem:[%s5 + $0xc] sm:$0xf]
      %v9495 = vld [vmem:[%s5 + $0x10] sm:$0xf]
      %v9496 = vld [vmem:[%s5 + $0x14] sm:$0xf]
      %v9497 = vld [vmem:[%s5 + $0x18] sm:$0xf]
      %v9498 = vld [vmem:[%s5 + $0x1c] sm:$0xf]
      %v9499 = vld [vmem:[%s5 + $0x20] sm:$0xf]
      %v9500 = vld [vmem:[%s5 + $0x24] sm:$0xf]
      %v9501 = vld [vmem:[%s5 + $0x28] sm:$0xf]
      %v9502 = vld [vmem:[%s5 + $0x2c] sm:$0xf]
      %v9503 = vld [vmem:[%s5 + $0x30] sm:$0xf]
      %v9504 = vld [vmem:[%s5 + $0x34] sm:$0xf]
      %v9505 = vld [vmem:[%s5 + $0x38] sm:$0xf]
      %v9506 = vld [vmem:[%s5 + $0x3c] sm:$0xf]
      %v9507 = vld [vmem:[%s5 + $0x40] sm:$0xf]
      %v9508 = vld [vmem:[%s5 + $0x44] sm:$0xf]
      %v9509 = vld [vmem:[%s5 + $0x48] sm:$0xf]
      %v9510 = vld [vmem:[%s5 + $0x4c] sm:$0xf]
      %v9511 = vld [vmem:[%s5 + $0x50] sm:$0xf]
      %v9512 = vld [vmem:[%s5 + $0x54] sm:$0xf]
      %v9513 = vld [vmem:[%s5 + $0x58] sm:$0xf]
      %v9514 = vld [vmem:[%s5 + $0x5c] sm:$0xf]
      %v9515 = vld [vmem:[%s5 + $0x60] sm:$0xf]
      %v9516 = vld [vmem:[%s5 + $0x64] sm:$0xf]
      %v9517 = vld [vmem:[%s5 + $0x68] sm:$0xf]
      %v9518 = vld [vmem:[%s5 + $0x6c] sm:$0xf]
      %v9519 = vld [vmem:[%s5 + $0x70] sm:$0xf]
      %v9520 = vld [vmem:[%s5 + $0x74] sm:$0xf]
      %v9521 = vld [vmem:[%s5 + $0x78] sm:$0xf]
      %v9522 = vld [vmem:[%s5 + $0x7c] sm:$0xf]
      %v9523 = vld [vmem:[%s5 + $0x80] sm:$0xf]
      %v9524 = vld [vmem:[%s5 + $0x84] sm:$0xf]
      %v9525 = vld [vmem:[%s5 + $0x88] sm:$0xf]
      %v9526 = vld [vmem:[%s5 + $0x8c] sm:$0xf]
      %v9563 = vunpack.c.l.b16 %v9491
      %v9564 = vunpack.c.l.b16 %v9492
      %v9565 = vunpack.c.l.b16 %v9493
      %v9566 = vunpack.c.l.b16 %v9494
      %v9567 = vunpack.c.l.b16 %v9495
      %v9568 = vunpack.c.l.b16 %v9496
      %v9569 = vunpack.c.l.b16 %v9497
      %v9570 = vunpack.c.l.b16 %v9498
      %v9571 = vunpack.c.l.b16 %v9499
      %v9572 = vunpack.c.l.b16 %v9500
      %v9573 = vunpack.c.l.b16 %v9501
      %v9574 = vunpack.c.l.b16 %v9502
      %v9575 = vunpack.c.l.b16 %v9503
      %v9576 = vunpack.c.l.b16 %v9504
      %v9577 = vunpack.c.l.b16 %v9505
      %v9578 = vunpack.c.l.b16 %v9506
      %v9579 = vunpack.c.l.b16 %v9507
      %v9580 = vunpack.c.l.b16 %v9508
      %v9581 = vunpack.c.l.b16 %v9509
      %v9582 = vunpack.c.l.b16 %v9510
      %v9583 = vunpack.c.l.b16 %v9511
      %v9584 = vunpack.c.l.b16 %v9512
      %v9585 = vunpack.c.l.b16 %v9513
      %v9586 = vunpack.c.l.b16 %v9514
      %v9587 = vunpack.c.l.b16 %v9515
      %v9588 = vunpack.c.l.b16 %v9516
      %v9589 = vunpack.c.l.b16 %v9517
      %v9590 = vunpack.c.l.b16 %v9518
      %v9591 = vunpack.c.l.b16 %v9519
      %v9592 = vunpack.c.l.b16 %v9520
      %v9593 = vunpack.c.l.b16 %v9521
      %v9594 = vunpack.c.l.b16 %v9522
      %v9595 = vunpack.c.l.b16 %v9523
      %v9596 = vunpack.c.l.b16 %v9524
      %v9597 = vunpack.c.l.b16 %v9525
      %v9598 = vunpack.c.l.b16 %v9526
      %v9599 = vpack.c.b16 %v9564, %v9563
      %v9600 = vpack.c.b16 %v9566, %v9565
      %v9601 = vpack.c.b16 %v9568, %v9567
      %v9602 = vpack.c.b16 %v9570, %v9569
      %v9603 = vpack.c.b16 %v9572, %v9571
      %v9604 = vpack.c.b16 %v9574, %v9573
      %v9605 = vpack.c.b16 %v9576, %v9575
      %v9606 = vpack.c.b16 %v9578, %v9577
      %v9607 = vpack.c.b16 %v9580, %v9579
      %v9608 = vpack.c.b16 %v9582, %v9581
      %v9609 = vpack.c.b16 %v9584, %v9583
      %v9610 = vpack.c.b16 %v9586, %v9585
      %v9611 = vpack.c.b16 %v9588, %v9587
      %v9612 = vpack.c.b16 %v9590, %v9589
      %v9613 = vpack.c.b16 %v9592, %v9591
      %v9614 = vpack.c.b16 %v9594, %v9593
      %v9615 = vpack.c.b16 %v9596, %v9595
      %v9616 = vpack.c.b16 %v9598, %v9597
      %v9636 = vsel %vm280, %v9445, 0
      %v9639 = vsel %vm280, %v9448, 0
      %v9642 = vsel %vm280, %v9451, 0
      %v9645 = vsel %vm280, %v9454, 0
      %v9648 = vsel %vm280, %v9457, 0
      %v9651 = vsel %vm280, %v9460, 0
      %v9654 = vsel %vm280, %v9463, 0
      %v9657 = vsel %vm280, %v9466, 0
      %v9660 = vsel %vm280, %v9469, 0
      %v9663 = vsel %vm280, %v9472, 0
      %v9666 = vsel %vm280, %v9475, 0
      %v9669 = vsel %vm280, %v9478, 0
      %v9672 = vsel %vm280, %v9481, 0
      %v9675 = vsel %vm280, %v9484, 0
      %v9678 = vsel %vm280, %v9487, 0
      %v9681 = vsel %vm280, %v9490, 0
      %9683 = vmatprep.subr.bf16.mxu0 0
      %9684 = vmatpush1.bf16.msra.mxu0 %v9599
      %9685 = vmatprep.subr.bf16.mxu0 0
      %9686 = vmatpush1.bf16.msra.mxu0 %v9600
      %9687 = vmatprep.subr.bf16.mxu0 0
      %9688 = vmatpush1.bf16.msra.mxu0 %v9601
      %9689 = vmatprep.subr.bf16.mxu0 0
      %9690 = vmatpush1.bf16.msra.mxu0 %v9602
      %9691 = vmatprep.subr.bf16.mxu0 0
      %9692 = vmatpush1.bf16.msra.mxu0 %v9603
      %9693 = vmatprep.subr.bf16.mxu0 0
      %9694 = vmatpush1.bf16.msra.mxu0 %v9604
      %9695 = vmatprep.subr.bf16.mxu0 0
      %9696 = vmatpush1.bf16.msra.mxu0 %v9605
      %9697 = vmatprep.subr.bf16.mxu0 0
      %9698 = vmatpush1.bf16.msra.mxu0 %v9606
      %9699 = vmatprep.subr.bf16.mxu0 0
      %9700 = vmatpush1.bf16.msra.mxu0 %v9607
      %9701 = vmatprep.subr.bf16.mxu0 0
      %9702 = vmatpush1.bf16.msra.mxu0 %v9608
      %9703 = vmatprep.subr.bf16.mxu0 0
      %9704 = vmatpush1.bf16.msra.mxu0 %v9609
      %9705 = vmatprep.subr.bf16.mxu0 0
      %9706 = vmatpush1.bf16.msra.mxu0 %v9610
      %9707 = vmatprep.subr.bf16.mxu0 0
      %9708 = vmatpush1.bf16.msra.mxu0 %v9611
      %9709 = vmatprep.subr.bf16.mxu0 0
      %9710 = vmatpush1.bf16.msra.mxu0 %v9612
      %9711 = vmatprep.subr.bf16.mxu0 0
      %9712 = vmatpush1.bf16.msra.mxu0 %v9613
      %9713 = vmatprep.subr.bf16.mxu0 0
      %9714 = vmatpush1.bf16.msra.mxu0 %v9614
      %9715 = vmatprep.mubr.bf16.mxu0 %v9444
      %9716 = vmatmul.mubr.bf16.gmra.mrb[0].mxu0 %v9443
      %v9717 = vpop.f32.mrb[0].mxu0
      %v9718 = vadd.f32 0.0, %v9717
      %v9719 = vpop.f32.mrb[0].mxu0
      %v9720 = vpop.f32.mrb[0].mxu0
      %v9721 = vadd.f32 0.0, %v9720
      %v9722 = vpop.f32.mrb[0].mxu0
      %9723 = vmatprep.mubr.bf16.mxu0 %v9447
      %9724 = vmatmul.mubr.bf16.gmra.mrb[0].mxu0 %v9446
      %v9725 = vpop.f32.mrb[0].mxu0
      %v9726 = vadd.f32 0.0, %v9725
      %v9727 = vpop.f32.mrb[0].mxu0
      %v9728 = vpop.f32.mrb[0].mxu0
      %v9729 = vadd.f32 0.0, %v9728
      %v9730 = vpop.f32.mrb[0].mxu0
      %9731 = vmatprep.mubr.bf16.mxu0 %v9450
      %9732 = vmatmul.mubr.bf16.gmra.mrb[0].mxu0 %v9449
      %v9733 = vpop.f32.mrb[0].mxu0
      %v9734 = vadd.f32 0.0, %v9733
      %v9735 = vpop.f32.mrb[0].mxu0
      %v9736 = vpop.f32.mrb[0].mxu0
      %v9737 = vadd.f32 0.0, %v9736
      %v9738 = vpop.f32.mrb[0].mxu0
      %9739 = vmatprep.mubr.bf16.mxu0 %v9453
      %9740 = vmatmul.mubr.bf16.gmra.mrb[0].mxu0 %v9452
      %v9741 = vpop.f32.mrb[0].mxu0
      %v9742 = vadd.f32 0.0, %v9741
      %v9743 = vpop.f32.mrb[0].mxu0
      %v9744 = vpop.f32.mrb[0].mxu0
      %v9745 = vadd.f32 0.0, %v9744
      %v9746 = vpop.f32.mrb[0].mxu0
      %9747 = vmatprep.mubr.bf16.mxu0 %v9456
      %9748 = vmatmul.mubr.bf16.gmra.mrb[0].mxu0 %v9455
      %v9749 = vpop.f32.mrb[0].mxu0
      %v9750 = vadd.f32 0.0, %v9749
      %v9751 = vpop.f32.mrb[0].mxu0
      %v9752 = vpop.f32.mrb[0].mxu0
      %v9753 = vadd.f32 0.0, %v9752
      %v9754 = vpop.f32.mrb[0].mxu0
      %9755 = vmatprep.mubr.bf16.mxu0 %v9459
      %9756 = vmatmul.mubr.bf16.gmra.mrb[0].mxu0 %v9458
      %v9757 = vpop.f32.mrb[0].mxu0
      %v9758 = vadd.f32 0.0, %v9757
      %v9759 = vpop.f32.mrb[0].mxu0
      %v9760 = vpop.f32.mrb[0].mxu0
      %v9761 = vadd.f32 0.0, %v9760
      %v9762 = vpop.f32.mrb[0].mxu0
      %9763 = vmatprep.mubr.bf16.mxu0 %v9462
      %9764 = vmatmul.mubr.bf16.gmra.mrb[0].mxu0 %v9461
      %v9765 = vpop.f32.mrb[0].mxu0
      %v9766 = vadd.f32 0.0, %v9765
      %v9767 = vpop.f32.mrb[0].mxu0
      %v9768 = vpop.f32.mrb[0].mxu0
      %v9769 = vadd.f32 0.0, %v9768
      %v9770 = vpop.f32.mrb[0].mxu0
      %9771 = vmatprep.mubr.bf16.mxu0 %v9465
      %9772 = vmatmul.mubr.bf16.gmra.mrb[0].mxu0 %v9464
      %v9773 = vpop.f32.mrb[0].mxu0
      %v9774 = vadd.f32 0.0, %v9773
      %v9775 = vpop.f32.mrb[0].mxu0
      %v9776 = vpop.f32.mrb[0].mxu0
      %v9777 = vadd.f32 0.0, %v9776
      %v9778 = vpop.f32.mrb[0].mxu0
      %9779 = vmatprep.mubr.bf16.mxu0 %v9468
      %9780 = vmatmul.mubr.bf16.gmra.mrb[0].mxu0 %v9467
      %v9781 = vpop.f32.mrb[0].mxu0
      %v9782 = vadd.f32 0.0, %v9781
      %v9783 = vpop.f32.mrb[0].mxu0
      %v9784 = vpop.f32.mrb[0].mxu0
      %v9785 = vadd.f32 0.0, %v9784
      %v9786 = vpop.f32.mrb[0].mxu0
      %9787 = vmatprep.mubr.bf16.mxu0 %v9471
      %9788 = vmatmul.mubr.bf16.gmra.mrb[0].mxu0 %v9470
      %v9789 = vpop.f32.mrb[0].mxu0
      %v9790 = vadd.f32 0.0, %v9789
      %v9791 = vpop.f32.mrb[0].mxu0
      %v9792 = vpop.f32.mrb[0].mxu0
      %v9793 = vadd.f32 0.0, %v9792
      %v9794 = vpop.f32.mrb[0].mxu0
      %9795 = vmatprep.mubr.bf16.mxu0 %v9474
      %9796 = vmatmul.mubr.bf16.gmra.mrb[0].mxu0 %v9473
      %v9797 = vpop.f32.mrb[0].mxu0
      %v9798 = vadd.f32 0.0, %v9797
      %v9799 = vpop.f32.mrb[0].mxu0
      %v9800 = vpop.f32.mrb[0].mxu0
      %v9801 = vadd.f32 0.0, %v9800
      %v9802 = vpop.f32.mrb[0].mxu0
      %9803 = vmatprep.mubr.bf16.mxu0 %v9477
      %9804 = vmatmul.mubr.bf16.gmra.mrb[0].mxu0 %v9476
      %v9805 = vpop.f32.mrb[0].mxu0
      %v9806 = vadd.f32 0.0, %v9805
      %v9807 = vpop.f32.mrb[0].mxu0
      %v9808 = vpop.f32.mrb[0].mxu0
      %v9809 = vadd.f32 0.0, %v9808
      %v9810 = vpop.f32.mrb[0].mxu0
      %9811 = vmatprep.mubr.bf16.mxu0 %v9480
      %9812 = vmatmul.mubr.bf16.gmra.mrb[0].mxu0 %v9479
      %v9813 = vpop.f32.mrb[0].mxu0
      %v9814 = vadd.f32 0.0, %v9813
      %v9815 = vpop.f32.mrb[0].mxu0
      %v9816 = vpop.f32.mrb[0].mxu0
      %v9817 = vadd.f32 0.0, %v9816
      %v9818 = vpop.f32.mrb[0].mxu0
      %9819 = vmatprep.mubr.bf16.mxu0 %v9483
      %9820 = vmatmul.mubr.bf16.gmra.mrb[0].mxu0 %v9482
      %v9821 = vpop.f32.mrb[0].mxu0
      %v9822 = vadd.f32 0.0, %v9821
      %v9823 = vpop.f32.mrb[0].mxu0
      %v9824 = vpop.f32.mrb[0].mxu0
      %v9825 = vadd.f32 0.0, %v9824
      %v9826 = vpop.f32.mrb[0].mxu0
      %9827 = vmatprep.mubr.bf16.mxu0 %v9486
      %9828 = vmatmul.mubr.bf16.gmra.mrb[0].mxu0 %v9485
      %v9829 = vpop.f32.mrb[0].mxu0
      %v9830 = vadd.f32 0.0, %v9829
      %v9831 = vpop.f32.mrb[0].mxu0
      %v9832 = vpop.f32.mrb[0].mxu0
      %v9833 = vadd.f32 0.0, %v9832
      %v9834 = vpop.f32.mrb[0].mxu0
      %9835 = vmatprep.mubr.bf16.mxu0 %v9489
      %9836 = vmatmul.mubr.bf16.gmra.mrb[0].mxu0 %v9488
      %v9837 = vpop.f32.mrb[0].mxu0
      %v9838 = vadd.f32 0.0, %v9837
      %v9839 = vpop.f32.mrb[0].mxu0
      %v9840 = vpop.f32.mrb[0].mxu0
      %v9841 = vadd.f32 0.0, %v9840
      %v9842 = vpop.f32.mrb[0].mxu0
      %9843 = vdwg.mxu0
      %9844 = vmatprep.subr.bf16.mxu0 0
      %9845 = vmatpush1.bf16.msra.mxu0 %v9615
      %9846 = vmatprep.subr.bf16.mxu0 0
      %9847 = vmatpush1.bf16.msra.mxu0 %v9616
      %9848 = vmatprep.subr.bf16.mxu0 0
      %9849 = vmatpush1.bf16.msra.mxu0 0
      %9850 = vmatprep.subr.bf16.mxu0 0
      %9851 = vmatpush1.bf16.msra.mxu0 0
      %9852 = vmatprep.subr.bf16.mxu0 0
      %9853 = vmatpush1.bf16.msra.mxu0 0
      %9854 = vmatprep.subr.bf16.mxu0 0
      %9855 = vmatpush1.bf16.msra.mxu0 0
      %9856 = vmatprep.subr.bf16.mxu0 0
      %9857 = vmatpush1.bf16.msra.mxu0 0
      %9858 = vmatprep.subr.bf16.mxu0 0
      %9859 = vmatpush1.bf16.msra.mxu0 0
      %9860 = vmatprep.subr.bf16.mxu0 0
      %9861 = vmatpush1.bf16.msra.mxu0 0
      %9862 = vmatprep.subr.bf16.mxu0 0
      %9863 = vmatpush1.bf16.msra.mxu0 0
      %9864 = vmatprep.subr.bf16.mxu0 0
      %9865 = vmatpush1.bf16.msra.mxu0 0
      %9866 = vmatprep.subr.bf16.mxu0 0
      %9867 = vmatpush1.bf16.msra.mxu0 0
      %9868 = vmatprep.subr.bf16.mxu0 0
      %9869 = vmatpush1.bf16.msra.mxu0 0
      %9870 = vmatprep.subr.bf16.mxu0 0
      %9871 = vmatpush1.bf16.msra.mxu0 0
      %9872 = vmatprep.subr.bf16.mxu0 0
      %9873 = vmatpush1.bf16.msra.mxu0 0
      %9874 = vmatprep.subr.bf16.mxu0 0
      %9875 = vmatpush1.bf16.msra.mxu0 0
      %9876 = vmatprep.mubr.bf16.mxu0 0
      %9877 = vmatmul.mubr.bf16.gmra.mrb[0].mxu0 %v9636
      %v9878 = vpop.f32.mrb[0].mxu0
      %v9879 = vadd.f32 %v9718, %v9878
      %v9880 = vpop.f32.mrb[0].mxu0
      %v9881 = vpop.f32.mrb[0].mxu0
      %v9882 = vadd.f32 %v9721, %v9881
      %v9883 = vpop.f32.mrb[0].mxu0
      %9884 = vmatprep.mubr.bf16.mxu0 0
      %9885 = vmatmul.mubr.bf16.gmra.mrb[0].mxu0 %v9639
      %v9886 = vpop.f32.mrb[0].mxu0
      %v9887 = vadd.f32 %v9726, %v9886
      %v9888 = vpop.f32.mrb[0].mxu0
      %v9889 = vpop.f32.mrb[0].mxu0
      %v9890 = vadd.f32 %v9729, %v9889
      %v9891 = vpop.f32.mrb[0].mxu0
      %9892 = vmatprep.mubr.bf16.mxu0 0
      %9893 = vmatmul.mubr.bf16.gmra.mrb[0].mxu0 %v9642
      %v9894 = vpop.f32.mrb[0].mxu0
      %v9895 = vadd.f32 %v9734, %v9894
      %v9896 = vpop.f32.mrb[0].mxu0
      %v9897 = vpop.f32.mrb[0].mxu0
      %v9898 = vadd.f32 %v9737, %v9897
      %v9899 = vpop.f32.mrb[0].mxu0
      %9900 = vmatprep.mubr.bf16.mxu0 0
      %9901 = vmatmul.mubr.bf16.gmra.mrb[0].mxu0 %v9645
      %v9902 = vpop.f32.mrb[0].mxu0
      %v9903 = vadd.f32 %v9742, %v9902
      %v9904 = vpop.f32.mrb[0].mxu0
      %v9905 = vpop.f32.mrb[0].mxu0
      %v9906 = vadd.f32 %v9745, %v9905
      %v9907 = vpop.f32.mrb[0].mxu0
      %9908 = vmatprep.mubr.bf16.mxu0 0
      %9909 = vmatmul.mubr.bf16.gmra.mrb[0].mxu0 %v9648
      %v9910 = vpop.f32.mrb[0].mxu0
      %v9911 = vadd.f32 %v9750, %v9910
      %v9912 = vpop.f32.mrb[0].mxu0
      %v9913 = vpop.f32.mrb[0].mxu0
      %v9914 = vadd.f32 %v9753, %v9913
      %v9915 = vpop.f32.mrb[0].mxu0
      %9916 = vmatprep.mubr.bf16.mxu0 0
      %9917 = vmatmul.mubr.bf16.gmra.mrb[0].mxu0 %v9651
      %v9918 = vpop.f32.mrb[0].mxu0
      %v9919 = vadd.f32 %v9758, %v9918
      %v9920 = vpop.f32.mrb[0].mxu0
      %v9921 = vpop.f32.mrb[0].mxu0
      %v9922 = vadd.f32 %v9761, %v9921
      %v9923 = vpop.f32.mrb[0].mxu0
      %9924 = vmatprep.mubr.bf16.mxu0 0
      %9925 = vmatmul.mubr.bf16.gmra.mrb[0].mxu0 %v9654
      %v9926 = vpop.f32.mrb[0].mxu0
      %v9927 = vadd.f32 %v9766, %v9926
      %v9928 = vpop.f32.mrb[0].mxu0
      %v9929 = vpop.f32.mrb[0].mxu0
      %v9930 = vadd.f32 %v9769, %v9929
      %v9931 = vpop.f32.mrb[0].mxu0
      %9932 = vmatprep.mubr.bf16.mxu0 0
      %9933 = vmatmul.mubr.bf16.gmra.mrb[0].mxu0 %v9657
      %v9934 = vpop.f32.mrb[0].mxu0
      %v9935 = vadd.f32 %v9774, %v9934
      %v9936 = vpop.f32.mrb[0].mxu0
      %v9937 = vpop.f32.mrb[0].mxu0
      %v9938 = vadd.f32 %v9777, %v9937
      %v9939 = vpop.f32.mrb[0].mxu0
      %9940 = vmatprep.mubr.bf16.mxu0 0
      %9941 = vmatmul.mubr.bf16.gmra.mrb[0].mxu0 %v9660
      %v9942 = vpop.f32.mrb[0].mxu0
      %v9943 = vadd.f32 %v9782, %v9942
      %v9944 = vpop.f32.mrb[0].mxu0
      %v9945 = vpop.f32.mrb[0].mxu0
      %v9946 = vadd.f32 %v9785, %v9945
      %v9947 = vpop.f32.mrb[0].mxu0
      %9948 = vmatprep.mubr.bf16.mxu0 0
      %9949 = vmatmul.mubr.bf16.gmra.mrb[0].mxu0 %v9663
      %v9950 = vpop.f32.mrb[0].mxu0
      %v9951 = vadd.f32 %v9790, %v9950
      %v9952 = vpop.f32.mrb[0].mxu0
      %v9953 = vpop.f32.mrb[0].mxu0
      %v9954 = vadd.f32 %v9793, %v9953
      %v9955 = vpop.f32.mrb[0].mxu0
      %9956 = vmatprep.mubr.bf16.mxu0 0
      %9957 = vmatmul.mubr.bf16.gmra.mrb[0].mxu0 %v9666
      %v9958 = vpop.f32.mrb[0].mxu0
      %v9959 = vadd.f32 %v9798, %v9958
      %v9960 = vpop.f32.mrb[0].mxu0
      %v9961 = vpop.f32.mrb[0].mxu0
      %v9962 = vadd.f32 %v9801, %v9961
      %v9963 = vpop.f32.mrb[0].mxu0
      %9964 = vmatprep.mubr.bf16.mxu0 0
      %9965 = vmatmul.mubr.bf16.gmra.mrb[0].mxu0 %v9669
      %v9966 = vpop.f32.mrb[0].mxu0
      %v9967 = vadd.f32 %v9806, %v9966
      %v9968 = vpop.f32.mrb[0].mxu0
      %v9969 = vpop.f32.mrb[0].mxu0
      %v9970 = vadd.f32 %v9809, %v9969
      %v9971 = vpop.f32.mrb[0].mxu0
      %9972 = vmatprep.mubr.bf16.mxu0 0
      %9973 = vmatmul.mubr.bf16.gmra.mrb[0].mxu0 %v9672
      %v9974 = vpop.f32.mrb[0].mxu0
      %v9975 = vadd.f32 %v9814, %v9974
      %v9976 = vpop.f32.mrb[0].mxu0
      %v9977 = vpop.f32.mrb[0].mxu0
      %v9978 = vadd.f32 %v9817, %v9977
      %v9979 = vpop.f32.mrb[0].mxu0
      %9980 = vmatprep.mubr.bf16.mxu0 0
      %9981 = vmatmul.mubr.bf16.gmra.mrb[0].mxu0 %v9675
      %v9982 = vpop.f32.mrb[0].mxu0
      %v9983 = vadd.f32 %v9822, %v9982
      %v9984 = vpop.f32.mrb[0].mxu0
      %v9985 = vpop.f32.mrb[0].mxu0
      %v9986 = vadd.f32 %v9825, %v9985
      %v9987 = vpop.f32.mrb[0].mxu0
      %9988 = vmatprep.mubr.bf16.mxu0 0
      %9989 = vmatmul.mubr.bf16.gmra.mrb[0].mxu0 %v9678
      %v9990 = vpop.f32.mrb[0].mxu0
      %v9991 = vadd.f32 %v9830, %v9990
      %v9992 = vpop.f32.mrb[0].mxu0
      %v9993 = vpop.f32.mrb[0].mxu0
      %v9994 = vadd.f32 %v9833, %v9993
      %v9995 = vpop.f32.mrb[0].mxu0
      %9996 = vmatprep.mubr.bf16.mxu0 0
      %9997 = vmatmul.mubr.bf16.gmra.mrb[0].mxu0 %v9681
      %v9998 = vpop.f32.mrb[0].mxu0
      %v9999 = vadd.f32 %v9838, %v9998
      %v10000 = vpop.f32.mrb[0].mxu0
      %v10001 = vpop.f32.mrb[0].mxu0
      %v10002 = vadd.f32 %v9841, %v10001
      %v10003 = vpop.f32.mrb[0].mxu0
      %10004 = vdwg.mxu0
      %vm10005 = vcmp.gt.f32.partialorder %v9879, 0.0
      %vm10006 = vcmp.gt.f32.partialorder %v9882, 0.0
      %vm10007 = vcmp.gt.f32.partialorder %v9887, 0.0
      %vm10008 = vcmp.gt.f32.partialorder %v9890, 0.0
      %vm10009 = vcmp.gt.f32.partialorder %v9895, 0.0
      %vm10010 = vcmp.gt.f32.partialorder %v9898, 0.0
      %vm10011 = vcmp.gt.f32.partialorder %v9903, 0.0
      %vm10012 = vcmp.gt.f32.partialorder %v9906, 0.0
      %vm10013 = vcmp.gt.f32.partialorder %v9911, 0.0
      %vm10014 = vcmp.gt.f32.partialorder %v9914, 0.0
      %vm10015 = vcmp.gt.f32.partialorder %v9919, 0.0
      %vm10016 = vcmp.gt.f32.partialorder %v9922, 0.0
      %vm10017 = vcmp.gt.f32.partialorder %v9927, 0.0
      %vm10018 = vcmp.gt.f32.partialorder %v9930, 0.0
      %vm10019 = vcmp.gt.f32.partialorder %v9935, 0.0
      %vm10020 = vcmp.gt.f32.partialorder %v9938, 0.0
      %vm10021 = vcmp.gt.f32.partialorder %v9943, 0.0
      %vm10022 = vcmp.gt.f32.partialorder %v9946, 0.0
      %vm10023 = vcmp.gt.f32.partialorder %v9951, 0.0
      %vm10024 = vcmp.gt.f32.partialorder %v9954, 0.0
      %vm10025 = vcmp.gt.f32.partialorder %v9959, 0.0
      %vm10026 = vcmp.gt.f32.partialorder %v9962, 0.0
      %vm10027 = vcmp.gt.f32.partialorder %v9967, 0.0
      %vm10028 = vcmp.gt.f32.partialorder %v9970, 0.0
      %vm10029 = vcmp.gt.f32.partialorder %v9975, 0.0
      %vm10030 = vcmp.gt.f32.partialorder %v9978, 0.0
      %vm10031 = vcmp.gt.f32.partialorder %v9983, 0.0
      %vm10032 = vcmp.gt.f32.partialorder %v9986, 0.0
      %vm10033 = vcmp.gt.f32.partialorder %v9991, 0.0
      %vm10034 = vcmp.gt.f32.partialorder %v9994, 0.0
      %vm10035 = vcmp.gt.f32.partialorder %v9999, 0.0
      %vm10036 = vcmp.gt.f32.partialorder %v10002, 0.0
      %v10037 = vmul.f32 %v9879, 0.1
      %v10038 = vmul.f32 %v9882, 0.1
      %v10039 = vmul.f32 %v9887, 0.1
      %v10040 = vmul.f32 %v9890, 0.1
      %v10041 = vmul.f32 %v9895, 0.1
      %v10042 = vmul.f32 %v9898, 0.1
      %v10043 = vmul.f32 %v9903, 0.1
      %v10044 = vmul.f32 %v9906, 0.1
      %v10045 = vmul.f32 %v9911, 0.1
      %v10046 = vmul.f32 %v9914, 0.1
      %v10047 = vmul.f32 %v9919, 0.1
      %v10048 = vmul.f32 %v9922, 0.1
      %v10049 = vmul.f32 %v9927, 0.1
      %v10050 = vmul.f32 %v9930, 0.1
      %v10051 = vmul.f32 %v9935, 0.1
      %v10052 = vmul.f32 %v9938, 0.1
      %v10053 = vmul.f32 %v9943, 0.1
      %v10054 = vmul.f32 %v9946, 0.1
      %v10055 = vmul.f32 %v9951, 0.1
      %v10056 = vmul.f32 %v9954, 0.1
      %v10057 = vmul.f32 %v9959, 0.1
      %v10058 = vmul.f32 %v9962, 0.1
      %v10059 = vmul.f32 %v9967, 0.1
      %v10060 = vmul.f32 %v9970, 0.1
      %v10061 = vmul.f32 %v9975, 0.1
      %v10062 = vmul.f32 %v9978, 0.1
      %v10063 = vmul.f32 %v9983, 0.1
      %v10064 = vmul.f32 %v9986, 0.1
      %v10065 = vmul.f32 %v9991, 0.1
      %v10066 = vmul.f32 %v9994, 0.1
      %v10067 = vmul.f32 %v9999, 0.1
      %v10068 = vmul.f32 %v10002, 0.1
      %v10069 = vsel %vm10005, %v9879, %v10037
      %v10070 = vsel %vm10006, %v9882, %v10038
      %v10071 = vsel %vm10007, %v9887, %v10039
      %v10072 = vsel %vm10008, %v9890, %v10040
      %v10073 = vsel %vm10009, %v9895, %v10041
      %v10074 = vsel %vm10010, %v9898, %v10042
      %v10075 = vsel %vm10011, %v9903, %v10043
      %v10076 = vsel %vm10012, %v9906, %v10044
      %v10077 = vsel %vm10013, %v9911, %v10045
      %v10078 = vsel %vm10014, %v9914, %v10046
      %v10079 = vsel %vm10015, %v9919, %v10047
      %v10080 = vsel %vm10016, %v9922, %v10048
      %v10081 = vsel %vm10017, %v9927, %v10049
      %v10082 = vsel %vm10018, %v9930, %v10050
      %v10083 = vsel %vm10019, %v9935, %v10051
      %v10084 = vsel %vm10020, %v9938, %v10052
      %v10085 = vsel %vm10021, %v9943, %v10053
      %v10086 = vsel %vm10022, %v9946, %v10054
      %v10087 = vsel %vm10023, %v9951, %v10055
      %v10088 = vsel %vm10024, %v9954, %v10056
      %v10089 = vsel %vm10025, %v9959, %v10057
      %v10090 = vsel %vm10026, %v9962, %v10058
      %v10091 = vsel %vm10027, %v9967, %v10059
      %v10092 = vsel %vm10028, %v9970, %v10060
      %v10093 = vsel %vm10029, %v9975, %v10061
      %v10094 = vsel %vm10030, %v9978, %v10062
      %v10095 = vsel %vm10031, %v9983, %v10063
      %v10096 = vsel %vm10032, %v9986, %v10064
      %v10097 = vsel %vm10033, %v9991, %v10065
      %v10098 = vsel %vm10034, %v9994, %v10066
      %v10099 = vsel %vm10035, %v9999, %v10067
      %v10100 = vsel %vm10036, %v10002, %v10068
      %v10101 = vld [vmem:[#allocation3] sm:$0xff]
      %v10102 = vld [vmem:[#allocation3 + $0x8] sm:$0xff]
      %v10103 = vld [vmem:[#allocation3 + $0x10] sm:$0xff]
      %v10104 = vld [vmem:[#allocation3 + $0x18] sm:$0xff]
      %v10105 = vld [vmem:[#allocation3 + $0x20] sm:$0xff]
      %v10106 = vld [vmem:[#allocation3 + $0x28] sm:$0xff]
      %v10107 = vld [vmem:[#allocation3 + $0x30] sm:$0xff]
      %v10108 = vld [vmem:[#allocation3 + $0x38] sm:$0xff]
      %v10109 = vld [vmem:[#allocation3 + $0x40] sm:$0xff]
      %v10110 = vld [vmem:[#allocation3 + $0x48] sm:$0xff]
      %v10111 = vld [vmem:[#allocation3 + $0x50] sm:$0xff]
      %v10112 = vld [vmem:[#allocation3 + $0x58] sm:$0xff]
      %v10113 = vld [vmem:[#allocation3 + $0x60] sm:$0xff]
      %v10114 = vld [vmem:[#allocation3 + $0x68] sm:$0xff]
      %v10115 = vld [vmem:[#allocation3 + $0x70] sm:$0xff]
      %v10116 = vld [vmem:[#allocation3 + $0x78] sm:$0xff]
      %v10117 = vld [vmem:[#allocation3 + $0x80] sm:$0xff]
      %v10118 = vld [vmem:[#allocation3 + $0x88] sm:$0xff]
      %v10119 = vld [vmem:[#allocation3 + $0x90] sm:$0xff]
      %v10120 = vld [vmem:[#allocation3 + $0x98] sm:$0xff]
      %v10121 = vld [vmem:[#allocation3 + $0xa0] sm:$0xff]
      %v10122 = vld [vmem:[#allocation3 + $0xa8] sm:$0xff]
      %v10123 = vld [vmem:[#allocation3 + $0xb0] sm:$0xff]
      %v10124 = vld [vmem:[#allocation3 + $0xb8] sm:$0xff]
      %v10125 = vld [vmem:[#allocation3 + $0xc0] sm:$0xff]
      %v10126 = vld [vmem:[#allocation3 + $0xc8] sm:$0xff]
      %v10127 = vld [vmem:[#allocation3 + $0xd0] sm:$0xff]
      %v10128 = vld [vmem:[#allocation3 + $0xd8] sm:$0xff]
      %v10129 = vld [vmem:[#allocation3 + $0xe0] sm:$0xff]
      %v10130 = vld [vmem:[#allocation3 + $0xe8] sm:$0xff]
      %v10131 = vld [vmem:[#allocation3 + $0xf0] sm:$0xff]
      %v10132 = vld [vmem:[#allocation3 + $0xf8] sm:$0xff]
      %v10133 = vadd.f32 %v10069, %v10101
      %v10134 = vadd.f32 %v10070, %v10102
      %v10135 = vadd.f32 %v10071, %v10103
      %v10136 = vadd.f32 %v10072, %v10104
      %v10137 = vadd.f32 %v10073, %v10105
      %v10138 = vadd.f32 %v10074, %v10106
      %v10139 = vadd.f32 %v10075, %v10107
      %v10140 = vadd.f32 %v10076, %v10108
      %v10141 = vadd.f32 %v10077, %v10109
      %v10142 = vadd.f32 %v10078, %v10110
      %v10143 = vadd.f32 %v10079, %v10111
      %v10144 = vadd.f32 %v10080, %v10112
      %v10145 = vadd.f32 %v10081, %v10113
      %v10146 = vadd.f32 %v10082, %v10114
      %v10147 = vadd.f32 %v10083, %v10115
      %v10148 = vadd.f32 %v10084, %v10116
      %v10149 = vadd.f32 %v10085, %v10117
      %v10150 = vadd.f32 %v10086, %v10118
      %v10151 = vadd.f32 %v10087, %v10119
      %v10152 = vadd.f32 %v10088, %v10120
      %v10153 = vadd.f32 %v10089, %v10121
      %v10154 = vadd.f32 %v10090, %v10122
      %v10155 = vadd.f32 %v10091, %v10123
      %v10156 = vadd.f32 %v10092, %v10124
      %v10157 = vadd.f32 %v10093, %v10125
      %v10158 = vadd.f32 %v10094, %v10126
      %v10159 = vadd.f32 %v10095, %v10127
      %v10160 = vadd.f32 %v10096, %v10128
      %v10161 = vadd.f32 %v10097, %v10129
      %v10162 = vadd.f32 %v10098, %v10130
      %v10163 = vadd.f32 %v10099, %v10131
      %v10164 = vadd.f32 %v10100, %v10132
      %10165 = vst.msk [vmem:[%s368 + $0x1] sm:$0xff] %vm280, %v10133
      %10166 = vst.msk [vmem:[%s368 + $0x9] sm:$0xff] %vm280, %v10134
      %10167 = vst.msk [vmem:[%s368 + $0x19] sm:$0xff] %vm280, %v10135
      %10168 = vst.msk [vmem:[%s368 + $0x21] sm:$0xff] %vm280, %v10136
      %10169 = vst.msk [vmem:[%s368 + $0x31] sm:$0xff] %vm280, %v10137
      %10170 = vst.msk [vmem:[%s368 + $0x39] sm:$0xff] %vm280, %v10138
      %10171 = vst.msk [vmem:[%s368 + $0x49] sm:$0xff] %vm280, %v10139
      %10172 = vst.msk [vmem:[%s368 + $0x51] sm:$0xff] %vm280, %v10140
      %10173 = vst.msk [vmem:[%s368 + $0x61] sm:$0xff] %vm280, %v10141
      %10174 = vst.msk [vmem:[%s368 + $0x69] sm:$0xff] %vm280, %v10142
      %10175 = vst.msk [vmem:[%s368 + $0x79] sm:$0xff] %vm280, %v10143
      %10176 = vst.msk [vmem:[%s368 + $0x81] sm:$0xff] %vm280, %v10144
      %10177 = vst.msk [vmem:[%s368 + $0x91] sm:$0xff] %vm280, %v10145
      %10178 = vst.msk [vmem:[%s368 + $0x99] sm:$0xff] %vm280, %v10146
      %10179 = vst.msk [vmem:[%s368 + $0xa9] sm:$0xff] %vm280, %v10147
      %10180 = vst.msk [vmem:[%s368 + $0xb1] sm:$0xff] %vm280, %v10148
      %10181 = vst.msk [vmem:[%s368 + $0xc1] sm:$0xff] %vm280, %v10149
      %10182 = vst.msk [vmem:[%s368 + $0xc9] sm:$0xff] %vm280, %v10150
      %10183 = vst.msk [vmem:[%s368 + $0xd9] sm:$0xff] %vm280, %v10151
      %10184 = vst.msk [vmem:[%s368 + $0xe1] sm:$0xff] %vm280, %v10152
      %10185 = vst.msk [vmem:[%s368 + $0xf1] sm:$0xff] %vm280, %v10153
      %10186 = vst.msk [vmem:[%s368 + $0xf9] sm:$0xff] %vm280, %v10154
      %10187 = vst.msk [vmem:[%s368 + $0x109] sm:$0xff] %vm280, %v10155
      %10188 = vst.msk [vmem:[%s368 + $0x111] sm:$0xff] %vm280, %v10156
      %10189 = vst.msk [vmem:[%s368 + $0x121] sm:$0xff] %vm280, %v10157
      %10190 = vst.msk [vmem:[%s368 + $0x129] sm:$0xff] %vm280, %v10158
      %10191 = vst.msk [vmem:[%s368 + $0x139] sm:$0xff] %vm280, %v10159
      %10192 = vst.msk [vmem:[%s368 + $0x141] sm:$0xff] %vm280, %v10160
      %10193 = vst.msk [vmem:[%s368 + $0x151] sm:$0xff] %vm280, %v10161
      %10194 = vst.msk [vmem:[%s368 + $0x159] sm:$0xff] %vm280, %v10162
      %10195 = vst.msk [vmem:[%s368 + $0x169] sm:$0xff] %vm280, %v10163
      %10196 = vst.msk [vmem:[%s368 + $0x171] sm:$0xff] %vm280, %v10164
      %v10197 = vld [vmem:[#allocation2] sm:$0xff]
      %v10198 = vld [vmem:[#allocation2 + $0x8] sm:$0xff]
      %v10199 = vld [vmem:[#allocation2 + $0x18] sm:$0xff]
      %v10200 = vld [vmem:[#allocation2 + $0x20] sm:$0xff]
      %v10201 = vld [vmem:[#allocation2 + $0x30] sm:$0xff]
      %v10202 = vld [vmem:[#allocation2 + $0x38] sm:$0xff]
      %v10203 = vld [vmem:[#allocation2 + $0x48] sm:$0xff]
      %v10204 = vld [vmem:[#allocation2 + $0x50] sm:$0xff]
      %v10205 = vld [vmem:[#allocation2 + $0x60] sm:$0xff]
      %v10206 = vld [vmem:[#allocation2 + $0x68] sm:$0xff]
      %v10207 = vld [vmem:[#allocation2 + $0x78] sm:$0xff]
      %v10208 = vld [vmem:[#allocation2 + $0x80] sm:$0xff]
      %v10209 = vld [vmem:[#allocation2 + $0x90] sm:$0xff]
      %v10210 = vld [vmem:[#allocation2 + $0x98] sm:$0xff]
      %v10211 = vld [vmem:[#allocation2 + $0xa8] sm:$0xff]
      %v10212 = vld [vmem:[#allocation2 + $0xb0] sm:$0xff]
      %v10213 = vld [vmem:[#allocation2 + $0xc0] sm:$0xff]
      %v10214 = vld [vmem:[#allocation2 + $0xc8] sm:$0xff]
      %v10215 = vld [vmem:[#allocation2 + $0xd8] sm:$0xff]
      %v10216 = vld [vmem:[#allocation2 + $0xe0] sm:$0xff]
      %v10217 = vld [vmem:[#allocation2 + $0xf0] sm:$0xff]
      %v10218 = vld [vmem:[#allocation2 + $0xf8] sm:$0xff]
      %v10219 = vld [vmem:[#allocation2 + $0x108] sm:$0xff]
      %v10220 = vld [vmem:[#allocation2 + $0x110] sm:$0xff]
      %v10221 = vld [vmem:[#allocation2 + $0x120] sm:$0xff]
      %v10222 = vld [vmem:[#allocation2 + $0x128] sm:$0xff]
      %v10223 = vld [vmem:[#allocation2 + $0x138] sm:$0xff]
      %v10224 = vld [vmem:[#allocation2 + $0x140] sm:$0xff]
      %v10225 = vld [vmem:[#allocation2 + $0x150] sm:$0xff]
      %v10226 = vld [vmem:[#allocation2 + $0x158] sm:$0xff]
      %v10227 = vld [vmem:[#allocation2 + $0x168] sm:$0xff]
      %v10228 = vld [vmem:[#allocation2 + $0x170] sm:$0xff]
      %v10229 = vld [vmem:[#allocation2 + $0x1] sm:$0xff]
      %v10230 = vld [vmem:[#allocation2 + $0x9] sm:$0xff]
      %v10231 = vld [vmem:[#allocation2 + $0x19] sm:$0xff]
      %v10232 = vld [vmem:[#allocation2 + $0x21] sm:$0xff]
      %v10233 = vld [vmem:[#allocation2 + $0x31] sm:$0xff]
      %v10234 = vld [vmem:[#allocation2 + $0x39] sm:$0xff]
      %v10235 = vld [vmem:[#allocation2 + $0x49] sm:$0xff]
      %v10236 = vld [vmem:[#allocation2 + $0x51] sm:$0xff]
      %v10237 = vld [vmem:[#allocation2 + $0x61] sm:$0xff]
      %v10238 = vld [vmem:[#allocation2 + $0x69] sm:$0xff]
      %v10239 = vld [vmem:[#allocation2 + $0x79] sm:$0xff]
      %v10240 = vld [vmem:[#allocation2 + $0x81] sm:$0xff]
      %v10241 = vld [vmem:[#allocation2 + $0x91] sm:$0xff]
      %v10242 = vld [vmem:[#allocation2 + $0x99] sm:$0xff]
      %v10243 = vld [vmem:[#allocation2 + $0xa9] sm:$0xff]
      %v10244 = vld [vmem:[#allocation2 + $0xb1] sm:$0xff]
      %v10245 = vld [vmem:[#allocation2 + $0xc1] sm:$0xff]
      %v10246 = vld [vmem:[#allocation2 + $0xc9] sm:$0xff]
      %v10247 = vld [vmem:[#allocation2 + $0xd9] sm:$0xff]
      %v10248 = vld [vmem:[#allocation2 + $0xe1] sm:$0xff]
      %v10249 = vld [vmem:[#allocation2 + $0xf1] sm:$0xff]
      %v10250 = vld [vmem:[#allocation2 + $0xf9] sm:$0xff]
      %v10251 = vld [vmem:[#allocation2 + $0x109] sm:$0xff]
      %v10252 = vld [vmem:[#allocation2 + $0x111] sm:$0xff]
      %v10253 = vld [vmem:[#allocation2 + $0x121] sm:$0xff]
      %v10254 = vld [vmem:[#allocation2 + $0x129] sm:$0xff]
      %v10255 = vld [vmem:[#allocation2 + $0x139] sm:$0xff]
      %v10256 = vld [vmem:[#allocation2 + $0x141] sm:$0xff]
      %v10257 = vld [vmem:[#allocation2 + $0x151] sm:$0xff]
      %v10258 = vld [vmem:[#allocation2 + $0x159] sm:$0xff]
      %v10259 = vld [vmem:[#allocation2 + $0x169] sm:$0xff]
      %v10260 = vld [vmem:[#allocation2 + $0x171] sm:$0xff]
      %v10261 = vld [vmem:[#allocation2 + $0x2] sm:$0xff]
      %v10262 = vld [vmem:[#allocation2 + $0xa] sm:$0xff]
      %v10263 = vld [vmem:[#allocation2 + $0x1a] sm:$0xff]
      %v10264 = vld [vmem:[#allocation2 + $0x22] sm:$0xff]
      %v10265 = vld [vmem:[#allocation2 + $0x32] sm:$0xff]
      %v10266 = vld [vmem:[#allocation2 + $0x3a] sm:$0xff]
      %v10267 = vld [vmem:[#allocation2 + $0x4a] sm:$0xff]
      %v10268 = vld [vmem:[#allocation2 + $0x52] sm:$0xff]
      %v10269 = vld [vmem:[#allocation2 + $0x62] sm:$0xff]
      %v10270 = vld [vmem:[#allocation2 + $0x6a] sm:$0xff]
      %v10271 = vld [vmem:[#allocation2 + $0x7a] sm:$0xff]
      %v10272 = vld [vmem:[#allocation2 + $0x82] sm:$0xff]
      %v10273 = vld [vmem:[#allocation2 + $0x92] sm:$0xff]
      %v10274 = vld [vmem:[#allocation2 + $0x9a] sm:$0xff]
      %v10275 = vld [vmem:[#allocation2 + $0xaa] sm:$0xff]
      %v10276 = vld [vmem:[#allocation2 + $0xb2] sm:$0xff]
      %v10277 = vld [vmem:[#allocation2 + $0xc2] sm:$0xff]
      %v10278 = vld [vmem:[#allocation2 + $0xca] sm:$0xff]
      %v10279 = vld [vmem:[#allocation2 + $0xda] sm:$0xff]
      %v10280 = vld [vmem:[#allocation2 + $0xe2] sm:$0xff]
      %v10281 = vld [vmem:[#allocation2 + $0xf2] sm:$0xff]
      %v10282 = vld [vmem:[#allocation2 + $0xfa] sm:$0xff]
      %v10283 = vld [vmem:[#allocation2 + $0x10a] sm:$0xff]
      %v10284 = vld [vmem:[#allocation2 + $0x112] sm:$0xff]
      %v10285 = vld [vmem:[#allocation2 + $0x122] sm:$0xff]
      %v10286 = vld [vmem:[#allocation2 + $0x12a] sm:$0xff]
      %v10287 = vld [vmem:[#allocation2 + $0x13a] sm:$0xff]
      %v10288 = vld [vmem:[#allocation2 + $0x142] sm:$0xff]
      %v10289 = vld [vmem:[#allocation2 + $0x152] sm:$0xff]
      %v10290 = vld [vmem:[#allocation2 + $0x15a] sm:$0xff]
      %v10291 = vld [vmem:[#allocation2 + $0x16a] sm:$0xff]
      %v10292 = vld [vmem:[#allocation2 + $0x172] sm:$0xff]
      %v10293 = vld [vmem:[%s368] sm:$0xff]
      %v10294 = vld [vmem:[%s368 + $0x8] sm:$0xff]
      %v10295 = vld [vmem:[%s368 + $0x18] sm:$0xff]
      %v10296 = vld [vmem:[%s368 + $0x20] sm:$0xff]
      %v10297 = vld [vmem:[%s368 + $0x30] sm:$0xff]
      %v10298 = vld [vmem:[%s368 + $0x38] sm:$0xff]
      %v10299 = vld [vmem:[%s368 + $0x48] sm:$0xff]
      %v10300 = vld [vmem:[%s368 + $0x50] sm:$0xff]
      %v10301 = vld [vmem:[%s368 + $0x60] sm:$0xff]
      %v10302 = vld [vmem:[%s368 + $0x68] sm:$0xff]
      %v10303 = vld [vmem:[%s368 + $0x78] sm:$0xff]
      %v10304 = vld [vmem:[%s368 + $0x80] sm:$0xff]
      %v10305 = vld [vmem:[%s368 + $0x90] sm:$0xff]
      %v10306 = vld [vmem:[%s368 + $0x98] sm:$0xff]
      %v10307 = vld [vmem:[%s368 + $0xa8] sm:$0xff]
      %v10308 = vld [vmem:[%s368 + $0xb0] sm:$0xff]
      %v10309 = vld [vmem:[%s368 + $0xc0] sm:$0xff]
      %v10310 = vld [vmem:[%s368 + $0xc8] sm:$0xff]
      %v10311 = vld [vmem:[%s368 + $0xd8] sm:$0xff]
      %v10312 = vld [vmem:[%s368 + $0xe0] sm:$0xff]
      %v10313 = vld [vmem:[%s368 + $0xf0] sm:$0xff]
      %v10314 = vld [vmem:[%s368 + $0xf8] sm:$0xff]
      %v10315 = vld [vmem:[%s368 + $0x108] sm:$0xff]
      %v10316 = vld [vmem:[%s368 + $0x110] sm:$0xff]
      %v10317 = vld [vmem:[%s368 + $0x120] sm:$0xff]
      %v10318 = vld [vmem:[%s368 + $0x128] sm:$0xff]
      %v10319 = vld [vmem:[%s368 + $0x138] sm:$0xff]
      %v10320 = vld [vmem:[%s368 + $0x140] sm:$0xff]
      %v10321 = vld [vmem:[%s368 + $0x150] sm:$0xff]
      %v10322 = vld [vmem:[%s368 + $0x158] sm:$0xff]
      %v10323 = vld [vmem:[%s368 + $0x168] sm:$0xff]
      %v10324 = vld [vmem:[%s368 + $0x170] sm:$0xff]
      %v10325 = vld [vmem:[%s368 + $0x1] sm:$0xff]
      %v10326 = vld [vmem:[%s368 + $0x9] sm:$0xff]
      %v10327 = vld [vmem:[%s368 + $0x19] sm:$0xff]
      %v10328 = vld [vmem:[%s368 + $0x21] sm:$0xff]
      %v10329 = vld [vmem:[%s368 + $0x31] sm:$0xff]
      %v10330 = vld [vmem:[%s368 + $0x39] sm:$0xff]
      %v10331 = vld [vmem:[%s368 + $0x49] sm:$0xff]
      %v10332 = vld [vmem:[%s368 + $0x51] sm:$0xff]
      %v10333 = vld [vmem:[%s368 + $0x61] sm:$0xff]
      %v10334 = vld [vmem:[%s368 + $0x69] sm:$0xff]
      %v10335 = vld [vmem:[%s368 + $0x79] sm:$0xff]
      %v10336 = vld [vmem:[%s368 + $0x81] sm:$0xff]
      %v10337 = vld [vmem:[%s368 + $0x91] sm:$0xff]
      %v10338 = vld [vmem:[%s368 + $0x99] sm:$0xff]
      %v10339 = vld [vmem:[%s368 + $0xa9] sm:$0xff]
      %v10340 = vld [vmem:[%s368 + $0xb1] sm:$0xff]
      %v10341 = vld [vmem:[%s368 + $0xc1] sm:$0xff]
      %v10342 = vld [vmem:[%s368 + $0xc9] sm:$0xff]
      %v10343 = vld [vmem:[%s368 + $0xd9] sm:$0xff]
      %v10344 = vld [vmem:[%s368 + $0xe1] sm:$0xff]
      %v10345 = vld [vmem:[%s368 + $0xf1] sm:$0xff]
      %v10346 = vld [vmem:[%s368 + $0xf9] sm:$0xff]
      %v10347 = vld [vmem:[%s368 + $0x109] sm:$0xff]
      %v10348 = vld [vmem:[%s368 + $0x111] sm:$0xff]
      %v10349 = vld [vmem:[%s368 + $0x121] sm:$0xff]
      %v10350 = vld [vmem:[%s368 + $0x129] sm:$0xff]
      %v10351 = vld [vmem:[%s368 + $0x139] sm:$0xff]
      %v10352 = vld [vmem:[%s368 + $0x141] sm:$0xff]
      %v10353 = vld [vmem:[%s368 + $0x151] sm:$0xff]
      %v10354 = vld [vmem:[%s368 + $0x159] sm:$0xff]
      %v10355 = vld [vmem:[%s368 + $0x169] sm:$0xff]
      %v10356 = vld [vmem:[%s368 + $0x171] sm:$0xff]
      %v10357 = vld [vmem:[%s368 + $0x2] sm:$0xff]
      %v10358 = vld [vmem:[%s368 + $0xa] sm:$0xff]
      %v10359 = vld [vmem:[%s368 + $0x1a] sm:$0xff]
      %v10360 = vld [vmem:[%s368 + $0x22] sm:$0xff]
      %v10361 = vld [vmem:[%s368 + $0x32] sm:$0xff]
      %v10362 = vld [vmem:[%s368 + $0x3a] sm:$0xff]
      %v10363 = vld [vmem:[%s368 + $0x4a] sm:$0xff]
      %v10364 = vld [vmem:[%s368 + $0x52] sm:$0xff]
      %v10365 = vld [vmem:[%s368 + $0x62] sm:$0xff]
      %v10366 = vld [vmem:[%s368 + $0x6a] sm:$0xff]
      %v10367 = vld [vmem:[%s368 + $0x7a] sm:$0xff]
      %v10368 = vld [vmem:[%s368 + $0x82] sm:$0xff]
      %v10369 = vld [vmem:[%s368 + $0x92] sm:$0xff]
      %v10370 = vld [vmem:[%s368 + $0x9a] sm:$0xff]
      %v10371 = vld [vmem:[%s368 + $0xaa] sm:$0xff]
      %v10372 = vld [vmem:[%s368 + $0xb2] sm:$0xff]
      %v10373 = vld [vmem:[%s368 + $0xc2] sm:$0xff]
      %v10374 = vld [vmem:[%s368 + $0xca] sm:$0xff]
      %v10375 = vld [vmem:[%s368 + $0xda] sm:$0xff]
      %v10376 = vld [vmem:[%s368 + $0xe2] sm:$0xff]
      %v10377 = vld [vmem:[%s368 + $0xf2] sm:$0xff]
      %v10378 = vld [vmem:[%s368 + $0xfa] sm:$0xff]
      %v10379 = vld [vmem:[%s368 + $0x10a] sm:$0xff]
      %v10380 = vld [vmem:[%s368 + $0x112] sm:$0xff]
      %v10381 = vld [vmem:[%s368 + $0x122] sm:$0xff]
      %v10382 = vld [vmem:[%s368 + $0x12a] sm:$0xff]
      %v10383 = vld [vmem:[%s368 + $0x13a] sm:$0xff]
      %v10384 = vld [vmem:[%s368 + $0x142] sm:$0xff]
      %v10385 = vld [vmem:[%s368 + $0x152] sm:$0xff]
      %v10386 = vld [vmem:[%s368 + $0x15a] sm:$0xff]
      %v10387 = vld [vmem:[%s368 + $0x16a] sm:$0xff]
      %v10388 = vld [vmem:[%s368 + $0x172] sm:$0xff]
      %v10389 = vld [vmem:[%s593] sm:$0xff]
      %v10390 = vld [vmem:[%s593 + $0x8] sm:$0xff]
      %v10391 = vld [vmem:[%s593 + $0x18] sm:$0xff]
      %v10392 = vld [vmem:[%s593 + $0x20] sm:$0xff]
      %v10393 = vld [vmem:[%s593 + $0x30] sm:$0xff]
      %v10394 = vld [vmem:[%s593 + $0x38] sm:$0xff]
      %v10395 = vld [vmem:[%s593 + $0x48] sm:$0xff]
      %v10396 = vld [vmem:[%s593 + $0x50] sm:$0xff]
      %v10397 = vld [vmem:[%s593 + $0x60] sm:$0xff]
      %v10398 = vld [vmem:[%s593 + $0x68] sm:$0xff]
      %v10399 = vld [vmem:[%s593 + $0x78] sm:$0xff]
      %v10400 = vld [vmem:[%s593 + $0x80] sm:$0xff]
      %v10401 = vld [vmem:[%s593 + $0x90] sm:$0xff]
      %v10402 = vld [vmem:[%s593 + $0x98] sm:$0xff]
      %v10403 = vld [vmem:[%s593 + $0xa8] sm:$0xff]
      %v10404 = vld [vmem:[%s593 + $0xb0] sm:$0xff]
      %v10405 = vld [vmem:[%s593 + $0xc0] sm:$0xff]
      %v10406 = vld [vmem:[%s593 + $0xc8] sm:$0xff]
      %v10407 = vld [vmem:[%s593 + $0xd8] sm:$0xff]
      %v10408 = vld [vmem:[%s593 + $0xe0] sm:$0xff]
      %v10409 = vld [vmem:[%s593 + $0xf0] sm:$0xff]
      %v10410 = vld [vmem:[%s593 + $0xf8] sm:$0xff]
      %v10411 = vld [vmem:[%s593 + $0x108] sm:$0xff]
      %v10412 = vld [vmem:[%s593 + $0x110] sm:$0xff]
      %v10413 = vld [vmem:[%s593 + $0x120] sm:$0xff]
      %v10414 = vld [vmem:[%s593 + $0x128] sm:$0xff]
      %v10415 = vld [vmem:[%s593 + $0x138] sm:$0xff]
      %v10416 = vld [vmem:[%s593 + $0x140] sm:$0xff]
      %v10417 = vld [vmem:[%s593 + $0x150] sm:$0xff]
      %v10418 = vld [vmem:[%s593 + $0x158] sm:$0xff]
      %v10419 = vld [vmem:[%s593 + $0x168] sm:$0xff]
      %v10420 = vld [vmem:[%s593 + $0x170] sm:$0xff]
      %v10421 = vld [vmem:[%s593 + $0x1] sm:$0xff]
      %v10422 = vld [vmem:[%s593 + $0x9] sm:$0xff]
      %v10423 = vld [vmem:[%s593 + $0x19] sm:$0xff]
      %v10424 = vld [vmem:[%s593 + $0x21] sm:$0xff]
      %v10425 = vld [vmem:[%s593 + $0x31] sm:$0xff]
      %v10426 = vld [vmem:[%s593 + $0x39] sm:$0xff]
      %v10427 = vld [vmem:[%s593 + $0x49] sm:$0xff]
      %v10428 = vld [vmem:[%s593 + $0x51] sm:$0xff]
      %v10429 = vld [vmem:[%s593 + $0x61] sm:$0xff]
      %v10430 = vld [vmem:[%s593 + $0x69] sm:$0xff]
      %v10431 = vld [vmem:[%s593 + $0x79] sm:$0xff]
      %v10432 = vld [vmem:[%s593 + $0x81] sm:$0xff]
      %v10433 = vld [vmem:[%s593 + $0x91] sm:$0xff]
      %v10434 = vld [vmem:[%s593 + $0x99] sm:$0xff]
      %v10435 = vld [vmem:[%s593 + $0xa9] sm:$0xff]
      %v10436 = vld [vmem:[%s593 + $0xb1] sm:$0xff]
      %v10437 = vld [vmem:[%s593 + $0xc1] sm:$0xff]
      %v10438 = vld [vmem:[%s593 + $0xc9] sm:$0xff]
      %v10439 = vld [vmem:[%s593 + $0xd9] sm:$0xff]
      %v10440 = vld [vmem:[%s593 + $0xe1] sm:$0xff]
      %v10441 = vld [vmem:[%s593 + $0xf1] sm:$0xff]
      %v10442 = vld [vmem:[%s593 + $0xf9] sm:$0xff]
      %v10443 = vld [vmem:[%s593 + $0x109] sm:$0xff]
      %v10444 = vld [vmem:[%s593 + $0x111] sm:$0xff]
      %v10445 = vld [vmem:[%s593 + $0x121] sm:$0xff]
      %v10446 = vld [vmem:[%s593 + $0x129] sm:$0xff]
      %v10447 = vld [vmem:[%s593 + $0x139] sm:$0xff]
      %v10448 = vld [vmem:[%s593 + $0x141] sm:$0xff]
      %v10449 = vld [vmem:[%s593 + $0x151] sm:$0xff]
      %v10450 = vld [vmem:[%s593 + $0x159] sm:$0xff]
      %v10451 = vld [vmem:[%s593 + $0x169] sm:$0xff]
      %v10452 = vld [vmem:[%s593 + $0x171] sm:$0xff]
      %v10453 = vld [vmem:[%s593 + $0x2] sm:$0xff]
      %v10454 = vld [vmem:[%s593 + $0xa] sm:$0xff]
      %v10455 = vld [vmem:[%s593 + $0x1a] sm:$0xff]
      %v10456 = vld [vmem:[%s593 + $0x22] sm:$0xff]
      %v10457 = vld [vmem:[%s593 + $0x32] sm:$0xff]
      %v10458 = vld [vmem:[%s593 + $0x3a] sm:$0xff]
      %v10459 = vld [vmem:[%s593 + $0x4a] sm:$0xff]
      %v10460 = vld [vmem:[%s593 + $0x52] sm:$0xff]
      %v10461 = vld [vmem:[%s593 + $0x62] sm:$0xff]
      %v10462 = vld [vmem:[%s593 + $0x6a] sm:$0xff]
      %v10463 = vld [vmem:[%s593 + $0x7a] sm:$0xff]
      %v10464 = vld [vmem:[%s593 + $0x82] sm:$0xff]
      %v10465 = vld [vmem:[%s593 + $0x92] sm:$0xff]
      %v10466 = vld [vmem:[%s593 + $0x9a] sm:$0xff]
      %v10467 = vld [vmem:[%s593 + $0xaa] sm:$0xff]
      %v10468 = vld [vmem:[%s593 + $0xb2] sm:$0xff]
      %v10469 = vld [vmem:[%s593 + $0xc2] sm:$0xff]
      %v10470 = vld [vmem:[%s593 + $0xca] sm:$0xff]
      %v10471 = vld [vmem:[%s593 + $0xda] sm:$0xff]
      %v10472 = vld [vmem:[%s593 + $0xe2] sm:$0xff]
      %v10473 = vld [vmem:[%s593 + $0xf2] sm:$0xff]
      %v10474 = vld [vmem:[%s593 + $0xfa] sm:$0xff]
      %v10475 = vld [vmem:[%s593 + $0x10a] sm:$0xff]
      %v10476 = vld [vmem:[%s593 + $0x112] sm:$0xff]
      %v10477 = vld [vmem:[%s593 + $0x122] sm:$0xff]
      %v10478 = vld [vmem:[%s593 + $0x12a] sm:$0xff]
      %v10479 = vld [vmem:[%s593 + $0x13a] sm:$0xff]
      %v10480 = vld [vmem:[%s593 + $0x142] sm:$0xff]
      %v10481 = vld [vmem:[%s593 + $0x152] sm:$0xff]
      %v10482 = vld [vmem:[%s593 + $0x15a] sm:$0xff]
      %v10483 = vld [vmem:[%s593 + $0x16a] sm:$0xff]
      %v10484 = vld [vmem:[%s593 + $0x172] sm:$0xff]
      %10517 = vrot.lane.b32.xlu0 %v10229, 32
      %v10518 = vpop.permute.xlu0 %10517
      %10519 = vrot.lane.b32.xlu0 %v10230, 32
      %v10520 = vpop.permute.xlu0 %10519
      %10521 = vrot.lane.b32.xlu0 %v10231, 32
      %v10522 = vpop.permute.xlu0 %10521
      %10523 = vrot.lane.b32.xlu0 %v10232, 32
      %v10524 = vpop.permute.xlu0 %10523
      %10525 = vrot.lane.b32.xlu0 %v10233, 32
      %v10526 = vpop.permute.xlu0 %10525
      %10527 = vrot.lane.b32.xlu0 %v10234, 32
      %v10528 = vpop.permute.xlu0 %10527
      %10529 = vrot.lane.b32.xlu0 %v10235, 32
      %v10530 = vpop.permute.xlu0 %10529
      %10531 = vrot.lane.b32.xlu0 %v10236, 32
      %v10532 = vpop.permute.xlu0 %10531
      %10533 = vrot.lane.b32.xlu0 %v10237, 32
      %v10534 = vpop.permute.xlu0 %10533
      %10535 = vrot.lane.b32.xlu0 %v10238, 32
      %v10536 = vpop.permute.xlu0 %10535
      %10537 = vrot.lane.b32.xlu0 %v10239, 32
      %v10538 = vpop.permute.xlu0 %10537
      %10539 = vrot.lane.b32.xlu0 %v10240, 32
      %v10540 = vpop.permute.xlu0 %10539
      %10541 = vrot.lane.b32.xlu0 %v10241, 32
      %v10542 = vpop.permute.xlu0 %10541
      %10543 = vrot.lane.b32.xlu0 %v10242, 32
      %v10544 = vpop.permute.xlu0 %10543
      %10545 = vrot.lane.b32.xlu0 %v10243, 32
      %v10546 = vpop.permute.xlu0 %10545
      %10547 = vrot.lane.b32.xlu0 %v10244, 32
      %v10548 = vpop.permute.xlu0 %10547
      %10549 = vrot.lane.b32.xlu0 %v10245, 32
      %v10550 = vpop.permute.xlu0 %10549
      %10551 = vrot.lane.b32.xlu0 %v10246, 32
      %v10552 = vpop.permute.xlu0 %10551
      %10553 = vrot.lane.b32.xlu0 %v10247, 32
      %v10554 = vpop.permute.xlu0 %10553
      %10555 = vrot.lane.b32.xlu0 %v10248, 32
      %v10556 = vpop.permute.xlu0 %10555
      %10557 = vrot.lane.b32.xlu0 %v10249, 32
      %v10558 = vpop.permute.xlu0 %10557
      %10559 = vrot.lane.b32.xlu0 %v10250, 32
      %v10560 = vpop.permute.xlu0 %10559
      %10561 = vrot.lane.b32.xlu0 %v10251, 32
      %v10562 = vpop.permute.xlu0 %10561
      %10563 = vrot.lane.b32.xlu0 %v10252, 32
      %v10564 = vpop.permute.xlu0 %10563
      %10565 = vrot.lane.b32.xlu0 %v10253, 32
      %v10566 = vpop.permute.xlu0 %10565
      %10567 = vrot.lane.b32.xlu0 %v10254, 32
      %v10568 = vpop.permute.xlu0 %10567
      %10569 = vrot.lane.b32.xlu0 %v10255, 32
      %v10570 = vpop.permute.xlu0 %10569
      %10571 = vrot.lane.b32.xlu0 %v10256, 32
      %v10572 = vpop.permute.xlu0 %10571
      %10573 = vrot.lane.b32.xlu0 %v10257, 32
      %v10574 = vpop.permute.xlu0 %10573
      %10575 = vrot.lane.b32.xlu0 %v10258, 32
      %v10576 = vpop.permute.xlu0 %10575
      %10577 = vrot.lane.b32.xlu0 %v10259, 32
      %v10578 = vpop.permute.xlu0 %10577
      %10579 = vrot.lane.b32.xlu0 %v10260, 32
      %v10580 = vpop.permute.xlu0 %10579
      %10645 = vrot.lane.b32.xlu0 %v10261, 64
      %v10646 = vpop.permute.xlu0 %10645
      %10647 = vrot.lane.b32.xlu0 %v10262, 64
      %v10648 = vpop.permute.xlu0 %10647
      %10649 = vrot.lane.b32.xlu0 %v10263, 64
      %v10650 = vpop.permute.xlu0 %10649
      %10651 = vrot.lane.b32.xlu0 %v10264, 64
      %v10652 = vpop.permute.xlu0 %10651
      %10653 = vrot.lane.b32.xlu0 %v10265, 64
      %v10654 = vpop.permute.xlu0 %10653
      %10655 = vrot.lane.b32.xlu0 %v10266, 64
      %v10656 = vpop.permute.xlu0 %10655
      %10657 = vrot.lane.b32.xlu0 %v10267, 64
      %v10658 = vpop.permute.xlu0 %10657
      %10659 = vrot.lane.b32.xlu0 %v10268, 64
      %v10660 = vpop.permute.xlu0 %10659
      %10661 = vrot.lane.b32.xlu0 %v10269, 64
      %v10662 = vpop.permute.xlu0 %10661
      %10663 = vrot.lane.b32.xlu0 %v10270, 64
      %v10664 = vpop.permute.xlu0 %10663
      %10665 = vrot.lane.b32.xlu0 %v10271, 64
      %v10666 = vpop.permute.xlu0 %10665
      %10667 = vrot.lane.b32.xlu0 %v10272, 64
      %v10668 = vpop.permute.xlu0 %10667
      %10669 = vrot.lane.b32.xlu0 %v10273, 64
      %v10670 = vpop.permute.xlu0 %10669
      %10671 = vrot.lane.b32.xlu0 %v10274, 64
      %v10672 = vpop.permute.xlu0 %10671
      %10673 = vrot.lane.b32.xlu0 %v10275, 64
      %v10674 = vpop.permute.xlu0 %10673
      %10675 = vrot.lane.b32.xlu0 %v10276, 64
      %v10676 = vpop.permute.xlu0 %10675
      %10677 = vrot.lane.b32.xlu0 %v10277, 64
      %v10678 = vpop.permute.xlu0 %10677
      %10679 = vrot.lane.b32.xlu0 %v10278, 64
      %v10680 = vpop.permute.xlu0 %10679
      %10681 = vrot.lane.b32.xlu0 %v10279, 64
      %v10682 = vpop.permute.xlu0 %10681
      %10683 = vrot.lane.b32.xlu0 %v10280, 64
      %v10684 = vpop.permute.xlu0 %10683
      %10685 = vrot.lane.b32.xlu0 %v10281, 64
      %v10686 = vpop.permute.xlu0 %10685
      %10687 = vrot.lane.b32.xlu0 %v10282, 64
      %v10688 = vpop.permute.xlu0 %10687
      %10689 = vrot.lane.b32.xlu0 %v10283, 64
      %v10690 = vpop.permute.xlu0 %10689
      %10691 = vrot.lane.b32.xlu0 %v10284, 64
      %v10692 = vpop.permute.xlu0 %10691
      %10693 = vrot.lane.b32.xlu0 %v10285, 64
      %v10694 = vpop.permute.xlu0 %10693
      %10695 = vrot.lane.b32.xlu0 %v10286, 64
      %v10696 = vpop.permute.xlu0 %10695
      %10697 = vrot.lane.b32.xlu0 %v10287, 64
      %v10698 = vpop.permute.xlu0 %10697
      %10699 = vrot.lane.b32.xlu0 %v10288, 64
      %v10700 = vpop.permute.xlu0 %10699
      %10701 = vrot.lane.b32.xlu0 %v10289, 64
      %v10702 = vpop.permute.xlu0 %10701
      %10703 = vrot.lane.b32.xlu0 %v10290, 64
      %v10704 = vpop.permute.xlu0 %10703
      %10705 = vrot.lane.b32.xlu0 %v10291, 64
      %v10706 = vpop.permute.xlu0 %10705
      %10707 = vrot.lane.b32.xlu0 %v10292, 64
      %v10708 = vpop.permute.xlu0 %10707
      %10773 = vrot.lane.b32.xlu0 %v10293, 96
      %v10774 = vpop.permute.xlu0 %10773
      %10775 = vrot.lane.b32.xlu0 %v10294, 96
      %v10776 = vpop.permute.xlu0 %10775
      %10777 = vrot.lane.b32.xlu0 %v10295, 96
      %v10778 = vpop.permute.xlu0 %10777
      %10779 = vrot.lane.b32.xlu0 %v10296, 96
      %v10780 = vpop.permute.xlu0 %10779
      %10781 = vrot.lane.b32.xlu0 %v10297, 96
      %v10782 = vpop.permute.xlu0 %10781
      %10783 = vrot.lane.b32.xlu0 %v10298, 96
      %v10784 = vpop.permute.xlu0 %10783
      %10785 = vrot.lane.b32.xlu0 %v10299, 96
      %v10786 = vpop.permute.xlu0 %10785
      %10787 = vrot.lane.b32.xlu0 %v10300, 96
      %v10788 = vpop.permute.xlu0 %10787
      %10789 = vrot.lane.b32.xlu0 %v10301, 96
      %v10790 = vpop.permute.xlu0 %10789
      %10791 = vrot.lane.b32.xlu0 %v10302, 96
      %v10792 = vpop.permute.xlu0 %10791
      %10793 = vrot.lane.b32.xlu0 %v10303, 96
      %v10794 = vpop.permute.xlu0 %10793
      %10795 = vrot.lane.b32.xlu0 %v10304, 96
      %v10796 = vpop.permute.xlu0 %10795
      %10797 = vrot.lane.b32.xlu0 %v10305, 96
      %v10798 = vpop.permute.xlu0 %10797
      %10799 = vrot.lane.b32.xlu0 %v10306, 96
      %v10800 = vpop.permute.xlu0 %10799
      %10801 = vrot.lane.b32.xlu0 %v10307, 96
      %v10802 = vpop.permute.xlu0 %10801
      %10803 = vrot.lane.b32.xlu0 %v10308, 96
      %v10804 = vpop.permute.xlu0 %10803
      %10805 = vrot.lane.b32.xlu0 %v10309, 96
      %v10806 = vpop.permute.xlu0 %10805
      %10807 = vrot.lane.b32.xlu0 %v10310, 96
      %v10808 = vpop.permute.xlu0 %10807
      %10809 = vrot.lane.b32.xlu0 %v10311, 96
      %v10810 = vpop.permute.xlu0 %10809
      %10811 = vrot.lane.b32.xlu0 %v10312, 96
      %v10812 = vpop.permute.xlu0 %10811
      %10813 = vrot.lane.b32.xlu0 %v10313, 96
      %v10814 = vpop.permute.xlu0 %10813
      %10815 = vrot.lane.b32.xlu0 %v10314, 96
      %v10816 = vpop.permute.xlu0 %10815
      %10817 = vrot.lane.b32.xlu0 %v10315, 96
      %v10818 = vpop.permute.xlu0 %10817
      %10819 = vrot.lane.b32.xlu0 %v10316, 96
      %v10820 = vpop.permute.xlu0 %10819
      %10821 = vrot.lane.b32.xlu0 %v10317, 96
      %v10822 = vpop.permute.xlu0 %10821
      %10823 = vrot.lane.b32.xlu0 %v10318, 96
      %v10824 = vpop.permute.xlu0 %10823
      %10825 = vrot.lane.b32.xlu0 %v10319, 96
      %v10826 = vpop.permute.xlu0 %10825
      %10827 = vrot.lane.b32.xlu0 %v10320, 96
      %v10828 = vpop.permute.xlu0 %10827
      %10829 = vrot.lane.b32.xlu0 %v10321, 96
      %v10830 = vpop.permute.xlu0 %10829
      %10831 = vrot.lane.b32.xlu0 %v10322, 96
      %v10832 = vpop.permute.xlu0 %10831
      %10833 = vrot.lane.b32.xlu0 %v10323, 96
      %v10834 = vpop.permute.xlu0 %10833
      %10835 = vrot.lane.b32.xlu0 %v10324, 96
      %v10836 = vpop.permute.xlu0 %10835
      %10901 = vrot.lane.b32.xlu0 %v10357, 32
      %v10902 = vpop.permute.xlu0 %10901
      %10903 = vrot.lane.b32.xlu0 %v10358, 32
      %v10904 = vpop.permute.xlu0 %10903
      %10905 = vrot.lane.b32.xlu0 %v10359, 32
      %v10906 = vpop.permute.xlu0 %10905
      %10907 = vrot.lane.b32.xlu0 %v10360, 32
      %v10908 = vpop.permute.xlu0 %10907
      %10909 = vrot.lane.b32.xlu0 %v10361, 32
      %v10910 = vpop.permute.xlu0 %10909
      %10911 = vrot.lane.b32.xlu0 %v10362, 32
      %v10912 = vpop.permute.xlu0 %10911
      %10913 = vrot.lane.b32.xlu0 %v10363, 32
      %v10914 = vpop.permute.xlu0 %10913
      %10915 = vrot.lane.b32.xlu0 %v10364, 32
      %v10916 = vpop.permute.xlu0 %10915
      %10917 = vrot.lane.b32.xlu0 %v10365, 32
      %v10918 = vpop.permute.xlu0 %10917
      %10919 = vrot.lane.b32.xlu0 %v10366, 32
      %v10920 = vpop.permute.xlu0 %10919
      %10921 = vrot.lane.b32.xlu0 %v10367, 32
      %v10922 = vpop.permute.xlu0 %10921
      %10923 = vrot.lane.b32.xlu0 %v10368, 32
      %v10924 = vpop.permute.xlu0 %10923
      %10925 = vrot.lane.b32.xlu0 %v10369, 32
      %v10926 = vpop.permute.xlu0 %10925
      %10927 = vrot.lane.b32.xlu0 %v10370, 32
      %v10928 = vpop.permute.xlu0 %10927
      %10929 = vrot.lane.b32.xlu0 %v10371, 32
      %v10930 = vpop.permute.xlu0 %10929
      %10931 = vrot.lane.b32.xlu0 %v10372, 32
      %v10932 = vpop.permute.xlu0 %10931
      %10933 = vrot.lane.b32.xlu0 %v10373, 32
      %v10934 = vpop.permute.xlu0 %10933
      %10935 = vrot.lane.b32.xlu0 %v10374, 32
      %v10936 = vpop.permute.xlu0 %10935
      %10937 = vrot.lane.b32.xlu0 %v10375, 32
      %v10938 = vpop.permute.xlu0 %10937
      %10939 = vrot.lane.b32.xlu0 %v10376, 32
      %v10940 = vpop.permute.xlu0 %10939
      %10941 = vrot.lane.b32.xlu0 %v10377, 32
      %v10942 = vpop.permute.xlu0 %10941
      %10943 = vrot.lane.b32.xlu0 %v10378, 32
      %v10944 = vpop.permute.xlu0 %10943
      %10945 = vrot.lane.b32.xlu0 %v10379, 32
      %v10946 = vpop.permute.xlu0 %10945
      %10947 = vrot.lane.b32.xlu0 %v10380, 32
      %v10948 = vpop.permute.xlu0 %10947
      %10949 = vrot.lane.b32.xlu0 %v10381, 32
      %v10950 = vpop.permute.xlu0 %10949
      %10951 = vrot.lane.b32.xlu0 %v10382, 32
      %v10952 = vpop.permute.xlu0 %10951
      %10953 = vrot.lane.b32.xlu0 %v10383, 32
      %v10954 = vpop.permute.xlu0 %10953
      %10955 = vrot.lane.b32.xlu0 %v10384, 32
      %v10956 = vpop.permute.xlu0 %10955
      %10957 = vrot.lane.b32.xlu0 %v10385, 32
      %v10958 = vpop.permute.xlu0 %10957
      %10959 = vrot.lane.b32.xlu0 %v10386, 32
      %v10960 = vpop.permute.xlu0 %10959
      %10961 = vrot.lane.b32.xlu0 %v10387, 32
      %v10962 = vpop.permute.xlu0 %10961
      %10963 = vrot.lane.b32.xlu0 %v10388, 32
      %v10964 = vpop.permute.xlu0 %10963
      %11029 = vrot.lane.b32.xlu0 %v10389, 64
      %v11030 = vpop.permute.xlu0 %11029
      %11031 = vrot.lane.b32.xlu0 %v10390, 64
      %v11032 = vpop.permute.xlu0 %11031
      %11033 = vrot.lane.b32.xlu0 %v10391, 64
      %v11034 = vpop.permute.xlu0 %11033
      %11035 = vrot.lane.b32.xlu0 %v10392, 64
      %v11036 = vpop.permute.xlu0 %11035
      %11037 = vrot.lane.b32.xlu0 %v10393, 64
      %v11038 = vpop.permute.xlu0 %11037
      %11039 = vrot.lane.b32.xlu0 %v10394, 64
      %v11040 = vpop.permute.xlu0 %11039
      %11041 = vrot.lane.b32.xlu0 %v10395, 64
      %v11042 = vpop.permute.xlu0 %11041
      %11043 = vrot.lane.b32.xlu0 %v10396, 64
      %v11044 = vpop.permute.xlu0 %11043
      %11045 = vrot.lane.b32.xlu0 %v10397, 64
      %v11046 = vpop.permute.xlu0 %11045
      %11047 = vrot.lane.b32.xlu0 %v10398, 64
      %v11048 = vpop.permute.xlu0 %11047
      %11049 = vrot.lane.b32.xlu0 %v10399, 64
      %v11050 = vpop.permute.xlu0 %11049
      %11051 = vrot.lane.b32.xlu0 %v10400, 64
      %v11052 = vpop.permute.xlu0 %11051
      %11053 = vrot.lane.b32.xlu0 %v10401, 64
      %v11054 = vpop.permute.xlu0 %11053
      %11055 = vrot.lane.b32.xlu0 %v10402, 64
      %v11056 = vpop.permute.xlu0 %11055
      %11057 = vrot.lane.b32.xlu0 %v10403, 64
      %v11058 = vpop.permute.xlu0 %11057
      %11059 = vrot.lane.b32.xlu0 %v10404, 64
      %v11060 = vpop.permute.xlu0 %11059
      %11061 = vrot.lane.b32.xlu0 %v10405, 64
      %v11062 = vpop.permute.xlu0 %11061
      %11063 = vrot.lane.b32.xlu0 %v10406, 64
      %v11064 = vpop.permute.xlu0 %11063
      %11065 = vrot.lane.b32.xlu0 %v10407, 64
      %v11066 = vpop.permute.xlu0 %11065
      %11067 = vrot.lane.b32.xlu0 %v10408, 64
      %v11068 = vpop.permute.xlu0 %11067
      %11069 = vrot.lane.b32.xlu0 %v10409, 64
      %v11070 = vpop.permute.xlu0 %11069
      %11071 = vrot.lane.b32.xlu0 %v10410, 64
      %v11072 = vpop.permute.xlu0 %11071
      %11073 = vrot.lane.b32.xlu0 %v10411, 64
      %v11074 = vpop.permute.xlu0 %11073
      %11075 = vrot.lane.b32.xlu0 %v10412, 64
      %v11076 = vpop.permute.xlu0 %11075
      %11077 = vrot.lane.b32.xlu0 %v10413, 64
      %v11078 = vpop.permute.xlu0 %11077
      %11079 = vrot.lane.b32.xlu0 %v10414, 64
      %v11080 = vpop.permute.xlu0 %11079
      %11081 = vrot.lane.b32.xlu0 %v10415, 64
      %v11082 = vpop.permute.xlu0 %11081
      %11083 = vrot.lane.b32.xlu0 %v10416, 64
      %v11084 = vpop.permute.xlu0 %11083
      %11085 = vrot.lane.b32.xlu0 %v10417, 64
      %v11086 = vpop.permute.xlu0 %11085
      %11087 = vrot.lane.b32.xlu0 %v10418, 64
      %v11088 = vpop.permute.xlu0 %11087
      %11089 = vrot.lane.b32.xlu0 %v10419, 64
      %v11090 = vpop.permute.xlu0 %11089
      %11091 = vrot.lane.b32.xlu0 %v10420, 64
      %v11092 = vpop.permute.xlu0 %11091
      %11157 = vrot.lane.b32.xlu0 %v10421, 96
      %v11158 = vpop.permute.xlu0 %11157
      %11159 = vrot.lane.b32.xlu0 %v10422, 96
      %v11160 = vpop.permute.xlu0 %11159
      %11161 = vrot.lane.b32.xlu0 %v10423, 96
      %v11162 = vpop.permute.xlu0 %11161
      %11163 = vrot.lane.b32.xlu0 %v10424, 96
      %v11164 = vpop.permute.xlu0 %11163
      %11165 = vrot.lane.b32.xlu0 %v10425, 96
      %v11166 = vpop.permute.xlu0 %11165
      %11167 = vrot.lane.b32.xlu0 %v10426, 96
      %v11168 = vpop.permute.xlu0 %11167
      %11169 = vrot.lane.b32.xlu0 %v10427, 96
      %v11170 = vpop.permute.xlu0 %11169
      %11171 = vrot.lane.b32.xlu0 %v10428, 96
      %v11172 = vpop.permute.xlu0 %11171
      %11173 = vrot.lane.b32.xlu0 %v10429, 96
      %v11174 = vpop.permute.xlu0 %11173
      %11175 = vrot.lane.b32.xlu0 %v10430, 96
      %v11176 = vpop.permute.xlu0 %11175
      %11177 = vrot.lane.b32.xlu0 %v10431, 96
      %v11178 = vpop.permute.xlu0 %11177
      %11179 = vrot.lane.b32.xlu0 %v10432, 96
      %v11180 = vpop.permute.xlu0 %11179
      %11181 = vrot.lane.b32.xlu0 %v10433, 96
      %v11182 = vpop.permute.xlu0 %11181
      %11183 = vrot.lane.b32.xlu0 %v10434, 96
      %v11184 = vpop.permute.xlu0 %11183
      %11185 = vrot.lane.b32.xlu0 %v10435, 96
      %v11186 = vpop.permute.xlu0 %11185
      %11187 = vrot.lane.b32.xlu0 %v10436, 96
      %v11188 = vpop.permute.xlu0 %11187
      %11189 = vrot.lane.b32.xlu0 %v10437, 96
      %v11190 = vpop.permute.xlu0 %11189
      %11191 = vrot.lane.b32.xlu0 %v10438, 96
      %v11192 = vpop.permute.xlu0 %11191
      %11193 = vrot.lane.b32.xlu0 %v10439, 96
      %v11194 = vpop.permute.xlu0 %11193
      %11195 = vrot.lane.b32.xlu0 %v10440, 96
      %v11196 = vpop.permute.xlu0 %11195
      %11197 = vrot.lane.b32.xlu0 %v10441, 96
      %v11198 = vpop.permute.xlu0 %11197
      %11199 = vrot.lane.b32.xlu0 %v10442, 96
      %v11200 = vpop.permute.xlu0 %11199
      %11201 = vrot.lane.b32.xlu0 %v10443, 96
      %v11202 = vpop.permute.xlu0 %11201
      %11203 = vrot.lane.b32.xlu0 %v10444, 96
      %v11204 = vpop.permute.xlu0 %11203
      %11205 = vrot.lane.b32.xlu0 %v10445, 96
      %v11206 = vpop.permute.xlu0 %11205
      %11207 = vrot.lane.b32.xlu0 %v10446, 96
      %v11208 = vpop.permute.xlu0 %11207
      %11209 = vrot.lane.b32.xlu0 %v10447, 96
      %v11210 = vpop.permute.xlu0 %11209
      %11211 = vrot.lane.b32.xlu0 %v10448, 96
      %v11212 = vpop.permute.xlu0 %11211
      %11213 = vrot.lane.b32.xlu0 %v10449, 96
      %v11214 = vpop.permute.xlu0 %11213
      %11215 = vrot.lane.b32.xlu0 %v10450, 96
      %v11216 = vpop.permute.xlu0 %11215
      %11217 = vrot.lane.b32.xlu0 %v10451, 96
      %v11218 = vpop.permute.xlu0 %11217
      %11219 = vrot.lane.b32.xlu0 %v10452, 96
      %v11220 = vpop.permute.xlu0 %11219
      %v11253 = vsel %vm280, %v10197, %v10518
      %v11254 = vsel %vm280, %v10198, %v10520
      %v11255 = vsel %vm280, %v10199, %v10522
      %v11256 = vsel %vm280, %v10200, %v10524
      %v11257 = vsel %vm280, %v10201, %v10526
      %v11258 = vsel %vm280, %v10202, %v10528
      %v11259 = vsel %vm280, %v10203, %v10530
      %v11260 = vsel %vm280, %v10204, %v10532
      %v11261 = vsel %vm280, %v10205, %v10534
      %v11262 = vsel %vm280, %v10206, %v10536
      %v11263 = vsel %vm280, %v10207, %v10538
      %v11264 = vsel %vm280, %v10208, %v10540
      %v11265 = vsel %vm280, %v10209, %v10542
      %v11266 = vsel %vm280, %v10210, %v10544
      %v11267 = vsel %vm280, %v10211, %v10546
      %v11268 = vsel %vm280, %v10212, %v10548
      %v11269 = vsel %vm280, %v10213, %v10550
      %v11270 = vsel %vm280, %v10214, %v10552
      %v11271 = vsel %vm280, %v10215, %v10554
      %v11272 = vsel %vm280, %v10216, %v10556
      %v11273 = vsel %vm280, %v10217, %v10558
      %v11274 = vsel %vm280, %v10218, %v10560
      %v11275 = vsel %vm280, %v10219, %v10562
      %v11276 = vsel %vm280, %v10220, %v10564
      %v11277 = vsel %vm280, %v10221, %v10566
      %v11278 = vsel %vm280, %v10222, %v10568
      %v11279 = vsel %vm280, %v10223, %v10570
      %v11280 = vsel %vm280, %v10224, %v10572
      %v11281 = vsel %vm280, %v10225, %v10574
      %v11282 = vsel %vm280, %v10226, %v10576
      %v11283 = vsel %vm280, %v10227, %v10578
      %v11284 = vsel %vm280, %v10228, %v10580
      %v11285 = vsel %vm1490, %v11253, %v10646
      %v11286 = vsel %vm1490, %v11254, %v10648
      %v11287 = vsel %vm1490, %v11255, %v10650
      %v11288 = vsel %vm1490, %v11256, %v10652
      %v11289 = vsel %vm1490, %v11257, %v10654
      %v11290 = vsel %vm1490, %v11258, %v10656
      %v11291 = vsel %vm1490, %v11259, %v10658
      %v11292 = vsel %vm1490, %v11260, %v10660
      %v11293 = vsel %vm1490, %v11261, %v10662
      %v11294 = vsel %vm1490, %v11262, %v10664
      %v11295 = vsel %vm1490, %v11263, %v10666
      %v11296 = vsel %vm1490, %v11264, %v10668
      %v11297 = vsel %vm1490, %v11265, %v10670
      %v11298 = vsel %vm1490, %v11266, %v10672
      %v11299 = vsel %vm1490, %v11267, %v10674
      %v11300 = vsel %vm1490, %v11268, %v10676
      %v11301 = vsel %vm1490, %v11269, %v10678
      %v11302 = vsel %vm1490, %v11270, %v10680
      %v11303 = vsel %vm1490, %v11271, %v10682
      %v11304 = vsel %vm1490, %v11272, %v10684
      %v11305 = vsel %vm1490, %v11273, %v10686
      %v11306 = vsel %vm1490, %v11274, %v10688
      %v11307 = vsel %vm1490, %v11275, %v10690
      %v11308 = vsel %vm1490, %v11276, %v10692
      %v11309 = vsel %vm1490, %v11277, %v10694
      %v11310 = vsel %vm1490, %v11278, %v10696
      %v11311 = vsel %vm1490, %v11279, %v10698
      %v11312 = vsel %vm1490, %v11280, %v10700
      %v11313 = vsel %vm1490, %v11281, %v10702
      %v11314 = vsel %vm1490, %v11282, %v10704
      %v11315 = vsel %vm1490, %v11283, %v10706
      %v11316 = vsel %vm1490, %v11284, %v10708
      %v11317 = vsel %vm1523, %v11285, %v10774
      %v11318 = vsel %vm1523, %v11286, %v10776
      %v11319 = vsel %vm1523, %v11287, %v10778
      %v11320 = vsel %vm1523, %v11288, %v10780
      %v11321 = vsel %vm1523, %v11289, %v10782
      %v11322 = vsel %vm1523, %v11290, %v10784
      %v11323 = vsel %vm1523, %v11291, %v10786
      %v11324 = vsel %vm1523, %v11292, %v10788
      %v11325 = vsel %vm1523, %v11293, %v10790
      %v11326 = vsel %vm1523, %v11294, %v10792
      %v11327 = vsel %vm1523, %v11295, %v10794
      %v11328 = vsel %vm1523, %v11296, %v10796
      %v11329 = vsel %vm1523, %v11297, %v10798
      %v11330 = vsel %vm1523, %v11298, %v10800
      %v11331 = vsel %vm1523, %v11299, %v10802
      %v11332 = vsel %vm1523, %v11300, %v10804
      %v11333 = vsel %vm1523, %v11301, %v10806
      %v11334 = vsel %vm1523, %v11302, %v10808
      %v11335 = vsel %vm1523, %v11303, %v10810
      %v11336 = vsel %vm1523, %v11304, %v10812
      %v11337 = vsel %vm1523, %v11305, %v10814
      %v11338 = vsel %vm1523, %v11306, %v10816
      %v11339 = vsel %vm1523, %v11307, %v10818
      %v11340 = vsel %vm1523, %v11308, %v10820
      %v11341 = vsel %vm1523, %v11309, %v10822
      %v11342 = vsel %vm1523, %v11310, %v10824
      %v11343 = vsel %vm1523, %v11311, %v10826
      %v11344 = vsel %vm1523, %v11312, %v10828
      %v11345 = vsel %vm1523, %v11313, %v10830
      %v11346 = vsel %vm1523, %v11314, %v10832
      %v11347 = vsel %vm1523, %v11315, %v10834
      %v11348 = vsel %vm1523, %v11316, %v10836
      %v11349 = vsel %vm280, %v10325, %v10902
      %v11350 = vsel %vm280, %v10326, %v10904
      %v11351 = vsel %vm280, %v10327, %v10906
      %v11352 = vsel %vm280, %v10328, %v10908
      %v11353 = vsel %vm280, %v10329, %v10910
      %v11354 = vsel %vm280, %v10330, %v10912
      %v11355 = vsel %vm280, %v10331, %v10914
      %v11356 = vsel %vm280, %v10332, %v10916
      %v11357 = vsel %vm280, %v10333, %v10918
      %v11358 = vsel %vm280, %v10334, %v10920
      %v11359 = vsel %vm280, %v10335, %v10922
      %v11360 = vsel %vm280, %v10336, %v10924
      %v11361 = vsel %vm280, %v10337, %v10926
      %v11362 = vsel %vm280, %v10338, %v10928
      %v11363 = vsel %vm280, %v10339, %v10930
      %v11364 = vsel %vm280, %v10340, %v10932
      %v11365 = vsel %vm280, %v10341, %v10934
      %v11366 = vsel %vm280, %v10342, %v10936
      %v11367 = vsel %vm280, %v10343, %v10938
      %v11368 = vsel %vm280, %v10344, %v10940
      %v11369 = vsel %vm280, %v10345, %v10942
      %v11370 = vsel %vm280, %v10346, %v10944
      %v11371 = vsel %vm280, %v10347, %v10946
      %v11372 = vsel %vm280, %v10348, %v10948
      %v11373 = vsel %vm280, %v10349, %v10950
      %v11374 = vsel %vm280, %v10350, %v10952
      %v11375 = vsel %vm280, %v10351, %v10954
      %v11376 = vsel %vm280, %v10352, %v10956
      %v11377 = vsel %vm280, %v10353, %v10958
      %v11378 = vsel %vm280, %v10354, %v10960
      %v11379 = vsel %vm280, %v10355, %v10962
      %v11380 = vsel %vm280, %v10356, %v10964
      %v11381 = vsel %vm1490, %v11349, %v11030
      %v11382 = vsel %vm1490, %v11350, %v11032
      %v11383 = vsel %vm1490, %v11351, %v11034
      %v11384 = vsel %vm1490, %v11352, %v11036
      %v11385 = vsel %vm1490, %v11353, %v11038
      %v11386 = vsel %vm1490, %v11354, %v11040
      %v11387 = vsel %vm1490, %v11355, %v11042
      %v11388 = vsel %vm1490, %v11356, %v11044
      %v11389 = vsel %vm1490, %v11357, %v11046
      %v11390 = vsel %vm1490, %v11358, %v11048
      %v11391 = vsel %vm1490, %v11359, %v11050
      %v11392 = vsel %vm1490, %v11360, %v11052
      %v11393 = vsel %vm1490, %v11361, %v11054
      %v11394 = vsel %vm1490, %v11362, %v11056
      %v11395 = vsel %vm1490, %v11363, %v11058
      %v11396 = vsel %vm1490, %v11364, %v11060
      %v11397 = vsel %vm1490, %v11365, %v11062
      %v11398 = vsel %vm1490, %v11366, %v11064
      %v11399 = vsel %vm1490, %v11367, %v11066
      %v11400 = vsel %vm1490, %v11368, %v11068
      %v11401 = vsel %vm1490, %v11369, %v11070
      %v11402 = vsel %vm1490, %v11370, %v11072
      %v11403 = vsel %vm1490, %v11371, %v11074
      %v11404 = vsel %vm1490, %v11372, %v11076
      %v11405 = vsel %vm1490, %v11373, %v11078
      %v11406 = vsel %vm1490, %v11374, %v11080
      %v11407 = vsel %vm1490, %v11375, %v11082
      %v11408 = vsel %vm1490, %v11376, %v11084
      %v11409 = vsel %vm1490, %v11377, %v11086
      %v11410 = vsel %vm1490, %v11378, %v11088
      %v11411 = vsel %vm1490, %v11379, %v11090
      %v11412 = vsel %vm1490, %v11380, %v11092
      %v11413 = vsel %vm1523, %v11381, %v11158
      %v11414 = vsel %vm1523, %v11382, %v11160
      %v11415 = vsel %vm1523, %v11383, %v11162
      %v11416 = vsel %vm1523, %v11384, %v11164
      %v11417 = vsel %vm1523, %v11385, %v11166
      %v11418 = vsel %vm1523, %v11386, %v11168
      %v11419 = vsel %vm1523, %v11387, %v11170
      %v11420 = vsel %vm1523, %v11388, %v11172
      %v11421 = vsel %vm1523, %v11389, %v11174
      %v11422 = vsel %vm1523, %v11390, %v11176
      %v11423 = vsel %vm1523, %v11391, %v11178
      %v11424 = vsel %vm1523, %v11392, %v11180
      %v11425 = vsel %vm1523, %v11393, %v11182
      %v11426 = vsel %vm1523, %v11394, %v11184
      %v11427 = vsel %vm1523, %v11395, %v11186
      %v11428 = vsel %vm1523, %v11396, %v11188
      %v11429 = vsel %vm1523, %v11397, %v11190
      %v11430 = vsel %vm1523, %v11398, %v11192
      %v11431 = vsel %vm1523, %v11399, %v11194
      %v11432 = vsel %vm1523, %v11400, %v11196
      %v11433 = vsel %vm1523, %v11401, %v11198
      %v11434 = vsel %vm1523, %v11402, %v11200
      %v11435 = vsel %vm1523, %v11403, %v11202
      %v11436 = vsel %vm1523, %v11404, %v11204
      %v11437 = vsel %vm1523, %v11405, %v11206
      %v11438 = vsel %vm1523, %v11406, %v11208
      %v11439 = vsel %vm1523, %v11407, %v11210
      %v11440 = vsel %vm1523, %v11408, %v11212
      %v11441 = vsel %vm1523, %v11409, %v11214
      %v11442 = vsel %vm1523, %v11410, %v11216
      %v11443 = vsel %vm1523, %v11411, %v11218
      %v11444 = vsel %vm1523, %v11412, %v11220
      %v11445 = vpack.c.bf16 %v11318, %v11317
      %v11446 = vpack.c.bf16 %v11414, %v11413
      %v11447 = vpack.c.bf16 %v10454, %v10453
      %v11448 = vpack.c.bf16 %v11320, %v11319
      %v11449 = vpack.c.bf16 %v11416, %v11415
      %v11450 = vpack.c.bf16 %v10456, %v10455
      %v11451 = vpack.c.bf16 %v11322, %v11321
      %v11452 = vpack.c.bf16 %v11418, %v11417
      %v11453 = vpack.c.bf16 %v10458, %v10457
      %v11454 = vpack.c.bf16 %v11324, %v11323
      %v11455 = vpack.c.bf16 %v11420, %v11419
      %v11456 = vpack.c.bf16 %v10460, %v10459
      %v11457 = vpack.c.bf16 %v11326, %v11325
      %v11458 = vpack.c.bf16 %v11422, %v11421
      %v11459 = vpack.c.bf16 %v10462, %v10461
      %v11460 = vpack.c.bf16 %v11328, %v11327
      %v11461 = vpack.c.bf16 %v11424, %v11423
      %v11462 = vpack.c.bf16 %v10464, %v10463
      %v11463 = vpack.c.bf16 %v11330, %v11329
      %v11464 = vpack.c.bf16 %v11426, %v11425
      %v11465 = vpack.c.bf16 %v10466, %v10465
      %v11466 = vpack.c.bf16 %v11332, %v11331
      %v11467 = vpack.c.bf16 %v11428, %v11427
      %v11468 = vpack.c.bf16 %v10468, %v10467
      %v11469 = vpack.c.bf16 %v11334, %v11333
      %v11470 = vpack.c.bf16 %v11430, %v11429
      %v11471 = vpack.c.bf16 %v10470, %v10469
      %v11472 = vpack.c.bf16 %v11336, %v11335
      %v11473 = vpack.c.bf16 %v11432, %v11431
      %v11474 = vpack.c.bf16 %v10472, %v10471
      %v11475 = vpack.c.bf16 %v11338, %v11337
      %v11476 = vpack.c.bf16 %v11434, %v11433
      %v11477 = vpack.c.bf16 %v10474, %v10473
      %v11478 = vpack.c.bf16 %v11340, %v11339
      %v11479 = vpack.c.bf16 %v11436, %v11435
      %v11480 = vpack.c.bf16 %v10476, %v10475
      %v11481 = vpack.c.bf16 %v11342, %v11341
      %v11482 = vpack.c.bf16 %v11438, %v11437
      %v11483 = vpack.c.bf16 %v10478, %v10477
      %v11484 = vpack.c.bf16 %v11344, %v11343
      %v11485 = vpack.c.bf16 %v11440, %v11439
      %v11486 = vpack.c.bf16 %v10480, %v10479
      %v11487 = vpack.c.bf16 %v11346, %v11345
      %v11488 = vpack.c.bf16 %v11442, %v11441
      %v11489 = vpack.c.bf16 %v10482, %v10481
      %v11490 = vpack.c.bf16 %v11348, %v11347
      %v11491 = vpack.c.bf16 %v11444, %v11443
      %v11492 = vpack.c.bf16 %v10484, %v10483
      %v11493 = vld [vmem:[%s6] sm:$0xf]
      %v11494 = vld [vmem:[%s6 + $0x4] sm:$0xf]
      %v11495 = vld [vmem:[%s6 + $0x8] sm:$0xf]
      %v11496 = vld [vmem:[%s6 + $0xc] sm:$0xf]
      %v11497 = vld [vmem:[%s6 + $0x10] sm:$0xf]
      %v11498 = vld [vmem:[%s6 + $0x14] sm:$0xf]
      %v11499 = vld [vmem:[%s6 + $0x18] sm:$0xf]
      %v11500 = vld [vmem:[%s6 + $0x1c] sm:$0xf]
      %v11501 = vld [vmem:[%s6 + $0x20] sm:$0xf]
      %v11502 = vld [vmem:[%s6 + $0x24] sm:$0xf]
      %v11503 = vld [vmem:[%s6 + $0x28] sm:$0xf]
      %v11504 = vld [vmem:[%s6 + $0x2c] sm:$0xf]
      %v11505 = vld [vmem:[%s6 + $0x30] sm:$0xf]
      %v11506 = vld [vmem:[%s6 + $0x34] sm:$0xf]
      %v11507 = vld [vmem:[%s6 + $0x38] sm:$0xf]
      %v11508 = vld [vmem:[%s6 + $0x3c] sm:$0xf]
      %v11509 = vld [vmem:[%s6 + $0x40] sm:$0xf]
      %v11510 = vld [vmem:[%s6 + $0x44] sm:$0xf]
      %v11511 = vld [vmem:[%s6 + $0x48] sm:$0xf]
      %v11512 = vld [vmem:[%s6 + $0x4c] sm:$0xf]
      %v11513 = vld [vmem:[%s6 + $0x50] sm:$0xf]
      %v11514 = vld [vmem:[%s6 + $0x54] sm:$0xf]
      %v11515 = vld [vmem:[%s6 + $0x58] sm:$0xf]
      %v11516 = vld [vmem:[%s6 + $0x5c] sm:$0xf]
      %v11517 = vld [vmem:[%s6 + $0x60] sm:$0xf]
      %v11518 = vld [vmem:[%s6 + $0x64] sm:$0xf]
      %v11519 = vld [vmem:[%s6 + $0x68] sm:$0xf]
      %v11520 = vld [vmem:[%s6 + $0x6c] sm:$0xf]
      %v11521 = vld [vmem:[%s6 + $0x70] sm:$0xf]
      %v11522 = vld [vmem:[%s6 + $0x74] sm:$0xf]
      %v11523 = vld [vmem:[%s6 + $0x78] sm:$0xf]
      %v11524 = vld [vmem:[%s6 + $0x7c] sm:$0xf]
      %v11525 = vld [vmem:[%s6 + $0x80] sm:$0xf]
      %v11526 = vld [vmem:[%s6 + $0x84] sm:$0xf]
      %v11527 = vld [vmem:[%s6 + $0x88] sm:$0xf]
      %v11528 = vld [vmem:[%s6 + $0x8c] sm:$0xf]
      %v11565 = vunpack.c.l.b16 %v11493
      %v11566 = vunpack.c.l.b16 %v11494
      %v11567 = vunpack.c.l.b16 %v11495
      %v11568 = vunpack.c.l.b16 %v11496
      %v11569 = vunpack.c.l.b16 %v11497
      %v11570 = vunpack.c.l.b16 %v11498
      %v11571 = vunpack.c.l.b16 %v11499
      %v11572 = vunpack.c.l.b16 %v11500
      %v11573 = vunpack.c.l.b16 %v11501
      %v11574 = vunpack.c.l.b16 %v11502
      %v11575 = vunpack.c.l.b16 %v11503
      %v11576 = vunpack.c.l.b16 %v11504
      %v11577 = vunpack.c.l.b16 %v11505
      %v11578 = vunpack.c.l.b16 %v11506
      %v11579 = vunpack.c.l.b16 %v11507
      %v11580 = vunpack.c.l.b16 %v11508
      %v11581 = vunpack.c.l.b16 %v11509
      %v11582 = vunpack.c.l.b16 %v11510
      %v11583 = vunpack.c.l.b16 %v11511
      %v11584 = vunpack.c.l.b16 %v11512
      %v11585 = vunpack.c.l.b16 %v11513
      %v11586 = vunpack.c.l.b16 %v11514
      %v11587 = vunpack.c.l.b16 %v11515
      %v11588 = vunpack.c.l.b16 %v11516
      %v11589 = vunpack.c.l.b16 %v11517
      %v11590 = vunpack.c.l.b16 %v11518
      %v11591 = vunpack.c.l.b16 %v11519
      %v11592 = vunpack.c.l.b16 %v11520
      %v11593 = vunpack.c.l.b16 %v11521
      %v11594 = vunpack.c.l.b16 %v11522
      %v11595 = vunpack.c.l.b16 %v11523
      %v11596 = vunpack.c.l.b16 %v11524
      %v11597 = vunpack.c.l.b16 %v11525
      %v11598 = vunpack.c.l.b16 %v11526
      %v11599 = vunpack.c.l.b16 %v11527
      %v11600 = vunpack.c.l.b16 %v11528
      %v11601 = vpack.c.b16 %v11566, %v11565
      %v11602 = vpack.c.b16 %v11568, %v11567
      %v11603 = vpack.c.b16 %v11570, %v11569
      %v11604 = vpack.c.b16 %v11572, %v11571
      %v11605 = vpack.c.b16 %v11574, %v11573
      %v11606 = vpack.c.b16 %v11576, %v11575
      %v11607 = vpack.c.b16 %v11578, %v11577
      %v11608 = vpack.c.b16 %v11580, %v11579
      %v11609 = vpack.c.b16 %v11582, %v11581
      %v11610 = vpack.c.b16 %v11584, %v11583
      %v11611 = vpack.c.b16 %v11586, %v11585
      %v11612 = vpack.c.b16 %v11588, %v11587
      %v11613 = vpack.c.b16 %v11590, %v11589
      %v11614 = vpack.c.b16 %v11592, %v11591
      %v11615 = vpack.c.b16 %v11594, %v11593
      %v11616 = vpack.c.b16 %v11596, %v11595
      %v11617 = vpack.c.b16 %v11598, %v11597
      %v11618 = vpack.c.b16 %v11600, %v11599
      %v11638 = vsel %vm280, %v11447, 0
      %v11641 = vsel %vm280, %v11450, 0
      %v11644 = vsel %vm280, %v11453, 0
      %v11647 = vsel %vm280, %v11456, 0
      %v11650 = vsel %vm280, %v11459, 0
      %v11653 = vsel %vm280, %v11462, 0
      %v11656 = vsel %vm280, %v11465, 0
      %v11659 = vsel %vm280, %v11468, 0
      %v11662 = vsel %vm280, %v11471, 0
      %v11665 = vsel %vm280, %v11474, 0
      %v11668 = vsel %vm280, %v11477, 0
      %v11671 = vsel %vm280, %v11480, 0
      %v11674 = vsel %vm280, %v11483, 0
      %v11677 = vsel %vm280, %v11486, 0
      %v11680 = vsel %vm280, %v11489, 0
      %v11683 = vsel %vm280, %v11492, 0
      %11685 = vmatprep.subr.bf16.mxu0 0
      %11686 = vmatpush1.bf16.msra.mxu0 %v11601
      %11687 = vmatprep.subr.bf16.mxu0 0
      %11688 = vmatpush1.bf16.msra.mxu0 %v11602
      %11689 = vmatprep.subr.bf16.mxu0 0
      %11690 = vmatpush1.bf16.msra.mxu0 %v11603
      %11691 = vmatprep.subr.bf16.mxu0 0
      %11692 = vmatpush1.bf16.msra.mxu0 %v11604
      %11693 = vmatprep.subr.bf16.mxu0 0
      %11694 = vmatpush1.bf16.msra.mxu0 %v11605
      %11695 = vmatprep.subr.bf16.mxu0 0
      %11696 = vmatpush1.bf16.msra.mxu0 %v11606
      %11697 = vmatprep.subr.bf16.mxu0 0
      %11698 = vmatpush1.bf16.msra.mxu0 %v11607
      %11699 = vmatprep.subr.bf16.mxu0 0
      %11700 = vmatpush1.bf16.msra.mxu0 %v11608
      %11701 = vmatprep.subr.bf16.mxu0 0
      %11702 = vmatpush1.bf16.msra.mxu0 %v11609
      %11703 = vmatprep.subr.bf16.mxu0 0
      %11704 = vmatpush1.bf16.msra.mxu0 %v11610
      %11705 = vmatprep.subr.bf16.mxu0 0
      %11706 = vmatpush1.bf16.msra.mxu0 %v11611
      %11707 = vmatprep.subr.bf16.mxu0 0
      %11708 = vmatpush1.bf16.msra.mxu0 %v11612
      %11709 = vmatprep.subr.bf16.mxu0 0
      %11710 = vmatpush1.bf16.msra.mxu0 %v11613
      %11711 = vmatprep.subr.bf16.mxu0 0
      %11712 = vmatpush1.bf16.msra.mxu0 %v11614
      %11713 = vmatprep.subr.bf16.mxu0 0
      %11714 = vmatpush1.bf16.msra.mxu0 %v11615
      %11715 = vmatprep.subr.bf16.mxu0 0
      %11716 = vmatpush1.bf16.msra.mxu0 %v11616
      %11717 = vmatprep.mubr.bf16.mxu0 %v11446
      %11718 = vmatmul.mubr.bf16.gmra.mrb[0].mxu0 %v11445
      %v11719 = vpop.f32.mrb[0].mxu0
      %v11720 = vadd.f32 0.0, %v11719
      %v11721 = vpop.f32.mrb[0].mxu0
      %v11722 = vpop.f32.mrb[0].mxu0
      %v11723 = vadd.f32 0.0, %v11722
      %v11724 = vpop.f32.mrb[0].mxu0
      %11725 = vmatprep.mubr.bf16.mxu0 %v11449
      %11726 = vmatmul.mubr.bf16.gmra.mrb[0].mxu0 %v11448
      %v11727 = vpop.f32.mrb[0].mxu0
      %v11728 = vadd.f32 0.0, %v11727
      %v11729 = vpop.f32.mrb[0].mxu0
      %v11730 = vpop.f32.mrb[0].mxu0
      %v11731 = vadd.f32 0.0, %v11730
      %v11732 = vpop.f32.mrb[0].mxu0
      %11733 = vmatprep.mubr.bf16.mxu0 %v11452
      %11734 = vmatmul.mubr.bf16.gmra.mrb[0].mxu0 %v11451
      %v11735 = vpop.f32.mrb[0].mxu0
      %v11736 = vadd.f32 0.0, %v11735
      %v11737 = vpop.f32.mrb[0].mxu0
      %v11738 = vpop.f32.mrb[0].mxu0
      %v11739 = vadd.f32 0.0, %v11738
      %v11740 = vpop.f32.mrb[0].mxu0
      %11741 = vmatprep.mubr.bf16.mxu0 %v11455
      %11742 = vmatmul.mubr.bf16.gmra.mrb[0].mxu0 %v11454
      %v11743 = vpop.f32.mrb[0].mxu0
      %v11744 = vadd.f32 0.0, %v11743
      %v11745 = vpop.f32.mrb[0].mxu0
      %v11746 = vpop.f32.mrb[0].mxu0
      %v11747 = vadd.f32 0.0, %v11746
      %v11748 = vpop.f32.mrb[0].mxu0
      %11749 = vmatprep.mubr.bf16.mxu0 %v11458
      %11750 = vmatmul.mubr.bf16.gmra.mrb[0].mxu0 %v11457
      %v11751 = vpop.f32.mrb[0].mxu0
      %v11752 = vadd.f32 0.0, %v11751
      %v11753 = vpop.f32.mrb[0].mxu0
      %v11754 = vpop.f32.mrb[0].mxu0
      %v11755 = vadd.f32 0.0, %v11754
      %v11756 = vpop.f32.mrb[0].mxu0
      %11757 = vmatprep.mubr.bf16.mxu0 %v11461
      %11758 = vmatmul.mubr.bf16.gmra.mrb[0].mxu0 %v11460
      %v11759 = vpop.f32.mrb[0].mxu0
      %v11760 = vadd.f32 0.0, %v11759
      %v11761 = vpop.f32.mrb[0].mxu0
      %v11762 = vpop.f32.mrb[0].mxu0
      %v11763 = vadd.f32 0.0, %v11762
      %v11764 = vpop.f32.mrb[0].mxu0
      %11765 = vmatprep.mubr.bf16.mxu0 %v11464
      %11766 = vmatmul.mubr.bf16.gmra.mrb[0].mxu0 %v11463
      %v11767 = vpop.f32.mrb[0].mxu0
      %v11768 = vadd.f32 0.0, %v11767
      %v11769 = vpop.f32.mrb[0].mxu0
      %v11770 = vpop.f32.mrb[0].mxu0
      %v11771 = vadd.f32 0.0, %v11770
      %v11772 = vpop.f32.mrb[0].mxu0
      %11773 = vmatprep.mubr.bf16.mxu0 %v11467
      %11774 = vmatmul.mubr.bf16.gmra.mrb[0].mxu0 %v11466
      %v11775 = vpop.f32.mrb[0].mxu0
      %v11776 = vadd.f32 0.0, %v11775
      %v11777 = vpop.f32.mrb[0].mxu0
      %v11778 = vpop.f32.mrb[0].mxu0
      %v11779 = vadd.f32 0.0, %v11778
      %v11780 = vpop.f32.mrb[0].mxu0
      %11781 = vmatprep.mubr.bf16.mxu0 %v11470
      %11782 = vmatmul.mubr.bf16.gmra.mrb[0].mxu0 %v11469
      %v11783 = vpop.f32.mrb[0].mxu0
      %v11784 = vadd.f32 0.0, %v11783
      %v11785 = vpop.f32.mrb[0].mxu0
      %v11786 = vpop.f32.mrb[0].mxu0
      %v11787 = vadd.f32 0.0, %v11786
      %v11788 = vpop.f32.mrb[0].mxu0
      %11789 = vmatprep.mubr.bf16.mxu0 %v11473
      %11790 = vmatmul.mubr.bf16.gmra.mrb[0].mxu0 %v11472
      %v11791 = vpop.f32.mrb[0].mxu0
      %v11792 = vadd.f32 0.0, %v11791
      %v11793 = vpop.f32.mrb[0].mxu0
      %v11794 = vpop.f32.mrb[0].mxu0
      %v11795 = vadd.f32 0.0, %v11794
      %v11796 = vpop.f32.mrb[0].mxu0
      %11797 = vmatprep.mubr.bf16.mxu0 %v11476
      %11798 = vmatmul.mubr.bf16.gmra.mrb[0].mxu0 %v11475
      %v11799 = vpop.f32.mrb[0].mxu0
      %v11800 = vadd.f32 0.0, %v11799
      %v11801 = vpop.f32.mrb[0].mxu0
      %v11802 = vpop.f32.mrb[0].mxu0
      %v11803 = vadd.f32 0.0, %v11802
      %v11804 = vpop.f32.mrb[0].mxu0
      %11805 = vmatprep.mubr.bf16.mxu0 %v11479
      %11806 = vmatmul.mubr.bf16.gmra.mrb[0].mxu0 %v11478
      %v11807 = vpop.f32.mrb[0].mxu0
      %v11808 = vadd.f32 0.0, %v11807
      %v11809 = vpop.f32.mrb[0].mxu0
      %v11810 = vpop.f32.mrb[0].mxu0
      %v11811 = vadd.f32 0.0, %v11810
      %v11812 = vpop.f32.mrb[0].mxu0
      %11813 = vmatprep.mubr.bf16.mxu0 %v11482
      %11814 = vmatmul.mubr.bf16.gmra.mrb[0].mxu0 %v11481
      %v11815 = vpop.f32.mrb[0].mxu0
      %v11816 = vadd.f32 0.0, %v11815
      %v11817 = vpop.f32.mrb[0].mxu0
      %v11818 = vpop.f32.mrb[0].mxu0
      %v11819 = vadd.f32 0.0, %v11818
      %v11820 = vpop.f32.mrb[0].mxu0
      %11821 = vmatprep.mubr.bf16.mxu0 %v11485
      %11822 = vmatmul.mubr.bf16.gmra.mrb[0].mxu0 %v11484
      %v11823 = vpop.f32.mrb[0].mxu0
      %v11824 = vadd.f32 0.0, %v11823
      %v11825 = vpop.f32.mrb[0].mxu0
      %v11826 = vpop.f32.mrb[0].mxu0
      %v11827 = vadd.f32 0.0, %v11826
      %v11828 = vpop.f32.mrb[0].mxu0
      %11829 = vmatprep.mubr.bf16.mxu0 %v11488
      %11830 = vmatmul.mubr.bf16.gmra.mrb[0].mxu0 %v11487
      %v11831 = vpop.f32.mrb[0].mxu0
      %v11832 = vadd.f32 0.0, %v11831
      %v11833 = vpop.f32.mrb[0].mxu0
      %v11834 = vpop.f32.mrb[0].mxu0
      %v11835 = vadd.f32 0.0, %v11834
      %v11836 = vpop.f32.mrb[0].mxu0
      %11837 = vmatprep.mubr.bf16.mxu0 %v11491
      %11838 = vmatmul.mubr.bf16.gmra.mrb[0].mxu0 %v11490
      %v11839 = vpop.f32.mrb[0].mxu0
      %v11840 = vadd.f32 0.0, %v11839
      %v11841 = vpop.f32.mrb[0].mxu0
      %v11842 = vpop.f32.mrb[0].mxu0
      %v11843 = vadd.f32 0.0, %v11842
      %v11844 = vpop.f32.mrb[0].mxu0
      %11845 = vdwg.mxu0
      %11846 = vmatprep.subr.bf16.mxu0 0
      %11847 = vmatpush1.bf16.msra.mxu0 %v11617
      %11848 = vmatprep.subr.bf16.mxu0 0
      %11849 = vmatpush1.bf16.msra.mxu0 %v11618
      %11850 = vmatprep.subr.bf16.mxu0 0
      %11851 = vmatpush1.bf16.msra.mxu0 0
      %11852 = vmatprep.subr.bf16.mxu0 0
      %11853 = vmatpush1.bf16.msra.mxu0 0
      %11854 = vmatprep.subr.bf16.mxu0 0
      %11855 = vmatpush1.bf16.msra.mxu0 0
      %11856 = vmatprep.subr.bf16.mxu0 0
      %11857 = vmatpush1.bf16.msra.mxu0 0
      %11858 = vmatprep.subr.bf16.mxu0 0
      %11859 = vmatpush1.bf16.msra.mxu0 0
      %11860 = vmatprep.subr.bf16.mxu0 0
      %11861 = vmatpush1.bf16.msra.mxu0 0
      %11862 = vmatprep.subr.bf16.mxu0 0
      %11863 = vmatpush1.bf16.msra.mxu0 0
      %11864 = vmatprep.subr.bf16.mxu0 0
      %11865 = vmatpush1.bf16.msra.mxu0 0
      %11866 = vmatprep.subr.bf16.mxu0 0
      %11867 = vmatpush1.bf16.msra.mxu0 0
      %11868 = vmatprep.subr.bf16.mxu0 0
      %11869 = vmatpush1.bf16.msra.mxu0 0
      %11870 = vmatprep.subr.bf16.mxu0 0
      %11871 = vmatpush1.bf16.msra.mxu0 0
      %11872 = vmatprep.subr.bf16.mxu0 0
      %11873 = vmatpush1.bf16.msra.mxu0 0
      %11874 = vmatprep.subr.bf16.mxu0 0
      %11875 = vmatpush1.bf16.msra.mxu0 0
      %11876 = vmatprep.subr.bf16.mxu0 0
      %11877 = vmatpush1.bf16.msra.mxu0 0
      %11878 = vmatprep.mubr.bf16.mxu0 0
      %11879 = vmatmul.mubr.bf16.gmra.mrb[0].mxu0 %v11638
      %v11880 = vpop.f32.mrb[0].mxu0
      %v11881 = vadd.f32 %v11720, %v11880
      %v11882 = vpop.f32.mrb[0].mxu0
      %v11883 = vpop.f32.mrb[0].mxu0
      %v11884 = vadd.f32 %v11723, %v11883
      %v11885 = vpop.f32.mrb[0].mxu0
      %11886 = vmatprep.mubr.bf16.mxu0 0
      %11887 = vmatmul.mubr.bf16.gmra.mrb[0].mxu0 %v11641
      %v11888 = vpop.f32.mrb[0].mxu0
      %v11889 = vadd.f32 %v11728, %v11888
      %v11890 = vpop.f32.mrb[0].mxu0
      %v11891 = vpop.f32.mrb[0].mxu0
      %v11892 = vadd.f32 %v11731, %v11891
      %v11893 = vpop.f32.mrb[0].mxu0
      %11894 = vmatprep.mubr.bf16.mxu0 0
      %11895 = vmatmul.mubr.bf16.gmra.mrb[0].mxu0 %v11644
      %v11896 = vpop.f32.mrb[0].mxu0
      %v11897 = vadd.f32 %v11736, %v11896
      %v11898 = vpop.f32.mrb[0].mxu0
      %v11899 = vpop.f32.mrb[0].mxu0
      %v11900 = vadd.f32 %v11739, %v11899
      %v11901 = vpop.f32.mrb[0].mxu0
      %11902 = vmatprep.mubr.bf16.mxu0 0
      %11903 = vmatmul.mubr.bf16.gmra.mrb[0].mxu0 %v11647
      %v11904 = vpop.f32.mrb[0].mxu0
      %v11905 = vadd.f32 %v11744, %v11904
      %v11906 = vpop.f32.mrb[0].mxu0
      %v11907 = vpop.f32.mrb[0].mxu0
      %v11908 = vadd.f32 %v11747, %v11907
      %v11909 = vpop.f32.mrb[0].mxu0
      %11910 = vmatprep.mubr.bf16.mxu0 0
      %11911 = vmatmul.mubr.bf16.gmra.mrb[0].mxu0 %v11650
      %v11912 = vpop.f32.mrb[0].mxu0
      %v11913 = vadd.f32 %v11752, %v11912
      %v11914 = vpop.f32.mrb[0].mxu0
      %v11915 = vpop.f32.mrb[0].mxu0
      %v11916 = vadd.f32 %v11755, %v11915
      %v11917 = vpop.f32.mrb[0].mxu0
      %11918 = vmatprep.mubr.bf16.mxu0 0
      %11919 = vmatmul.mubr.bf16.gmra.mrb[0].mxu0 %v11653
      %v11920 = vpop.f32.mrb[0].mxu0
      %v11921 = vadd.f32 %v11760, %v11920
      %v11922 = vpop.f32.mrb[0].mxu0
      %v11923 = vpop.f32.mrb[0].mxu0
      %v11924 = vadd.f32 %v11763, %v11923
      %v11925 = vpop.f32.mrb[0].mxu0
      %11926 = vmatprep.mubr.bf16.mxu0 0
      %11927 = vmatmul.mubr.bf16.gmra.mrb[0].mxu0 %v11656
      %v11928 = vpop.f32.mrb[0].mxu0
      %v11929 = vadd.f32 %v11768, %v11928
      %v11930 = vpop.f32.mrb[0].mxu0
      %v11931 = vpop.f32.mrb[0].mxu0
      %v11932 = vadd.f32 %v11771, %v11931
      %v11933 = vpop.f32.mrb[0].mxu0
      %11934 = vmatprep.mubr.bf16.mxu0 0
      %11935 = vmatmul.mubr.bf16.gmra.mrb[0].mxu0 %v11659
      %v11936 = vpop.f32.mrb[0].mxu0
      %v11937 = vadd.f32 %v11776, %v11936
      %v11938 = vpop.f32.mrb[0].mxu0
      %v11939 = vpop.f32.mrb[0].mxu0
      %v11940 = vadd.f32 %v11779, %v11939
      %v11941 = vpop.f32.mrb[0].mxu0
      %11942 = vmatprep.mubr.bf16.mxu0 0
      %11943 = vmatmul.mubr.bf16.gmra.mrb[0].mxu0 %v11662
      %v11944 = vpop.f32.mrb[0].mxu0
      %v11945 = vadd.f32 %v11784, %v11944
      %v11946 = vpop.f32.mrb[0].mxu0
      %v11947 = vpop.f32.mrb[0].mxu0
      %v11948 = vadd.f32 %v11787, %v11947
      %v11949 = vpop.f32.mrb[0].mxu0
      %11950 = vmatprep.mubr.bf16.mxu0 0
      %11951 = vmatmul.mubr.bf16.gmra.mrb[0].mxu0 %v11665
      %v11952 = vpop.f32.mrb[0].mxu0
      %v11953 = vadd.f32 %v11792, %v11952
      %v11954 = vpop.f32.mrb[0].mxu0
      %v11955 = vpop.f32.mrb[0].mxu0
      %v11956 = vadd.f32 %v11795, %v11955
      %v11957 = vpop.f32.mrb[0].mxu0
      %11958 = vmatprep.mubr.bf16.mxu0 0
      %11959 = vmatmul.mubr.bf16.gmra.mrb[0].mxu0 %v11668
      %v11960 = vpop.f32.mrb[0].mxu0
      %v11961 = vadd.f32 %v11800, %v11960
      %v11962 = vpop.f32.mrb[0].mxu0
      %v11963 = vpop.f32.mrb[0].mxu0
      %v11964 = vadd.f32 %v11803, %v11963
      %v11965 = vpop.f32.mrb[0].mxu0
      %11966 = vmatprep.mubr.bf16.mxu0 0
      %11967 = vmatmul.mubr.bf16.gmra.mrb[0].mxu0 %v11671
      %v11968 = vpop.f32.mrb[0].mxu0
      %v11969 = vadd.f32 %v11808, %v11968
      %v11970 = vpop.f32.mrb[0].mxu0
      %v11971 = vpop.f32.mrb[0].mxu0
      %v11972 = vadd.f32 %v11811, %v11971
      %v11973 = vpop.f32.mrb[0].mxu0
      %11974 = vmatprep.mubr.bf16.mxu0 0
      %11975 = vmatmul.mubr.bf16.gmra.mrb[0].mxu0 %v11674
      %v11976 = vpop.f32.mrb[0].mxu0
      %v11977 = vadd.f32 %v11816, %v11976
      %v11978 = vpop.f32.mrb[0].mxu0
      %v11979 = vpop.f32.mrb[0].mxu0
      %v11980 = vadd.f32 %v11819, %v11979
      %v11981 = vpop.f32.mrb[0].mxu0
      %11982 = vmatprep.mubr.bf16.mxu0 0
      %11983 = vmatmul.mubr.bf16.gmra.mrb[0].mxu0 %v11677
      %v11984 = vpop.f32.mrb[0].mxu0
      %v11985 = vadd.f32 %v11824, %v11984
      %v11986 = vpop.f32.mrb[0].mxu0
      %v11987 = vpop.f32.mrb[0].mxu0
      %v11988 = vadd.f32 %v11827, %v11987
      %v11989 = vpop.f32.mrb[0].mxu0
      %11990 = vmatprep.mubr.bf16.mxu0 0
      %11991 = vmatmul.mubr.bf16.gmra.mrb[0].mxu0 %v11680
      %v11992 = vpop.f32.mrb[0].mxu0
      %v11993 = vadd.f32 %v11832, %v11992
      %v11994 = vpop.f32.mrb[0].mxu0
      %v11995 = vpop.f32.mrb[0].mxu0
      %v11996 = vadd.f32 %v11835, %v11995
      %v11997 = vpop.f32.mrb[0].mxu0
      %11998 = vmatprep.mubr.bf16.mxu0 0
      %11999 = vmatmul.mubr.bf16.gmra.mrb[0].mxu0 %v11683
      %v12000 = vpop.f32.mrb[0].mxu0
      %v12001 = vadd.f32 %v11840, %v12000
      %v12002 = vpop.f32.mrb[0].mxu0
      %v12003 = vpop.f32.mrb[0].mxu0
      %v12004 = vadd.f32 %v11843, %v12003
      %v12005 = vpop.f32.mrb[0].mxu0
      %12006 = vdwg.mxu0
      %vm12007 = vcmp.gt.f32.partialorder %v11881, 0.0
      %vm12008 = vcmp.gt.f32.partialorder %v11884, 0.0
      %vm12009 = vcmp.gt.f32.partialorder %v11889, 0.0
      %vm12010 = vcmp.gt.f32.partialorder %v11892, 0.0
      %vm12011 = vcmp.gt.f32.partialorder %v11897, 0.0
      %vm12012 = vcmp.gt.f32.partialorder %v11900, 0.0
      %vm12013 = vcmp.gt.f32.partialorder %v11905, 0.0
      %vm12014 = vcmp.gt.f32.partialorder %v11908, 0.0
      %vm12015 = vcmp.gt.f32.partialorder %v11913, 0.0
      %vm12016 = vcmp.gt.f32.partialorder %v11916, 0.0
      %vm12017 = vcmp.gt.f32.partialorder %v11921, 0.0
      %vm12018 = vcmp.gt.f32.partialorder %v11924, 0.0
      %vm12019 = vcmp.gt.f32.partialorder %v11929, 0.0
      %vm12020 = vcmp.gt.f32.partialorder %v11932, 0.0
      %vm12021 = vcmp.gt.f32.partialorder %v11937, 0.0
      %vm12022 = vcmp.gt.f32.partialorder %v11940, 0.0
      %vm12023 = vcmp.gt.f32.partialorder %v11945, 0.0
      %vm12024 = vcmp.gt.f32.partialorder %v11948, 0.0
      %vm12025 = vcmp.gt.f32.partialorder %v11953, 0.0
      %vm12026 = vcmp.gt.f32.partialorder %v11956, 0.0
      %vm12027 = vcmp.gt.f32.partialorder %v11961, 0.0
      %vm12028 = vcmp.gt.f32.partialorder %v11964, 0.0
      %vm12029 = vcmp.gt.f32.partialorder %v11969, 0.0
      %vm12030 = vcmp.gt.f32.partialorder %v11972, 0.0
      %vm12031 = vcmp.gt.f32.partialorder %v11977, 0.0
      %vm12032 = vcmp.gt.f32.partialorder %v11980, 0.0
      %vm12033 = vcmp.gt.f32.partialorder %v11985, 0.0
      %vm12034 = vcmp.gt.f32.partialorder %v11988, 0.0
      %vm12035 = vcmp.gt.f32.partialorder %v11993, 0.0
      %vm12036 = vcmp.gt.f32.partialorder %v11996, 0.0
      %vm12037 = vcmp.gt.f32.partialorder %v12001, 0.0
      %vm12038 = vcmp.gt.f32.partialorder %v12004, 0.0
      %v12039 = vmul.f32 %v11881, 0.1
      %v12040 = vmul.f32 %v11884, 0.1
      %v12041 = vmul.f32 %v11889, 0.1
      %v12042 = vmul.f32 %v11892, 0.1
      %v12043 = vmul.f32 %v11897, 0.1
      %v12044 = vmul.f32 %v11900, 0.1
      %v12045 = vmul.f32 %v11905, 0.1
      %v12046 = vmul.f32 %v11908, 0.1
      %v12047 = vmul.f32 %v11913, 0.1
      %v12048 = vmul.f32 %v11916, 0.1
      %v12049 = vmul.f32 %v11921, 0.1
      %v12050 = vmul.f32 %v11924, 0.1
      %v12051 = vmul.f32 %v11929, 0.1
      %v12052 = vmul.f32 %v11932, 0.1
      %v12053 = vmul.f32 %v11937, 0.1
      %v12054 = vmul.f32 %v11940, 0.1
      %v12055 = vmul.f32 %v11945, 0.1
      %v12056 = vmul.f32 %v11948, 0.1
      %v12057 = vmul.f32 %v11953, 0.1
      %v12058 = vmul.f32 %v11956, 0.1
      %v12059 = vmul.f32 %v11961, 0.1
      %v12060 = vmul.f32 %v11964, 0.1
      %v12061 = vmul.f32 %v11969, 0.1
      %v12062 = vmul.f32 %v11972, 0.1
      %v12063 = vmul.f32 %v11977, 0.1
      %v12064 = vmul.f32 %v11980, 0.1
      %v12065 = vmul.f32 %v11985, 0.1
      %v12066 = vmul.f32 %v11988, 0.1
      %v12067 = vmul.f32 %v11993, 0.1
      %v12068 = vmul.f32 %v11996, 0.1
      %v12069 = vmul.f32 %v12001, 0.1
      %v12070 = vmul.f32 %v12004, 0.1
      %v12071 = vsel %vm12007, %v11881, %v12039
      %v12072 = vsel %vm12008, %v11884, %v12040
      %v12073 = vsel %vm12009, %v11889, %v12041
      %v12074 = vsel %vm12010, %v11892, %v12042
      %v12075 = vsel %vm12011, %v11897, %v12043
      %v12076 = vsel %vm12012, %v11900, %v12044
      %v12077 = vsel %vm12013, %v11905, %v12045
      %v12078 = vsel %vm12014, %v11908, %v12046
      %v12079 = vsel %vm12015, %v11913, %v12047
      %v12080 = vsel %vm12016, %v11916, %v12048
      %v12081 = vsel %vm12017, %v11921, %v12049
      %v12082 = vsel %vm12018, %v11924, %v12050
      %v12083 = vsel %vm12019, %v11929, %v12051
      %v12084 = vsel %vm12020, %v11932, %v12052
      %v12085 = vsel %vm12021, %v11937, %v12053
      %v12086 = vsel %vm12022, %v11940, %v12054
      %v12087 = vsel %vm12023, %v11945, %v12055
      %v12088 = vsel %vm12024, %v11948, %v12056
      %v12089 = vsel %vm12025, %v11953, %v12057
      %v12090 = vsel %vm12026, %v11956, %v12058
      %v12091 = vsel %vm12027, %v11961, %v12059
      %v12092 = vsel %vm12028, %v11964, %v12060
      %v12093 = vsel %vm12029, %v11969, %v12061
      %v12094 = vsel %vm12030, %v11972, %v12062
      %v12095 = vsel %vm12031, %v11977, %v12063
      %v12096 = vsel %vm12032, %v11980, %v12064
      %v12097 = vsel %vm12033, %v11985, %v12065
      %v12098 = vsel %vm12034, %v11988, %v12066
      %v12099 = vsel %vm12035, %v11993, %v12067
      %v12100 = vsel %vm12036, %v11996, %v12068
      %v12101 = vsel %vm12037, %v12001, %v12069
      %v12102 = vsel %vm12038, %v12004, %v12070
      %vm12103 = vcmask 97280
      %12104 = vst.msk [vmem:[%s278] sm:$0xff] %vm12103, %v12071
      %12105 = vst.msk [vmem:[%s278 + $0x8] sm:$0xff] %vm12103, %v12072
      %12106 = vst.msk [vmem:[%s278 + $0x10] sm:$0xff] %vm12103, %v12073
      %12107 = vst.msk [vmem:[%s278 + $0x18] sm:$0xff] %vm12103, %v12074
      %12108 = vst.msk [vmem:[%s278 + $0x20] sm:$0xff] %vm12103, %v12075
      %12109 = vst.msk [vmem:[%s278 + $0x28] sm:$0xff] %vm12103, %v12076
      %12110 = vst.msk [vmem:[%s278 + $0x30] sm:$0xff] %vm12103, %v12077
      %12111 = vst.msk [vmem:[%s278 + $0x38] sm:$0xff] %vm12103, %v12078
      %12112 = vst.msk [vmem:[%s278 + $0x40] sm:$0xff] %vm12103, %v12079
      %12113 = vst.msk [vmem:[%s278 + $0x48] sm:$0xff] %vm12103, %v12080
      %12114 = vst.msk [vmem:[%s278 + $0x50] sm:$0xff] %vm12103, %v12081
      %12115 = vst.msk [vmem:[%s278 + $0x58] sm:$0xff] %vm12103, %v12082
      %12116 = vst.msk [vmem:[%s278 + $0x60] sm:$0xff] %vm12103, %v12083
      %12117 = vst.msk [vmem:[%s278 + $0x68] sm:$0xff] %vm12103, %v12084
      %12118 = vst.msk [vmem:[%s278 + $0x70] sm:$0xff] %vm12103, %v12085
      %12119 = vst.msk [vmem:[%s278 + $0x78] sm:$0xff] %vm12103, %v12086
      %12120 = vst.msk [vmem:[%s278 + $0x80] sm:$0xff] %vm12103, %v12087
      %12121 = vst.msk [vmem:[%s278 + $0x88] sm:$0xff] %vm12103, %v12088
      %12122 = vst.msk [vmem:[%s278 + $0x90] sm:$0xff] %vm12103, %v12089
      %12123 = vst.msk [vmem:[%s278 + $0x98] sm:$0xff] %vm12103, %v12090
      %12124 = vst.msk [vmem:[%s278 + $0xa0] sm:$0xff] %vm12103, %v12091
      %12125 = vst.msk [vmem:[%s278 + $0xa8] sm:$0xff] %vm12103, %v12092
      %12126 = vst.msk [vmem:[%s278 + $0xb0] sm:$0xff] %vm12103, %v12093
      %12127 = vst.msk [vmem:[%s278 + $0xb8] sm:$0xff] %vm12103, %v12094
      %12128 = vst.msk [vmem:[%s278 + $0xc0] sm:$0xff] %vm12103, %v12095
      %12129 = vst.msk [vmem:[%s278 + $0xc8] sm:$0xff] %vm12103, %v12096
      %12130 = vst.msk [vmem:[%s278 + $0xd0] sm:$0xff] %vm12103, %v12097
      %12131 = vst.msk [vmem:[%s278 + $0xd8] sm:$0xff] %vm12103, %v12098
      %12132 = vst.msk [vmem:[%s278 + $0xe0] sm:$0xff] %vm12103, %v12099
      %12133 = vst.msk [vmem:[%s278 + $0xe8] sm:$0xff] %vm12103, %v12100
      %12134 = vst.msk [vmem:[%s278 + $0xf0] sm:$0xff] %vm12103, %v12101
      %12135 = vst.msk [vmem:[%s278 + $0xf8] sm:$0xff] %vm12103, %v12102
      %p12136 = scmp.lt.s32.totalorder %s18, 1
      %s12137 = scalar_select %p12136, %s18, 1
      %s12138 = smul.addr %s12137, 32
      %s12139 = smul.addr %s12138, 8
      %s12140 = scalar_lea.vmem %s7, %s12139
      // Predicated region
      $region49: #{sol_forward.1} parent=47 // pred_check
        %p12141 = pneg %p188
      $region50: #{sol_forward.1} parent=47 // pred_check_branch
        %12143 = sbr.rel (%p12141) target = $region52
      $region51: #{sol_forward.1} parent=47 // pred_region
        _
      $region52: #{sol_forward.1} parent=47 // pred_fallthru
        _
    $region48: #{sol_forward.1} parent=5 // pred_fallthru
      _
    %p12144 = scmp.le.s32.totalorder 2, %s13
    // Predicated region
    $region53: #{sol_forward.1} parent=5 // pred_check
      %p12145 = pneg %p12144
    $region54: #{sol_forward.1} parent=5 // pred_check_branch
      %12147 = sbr.rel (%p12145) target = $region56
    $region55: #{sol_forward.1} parent=5 // pred_region
      %s12148 = ssub.s32 %s13, 2
      // Predicated region
      $region57: #{sol_forward.1} parent=55 // pred_check
        %p12149 = pneg %p194
      $region58: #{sol_forward.1} parent=55 // pred_check_branch
        %12151 = sbr.rel (%p12149) target = $region60
      $region59: #{sol_forward.1} parent=55 // pred_region
        %p12152 = scmp.lt.s32.totalorder %s19, 1
        %s12153 = scalar_select %p12152, %s19, 1
        %s12154 = smul.addr %s12153, 32
        %s12155 = smul.addr %s12154, 8
        %s12156 = scalar_lea.vmem %s7, %s12155
      $region60: #{sol_forward.1} parent=55 // pred_fallthru
        _
    $region56: #{sol_forward.1} parent=5 // pred_fallthru
      _
  $region6: #{sol_forward.1} parent=0 // loop_footer
    %s17 = sadd.s32 1, %s13
  $region7: #{sol_forward.1} parent=0 // loop_footer_branch
    %12 = sbr.rel target = $region3
  $region8: #{sol_forward.1} parent=0 // loop_exit
    _

</llo_original>
